<compile_context>
chip_gen: v7x
topology: tpu7x:2x2x1
jax: 0.10.0
libtpu: 0.0.40
codegen_flags: <defaults>
</compile_context>

<pallas_src>
import functools

import jax
import jax.numpy as jnp
from jax.experimental import pallas as pl
from jax.experimental.pallas import tpu as pltpu

n_wires = 3606

_MIB = 1024 * 1024
_DEC_SLAB = 512          # max lane width of the f32 decoder staging slab


def _vae_fwd_kernel(x_ref, we_ref, wd_ref, o_ref, *, dec_slab):
    # x_ref:  (1, C, TL)  one batch element, one L-tile (NCW slab, contiguous)
    # we_ref: (E, C)      encoder Conv1d weight (kernel dim squeezed), resident
    # wd_ref: (C, E)      decoder Conv1d weight (kernel dim squeezed), resident
    # o_ref:  (1, C, TL)
    x = x_ref[0]                                             # (C, TL)
    # Encoder: (E, C) @ (C, TL) -> (E, TL), f32 accumulation on the MXU;
    # tanh stays in f32 (v5e has no bf16 EUP).
    z = jnp.tanh(
        jnp.dot(we_ref[...], x.astype(we_ref.dtype),
                preferred_element_type=jnp.float32))
    # Decoder, streamed in <=dec_slab-wide column slabs so the f32 result is
    # never a full (C, TL) VMEM temp; each slab is cast and stored directly.
    tl = x.shape[-1]                                         # static
    for lo in range(0, tl, dec_slab):
        w = min(dec_slab, tl - lo)
        zs = z[:, lo:lo + w].astype(wd_ref.dtype)            # (E, w)
        ys = jnp.dot(wd_ref[...], zs,
                     preferred_element_type=jnp.float32)     # (C, w)
        o_ref[0, :, lo:lo + w] = ys.astype(o_ref.dtype)


def _pick_vmem_limit():
    """Generation-aware scoped-VMEM limit (~78% of physical, capped at 100 MiB)."""
    cap = None
    try:
        cap = getattr(pltpu.get_tpu_info(), "vmem_capacity_bytes", None)
    except Exception:
        cap = None
    if not cap or cap <= 0:
        cap = 64 * _MIB          # conservative fallback: v7x-sized VMEM
    return int(min(cap * 78 // 100, 100 * _MIB))


def _choose_tile_l(L, C, act_bytes, vmem_limit):
    """Largest 128-aligned L tile whose double-buffered in/out slabs (plus the
    f32 decoder staging slab) fit the scoped-VMEM budget."""
    if L <= 128:
        return L                 # single full-extent block (lane-sparse if L < 128)
    budget = vmem_limit - 8 * _MIB          # weights, z, compiler scratch, misc
    tl = 128
    for cand in (1024, 768, 512, 384, 256, 128):
        need = 4 * C * cand * act_bytes + C * min(cand, _DEC_SLAB) * 4
        if need <= budget:
            tl = cand
            break
    return min(tl, (L // 128) * 128)


def vae_forward(x, w_enc, w_dec):
    """Fused VAE forward: out[b] = W_dec @ tanh(W_enc @ x[b]) in NCW layout.

    x:     (B, n_wires, L)         bf16 recommended (kernel is HBM-bound).
    w_enc: (encoded_dim, n_wires)  Conv1d(n_wires, encoded_dim, 1).weight[..., 0]
    w_dec: (n_wires, encoded_dim)  Conv1d(encoded_dim, n_wires, 1).weight[..., 0]
    Output keeps x.dtype; matmuls accumulate in f32; tanh runs in f32.
    """
    B, C, L = x.shape
    E = w_enc.shape[0]
    assert w_enc.shape == (E, C) and w_dec.shape == (C, E)

    vmem_limit = _pick_vmem_limit()
    TL = _choose_tile_l(L, C, jnp.dtype(x.dtype).itemsize, vmem_limit)
    nl = pl.cdiv(L, TL)          # ragged tail handled by Pallas edge-block masking
    out_dtype = x.dtype

    kernel = functools.partial(_vae_fwd_kernel, dec_slab=_DEC_SLAB)

    cost = pl.CostEstimate(
        flops=4 * B * L * C * E,                     # two matmuls, 2*M*K*N each
        transcendentals=B * L * E,                   # tanh
        bytes_accessed=(x.size * x.dtype.itemsize
                        + B * C * L * jnp.dtype(out_dtype).itemsize
                        + w_enc.size * w_enc.dtype.itemsize
                        + w_dec.size * w_dec.dtype.itemsize),
    )

    return pl.pallas_call(
        kernel,
        out_shape=jax.ShapeDtypeStruct((B, C, L), out_dtype),
        grid=(nl, B),            # larger parallel extent first (v7x megacore)
        in_specs=[
            pl.BlockSpec((1, C, TL), lambda l, b: (b, 0, l)),   # activation tile
            pl.BlockSpec((E, C), lambda l, b: (0, 0)),          # enc weight, resident
            pl.BlockSpec((C, E), lambda l, b: (0, 0)),          # dec weight, resident
        ],
        out_specs=pl.BlockSpec((1, C, TL), lambda l, b: (b, 0, l)),
        compiler_params=pltpu.CompilerParams(
            dimension_semantics=("parallel", "parallel"),
            vmem_limit_bytes=vmem_limit,
        ),
        cost_estimate=cost,
    )(x, w_enc, w_dec)


def _reference_forward(x, w_enc, w_dec):
    # Pure-JAX f32 reference of the PyTorch module (Conv1d k=1, no bias).
    y = jnp.tanh(jnp.einsum("oc,bcl->bol", w_enc, x))
    return jnp.einsum("oc,bcl->bol", w_dec, y)


if __name__ == "__main__":
    encoded_dim = 16
    B, L = 2, 8

    key = jax.random.PRNGKey(0)
    kx, ke, kd = jax.random.split(key, 3)

    # Deterministic synthetic parameters (Conv1d weights with kernel dim squeezed).
    w_enc_f32 = jax.random.normal(ke, (encoded_dim, n_wires), jnp.float32) * (
        1.0 / jnp.sqrt(float(n_wires)))
    w_dec_f32 = jax.random.normal(kd, (n_wires, encoded_dim), jnp.float32) * (
        1.0 / jnp.sqrt(float(encoded_dim)))
    x_f32 = jax.random.normal(kx, (B, n_wires, L), jnp.float32)

    # Prep, done once outside the hot path: bf16 weights AND activations halve
    # HBM traffic / VMEM tiles on this bandwidth-bound op; the kernel still
    # accumulates in f32 and returns bf16 (== x.dtype).
    w_enc = w_enc_f32.astype(jnp.bfloat16)
    w_dec = w_dec_f32.astype(jnp.bfloat16)
    x = x_f32.astype(jnp.bfloat16)

    fwd = jax.jit(vae_forward)
    out = jax.block_until_ready(fwd(x, w_enc, w_dec))

    assert out.shape == (B, n_wires, L)
    assert out.dtype == x.dtype

    # Reference in f32 on the same bf16-quantized params/activations, so the
    # check isolates kernel correctness from the intentional bf16 cast.
    ref = jax.block_until_ready(
        _reference_forward(x.astype(jnp.float32),
                           w_enc.astype(jnp.float32),
                           w_dec.astype(jnp.float32)))
    out_f32 = out.astype(jnp.float32)
    max_err = float(jnp.max(jnp.abs(out_f32 - ref)))
    assert jnp.allclose(out_f32, ref, atol=5e-2, rtol=5e-2), (
        f"mismatch vs reference (max abs err {max_err})"
    )

    print("KERNEL_OK")
</pallas_src>

<mosaic_0001>
module attributes {stable_mosaic.version = 11 : i64} {
  func.func @_vae_fwd_kernel(%arg0: i32, %arg1: i32, %arg2: memref<1x3606x8xbf16, #tpu.memory_space<vmem>>, %arg3: memref<16x3606xbf16, #tpu.memory_space<vmem>>, %arg4: memref<3606x16xbf16, #tpu.memory_space<vmem>>, %arg5: memref<1x3606x8xbf16, #tpu.memory_space<vmem>>) attributes {dimension_semantics = [#tpu.dimension_semantics<parallel>, #tpu.dimension_semantics<parallel>], iteration_bounds = array<i64: 1, 2>, scalar_prefetch = 0 : i64, scratch_operands = 0 : i64, tpu.core_type = #tpu.core_type<tc>, window_params = [{transform_indices = @transform_0, window_bounds = array<i64: 1, 3606, 8>}, {pipeline_mode = #tpu.pipeline_mode<synchronous>, transform_indices = @transform_1, window_bounds = array<i64: 16, 3606>}, {pipeline_mode = #tpu.pipeline_mode<synchronous>, transform_indices = @transform_2, window_bounds = array<i64: 3606, 16>}, {transform_indices = @transform_3, window_bounds = array<i64: 1, 3606, 8>}]} {
    %c0 = arith.constant 0 : index
    %c0_0 = arith.constant 0 : index
    %c0_1 = arith.constant 0 : index
    %0 = vector.load %arg2[%c0, %c0_0, %c0_1] : memref<1x3606x8xbf16, #tpu.memory_space<vmem>>, vector<1x3606x8xbf16>
    %1 = vector.shape_cast %0 : vector<1x3606x8xbf16> to vector<3606x8xbf16>
    %c0_2 = arith.constant 0 : index
    %c0_3 = arith.constant 0 : index
    %2 = vector.load %arg3[%c0_2, %c0_3] : memref<16x3606xbf16, #tpu.memory_space<vmem>>, vector<16x3606xbf16>
    %cst = arith.constant dense<0.000000e+00> : vector<16x8xf32>
    %3 = tpu.matmul %2, %1, %cst {dimension_numbers = #tpu.dot_dimension_numbers<[1], [0], [0], [1], [0, 0, 1, 1], [], []>} : vector<16x3606xbf16>, vector<3606x8xbf16>, vector<16x8xf32> -> vector<16x8xf32>
    %4 = math.tanh %3 : vector<16x8xf32>
    %5 = arith.truncf %4 : vector<16x8xf32> to vector<16x8xbf16>
    %c0_4 = arith.constant 0 : index
    %c0_5 = arith.constant 0 : index
    %6 = vector.load %arg4[%c0_4, %c0_5] : memref<3606x16xbf16, #tpu.memory_space<vmem>>, vector<3606x16xbf16>
    %cst_6 = arith.constant dense<0.000000e+00> : vector<3606x8xf32>
    %7 = tpu.matmul %6, %5, %cst_6 {dimension_numbers = #tpu.dot_dimension_numbers<[1], [0], [0], [1], [0, 0, 1, 1], [], []>} : vector<3606x16xbf16>, vector<16x8xbf16>, vector<3606x8xf32> -> vector<3606x8xf32>
    %8 = arith.truncf %7 : vector<3606x8xf32> to vector<3606x8xbf16>
    %c0_7 = arith.constant 0 : index
    %c0_8 = arith.constant 0 : index
    %c0_9 = arith.constant 0 : index
    %9 = vector.load %arg5[%c0_7, %c0_8, %c0_9] : memref<1x3606x8xbf16, #tpu.memory_space<vmem>>, vector<1x3606x8xbf16>
    %10 = vector.shape_cast %9 : vector<1x3606x8xbf16> to vector<3606x8xbf16>
    %11 = vector.shape_cast %8 : vector<3606x8xbf16> to vector<1x3606x8xbf16>
    tpu.vector_store %arg5[%c0_7, %c0_8, %c0_9], %11 {strides = array<i32>} : memref<1x3606x8xbf16, #tpu.memory_space<vmem>>, vector<1x3606x8xbf16>,
    return
  }
  func.func @transform_0(%arg0: i32, %arg1: i32) -> (i32, i32, i32) {
    %c0_i32 = arith.constant 0 : i32
    %c0_i32_0 = arith.constant 0 : i32
    return %arg1, %c0_i32, %arg0 : i32, i32, i32
  }
  func.func @transform_1(%arg0: i32, %arg1: i32) -> (i32, i32) {
    %c0_i32 = arith.constant 0 : i32
    %c0_i32_0 = arith.constant 0 : i32
    %c0_i32_1 = arith.constant 0 : i32
    return %c0_i32, %c0_i32_0 : i32, i32
  }
  func.func @transform_2(%arg0: i32, %arg1: i32) -> (i32, i32) {
    %c0_i32 = arith.constant 0 : i32
    %c0_i32_0 = arith.constant 0 : i32
    %c0_i32_1 = arith.constant 0 : i32
    return %c0_i32, %c0_i32_0 : i32, i32
  }
  func.func @transform_3(%arg0: i32, %arg1: i32) -> (i32, i32, i32) {
    %c0_i32 = arith.constant 0 : i32
    %c0_i32_0 = arith.constant 0 : i32
    return %arg1, %c0_i32, %arg0 : i32, i32, i32
  }
}

</mosaic_0001>

<llo_original>
// kernel: vae_forward.1
$region0: #{vae_forward.1}
  #allocation0 [shape = 'u32[]', space=smem, size = 0x4, offset = 0x4, fixed_abs, tag = 'smem constant byte address 0x4 - core index']
  #allocation1 [shape = 'u32[144,128]{1,0:T(1,128)}', space=vmem, size = 0x12000, scoped, tag = 'internal scratch']
  %s0 = inlined_call_operand.vmem [shape: bf16[2,3606,8], index: 0, kind: input, shape index: {}]
  %s1 = inlined_call_operand.vmem [shape: bf16[16,3606], index: 1, kind: input, shape index: {}]
  %s2 = inlined_call_operand.vmem [shape: bf16[3606,16], index: 2, kind: input, shape index: {}]
  %s3 = inlined_call_operand.vmem [shape: bf16[2,3606,8], index: 3, kind: output, shape index: {}]
  %s4 = sld [smem:[#allocation0]]
  $region45: #{vae_forward.1} parent=0
    _
  %s6 = ssub.s32 1, %s4
  %s7 = scalar_select 0, %s6, %s4
  loop: start=0, step=1, limit=4
  $region2: #{vae_forward.1} parent=0 // loop_pre_header
    _
  $region3: #{vae_forward.1} parent=0 // loop_header
    %s9 = sphi 0, %s13
    %p10 = scmp.ge.s32.totalorder %s9, 4
    %s16 = sphi 0, %s28
    %s17 = sphi 0, %s24
    %s18 = sphi 0, %s16
    %s19 = sphi 0, %s17
    %s20 = sphi 0, %s18
    %s21 = sphi 0, %s19
    %s33 = sphi 0, %s35
    %s36 = sphi 0, %s33
    %s37 = sphi 0, %s36
    %s53 = sphi 0, %s37
    %s57 = sphi 0, %s57
    %s59 = sphi 0, %s57
    %s60 = sphi 0, %s59
    %s74 = sphi 0, %s60
    %s78 = sphi 0, %s78
    %s80 = sphi 0, %s78
    %s81 = sphi 0, %s80
    %s95 = sphi 0, %s81
    %s103 = sphi 0, %s105
    %s106 = sphi 0, %s103
    %s107 = sphi 0, %s106
    %s123 = sphi 0, %s107
  $region4: #{vae_forward.1} parent=0 // loop_header_branch
    %12 = sbr.rel (%p10) target = $region8
  $region5: #{vae_forward.1} parent=0 // loop_body
    %s14 = ssub.s32 %s9, 1
    %s15 = ssub.s32 %s9, 2
    %s22 = sadd.s32 1, %s17
    %p23 = scmp.ge.s32.totalorder %s22, 2
    %s24 = scalar_select %p23, 0, %s22
    %s25 = sadd.s32 1, %s16
    %s26 = scalar_select %p23, %s25, %s16
    %p27 = scmp.ge.s32.totalorder %s26, 1
    %s28 = scalar_select %p27, 0, %s26
    %s29 = ssub.s32 %s17, %s24
    %s30 = ssub.s32 %s16, %s28
    %s31 = sor.u32 %s29, %s30
    %p32 = scmp.eq.s32.totalorder %s31, 0
    %s34 = sadd.s32 %s33, 1
    %s35 = scalar_select %p32, %s33, %s34
    %p38 = pneg %p32
    %p39 = scmp.eq.s32.totalorder %s9, 1
    %p40 = por %p38, %p39
    %p41 = scmp.ne.s32.totalorder %s33, %s36
    %p42 = scmp.eq.s32.totalorder %s9, 0
    %p43 = por %p41, %p42
    %p44 = scmp.ne.s32.totalorder %s33, %s36
    %p45 = scmp.eq.s32.totalorder %s14, 1
    %p46 = por %p44, %p45
    %p47 = scmp.ne.s32.totalorder %s36, %s37
    %p48 = scmp.eq.s32.totalorder %s14, 0
    %p49 = por %p47, %p48
    %p50 = scmp.ne.s32.totalorder %s36, %s37
    %p51 = scmp.eq.s32.totalorder %s15, 1
    %p52 = por %p50, %p51
    %p54 = scmp.ne.s32.totalorder %s37, %s53
    %p55 = scmp.eq.s32.totalorder %s15, 0
    %p56 = por %p54, %p55
    %s58 = sadd.s32 %s57, 1
    %p61 = scmp.eq.s32.totalorder %s9, 1
    %p62 = scmp.ne.s32.totalorder %s57, %s59
    %p63 = scmp.eq.s32.totalorder %s9, 0
    %p64 = por %p62, %p63
    %p65 = scmp.ne.s32.totalorder %s57, %s59
    %p66 = scmp.eq.s32.totalorder %s14, 1
    %p67 = por %p65, %p66
    %p68 = scmp.ne.s32.totalorder %s59, %s60
    %p69 = scmp.eq.s32.totalorder %s14, 0
    %p70 = por %p68, %p69
    %p71 = scmp.ne.s32.totalorder %s59, %s60
    %p72 = scmp.eq.s32.totalorder %s15, 1
    %p73 = por %p71, %p72
    %p75 = scmp.ne.s32.totalorder %s60, %s74
    %p76 = scmp.eq.s32.totalorder %s15, 0
    %p77 = por %p75, %p76
    %s79 = sadd.s32 %s78, 1
    %p82 = scmp.eq.s32.totalorder %s9, 1
    %p83 = scmp.ne.s32.totalorder %s78, %s80
    %p84 = scmp.eq.s32.totalorder %s9, 0
    %p85 = por %p83, %p84
    %p86 = scmp.ne.s32.totalorder %s78, %s80
    %p87 = scmp.eq.s32.totalorder %s14, 1
    %p88 = por %p86, %p87
    %p89 = scmp.ne.s32.totalorder %s80, %s81
    %p90 = scmp.eq.s32.totalorder %s14, 0
    %p91 = por %p89, %p90
    %p92 = scmp.ne.s32.totalorder %s80, %s81
    %p93 = scmp.eq.s32.totalorder %s15, 1
    %p94 = por %p92, %p93
    %p96 = scmp.ne.s32.totalorder %s81, %s95
    %p97 = scmp.eq.s32.totalorder %s15, 0
    %p98 = por %p96, %p97
    %s99 = ssub.s32 %s17, %s24
    %s100 = ssub.s32 %s16, %s28
    %s101 = sor.u32 %s99, %s100
    %p102 = scmp.eq.s32.totalorder %s101, 0
    %s104 = sadd.s32 %s103, 1
    %s105 = scalar_select %p102, %s103, %s104
    %p108 = pneg %p102
    %p109 = scmp.eq.s32.totalorder %s9, 1
    %p110 = por %p108, %p109
    %p111 = scmp.ne.s32.totalorder %s103, %s106
    %p112 = scmp.eq.s32.totalorder %s9, 0
    %p113 = por %p111, %p112
    %p114 = scmp.ne.s32.totalorder %s103, %s106
    %p115 = scmp.eq.s32.totalorder %s14, 1
    %p116 = por %p114, %p115
    %p117 = scmp.ne.s32.totalorder %s106, %s107
    %p118 = scmp.eq.s32.totalorder %s14, 0
    %p119 = por %p117, %p118
    %p120 = scmp.ne.s32.totalorder %s106, %s107
    %p121 = scmp.eq.s32.totalorder %s15, 1
    %p122 = por %p120, %p121
    %p124 = scmp.ne.s32.totalorder %s107, %s123
    %p125 = scmp.eq.s32.totalorder %s15, 0
    %p126 = por %p124, %p125
    %p127 = scmp.le.s32.totalorder 1, %s9
    %p128 = scmp.lt.s32.totalorder %s9, 3
    %p129 = pnand %p127, %p128
    %p130 = pneg %p129
    // Predicated region
    $region9: #{vae_forward.1} parent=5 // pred_check
      _
    $region10: #{vae_forward.1} parent=5 // pred_check_branch
      %132 = sbr.rel (%p129) target = $region12
    $region11: #{vae_forward.1} parent=5 // pred_region
      %s133 = ssub.s32 %s9, 1
      // Predicated region
      $region13: #{vae_forward.1} parent=11 // pred_check
        %p134 = pneg %p70
      $region14: #{vae_forward.1} parent=11 // pred_check_branch
        %136 = sbr.rel (%p134) target = $region16
      $region15: #{vae_forward.1} parent=11 // pred_region
        _
      $region16: #{vae_forward.1} parent=11 // pred_fallthru
        _
      // Predicated region
      $region17: #{vae_forward.1} parent=11 // pred_check
        %p137 = pneg %p91
      $region18: #{vae_forward.1} parent=11 // pred_check_branch
        %139 = sbr.rel (%p137) target = $region20
      $region19: #{vae_forward.1} parent=11 // pred_region
        _
      $region20: #{vae_forward.1} parent=11 // pred_fallthru
        _
    $region12: #{vae_forward.1} parent=5 // pred_fallthru
      _
    %p140 = scmp.lt.s32.totalorder %s9, 2
    // Predicated region
    $region21: #{vae_forward.1} parent=5 // pred_check
      %p141 = pneg %p140
    $region22: #{vae_forward.1} parent=5 // pred_check_branch
      %143 = sbr.rel (%p141) target = $region24
    $region23: #{vae_forward.1} parent=5 // pred_region
      // Predicated region
      $region25: #{vae_forward.1} parent=23 // pred_check
        %p144 = pneg %p43
      $region26: #{vae_forward.1} parent=23 // pred_check_branch
        %146 = sbr.rel (%p144) target = $region28
      $region27: #{vae_forward.1} parent=23 // pred_region
        %p147 = scmp.lt.s32.totalorder %s17, 1
        %s148 = scalar_select %p147, %s17, 1
        %p149 = scmp.lt.s32.totalorder %s16, 0
        %s150 = scalar_select %p149, %s16, 0
        %s151 = smul.addr %s148, 451
        %s152 = sadd.s32 %s150, %s151
        %s153 = smul.addr %s152, 4
        %s154 = scalar_lea.vmem %s0, %s153
      $region28: #{vae_forward.1} parent=23 // pred_fallthru
        _
    $region24: #{vae_forward.1} parent=5 // pred_fallthru
      _
    %p155 = scmp.le.s32.totalorder 1, %s9
    %p156 = scmp.lt.s32.totalorder %s9, 3
    %p157 = pnand %p155, %p156
    %p158 = pneg %p157
    // Predicated region
    $region29: #{vae_forward.1} parent=5 // pred_check
      _
    $region30: #{vae_forward.1} parent=5 // pred_check_branch
      %160 = sbr.rel (%p157) target = $region32
    $region31: #{vae_forward.1} parent=5 // pred_region
      %s161 = ssub.s32 %s9, 1
      %p162 = scmp.lt.s32.totalorder %s19, 1
      %s163 = scalar_select %p162, %s19, 1
      %p164 = scmp.lt.s32.totalorder %s18, 0
      %s165 = scalar_select %p164, %s18, 0
      %s166 = smul.addr %s163, 451
      %s167 = sadd.s32 %s165, %s166
      %s168 = smul.addr %s167, 4
      %s169 = scalar_lea.vmem %s0, %s168
      %p170 = pneg %p49
      %p171 = pneg %p46
      %p172 = pneg %p70
      %p173 = pneg %p67
      %p174 = pneg %p91
      %p175 = pneg %p88
      %p176 = pneg %p119
      %p177 = pneg %p116
      %p178 = scmp.lt.s32.totalorder %s19, 1
      %s179 = scalar_select %p178, %s19, 1
      %p180 = scmp.lt.s32.totalorder %s18, 0
      %s181 = scalar_select %p180, %s18, 0
      %s182 = smul.addr %s179, 451
      %s183 = sadd.s32 %s181, %s182
      %s184 = smul.addr %s183, 4
      %s185 = scalar_lea.vmem %s3, %s184
      %p186 = scmp.lt.s32.totalorder %s19, 1
      %s187 = scalar_select %p186, %s19, 1
      %p188 = scmp.lt.s32.totalorder %s18, 0
      %s189 = scalar_select %p188, %s18, 0
      %s190 = smul.addr %s187, 451
      %s191 = sadd.s32 %s189, %s190
      %s192 = smul.addr %s191, 4
      %s193 = scalar_lea.vmem %s0, %s192
      %p194 = scmp.lt.s32.totalorder %s19, 1
      %s195 = scalar_select %p194, %s19, 1
      %p196 = scmp.lt.s32.totalorder %s18, 0
      %s197 = scalar_select %p196, %s18, 0
      %s198 = smul.addr %s195, 451
      %s199 = sadd.s32 %s197, %s198
      %s200 = smul.addr %s199, 4
      %s201 = scalar_lea.vmem %s3, %s200
      %v203 = vld [vmem:[%s193] sm:$0xf]
      %v204 = vld [vmem:[%s193 + $0x4] sm:$0xf]
      %v205 = vld [vmem:[%s193 + $0x8] sm:$0xf]
      %v206 = vld [vmem:[%s193 + $0xc] sm:$0xf]
      %v207 = vld [vmem:[%s193 + $0x10] sm:$0xf]
      %v208 = vld [vmem:[%s193 + $0x14] sm:$0xf]
      %v209 = vld [vmem:[%s193 + $0x18] sm:$0xf]
      %v210 = vld [vmem:[%s193 + $0x1c] sm:$0xf]
      %v211 = vld [vmem:[%s193 + $0x20] sm:$0xf]
      %v212 = vld [vmem:[%s193 + $0x24] sm:$0xf]
      %v213 = vld [vmem:[%s193 + $0x28] sm:$0xf]
      %v214 = vld [vmem:[%s193 + $0x2c] sm:$0xf]
      %v215 = vld [vmem:[%s193 + $0x30] sm:$0xf]
      %v216 = vld [vmem:[%s193 + $0x34] sm:$0xf]
      %v217 = vld [vmem:[%s193 + $0x38] sm:$0xf]
      %v218 = vld [vmem:[%s193 + $0x3c] sm:$0xf]
      %v219 = vld [vmem:[%s193 + $0x40] sm:$0xf]
      %v220 = vld [vmem:[%s193 + $0x44] sm:$0xf]
      %v221 = vld [vmem:[%s193 + $0x48] sm:$0xf]
      %v222 = vld [vmem:[%s193 + $0x4c] sm:$0xf]
      %v223 = vld [vmem:[%s193 + $0x50] sm:$0xf]
      %v224 = vld [vmem:[%s193 + $0x54] sm:$0xf]
      %v225 = vld [vmem:[%s193 + $0x58] sm:$0xf]
      %v226 = vld [vmem:[%s193 + $0x5c] sm:$0xf]
      %v227 = vld [vmem:[%s193 + $0x60] sm:$0xf]
      %v228 = vld [vmem:[%s193 + $0x64] sm:$0xf]
      %v229 = vld [vmem:[%s193 + $0x68] sm:$0xf]
      %v230 = vld [vmem:[%s193 + $0x6c] sm:$0xf]
      %v231 = vld [vmem:[%s193 + $0x70] sm:$0xf]
      %v232 = vld [vmem:[%s193 + $0x74] sm:$0xf]
      %v233 = vld [vmem:[%s193 + $0x78] sm:$0xf]
      %v234 = vld [vmem:[%s193 + $0x7c] sm:$0xf]
      %v235 = vld [vmem:[%s193 + $0x80] sm:$0xf]
      %v236 = vld [vmem:[%s193 + $0x84] sm:$0xf]
      %v237 = vld [vmem:[%s193 + $0x88] sm:$0xf]
      %v238 = vld [vmem:[%s193 + $0x8c] sm:$0xf]
      %v239 = vld [vmem:[%s193 + $0x90] sm:$0xf]
      %v240 = vld [vmem:[%s193 + $0x94] sm:$0xf]
      %v241 = vld [vmem:[%s193 + $0x98] sm:$0xf]
      %v242 = vld [vmem:[%s193 + $0x9c] sm:$0xf]
      %v243 = vld [vmem:[%s193 + $0xa0] sm:$0xf]
      %v244 = vld [vmem:[%s193 + $0xa4] sm:$0xf]
      %v245 = vld [vmem:[%s193 + $0xa8] sm:$0xf]
      %v246 = vld [vmem:[%s193 + $0xac] sm:$0xf]
      %v247 = vld [vmem:[%s193 + $0xb0] sm:$0xf]
      %v248 = vld [vmem:[%s193 + $0xb4] sm:$0xf]
      %v249 = vld [vmem:[%s193 + $0xb8] sm:$0xf]
      %v250 = vld [vmem:[%s193 + $0xbc] sm:$0xf]
      %v251 = vld [vmem:[%s193 + $0xc0] sm:$0xf]
      %v252 = vld [vmem:[%s193 + $0xc4] sm:$0xf]
      %v253 = vld [vmem:[%s193 + $0xc8] sm:$0xf]
      %v254 = vld [vmem:[%s193 + $0xcc] sm:$0xf]
      %v255 = vld [vmem:[%s193 + $0xd0] sm:$0xf]
      %v256 = vld [vmem:[%s193 + $0xd4] sm:$0xf]
      %v257 = vld [vmem:[%s193 + $0xd8] sm:$0xf]
      %v258 = vld [vmem:[%s193 + $0xdc] sm:$0xf]
      %v259 = vld [vmem:[%s193 + $0xe0] sm:$0xf]
      %v260 = vld [vmem:[%s193 + $0xe4] sm:$0xf]
      %v261 = vld [vmem:[%s193 + $0xe8] sm:$0xf]
      %v262 = vld [vmem:[%s193 + $0xec] sm:$0xf]
      %v263 = vld [vmem:[%s193 + $0xf0] sm:$0xf]
      %v264 = vld [vmem:[%s193 + $0xf4] sm:$0xf]
      %v265 = vld [vmem:[%s193 + $0xf8] sm:$0xf]
      %v266 = vld [vmem:[%s193 + $0xfc] sm:$0xf]
      %v267 = vld [vmem:[%s193 + $0x100] sm:$0xf]
      %v268 = vld [vmem:[%s193 + $0x104] sm:$0xf]
      %v269 = vld [vmem:[%s193 + $0x108] sm:$0xf]
      %v270 = vld [vmem:[%s193 + $0x10c] sm:$0xf]
      %v271 = vld [vmem:[%s193 + $0x110] sm:$0xf]
      %v272 = vld [vmem:[%s193 + $0x114] sm:$0xf]
      %v273 = vld [vmem:[%s193 + $0x118] sm:$0xf]
      %v274 = vld [vmem:[%s193 + $0x11c] sm:$0xf]
      %v275 = vld [vmem:[%s193 + $0x120] sm:$0xf]
      %v276 = vld [vmem:[%s193 + $0x124] sm:$0xf]
      %v277 = vld [vmem:[%s193 + $0x128] sm:$0xf]
      %v278 = vld [vmem:[%s193 + $0x12c] sm:$0xf]
      %v279 = vld [vmem:[%s193 + $0x130] sm:$0xf]
      %v280 = vld [vmem:[%s193 + $0x134] sm:$0xf]
      %v281 = vld [vmem:[%s193 + $0x138] sm:$0xf]
      %v282 = vld [vmem:[%s193 + $0x13c] sm:$0xf]
      %v283 = vld [vmem:[%s193 + $0x140] sm:$0xf]
      %v284 = vld [vmem:[%s193 + $0x144] sm:$0xf]
      %v285 = vld [vmem:[%s193 + $0x148] sm:$0xf]
      %v286 = vld [vmem:[%s193 + $0x14c] sm:$0xf]
      %v287 = vld [vmem:[%s193 + $0x150] sm:$0xf]
      %v288 = vld [vmem:[%s193 + $0x154] sm:$0xf]
      %v289 = vld [vmem:[%s193 + $0x158] sm:$0xf]
      %v290 = vld [vmem:[%s193 + $0x15c] sm:$0xf]
      %v291 = vld [vmem:[%s193 + $0x160] sm:$0xf]
      %v292 = vld [vmem:[%s193 + $0x164] sm:$0xf]
      %v293 = vld [vmem:[%s193 + $0x168] sm:$0xf]
      %v294 = vld [vmem:[%s193 + $0x16c] sm:$0xf]
      %v295 = vld [vmem:[%s193 + $0x170] sm:$0xf]
      %v296 = vld [vmem:[%s193 + $0x174] sm:$0xf]
      %v297 = vld [vmem:[%s193 + $0x178] sm:$0xf]
      %v298 = vld [vmem:[%s193 + $0x17c] sm:$0xf]
      %v299 = vld [vmem:[%s193 + $0x180] sm:$0xf]
      %v300 = vld [vmem:[%s193 + $0x184] sm:$0xf]
      %v301 = vld [vmem:[%s193 + $0x188] sm:$0xf]
      %v302 = vld [vmem:[%s193 + $0x18c] sm:$0xf]
      %v303 = vld [vmem:[%s193 + $0x190] sm:$0xf]
      %v304 = vld [vmem:[%s193 + $0x194] sm:$0xf]
      %v305 = vld [vmem:[%s193 + $0x198] sm:$0xf]
      %v306 = vld [vmem:[%s193 + $0x19c] sm:$0xf]
      %v307 = vld [vmem:[%s193 + $0x1a0] sm:$0xf]
      %v308 = vld [vmem:[%s193 + $0x1a4] sm:$0xf]
      %v309 = vld [vmem:[%s193 + $0x1a8] sm:$0xf]
      %v310 = vld [vmem:[%s193 + $0x1ac] sm:$0xf]
      %v311 = vld [vmem:[%s193 + $0x1b0] sm:$0xf]
      %v312 = vld [vmem:[%s193 + $0x1b4] sm:$0xf]
      %v313 = vld [vmem:[%s193 + $0x1b8] sm:$0xf]
      %v314 = vld [vmem:[%s193 + $0x1bc] sm:$0xf]
      %v315 = vld [vmem:[%s193 + $0x1c0] sm:$0xf]
      %v316 = vld [vmem:[%s193 + $0x1c4] sm:$0xf]
      %v317 = vld [vmem:[%s193 + $0x1c8] sm:$0xf]
      %v318 = vld [vmem:[%s193 + $0x1cc] sm:$0xf]
      %v319 = vld [vmem:[%s193 + $0x1d0] sm:$0xf]
      %v320 = vld [vmem:[%s193 + $0x1d4] sm:$0xf]
      %v321 = vld [vmem:[%s193 + $0x1d8] sm:$0xf]
      %v322 = vld [vmem:[%s193 + $0x1dc] sm:$0xf]
      %v323 = vld [vmem:[%s193 + $0x1e0] sm:$0xf]
      %v324 = vld [vmem:[%s193 + $0x1e4] sm:$0xf]
      %v325 = vld [vmem:[%s193 + $0x1e8] sm:$0xf]
      %v326 = vld [vmem:[%s193 + $0x1ec] sm:$0xf]
      %v327 = vld [vmem:[%s193 + $0x1f0] sm:$0xf]
      %v328 = vld [vmem:[%s193 + $0x1f4] sm:$0xf]
      %v329 = vld [vmem:[%s193 + $0x1f8] sm:$0xf]
      %v330 = vld [vmem:[%s193 + $0x1fc] sm:$0xf]
      %v331 = vld [vmem:[%s193 + $0x200] sm:$0xf]
      %v332 = vld [vmem:[%s193 + $0x204] sm:$0xf]
      %v333 = vld [vmem:[%s193 + $0x208] sm:$0xf]
      %v334 = vld [vmem:[%s193 + $0x20c] sm:$0xf]
      %v335 = vld [vmem:[%s193 + $0x210] sm:$0xf]
      %v336 = vld [vmem:[%s193 + $0x214] sm:$0xf]
      %v337 = vld [vmem:[%s193 + $0x218] sm:$0xf]
      %v338 = vld [vmem:[%s193 + $0x21c] sm:$0xf]
      %v339 = vld [vmem:[%s193 + $0x220] sm:$0xf]
      %v340 = vld [vmem:[%s193 + $0x224] sm:$0xf]
      %v341 = vld [vmem:[%s193 + $0x228] sm:$0xf]
      %v342 = vld [vmem:[%s193 + $0x22c] sm:$0xf]
      %v343 = vld [vmem:[%s193 + $0x230] sm:$0xf]
      %v344 = vld [vmem:[%s193 + $0x234] sm:$0xf]
      %v345 = vld [vmem:[%s193 + $0x238] sm:$0xf]
      %v346 = vld [vmem:[%s193 + $0x23c] sm:$0xf]
      %v347 = vld [vmem:[%s193 + $0x240] sm:$0xf]
      %v348 = vld [vmem:[%s193 + $0x244] sm:$0xf]
      %v349 = vld [vmem:[%s193 + $0x248] sm:$0xf]
      %v350 = vld [vmem:[%s193 + $0x24c] sm:$0xf]
      %v351 = vld [vmem:[%s193 + $0x250] sm:$0xf]
      %v352 = vld [vmem:[%s193 + $0x254] sm:$0xf]
      %v353 = vld [vmem:[%s193 + $0x258] sm:$0xf]
      %v354 = vld [vmem:[%s193 + $0x25c] sm:$0xf]
      %v355 = vld [vmem:[%s193 + $0x260] sm:$0xf]
      %v356 = vld [vmem:[%s193 + $0x264] sm:$0xf]
      %v357 = vld [vmem:[%s193 + $0x268] sm:$0xf]
      %v358 = vld [vmem:[%s193 + $0x26c] sm:$0xf]
      %v359 = vld [vmem:[%s193 + $0x270] sm:$0xf]
      %v360 = vld [vmem:[%s193 + $0x274] sm:$0xf]
      %v361 = vld [vmem:[%s193 + $0x278] sm:$0xf]
      %v362 = vld [vmem:[%s193 + $0x27c] sm:$0xf]
      %v363 = vld [vmem:[%s193 + $0x280] sm:$0xf]
      %v364 = vld [vmem:[%s193 + $0x284] sm:$0xf]
      %v365 = vld [vmem:[%s193 + $0x288] sm:$0xf]
      %v366 = vld [vmem:[%s193 + $0x28c] sm:$0xf]
      %v367 = vld [vmem:[%s193 + $0x290] sm:$0xf]
      %v368 = vld [vmem:[%s193 + $0x294] sm:$0xf]
      %v369 = vld [vmem:[%s193 + $0x298] sm:$0xf]
      %v370 = vld [vmem:[%s193 + $0x29c] sm:$0xf]
      %v371 = vld [vmem:[%s193 + $0x2a0] sm:$0xf]
      %v372 = vld [vmem:[%s193 + $0x2a4] sm:$0xf]
      %v373 = vld [vmem:[%s193 + $0x2a8] sm:$0xf]
      %v374 = vld [vmem:[%s193 + $0x2ac] sm:$0xf]
      %v375 = vld [vmem:[%s193 + $0x2b0] sm:$0xf]
      %v376 = vld [vmem:[%s193 + $0x2b4] sm:$0xf]
      %v377 = vld [vmem:[%s193 + $0x2b8] sm:$0xf]
      %v378 = vld [vmem:[%s193 + $0x2bc] sm:$0xf]
      %v379 = vld [vmem:[%s193 + $0x2c0] sm:$0xf]
      %v380 = vld [vmem:[%s193 + $0x2c4] sm:$0xf]
      %v381 = vld [vmem:[%s193 + $0x2c8] sm:$0xf]
      %v382 = vld [vmem:[%s193 + $0x2cc] sm:$0xf]
      %v383 = vld [vmem:[%s193 + $0x2d0] sm:$0xf]
      %v384 = vld [vmem:[%s193 + $0x2d4] sm:$0xf]
      %v385 = vld [vmem:[%s193 + $0x2d8] sm:$0xf]
      %v386 = vld [vmem:[%s193 + $0x2dc] sm:$0xf]
      %v387 = vld [vmem:[%s193 + $0x2e0] sm:$0xf]
      %v388 = vld [vmem:[%s193 + $0x2e4] sm:$0xf]
      %v389 = vld [vmem:[%s193 + $0x2e8] sm:$0xf]
      %v390 = vld [vmem:[%s193 + $0x2ec] sm:$0xf]
      %v391 = vld [vmem:[%s193 + $0x2f0] sm:$0xf]
      %v392 = vld [vmem:[%s193 + $0x2f4] sm:$0xf]
      %v393 = vld [vmem:[%s193 + $0x2f8] sm:$0xf]
      %v394 = vld [vmem:[%s193 + $0x2fc] sm:$0xf]
      %v395 = vld [vmem:[%s193 + $0x300] sm:$0xf]
      %v396 = vld [vmem:[%s193 + $0x304] sm:$0xf]
      %v397 = vld [vmem:[%s193 + $0x308] sm:$0xf]
      %v398 = vld [vmem:[%s193 + $0x30c] sm:$0xf]
      %v399 = vld [vmem:[%s193 + $0x310] sm:$0xf]
      %v400 = vld [vmem:[%s193 + $0x314] sm:$0xf]
      %v401 = vld [vmem:[%s193 + $0x318] sm:$0xf]
      %v402 = vld [vmem:[%s193 + $0x31c] sm:$0xf]
      %v403 = vld [vmem:[%s193 + $0x320] sm:$0xf]
      %v404 = vld [vmem:[%s193 + $0x324] sm:$0xf]
      %v405 = vld [vmem:[%s193 + $0x328] sm:$0xf]
      %v406 = vld [vmem:[%s193 + $0x32c] sm:$0xf]
      %v407 = vld [vmem:[%s193 + $0x330] sm:$0xf]
      %v408 = vld [vmem:[%s193 + $0x334] sm:$0xf]
      %v409 = vld [vmem:[%s193 + $0x338] sm:$0xf]
      %v410 = vld [vmem:[%s193 + $0x33c] sm:$0xf]
      %v411 = vld [vmem:[%s193 + $0x340] sm:$0xf]
      %v412 = vld [vmem:[%s193 + $0x344] sm:$0xf]
      %v413 = vld [vmem:[%s193 + $0x348] sm:$0xf]
      %v414 = vld [vmem:[%s193 + $0x34c] sm:$0xf]
      %v415 = vld [vmem:[%s193 + $0x350] sm:$0xf]
      %v416 = vld [vmem:[%s193 + $0x354] sm:$0xf]
      %v417 = vld [vmem:[%s193 + $0x358] sm:$0xf]
      %v418 = vld [vmem:[%s193 + $0x35c] sm:$0xf]
      %v419 = vld [vmem:[%s193 + $0x360] sm:$0xf]
      %v420 = vld [vmem:[%s193 + $0x364] sm:$0xf]
      %v421 = vld [vmem:[%s193 + $0x368] sm:$0xf]
      %v422 = vld [vmem:[%s193 + $0x36c] sm:$0xf]
      %v423 = vld [vmem:[%s193 + $0x370] sm:$0xf]
      %v424 = vld [vmem:[%s193 + $0x374] sm:$0xf]
      %v425 = vld [vmem:[%s193 + $0x378] sm:$0xf]
      %v426 = vld [vmem:[%s193 + $0x37c] sm:$0xf]
      %v427 = vld [vmem:[%s193 + $0x380] sm:$0xf]
      %v428 = vld [vmem:[%s193 + $0x384] sm:$0xf]
      %v429 = vld [vmem:[%s193 + $0x388] sm:$0xf]
      %v430 = vld [vmem:[%s193 + $0x38c] sm:$0xf]
      %v431 = vld [vmem:[%s193 + $0x390] sm:$0xf]
      %v432 = vld [vmem:[%s193 + $0x394] sm:$0xf]
      %v433 = vld [vmem:[%s193 + $0x398] sm:$0xf]
      %v434 = vld [vmem:[%s193 + $0x39c] sm:$0xf]
      %v435 = vld [vmem:[%s193 + $0x3a0] sm:$0xf]
      %v436 = vld [vmem:[%s193 + $0x3a4] sm:$0xf]
      %v437 = vld [vmem:[%s193 + $0x3a8] sm:$0xf]
      %v438 = vld [vmem:[%s193 + $0x3ac] sm:$0xf]
      %v439 = vld [vmem:[%s193 + $0x3b0] sm:$0xf]
      %v440 = vld [vmem:[%s193 + $0x3b4] sm:$0xf]
      %v441 = vld [vmem:[%s193 + $0x3b8] sm:$0xf]
      %v442 = vld [vmem:[%s193 + $0x3bc] sm:$0xf]
      %v443 = vld [vmem:[%s193 + $0x3c0] sm:$0xf]
      %v444 = vld [vmem:[%s193 + $0x3c4] sm:$0xf]
      %v445 = vld [vmem:[%s193 + $0x3c8] sm:$0xf]
      %v446 = vld [vmem:[%s193 + $0x3cc] sm:$0xf]
      %v447 = vld [vmem:[%s193 + $0x3d0] sm:$0xf]
      %v448 = vld [vmem:[%s193 + $0x3d4] sm:$0xf]
      %v449 = vld [vmem:[%s193 + $0x3d8] sm:$0xf]
      %v450 = vld [vmem:[%s193 + $0x3dc] sm:$0xf]
      %v451 = vld [vmem:[%s193 + $0x3e0] sm:$0xf]
      %v452 = vld [vmem:[%s193 + $0x3e4] sm:$0xf]
      %v453 = vld [vmem:[%s193 + $0x3e8] sm:$0xf]
      %v454 = vld [vmem:[%s193 + $0x3ec] sm:$0xf]
      %v455 = vld [vmem:[%s193 + $0x3f0] sm:$0xf]
      %v456 = vld [vmem:[%s193 + $0x3f4] sm:$0xf]
      %v457 = vld [vmem:[%s193 + $0x3f8] sm:$0xf]
      %v458 = vld [vmem:[%s193 + $0x3fc] sm:$0xf]
      %v459 = vld [vmem:[%s193 + $0x400] sm:$0xf]
      %v460 = vld [vmem:[%s193 + $0x404] sm:$0xf]
      %v461 = vld [vmem:[%s193 + $0x408] sm:$0xf]
      %v462 = vld [vmem:[%s193 + $0x40c] sm:$0xf]
      %v463 = vld [vmem:[%s193 + $0x410] sm:$0xf]
      %v464 = vld [vmem:[%s193 + $0x414] sm:$0xf]
      %v465 = vld [vmem:[%s193 + $0x418] sm:$0xf]
      %v466 = vld [vmem:[%s193 + $0x41c] sm:$0xf]
      %v467 = vld [vmem:[%s193 + $0x420] sm:$0xf]
      %v468 = vld [vmem:[%s193 + $0x424] sm:$0xf]
      %v469 = vld [vmem:[%s193 + $0x428] sm:$0xf]
      %v470 = vld [vmem:[%s193 + $0x42c] sm:$0xf]
      %v471 = vld [vmem:[%s193 + $0x430] sm:$0xf]
      %v472 = vld [vmem:[%s193 + $0x434] sm:$0xf]
      %v473 = vld [vmem:[%s193 + $0x438] sm:$0xf]
      %v474 = vld [vmem:[%s193 + $0x43c] sm:$0xf]
      %v475 = vld [vmem:[%s193 + $0x440] sm:$0xf]
      %v476 = vld [vmem:[%s193 + $0x444] sm:$0xf]
      %v477 = vld [vmem:[%s193 + $0x448] sm:$0xf]
      %v478 = vld [vmem:[%s193 + $0x44c] sm:$0xf]
      %v479 = vld [vmem:[%s193 + $0x450] sm:$0xf]
      %v480 = vld [vmem:[%s193 + $0x454] sm:$0xf]
      %v481 = vld [vmem:[%s193 + $0x458] sm:$0xf]
      %v482 = vld [vmem:[%s193 + $0x45c] sm:$0xf]
      %v483 = vld [vmem:[%s193 + $0x460] sm:$0xf]
      %v484 = vld [vmem:[%s193 + $0x464] sm:$0xf]
      %v485 = vld [vmem:[%s193 + $0x468] sm:$0xf]
      %v486 = vld [vmem:[%s193 + $0x46c] sm:$0xf]
      %v487 = vld [vmem:[%s193 + $0x470] sm:$0xf]
      %v488 = vld [vmem:[%s193 + $0x474] sm:$0xf]
      %v489 = vld [vmem:[%s193 + $0x478] sm:$0xf]
      %v490 = vld [vmem:[%s193 + $0x47c] sm:$0xf]
      %v491 = vld [vmem:[%s193 + $0x480] sm:$0xf]
      %v492 = vld [vmem:[%s193 + $0x484] sm:$0xf]
      %v493 = vld [vmem:[%s193 + $0x488] sm:$0xf]
      %v494 = vld [vmem:[%s193 + $0x48c] sm:$0xf]
      %v495 = vld [vmem:[%s193 + $0x490] sm:$0xf]
      %v496 = vld [vmem:[%s193 + $0x494] sm:$0xf]
      %v497 = vld [vmem:[%s193 + $0x498] sm:$0xf]
      %v498 = vld [vmem:[%s193 + $0x49c] sm:$0xf]
      %v499 = vld [vmem:[%s193 + $0x4a0] sm:$0xf]
      %v500 = vld [vmem:[%s193 + $0x4a4] sm:$0xf]
      %v501 = vld [vmem:[%s193 + $0x4a8] sm:$0xf]
      %v502 = vld [vmem:[%s193 + $0x4ac] sm:$0xf]
      %v503 = vld [vmem:[%s193 + $0x4b0] sm:$0xf]
      %v504 = vld [vmem:[%s193 + $0x4b4] sm:$0xf]
      %v505 = vld [vmem:[%s193 + $0x4b8] sm:$0xf]
      %v506 = vld [vmem:[%s193 + $0x4bc] sm:$0xf]
      %v507 = vld [vmem:[%s193 + $0x4c0] sm:$0xf]
      %v508 = vld [vmem:[%s193 + $0x4c4] sm:$0xf]
      %v509 = vld [vmem:[%s193 + $0x4c8] sm:$0xf]
      %v510 = vld [vmem:[%s193 + $0x4cc] sm:$0xf]
      %v511 = vld [vmem:[%s193 + $0x4d0] sm:$0xf]
      %v512 = vld [vmem:[%s193 + $0x4d4] sm:$0xf]
      %v513 = vld [vmem:[%s193 + $0x4d8] sm:$0xf]
      %v514 = vld [vmem:[%s193 + $0x4dc] sm:$0xf]
      %v515 = vld [vmem:[%s193 + $0x4e0] sm:$0xf]
      %v516 = vld [vmem:[%s193 + $0x4e4] sm:$0xf]
      %v517 = vld [vmem:[%s193 + $0x4e8] sm:$0xf]
      %v518 = vld [vmem:[%s193 + $0x4ec] sm:$0xf]
      %v519 = vld [vmem:[%s193 + $0x4f0] sm:$0xf]
      %v520 = vld [vmem:[%s193 + $0x4f4] sm:$0xf]
      %v521 = vld [vmem:[%s193 + $0x4f8] sm:$0xf]
      %v522 = vld [vmem:[%s193 + $0x4fc] sm:$0xf]
      %v523 = vld [vmem:[%s193 + $0x500] sm:$0xf]
      %v524 = vld [vmem:[%s193 + $0x504] sm:$0xf]
      %v525 = vld [vmem:[%s193 + $0x508] sm:$0xf]
      %v526 = vld [vmem:[%s193 + $0x50c] sm:$0xf]
      %v527 = vld [vmem:[%s193 + $0x510] sm:$0xf]
      %v528 = vld [vmem:[%s193 + $0x514] sm:$0xf]
      %v529 = vld [vmem:[%s193 + $0x518] sm:$0xf]
      %v530 = vld [vmem:[%s193 + $0x51c] sm:$0xf]
      %v531 = vld [vmem:[%s193 + $0x520] sm:$0xf]
      %v532 = vld [vmem:[%s193 + $0x524] sm:$0xf]
      %v533 = vld [vmem:[%s193 + $0x528] sm:$0xf]
      %v534 = vld [vmem:[%s193 + $0x52c] sm:$0xf]
      %v535 = vld [vmem:[%s193 + $0x530] sm:$0xf]
      %v536 = vld [vmem:[%s193 + $0x534] sm:$0xf]
      %v537 = vld [vmem:[%s193 + $0x538] sm:$0xf]
      %v538 = vld [vmem:[%s193 + $0x53c] sm:$0xf]
      %v539 = vld [vmem:[%s193 + $0x540] sm:$0xf]
      %v540 = vld [vmem:[%s193 + $0x544] sm:$0xf]
      %v541 = vld [vmem:[%s193 + $0x548] sm:$0xf]
      %v542 = vld [vmem:[%s193 + $0x54c] sm:$0xf]
      %v543 = vld [vmem:[%s193 + $0x550] sm:$0xf]
      %v544 = vld [vmem:[%s193 + $0x554] sm:$0xf]
      %v545 = vld [vmem:[%s193 + $0x558] sm:$0xf]
      %v546 = vld [vmem:[%s193 + $0x55c] sm:$0xf]
      %v547 = vld [vmem:[%s193 + $0x560] sm:$0xf]
      %v548 = vld [vmem:[%s193 + $0x564] sm:$0xf]
      %v549 = vld [vmem:[%s193 + $0x568] sm:$0xf]
      %v550 = vld [vmem:[%s193 + $0x56c] sm:$0xf]
      %v551 = vld [vmem:[%s193 + $0x570] sm:$0xf]
      %v552 = vld [vmem:[%s193 + $0x574] sm:$0xf]
      %v553 = vld [vmem:[%s193 + $0x578] sm:$0xf]
      %v554 = vld [vmem:[%s193 + $0x57c] sm:$0xf]
      %v555 = vld [vmem:[%s193 + $0x580] sm:$0xf]
      %v556 = vld [vmem:[%s193 + $0x584] sm:$0xf]
      %v557 = vld [vmem:[%s193 + $0x588] sm:$0xf]
      %v558 = vld [vmem:[%s193 + $0x58c] sm:$0xf]
      %v559 = vld [vmem:[%s193 + $0x590] sm:$0xf]
      %v560 = vld [vmem:[%s193 + $0x594] sm:$0xf]
      %v561 = vld [vmem:[%s193 + $0x598] sm:$0xf]
      %v562 = vld [vmem:[%s193 + $0x59c] sm:$0xf]
      %v563 = vld [vmem:[%s193 + $0x5a0] sm:$0xf]
      %v564 = vld [vmem:[%s193 + $0x5a4] sm:$0xf]
      %v565 = vld [vmem:[%s193 + $0x5a8] sm:$0xf]
      %v566 = vld [vmem:[%s193 + $0x5ac] sm:$0xf]
      %v567 = vld [vmem:[%s193 + $0x5b0] sm:$0xf]
      %v568 = vld [vmem:[%s193 + $0x5b4] sm:$0xf]
      %v569 = vld [vmem:[%s193 + $0x5b8] sm:$0xf]
      %v570 = vld [vmem:[%s193 + $0x5bc] sm:$0xf]
      %v571 = vld [vmem:[%s193 + $0x5c0] sm:$0xf]
      %v572 = vld [vmem:[%s193 + $0x5c4] sm:$0xf]
      %v573 = vld [vmem:[%s193 + $0x5c8] sm:$0xf]
      %v574 = vld [vmem:[%s193 + $0x5cc] sm:$0xf]
      %v575 = vld [vmem:[%s193 + $0x5d0] sm:$0xf]
      %v576 = vld [vmem:[%s193 + $0x5d4] sm:$0xf]
      %v577 = vld [vmem:[%s193 + $0x5d8] sm:$0xf]
      %v578 = vld [vmem:[%s193 + $0x5dc] sm:$0xf]
      %v579 = vld [vmem:[%s193 + $0x5e0] sm:$0xf]
      %v580 = vld [vmem:[%s193 + $0x5e4] sm:$0xf]
      %v581 = vld [vmem:[%s193 + $0x5e8] sm:$0xf]
      %v582 = vld [vmem:[%s193 + $0x5ec] sm:$0xf]
      %v583 = vld [vmem:[%s193 + $0x5f0] sm:$0xf]
      %v584 = vld [vmem:[%s193 + $0x5f4] sm:$0xf]
      %v585 = vld [vmem:[%s193 + $0x5f8] sm:$0xf]
      %v586 = vld [vmem:[%s193 + $0x5fc] sm:$0xf]
      %v587 = vld [vmem:[%s193 + $0x600] sm:$0xf]
      %v588 = vld [vmem:[%s193 + $0x604] sm:$0xf]
      %v589 = vld [vmem:[%s193 + $0x608] sm:$0xf]
      %v590 = vld [vmem:[%s193 + $0x60c] sm:$0xf]
      %v591 = vld [vmem:[%s193 + $0x610] sm:$0xf]
      %v592 = vld [vmem:[%s193 + $0x614] sm:$0xf]
      %v593 = vld [vmem:[%s193 + $0x618] sm:$0xf]
      %v594 = vld [vmem:[%s193 + $0x61c] sm:$0xf]
      %v595 = vld [vmem:[%s193 + $0x620] sm:$0xf]
      %v596 = vld [vmem:[%s193 + $0x624] sm:$0xf]
      %v597 = vld [vmem:[%s193 + $0x628] sm:$0xf]
      %v598 = vld [vmem:[%s193 + $0x62c] sm:$0xf]
      %v599 = vld [vmem:[%s193 + $0x630] sm:$0xf]
      %v600 = vld [vmem:[%s193 + $0x634] sm:$0xf]
      %v601 = vld [vmem:[%s193 + $0x638] sm:$0xf]
      %v602 = vld [vmem:[%s193 + $0x63c] sm:$0xf]
      %v603 = vld [vmem:[%s193 + $0x640] sm:$0xf]
      %v604 = vld [vmem:[%s193 + $0x644] sm:$0xf]
      %v605 = vld [vmem:[%s193 + $0x648] sm:$0xf]
      %v606 = vld [vmem:[%s193 + $0x64c] sm:$0xf]
      %v607 = vld [vmem:[%s193 + $0x650] sm:$0xf]
      %v608 = vld [vmem:[%s193 + $0x654] sm:$0xf]
      %v609 = vld [vmem:[%s193 + $0x658] sm:$0xf]
      %v610 = vld [vmem:[%s193 + $0x65c] sm:$0xf]
      %v611 = vld [vmem:[%s193 + $0x660] sm:$0xf]
      %v612 = vld [vmem:[%s193 + $0x664] sm:$0xf]
      %v613 = vld [vmem:[%s193 + $0x668] sm:$0xf]
      %v614 = vld [vmem:[%s193 + $0x66c] sm:$0xf]
      %v615 = vld [vmem:[%s193 + $0x670] sm:$0xf]
      %v616 = vld [vmem:[%s193 + $0x674] sm:$0xf]
      %v617 = vld [vmem:[%s193 + $0x678] sm:$0xf]
      %v618 = vld [vmem:[%s193 + $0x67c] sm:$0xf]
      %v619 = vld [vmem:[%s193 + $0x680] sm:$0xf]
      %v620 = vld [vmem:[%s193 + $0x684] sm:$0xf]
      %v621 = vld [vmem:[%s193 + $0x688] sm:$0xf]
      %v622 = vld [vmem:[%s193 + $0x68c] sm:$0xf]
      %v623 = vld [vmem:[%s193 + $0x690] sm:$0xf]
      %v624 = vld [vmem:[%s193 + $0x694] sm:$0xf]
      %v625 = vld [vmem:[%s193 + $0x698] sm:$0xf]
      %v626 = vld [vmem:[%s193 + $0x69c] sm:$0xf]
      %v627 = vld [vmem:[%s193 + $0x6a0] sm:$0xf]
      %v628 = vld [vmem:[%s193 + $0x6a4] sm:$0xf]
      %v629 = vld [vmem:[%s193 + $0x6a8] sm:$0xf]
      %v630 = vld [vmem:[%s193 + $0x6ac] sm:$0xf]
      %v631 = vld [vmem:[%s193 + $0x6b0] sm:$0xf]
      %v632 = vld [vmem:[%s193 + $0x6b4] sm:$0xf]
      %v633 = vld [vmem:[%s193 + $0x6b8] sm:$0xf]
      %v634 = vld [vmem:[%s193 + $0x6bc] sm:$0xf]
      %v635 = vld [vmem:[%s193 + $0x6c0] sm:$0xf]
      %v636 = vld [vmem:[%s193 + $0x6c4] sm:$0xf]
      %v637 = vld [vmem:[%s193 + $0x6c8] sm:$0xf]
      %v638 = vld [vmem:[%s193 + $0x6cc] sm:$0xf]
      %v639 = vld [vmem:[%s193 + $0x6d0] sm:$0xf]
      %v640 = vld [vmem:[%s193 + $0x6d4] sm:$0xf]
      %v641 = vld [vmem:[%s193 + $0x6d8] sm:$0xf]
      %v642 = vld [vmem:[%s193 + $0x6dc] sm:$0xf]
      %v643 = vld [vmem:[%s193 + $0x6e0] sm:$0xf]
      %v644 = vld [vmem:[%s193 + $0x6e4] sm:$0xf]
      %v645 = vld [vmem:[%s193 + $0x6e8] sm:$0xf]
      %v646 = vld [vmem:[%s193 + $0x6ec] sm:$0xf]
      %v647 = vld [vmem:[%s193 + $0x6f0] sm:$0xf]
      %v648 = vld [vmem:[%s193 + $0x6f4] sm:$0xf]
      %v649 = vld [vmem:[%s193 + $0x6f8] sm:$0xf]
      %v650 = vld [vmem:[%s193 + $0x6fc] sm:$0xf]
      %v651 = vld [vmem:[%s193 + $0x700] sm:$0xf]
      %v652 = vld [vmem:[%s193 + $0x704] sm:$0xf]
      %v653 = vld [vmem:[%s193 + $0x708] sm:$0x7]
      %v654 = vld [vmem:[%s1] sm:$0xff]
      %v655 = vld [vmem:[%s1 + $0x8] sm:$0xff]
      %v656 = vld [vmem:[%s1 + $0x10] sm:$0xff]
      %v657 = vld [vmem:[%s1 + $0x18] sm:$0xff]
      %v658 = vld [vmem:[%s1 + $0x20] sm:$0xff]
      %v659 = vld [vmem:[%s1 + $0x28] sm:$0xff]
      %v660 = vld [vmem:[%s1 + $0x30] sm:$0xff]
      %v661 = vld [vmem:[%s1 + $0x38] sm:$0xff]
      %v662 = vld [vmem:[%s1 + $0x40] sm:$0xff]
      %v663 = vld [vmem:[%s1 + $0x48] sm:$0xff]
      %v664 = vld [vmem:[%s1 + $0x50] sm:$0xff]
      %v665 = vld [vmem:[%s1 + $0x58] sm:$0xff]
      %v666 = vld [vmem:[%s1 + $0x60] sm:$0xff]
      %v667 = vld [vmem:[%s1 + $0x68] sm:$0xff]
      %v668 = vld [vmem:[%s1 + $0x70] sm:$0xf]
      %v669 = vld [vmem:[%s1 + $0x74] sm:$0xff]
      %v670 = vld [vmem:[%s1 + $0x7c] sm:$0xff]
      %v671 = vld [vmem:[%s1 + $0x84] sm:$0xff]
      %v672 = vld [vmem:[%s1 + $0x8c] sm:$0xff]
      %v673 = vld [vmem:[%s1 + $0x94] sm:$0xff]
      %v674 = vld [vmem:[%s1 + $0x9c] sm:$0xff]
      %v675 = vld [vmem:[%s1 + $0xa4] sm:$0xff]
      %v676 = vld [vmem:[%s1 + $0xac] sm:$0xff]
      %v677 = vld [vmem:[%s1 + $0xb4] sm:$0xff]
      %v678 = vld [vmem:[%s1 + $0xbc] sm:$0xff]
      %v679 = vld [vmem:[%s1 + $0xc4] sm:$0xff]
      %v680 = vld [vmem:[%s1 + $0xcc] sm:$0xff]
      %v681 = vld [vmem:[%s1 + $0xd4] sm:$0xff]
      %v682 = vld [vmem:[%s1 + $0xdc] sm:$0xff]
      %v683 = vld [vmem:[%s1 + $0xe4] sm:$0xf]
      %v714 = vunpack.c.l.b16 %v654
      %v715 = vunpack.c.h.b16 %v654
      %v716 = vunpack.c.l.b16 %v655
      %v717 = vunpack.c.h.b16 %v655
      %v718 = vunpack.c.l.b16 %v656
      %v719 = vunpack.c.h.b16 %v656
      %v720 = vunpack.c.l.b16 %v657
      %v721 = vunpack.c.h.b16 %v657
      %v722 = vunpack.c.l.b16 %v658
      %v723 = vunpack.c.h.b16 %v658
      %v724 = vunpack.c.l.b16 %v659
      %v725 = vunpack.c.h.b16 %v659
      %v726 = vunpack.c.l.b16 %v660
      %v727 = vunpack.c.h.b16 %v660
      %v728 = vunpack.c.l.b16 %v661
      %v729 = vunpack.c.h.b16 %v661
      %v730 = vunpack.c.l.b16 %v662
      %v731 = vunpack.c.h.b16 %v662
      %v732 = vunpack.c.l.b16 %v663
      %v733 = vunpack.c.h.b16 %v663
      %v734 = vunpack.c.l.b16 %v664
      %v735 = vunpack.c.h.b16 %v664
      %v736 = vunpack.c.l.b16 %v665
      %v737 = vunpack.c.h.b16 %v665
      %v738 = vunpack.c.l.b16 %v666
      %v739 = vunpack.c.h.b16 %v666
      %v740 = vunpack.c.l.b16 %v667
      %v741 = vunpack.c.h.b16 %v667
      %v742 = vunpack.c.l.b16 %v668
      %v743 = vunpack.c.l.b16 %v669
      %v744 = vunpack.c.h.b16 %v669
      %v745 = vunpack.c.l.b16 %v670
      %v746 = vunpack.c.h.b16 %v670
      %v747 = vunpack.c.l.b16 %v671
      %v748 = vunpack.c.h.b16 %v671
      %v749 = vunpack.c.l.b16 %v672
      %v750 = vunpack.c.h.b16 %v672
      %v751 = vunpack.c.l.b16 %v673
      %v752 = vunpack.c.h.b16 %v673
      %v753 = vunpack.c.l.b16 %v674
      %v754 = vunpack.c.h.b16 %v674
      %v755 = vunpack.c.l.b16 %v675
      %v756 = vunpack.c.h.b16 %v675
      %v757 = vunpack.c.l.b16 %v676
      %v758 = vunpack.c.h.b16 %v676
      %v759 = vunpack.c.l.b16 %v677
      %v760 = vunpack.c.h.b16 %v677
      %v761 = vunpack.c.l.b16 %v678
      %v762 = vunpack.c.h.b16 %v678
      %v763 = vunpack.c.l.b16 %v679
      %v764 = vunpack.c.h.b16 %v679
      %v765 = vunpack.c.l.b16 %v680
      %v766 = vunpack.c.h.b16 %v680
      %v767 = vunpack.c.l.b16 %v681
      %v768 = vunpack.c.h.b16 %v681
      %v769 = vunpack.c.l.b16 %v682
      %v770 = vunpack.c.h.b16 %v682
      %v771 = vunpack.c.l.b16 %v683
      %v772 = vpack.c.b16 %v743, %v714
      %v773 = vpack.c.b16 %v744, %v715
      %v774 = vpack.c.b16 %v745, %v716
      %v775 = vpack.c.b16 %v746, %v717
      %v776 = vpack.c.b16 %v747, %v718
      %v777 = vpack.c.b16 %v748, %v719
      %v778 = vpack.c.b16 %v749, %v720
      %v779 = vpack.c.b16 %v750, %v721
      %v780 = vpack.c.b16 %v751, %v722
      %v781 = vpack.c.b16 %v752, %v723
      %v782 = vpack.c.b16 %v753, %v724
      %v783 = vpack.c.b16 %v754, %v725
      %v784 = vpack.c.b16 %v755, %v726
      %v785 = vpack.c.b16 %v756, %v727
      %v786 = vpack.c.b16 %v757, %v728
      %v787 = vpack.c.b16 %v758, %v729
      %v788 = vpack.c.b16 %v759, %v730
      %v789 = vpack.c.b16 %v760, %v731
      %v790 = vpack.c.b16 %v761, %v732
      %v791 = vpack.c.b16 %v762, %v733
      %v792 = vpack.c.b16 %v763, %v734
      %v793 = vpack.c.b16 %v764, %v735
      %v794 = vpack.c.b16 %v765, %v736
      %v795 = vpack.c.b16 %v766, %v737
      %v796 = vpack.c.b16 %v767, %v738
      %v797 = vpack.c.b16 %v768, %v739
      %v798 = vpack.c.b16 %v769, %v740
      %v799 = vpack.c.b16 %v770, %v741
      %v800 = vpack.c.b16 %v771, %v742
      %v1280 = vunpack.c.l.b16 %v203
      %v1281 = vunpack.c.l.b16 %v204
      %v1282 = vunpack.c.l.b16 %v205
      %v1283 = vunpack.c.l.b16 %v206
      %v1284 = vunpack.c.l.b16 %v207
      %v1285 = vunpack.c.l.b16 %v208
      %v1286 = vunpack.c.l.b16 %v209
      %v1287 = vunpack.c.l.b16 %v210
      %v1288 = vunpack.c.l.b16 %v211
      %v1289 = vunpack.c.l.b16 %v212
      %v1290 = vunpack.c.l.b16 %v213
      %v1291 = vunpack.c.l.b16 %v214
      %v1292 = vunpack.c.l.b16 %v215
      %v1293 = vunpack.c.l.b16 %v216
      %v1294 = vunpack.c.l.b16 %v217
      %v1295 = vunpack.c.l.b16 %v218
      %v1296 = vunpack.c.l.b16 %v219
      %v1297 = vunpack.c.l.b16 %v220
      %v1298 = vunpack.c.l.b16 %v221
      %v1299 = vunpack.c.l.b16 %v222
      %v1300 = vunpack.c.l.b16 %v223
      %v1301 = vunpack.c.l.b16 %v224
      %v1302 = vunpack.c.l.b16 %v225
      %v1303 = vunpack.c.l.b16 %v226
      %v1304 = vunpack.c.l.b16 %v227
      %v1305 = vunpack.c.l.b16 %v228
      %v1306 = vunpack.c.l.b16 %v229
      %v1307 = vunpack.c.l.b16 %v230
      %v1308 = vunpack.c.l.b16 %v231
      %v1309 = vunpack.c.l.b16 %v232
      %v1310 = vunpack.c.l.b16 %v233
      %v1311 = vunpack.c.l.b16 %v234
      %v1312 = vunpack.c.l.b16 %v235
      %v1313 = vunpack.c.l.b16 %v236
      %v1314 = vunpack.c.l.b16 %v237
      %v1315 = vunpack.c.l.b16 %v238
      %v1316 = vunpack.c.l.b16 %v239
      %v1317 = vunpack.c.l.b16 %v240
      %v1318 = vunpack.c.l.b16 %v241
      %v1319 = vunpack.c.l.b16 %v242
      %v1320 = vunpack.c.l.b16 %v243
      %v1321 = vunpack.c.l.b16 %v244
      %v1322 = vunpack.c.l.b16 %v245
      %v1323 = vunpack.c.l.b16 %v246
      %v1324 = vunpack.c.l.b16 %v247
      %v1325 = vunpack.c.l.b16 %v248
      %v1326 = vunpack.c.l.b16 %v249
      %v1327 = vunpack.c.l.b16 %v250
      %v1328 = vunpack.c.l.b16 %v251
      %v1329 = vunpack.c.l.b16 %v252
      %v1330 = vunpack.c.l.b16 %v253
      %v1331 = vunpack.c.l.b16 %v254
      %v1332 = vunpack.c.l.b16 %v255
      %v1333 = vunpack.c.l.b16 %v256
      %v1334 = vunpack.c.l.b16 %v257
      %v1335 = vunpack.c.l.b16 %v258
      %v1336 = vunpack.c.l.b16 %v259
      %v1337 = vunpack.c.l.b16 %v260
      %v1338 = vunpack.c.l.b16 %v261
      %v1339 = vunpack.c.l.b16 %v262
      %v1340 = vunpack.c.l.b16 %v263
      %v1341 = vunpack.c.l.b16 %v264
      %v1342 = vunpack.c.l.b16 %v265
      %v1343 = vunpack.c.l.b16 %v266
      %v1344 = vunpack.c.l.b16 %v267
      %v1345 = vunpack.c.l.b16 %v268
      %v1346 = vunpack.c.l.b16 %v269
      %v1347 = vunpack.c.l.b16 %v270
      %v1348 = vunpack.c.l.b16 %v271
      %v1349 = vunpack.c.l.b16 %v272
      %v1350 = vunpack.c.l.b16 %v273
      %v1351 = vunpack.c.l.b16 %v274
      %v1352 = vunpack.c.l.b16 %v275
      %v1353 = vunpack.c.l.b16 %v276
      %v1354 = vunpack.c.l.b16 %v277
      %v1355 = vunpack.c.l.b16 %v278
      %v1356 = vunpack.c.l.b16 %v279
      %v1357 = vunpack.c.l.b16 %v280
      %v1358 = vunpack.c.l.b16 %v281
      %v1359 = vunpack.c.l.b16 %v282
      %v1360 = vunpack.c.l.b16 %v283
      %v1361 = vunpack.c.l.b16 %v284
      %v1362 = vunpack.c.l.b16 %v285
      %v1363 = vunpack.c.l.b16 %v286
      %v1364 = vunpack.c.l.b16 %v287
      %v1365 = vunpack.c.l.b16 %v288
      %v1366 = vunpack.c.l.b16 %v289
      %v1367 = vunpack.c.l.b16 %v290
      %v1368 = vunpack.c.l.b16 %v291
      %v1369 = vunpack.c.l.b16 %v292
      %v1370 = vunpack.c.l.b16 %v293
      %v1371 = vunpack.c.l.b16 %v294
      %v1372 = vunpack.c.l.b16 %v295
      %v1373 = vunpack.c.l.b16 %v296
      %v1374 = vunpack.c.l.b16 %v297
      %v1375 = vunpack.c.l.b16 %v298
      %v1376 = vunpack.c.l.b16 %v299
      %v1377 = vunpack.c.l.b16 %v300
      %v1378 = vunpack.c.l.b16 %v301
      %v1379 = vunpack.c.l.b16 %v302
      %v1380 = vunpack.c.l.b16 %v303
      %v1381 = vunpack.c.l.b16 %v304
      %v1382 = vunpack.c.l.b16 %v305
      %v1383 = vunpack.c.l.b16 %v306
      %v1384 = vunpack.c.l.b16 %v307
      %v1385 = vunpack.c.l.b16 %v308
      %v1386 = vunpack.c.l.b16 %v309
      %v1387 = vunpack.c.l.b16 %v310
      %v1388 = vunpack.c.l.b16 %v311
      %v1389 = vunpack.c.l.b16 %v312
      %v1390 = vunpack.c.l.b16 %v313
      %v1391 = vunpack.c.l.b16 %v314
      %v1392 = vunpack.c.l.b16 %v315
      %v1393 = vunpack.c.l.b16 %v316
      %v1394 = vunpack.c.l.b16 %v317
      %v1395 = vunpack.c.l.b16 %v318
      %v1396 = vunpack.c.l.b16 %v319
      %v1397 = vunpack.c.l.b16 %v320
      %v1398 = vunpack.c.l.b16 %v321
      %v1399 = vunpack.c.l.b16 %v322
      %v1400 = vunpack.c.l.b16 %v323
      %v1401 = vunpack.c.l.b16 %v324
      %v1402 = vunpack.c.l.b16 %v325
      %v1403 = vunpack.c.l.b16 %v326
      %v1404 = vunpack.c.l.b16 %v327
      %v1405 = vunpack.c.l.b16 %v328
      %v1406 = vunpack.c.l.b16 %v329
      %v1407 = vunpack.c.l.b16 %v330
      %v1408 = vunpack.c.l.b16 %v331
      %v1409 = vunpack.c.l.b16 %v332
      %v1410 = vunpack.c.l.b16 %v333
      %v1411 = vunpack.c.l.b16 %v334
      %v1412 = vunpack.c.l.b16 %v335
      %v1413 = vunpack.c.l.b16 %v336
      %v1414 = vunpack.c.l.b16 %v337
      %v1415 = vunpack.c.l.b16 %v338
      %v1416 = vunpack.c.l.b16 %v339
      %v1417 = vunpack.c.l.b16 %v340
      %v1418 = vunpack.c.l.b16 %v341
      %v1419 = vunpack.c.l.b16 %v342
      %v1420 = vunpack.c.l.b16 %v343
      %v1421 = vunpack.c.l.b16 %v344
      %v1422 = vunpack.c.l.b16 %v345
      %v1423 = vunpack.c.l.b16 %v346
      %v1424 = vunpack.c.l.b16 %v347
      %v1425 = vunpack.c.l.b16 %v348
      %v1426 = vunpack.c.l.b16 %v349
      %v1427 = vunpack.c.l.b16 %v350
      %v1428 = vunpack.c.l.b16 %v351
      %v1429 = vunpack.c.l.b16 %v352
      %v1430 = vunpack.c.l.b16 %v353
      %v1431 = vunpack.c.l.b16 %v354
      %v1432 = vunpack.c.l.b16 %v355
      %v1433 = vunpack.c.l.b16 %v356
      %v1434 = vunpack.c.l.b16 %v357
      %v1435 = vunpack.c.l.b16 %v358
      %v1436 = vunpack.c.l.b16 %v359
      %v1437 = vunpack.c.l.b16 %v360
      %v1438 = vunpack.c.l.b16 %v361
      %v1439 = vunpack.c.l.b16 %v362
      %v1440 = vunpack.c.l.b16 %v363
      %v1441 = vunpack.c.l.b16 %v364
      %v1442 = vunpack.c.l.b16 %v365
      %v1443 = vunpack.c.l.b16 %v366
      %v1444 = vunpack.c.l.b16 %v367
      %v1445 = vunpack.c.l.b16 %v368
      %v1446 = vunpack.c.l.b16 %v369
      %v1447 = vunpack.c.l.b16 %v370
      %v1448 = vunpack.c.l.b16 %v371
      %v1449 = vunpack.c.l.b16 %v372
      %v1450 = vunpack.c.l.b16 %v373
      %v1451 = vunpack.c.l.b16 %v374
      %v1452 = vunpack.c.l.b16 %v375
      %v1453 = vunpack.c.l.b16 %v376
      %v1454 = vunpack.c.l.b16 %v377
      %v1455 = vunpack.c.l.b16 %v378
      %v1456 = vunpack.c.l.b16 %v379
      %v1457 = vunpack.c.l.b16 %v380
      %v1458 = vunpack.c.l.b16 %v381
      %v1459 = vunpack.c.l.b16 %v382
      %v1460 = vunpack.c.l.b16 %v383
      %v1461 = vunpack.c.l.b16 %v384
      %v1462 = vunpack.c.l.b16 %v385
      %v1463 = vunpack.c.l.b16 %v386
      %v1464 = vunpack.c.l.b16 %v387
      %v1465 = vunpack.c.l.b16 %v388
      %v1466 = vunpack.c.l.b16 %v389
      %v1467 = vunpack.c.l.b16 %v390
      %v1468 = vunpack.c.l.b16 %v391
      %v1469 = vunpack.c.l.b16 %v392
      %v1470 = vunpack.c.l.b16 %v393
      %v1471 = vunpack.c.l.b16 %v394
      %v1472 = vunpack.c.l.b16 %v395
      %v1473 = vunpack.c.l.b16 %v396
      %v1474 = vunpack.c.l.b16 %v397
      %v1475 = vunpack.c.l.b16 %v398
      %v1476 = vunpack.c.l.b16 %v399
      %v1477 = vunpack.c.l.b16 %v400
      %v1478 = vunpack.c.l.b16 %v401
      %v1479 = vunpack.c.l.b16 %v402
      %v1480 = vunpack.c.l.b16 %v403
      %v1481 = vunpack.c.l.b16 %v404
      %v1482 = vunpack.c.l.b16 %v405
      %v1483 = vunpack.c.l.b16 %v406
      %v1484 = vunpack.c.l.b16 %v407
      %v1485 = vunpack.c.l.b16 %v408
      %v1486 = vunpack.c.l.b16 %v409
      %v1487 = vunpack.c.l.b16 %v410
      %v1488 = vunpack.c.l.b16 %v411
      %v1489 = vunpack.c.l.b16 %v412
      %v1490 = vunpack.c.l.b16 %v413
      %v1491 = vunpack.c.l.b16 %v414
      %v1492 = vunpack.c.l.b16 %v415
      %v1493 = vunpack.c.l.b16 %v416
      %v1494 = vunpack.c.l.b16 %v417
      %v1495 = vunpack.c.l.b16 %v418
      %v1496 = vunpack.c.l.b16 %v419
      %v1497 = vunpack.c.l.b16 %v420
      %v1498 = vunpack.c.l.b16 %v421
      %v1499 = vunpack.c.l.b16 %v422
      %v1500 = vunpack.c.l.b16 %v423
      %v1501 = vunpack.c.l.b16 %v424
      %v1502 = vunpack.c.l.b16 %v425
      %v1503 = vunpack.c.l.b16 %v426
      %v1504 = vunpack.c.l.b16 %v427
      %v1505 = vunpack.c.l.b16 %v428
      %v1506 = vunpack.c.l.b16 %v429
      %v1507 = vunpack.c.l.b16 %v430
      %v1508 = vunpack.c.l.b16 %v431
      %v1509 = vunpack.c.l.b16 %v432
      %v1510 = vunpack.c.l.b16 %v433
      %v1511 = vunpack.c.l.b16 %v434
      %v1512 = vunpack.c.l.b16 %v435
      %v1513 = vunpack.c.l.b16 %v436
      %v1514 = vunpack.c.l.b16 %v437
      %v1515 = vunpack.c.l.b16 %v438
      %v1516 = vunpack.c.l.b16 %v439
      %v1517 = vunpack.c.l.b16 %v440
      %v1518 = vunpack.c.l.b16 %v441
      %v1519 = vunpack.c.l.b16 %v442
      %v1520 = vunpack.c.l.b16 %v443
      %v1521 = vunpack.c.l.b16 %v444
      %v1522 = vunpack.c.l.b16 %v445
      %v1523 = vunpack.c.l.b16 %v446
      %v1524 = vunpack.c.l.b16 %v447
      %v1525 = vunpack.c.l.b16 %v448
      %v1526 = vunpack.c.l.b16 %v449
      %v1527 = vunpack.c.l.b16 %v450
      %v1528 = vunpack.c.l.b16 %v451
      %v1529 = vunpack.c.l.b16 %v452
      %v1530 = vunpack.c.l.b16 %v453
      %v1531 = vunpack.c.l.b16 %v454
      %v1532 = vunpack.c.l.b16 %v455
      %v1533 = vunpack.c.l.b16 %v456
      %v1534 = vunpack.c.l.b16 %v457
      %v1535 = vunpack.c.l.b16 %v458
      %v1536 = vunpack.c.l.b16 %v459
      %v1537 = vunpack.c.l.b16 %v460
      %v1538 = vunpack.c.l.b16 %v461
      %v1539 = vunpack.c.l.b16 %v462
      %v1540 = vunpack.c.l.b16 %v463
      %v1541 = vunpack.c.l.b16 %v464
      %v1542 = vunpack.c.l.b16 %v465
      %v1543 = vunpack.c.l.b16 %v466
      %v1544 = vunpack.c.l.b16 %v467
      %v1545 = vunpack.c.l.b16 %v468
      %v1546 = vunpack.c.l.b16 %v469
      %v1547 = vunpack.c.l.b16 %v470
      %v1548 = vunpack.c.l.b16 %v471
      %v1549 = vunpack.c.l.b16 %v472
      %v1550 = vunpack.c.l.b16 %v473
      %v1551 = vunpack.c.l.b16 %v474
      %v1552 = vunpack.c.l.b16 %v475
      %v1553 = vunpack.c.l.b16 %v476
      %v1554 = vunpack.c.l.b16 %v477
      %v1555 = vunpack.c.l.b16 %v478
      %v1556 = vunpack.c.l.b16 %v479
      %v1557 = vunpack.c.l.b16 %v480
      %v1558 = vunpack.c.l.b16 %v481
      %v1559 = vunpack.c.l.b16 %v482
      %v1560 = vunpack.c.l.b16 %v483
      %v1561 = vunpack.c.l.b16 %v484
      %v1562 = vunpack.c.l.b16 %v485
      %v1563 = vunpack.c.l.b16 %v486
      %v1564 = vunpack.c.l.b16 %v487
      %v1565 = vunpack.c.l.b16 %v488
      %v1566 = vunpack.c.l.b16 %v489
      %v1567 = vunpack.c.l.b16 %v490
      %v1568 = vunpack.c.l.b16 %v491
      %v1569 = vunpack.c.l.b16 %v492
      %v1570 = vunpack.c.l.b16 %v493
      %v1571 = vunpack.c.l.b16 %v494
      %v1572 = vunpack.c.l.b16 %v495
      %v1573 = vunpack.c.l.b16 %v496
      %v1574 = vunpack.c.l.b16 %v497
      %v1575 = vunpack.c.l.b16 %v498
      %v1576 = vunpack.c.l.b16 %v499
      %v1577 = vunpack.c.l.b16 %v500
      %v1578 = vunpack.c.l.b16 %v501
      %v1579 = vunpack.c.l.b16 %v502
      %v1580 = vunpack.c.l.b16 %v503
      %v1581 = vunpack.c.l.b16 %v504
      %v1582 = vunpack.c.l.b16 %v505
      %v1583 = vunpack.c.l.b16 %v506
      %v1584 = vunpack.c.l.b16 %v507
      %v1585 = vunpack.c.l.b16 %v508
      %v1586 = vunpack.c.l.b16 %v509
      %v1587 = vunpack.c.l.b16 %v510
      %v1588 = vunpack.c.l.b16 %v511
      %v1589 = vunpack.c.l.b16 %v512
      %v1590 = vunpack.c.l.b16 %v513
      %v1591 = vunpack.c.l.b16 %v514
      %v1592 = vunpack.c.l.b16 %v515
      %v1593 = vunpack.c.l.b16 %v516
      %v1594 = vunpack.c.l.b16 %v517
      %v1595 = vunpack.c.l.b16 %v518
      %v1596 = vunpack.c.l.b16 %v519
      %v1597 = vunpack.c.l.b16 %v520
      %v1598 = vunpack.c.l.b16 %v521
      %v1599 = vunpack.c.l.b16 %v522
      %v1600 = vunpack.c.l.b16 %v523
      %v1601 = vunpack.c.l.b16 %v524
      %v1602 = vunpack.c.l.b16 %v525
      %v1603 = vunpack.c.l.b16 %v526
      %v1604 = vunpack.c.l.b16 %v527
      %v1605 = vunpack.c.l.b16 %v528
      %v1606 = vunpack.c.l.b16 %v529
      %v1607 = vunpack.c.l.b16 %v530
      %v1608 = vunpack.c.l.b16 %v531
      %v1609 = vunpack.c.l.b16 %v532
      %v1610 = vunpack.c.l.b16 %v533
      %v1611 = vunpack.c.l.b16 %v534
      %v1612 = vunpack.c.l.b16 %v535
      %v1613 = vunpack.c.l.b16 %v536
      %v1614 = vunpack.c.l.b16 %v537
      %v1615 = vunpack.c.l.b16 %v538
      %v1616 = vunpack.c.l.b16 %v539
      %v1617 = vunpack.c.l.b16 %v540
      %v1618 = vunpack.c.l.b16 %v541
      %v1619 = vunpack.c.l.b16 %v542
      %v1620 = vunpack.c.l.b16 %v543
      %v1621 = vunpack.c.l.b16 %v544
      %v1622 = vunpack.c.l.b16 %v545
      %v1623 = vunpack.c.l.b16 %v546
      %v1624 = vunpack.c.l.b16 %v547
      %v1625 = vunpack.c.l.b16 %v548
      %v1626 = vunpack.c.l.b16 %v549
      %v1627 = vunpack.c.l.b16 %v550
      %v1628 = vunpack.c.l.b16 %v551
      %v1629 = vunpack.c.l.b16 %v552
      %v1630 = vunpack.c.l.b16 %v553
      %v1631 = vunpack.c.l.b16 %v554
      %v1632 = vunpack.c.l.b16 %v555
      %v1633 = vunpack.c.l.b16 %v556
      %v1634 = vunpack.c.l.b16 %v557
      %v1635 = vunpack.c.l.b16 %v558
      %v1636 = vunpack.c.l.b16 %v559
      %v1637 = vunpack.c.l.b16 %v560
      %v1638 = vunpack.c.l.b16 %v561
      %v1639 = vunpack.c.l.b16 %v562
      %v1640 = vunpack.c.l.b16 %v563
      %v1641 = vunpack.c.l.b16 %v564
      %v1642 = vunpack.c.l.b16 %v565
      %v1643 = vunpack.c.l.b16 %v566
      %v1644 = vunpack.c.l.b16 %v567
      %v1645 = vunpack.c.l.b16 %v568
      %v1646 = vunpack.c.l.b16 %v569
      %v1647 = vunpack.c.l.b16 %v570
      %v1648 = vunpack.c.l.b16 %v571
      %v1649 = vunpack.c.l.b16 %v572
      %v1650 = vunpack.c.l.b16 %v573
      %v1651 = vunpack.c.l.b16 %v574
      %v1652 = vunpack.c.l.b16 %v575
      %v1653 = vunpack.c.l.b16 %v576
      %v1654 = vunpack.c.l.b16 %v577
      %v1655 = vunpack.c.l.b16 %v578
      %v1656 = vunpack.c.l.b16 %v579
      %v1657 = vunpack.c.l.b16 %v580
      %v1658 = vunpack.c.l.b16 %v581
      %v1659 = vunpack.c.l.b16 %v582
      %v1660 = vunpack.c.l.b16 %v583
      %v1661 = vunpack.c.l.b16 %v584
      %v1662 = vunpack.c.l.b16 %v585
      %v1663 = vunpack.c.l.b16 %v586
      %v1664 = vunpack.c.l.b16 %v587
      %v1665 = vunpack.c.l.b16 %v588
      %v1666 = vunpack.c.l.b16 %v589
      %v1667 = vunpack.c.l.b16 %v590
      %v1668 = vunpack.c.l.b16 %v591
      %v1669 = vunpack.c.l.b16 %v592
      %v1670 = vunpack.c.l.b16 %v593
      %v1671 = vunpack.c.l.b16 %v594
      %v1672 = vunpack.c.l.b16 %v595
      %v1673 = vunpack.c.l.b16 %v596
      %v1674 = vunpack.c.l.b16 %v597
      %v1675 = vunpack.c.l.b16 %v598
      %v1676 = vunpack.c.l.b16 %v599
      %v1677 = vunpack.c.l.b16 %v600
      %v1678 = vunpack.c.l.b16 %v601
      %v1679 = vunpack.c.l.b16 %v602
      %v1680 = vunpack.c.l.b16 %v603
      %v1681 = vunpack.c.l.b16 %v604
      %v1682 = vunpack.c.l.b16 %v605
      %v1683 = vunpack.c.l.b16 %v606
      %v1684 = vunpack.c.l.b16 %v607
      %v1685 = vunpack.c.l.b16 %v608
      %v1686 = vunpack.c.l.b16 %v609
      %v1687 = vunpack.c.l.b16 %v610
      %v1688 = vunpack.c.l.b16 %v611
      %v1689 = vunpack.c.l.b16 %v612
      %v1690 = vunpack.c.l.b16 %v613
      %v1691 = vunpack.c.l.b16 %v614
      %v1692 = vunpack.c.l.b16 %v615
      %v1693 = vunpack.c.l.b16 %v616
      %v1694 = vunpack.c.l.b16 %v617
      %v1695 = vunpack.c.l.b16 %v618
      %v1696 = vunpack.c.l.b16 %v619
      %v1697 = vunpack.c.l.b16 %v620
      %v1698 = vunpack.c.l.b16 %v621
      %v1699 = vunpack.c.l.b16 %v622
      %v1700 = vunpack.c.l.b16 %v623
      %v1701 = vunpack.c.l.b16 %v624
      %v1702 = vunpack.c.l.b16 %v625
      %v1703 = vunpack.c.l.b16 %v626
      %v1704 = vunpack.c.l.b16 %v627
      %v1705 = vunpack.c.l.b16 %v628
      %v1706 = vunpack.c.l.b16 %v629
      %v1707 = vunpack.c.l.b16 %v630
      %v1708 = vunpack.c.l.b16 %v631
      %v1709 = vunpack.c.l.b16 %v632
      %v1710 = vunpack.c.l.b16 %v633
      %v1711 = vunpack.c.l.b16 %v634
      %v1712 = vunpack.c.l.b16 %v635
      %v1713 = vunpack.c.l.b16 %v636
      %v1714 = vunpack.c.l.b16 %v637
      %v1715 = vunpack.c.l.b16 %v638
      %v1716 = vunpack.c.l.b16 %v639
      %v1717 = vunpack.c.l.b16 %v640
      %v1718 = vunpack.c.l.b16 %v641
      %v1719 = vunpack.c.l.b16 %v642
      %v1720 = vunpack.c.l.b16 %v643
      %v1721 = vunpack.c.l.b16 %v644
      %v1722 = vunpack.c.l.b16 %v645
      %v1723 = vunpack.c.l.b16 %v646
      %v1724 = vunpack.c.l.b16 %v647
      %v1725 = vunpack.c.l.b16 %v648
      %v1726 = vunpack.c.l.b16 %v649
      %v1727 = vunpack.c.l.b16 %v650
      %v1728 = vunpack.c.l.b16 %v651
      %v1729 = vunpack.c.l.b16 %v652
      %v1730 = vunpack.c.l.b16 %v653
      %v1731 = vpack.c.b16 %v1281, %v1280
      %v1732 = vpack.c.b16 %v1283, %v1282
      %v1733 = vpack.c.b16 %v1285, %v1284
      %v1734 = vpack.c.b16 %v1287, %v1286
      %v1735 = vpack.c.b16 %v1289, %v1288
      %v1736 = vpack.c.b16 %v1291, %v1290
      %v1737 = vpack.c.b16 %v1293, %v1292
      %v1738 = vpack.c.b16 %v1295, %v1294
      %v1739 = vpack.c.b16 %v1297, %v1296
      %v1740 = vpack.c.b16 %v1299, %v1298
      %v1741 = vpack.c.b16 %v1301, %v1300
      %v1742 = vpack.c.b16 %v1303, %v1302
      %v1743 = vpack.c.b16 %v1305, %v1304
      %v1744 = vpack.c.b16 %v1307, %v1306
      %v1745 = vpack.c.b16 %v1309, %v1308
      %v1746 = vpack.c.b16 %v1311, %v1310
      %v1747 = vpack.c.b16 %v1313, %v1312
      %v1748 = vpack.c.b16 %v1315, %v1314
      %v1749 = vpack.c.b16 %v1317, %v1316
      %v1750 = vpack.c.b16 %v1319, %v1318
      %v1751 = vpack.c.b16 %v1321, %v1320
      %v1752 = vpack.c.b16 %v1323, %v1322
      %v1753 = vpack.c.b16 %v1325, %v1324
      %v1754 = vpack.c.b16 %v1327, %v1326
      %v1755 = vpack.c.b16 %v1329, %v1328
      %v1756 = vpack.c.b16 %v1331, %v1330
      %v1757 = vpack.c.b16 %v1333, %v1332
      %v1758 = vpack.c.b16 %v1335, %v1334
      %v1759 = vpack.c.b16 %v1337, %v1336
      %v1760 = vpack.c.b16 %v1339, %v1338
      %v1761 = vpack.c.b16 %v1341, %v1340
      %v1762 = vpack.c.b16 %v1343, %v1342
      %v1763 = vpack.c.b16 %v1345, %v1344
      %v1764 = vpack.c.b16 %v1347, %v1346
      %v1765 = vpack.c.b16 %v1349, %v1348
      %v1766 = vpack.c.b16 %v1351, %v1350
      %v1767 = vpack.c.b16 %v1353, %v1352
      %v1768 = vpack.c.b16 %v1355, %v1354
      %v1769 = vpack.c.b16 %v1357, %v1356
      %v1770 = vpack.c.b16 %v1359, %v1358
      %v1771 = vpack.c.b16 %v1361, %v1360
      %v1772 = vpack.c.b16 %v1363, %v1362
      %v1773 = vpack.c.b16 %v1365, %v1364
      %v1774 = vpack.c.b16 %v1367, %v1366
      %v1775 = vpack.c.b16 %v1369, %v1368
      %v1776 = vpack.c.b16 %v1371, %v1370
      %v1777 = vpack.c.b16 %v1373, %v1372
      %v1778 = vpack.c.b16 %v1375, %v1374
      %v1779 = vpack.c.b16 %v1377, %v1376
      %v1780 = vpack.c.b16 %v1379, %v1378
      %v1781 = vpack.c.b16 %v1381, %v1380
      %v1782 = vpack.c.b16 %v1383, %v1382
      %v1783 = vpack.c.b16 %v1385, %v1384
      %v1784 = vpack.c.b16 %v1387, %v1386
      %v1785 = vpack.c.b16 %v1389, %v1388
      %v1786 = vpack.c.b16 %v1391, %v1390
      %v1787 = vpack.c.b16 %v1393, %v1392
      %v1788 = vpack.c.b16 %v1395, %v1394
      %v1789 = vpack.c.b16 %v1397, %v1396
      %v1790 = vpack.c.b16 %v1399, %v1398
      %v1791 = vpack.c.b16 %v1401, %v1400
      %v1792 = vpack.c.b16 %v1403, %v1402
      %v1793 = vpack.c.b16 %v1405, %v1404
      %v1794 = vpack.c.b16 %v1407, %v1406
      %v1795 = vpack.c.b16 %v1409, %v1408
      %v1796 = vpack.c.b16 %v1411, %v1410
      %v1797 = vpack.c.b16 %v1413, %v1412
      %v1798 = vpack.c.b16 %v1415, %v1414
      %v1799 = vpack.c.b16 %v1417, %v1416
      %v1800 = vpack.c.b16 %v1419, %v1418
      %v1801 = vpack.c.b16 %v1421, %v1420
      %v1802 = vpack.c.b16 %v1423, %v1422
      %v1803 = vpack.c.b16 %v1425, %v1424
      %v1804 = vpack.c.b16 %v1427, %v1426
      %v1805 = vpack.c.b16 %v1429, %v1428
      %v1806 = vpack.c.b16 %v1431, %v1430
      %v1807 = vpack.c.b16 %v1433, %v1432
      %v1808 = vpack.c.b16 %v1435, %v1434
      %v1809 = vpack.c.b16 %v1437, %v1436
      %v1810 = vpack.c.b16 %v1439, %v1438
      %v1811 = vpack.c.b16 %v1441, %v1440
      %v1812 = vpack.c.b16 %v1443, %v1442
      %v1813 = vpack.c.b16 %v1445, %v1444
      %v1814 = vpack.c.b16 %v1447, %v1446
      %v1815 = vpack.c.b16 %v1449, %v1448
      %v1816 = vpack.c.b16 %v1451, %v1450
      %v1817 = vpack.c.b16 %v1453, %v1452
      %v1818 = vpack.c.b16 %v1455, %v1454
      %v1819 = vpack.c.b16 %v1457, %v1456
      %v1820 = vpack.c.b16 %v1459, %v1458
      %v1821 = vpack.c.b16 %v1461, %v1460
      %v1822 = vpack.c.b16 %v1463, %v1462
      %v1823 = vpack.c.b16 %v1465, %v1464
      %v1824 = vpack.c.b16 %v1467, %v1466
      %v1825 = vpack.c.b16 %v1469, %v1468
      %v1826 = vpack.c.b16 %v1471, %v1470
      %v1827 = vpack.c.b16 %v1473, %v1472
      %v1828 = vpack.c.b16 %v1475, %v1474
      %v1829 = vpack.c.b16 %v1477, %v1476
      %v1830 = vpack.c.b16 %v1479, %v1478
      %v1831 = vpack.c.b16 %v1481, %v1480
      %v1832 = vpack.c.b16 %v1483, %v1482
      %v1833 = vpack.c.b16 %v1485, %v1484
      %v1834 = vpack.c.b16 %v1487, %v1486
      %v1835 = vpack.c.b16 %v1489, %v1488
      %v1836 = vpack.c.b16 %v1491, %v1490
      %v1837 = vpack.c.b16 %v1493, %v1492
      %v1838 = vpack.c.b16 %v1495, %v1494
      %v1839 = vpack.c.b16 %v1497, %v1496
      %v1840 = vpack.c.b16 %v1499, %v1498
      %v1841 = vpack.c.b16 %v1501, %v1500
      %v1842 = vpack.c.b16 %v1503, %v1502
      %v1843 = vpack.c.b16 %v1505, %v1504
      %v1844 = vpack.c.b16 %v1507, %v1506
      %v1845 = vpack.c.b16 %v1509, %v1508
      %v1846 = vpack.c.b16 %v1511, %v1510
      %v1847 = vpack.c.b16 %v1513, %v1512
      %v1848 = vpack.c.b16 %v1515, %v1514
      %v1849 = vpack.c.b16 %v1517, %v1516
      %v1850 = vpack.c.b16 %v1519, %v1518
      %v1851 = vpack.c.b16 %v1521, %v1520
      %v1852 = vpack.c.b16 %v1523, %v1522
      %v1853 = vpack.c.b16 %v1525, %v1524
      %v1854 = vpack.c.b16 %v1527, %v1526
      %v1855 = vpack.c.b16 %v1529, %v1528
      %v1856 = vpack.c.b16 %v1531, %v1530
      %v1857 = vpack.c.b16 %v1533, %v1532
      %v1858 = vpack.c.b16 %v1535, %v1534
      %v1859 = vpack.c.b16 %v1537, %v1536
      %v1860 = vpack.c.b16 %v1539, %v1538
      %v1861 = vpack.c.b16 %v1541, %v1540
      %v1862 = vpack.c.b16 %v1543, %v1542
      %v1863 = vpack.c.b16 %v1545, %v1544
      %v1864 = vpack.c.b16 %v1547, %v1546
      %v1865 = vpack.c.b16 %v1549, %v1548
      %v1866 = vpack.c.b16 %v1551, %v1550
      %v1867 = vpack.c.b16 %v1553, %v1552
      %v1868 = vpack.c.b16 %v1555, %v1554
      %v1869 = vpack.c.b16 %v1557, %v1556
      %v1870 = vpack.c.b16 %v1559, %v1558
      %v1871 = vpack.c.b16 %v1561, %v1560
      %v1872 = vpack.c.b16 %v1563, %v1562
      %v1873 = vpack.c.b16 %v1565, %v1564
      %v1874 = vpack.c.b16 %v1567, %v1566
      %v1875 = vpack.c.b16 %v1569, %v1568
      %v1876 = vpack.c.b16 %v1571, %v1570
      %v1877 = vpack.c.b16 %v1573, %v1572
      %v1878 = vpack.c.b16 %v1575, %v1574
      %v1879 = vpack.c.b16 %v1577, %v1576
      %v1880 = vpack.c.b16 %v1579, %v1578
      %v1881 = vpack.c.b16 %v1581, %v1580
      %v1882 = vpack.c.b16 %v1583, %v1582
      %v1883 = vpack.c.b16 %v1585, %v1584
      %v1884 = vpack.c.b16 %v1587, %v1586
      %v1885 = vpack.c.b16 %v1589, %v1588
      %v1886 = vpack.c.b16 %v1591, %v1590
      %v1887 = vpack.c.b16 %v1593, %v1592
      %v1888 = vpack.c.b16 %v1595, %v1594
      %v1889 = vpack.c.b16 %v1597, %v1596
      %v1890 = vpack.c.b16 %v1599, %v1598
      %v1891 = vpack.c.b16 %v1601, %v1600
      %v1892 = vpack.c.b16 %v1603, %v1602
      %v1893 = vpack.c.b16 %v1605, %v1604
      %v1894 = vpack.c.b16 %v1607, %v1606
      %v1895 = vpack.c.b16 %v1609, %v1608
      %v1896 = vpack.c.b16 %v1611, %v1610
      %v1897 = vpack.c.b16 %v1613, %v1612
      %v1898 = vpack.c.b16 %v1615, %v1614
      %v1899 = vpack.c.b16 %v1617, %v1616
      %v1900 = vpack.c.b16 %v1619, %v1618
      %v1901 = vpack.c.b16 %v1621, %v1620
      %v1902 = vpack.c.b16 %v1623, %v1622
      %v1903 = vpack.c.b16 %v1625, %v1624
      %v1904 = vpack.c.b16 %v1627, %v1626
      %v1905 = vpack.c.b16 %v1629, %v1628
      %v1906 = vpack.c.b16 %v1631, %v1630
      %v1907 = vpack.c.b16 %v1633, %v1632
      %v1908 = vpack.c.b16 %v1635, %v1634
      %v1909 = vpack.c.b16 %v1637, %v1636
      %v1910 = vpack.c.b16 %v1639, %v1638
      %v1911 = vpack.c.b16 %v1641, %v1640
      %v1912 = vpack.c.b16 %v1643, %v1642
      %v1913 = vpack.c.b16 %v1645, %v1644
      %v1914 = vpack.c.b16 %v1647, %v1646
      %v1915 = vpack.c.b16 %v1649, %v1648
      %v1916 = vpack.c.b16 %v1651, %v1650
      %v1917 = vpack.c.b16 %v1653, %v1652
      %v1918 = vpack.c.b16 %v1655, %v1654
      %v1919 = vpack.c.b16 %v1657, %v1656
      %v1920 = vpack.c.b16 %v1659, %v1658
      %v1921 = vpack.c.b16 %v1661, %v1660
      %v1922 = vpack.c.b16 %v1663, %v1662
      %v1923 = vpack.c.b16 %v1665, %v1664
      %v1924 = vpack.c.b16 %v1667, %v1666
      %v1925 = vpack.c.b16 %v1669, %v1668
      %v1926 = vpack.c.b16 %v1671, %v1670
      %v1927 = vpack.c.b16 %v1673, %v1672
      %v1928 = vpack.c.b16 %v1675, %v1674
      %v1929 = vpack.c.b16 %v1677, %v1676
      %v1930 = vpack.c.b16 %v1679, %v1678
      %v1931 = vpack.c.b16 %v1681, %v1680
      %v1932 = vpack.c.b16 %v1683, %v1682
      %v1933 = vpack.c.b16 %v1685, %v1684
      %v1934 = vpack.c.b16 %v1687, %v1686
      %v1935 = vpack.c.b16 %v1689, %v1688
      %v1936 = vpack.c.b16 %v1691, %v1690
      %v1937 = vpack.c.b16 %v1693, %v1692
      %v1938 = vpack.c.b16 %v1695, %v1694
      %v1939 = vpack.c.b16 %v1697, %v1696
      %v1940 = vpack.c.b16 %v1699, %v1698
      %v1941 = vpack.c.b16 %v1701, %v1700
      %v1942 = vpack.c.b16 %v1703, %v1702
      %v1943 = vpack.c.b16 %v1705, %v1704
      %v1944 = vpack.c.b16 %v1707, %v1706
      %v1945 = vpack.c.b16 %v1709, %v1708
      %v1946 = vpack.c.b16 %v1711, %v1710
      %v1947 = vpack.c.b16 %v1713, %v1712
      %v1948 = vpack.c.b16 %v1715, %v1714
      %v1949 = vpack.c.b16 %v1717, %v1716
      %v1950 = vpack.c.b16 %v1719, %v1718
      %v1951 = vpack.c.b16 %v1721, %v1720
      %v1952 = vpack.c.b16 %v1723, %v1722
      %v1953 = vpack.c.b16 %v1725, %v1724
      %v1954 = vpack.c.b16 %v1727, %v1726
      %v1955 = vpack.c.b16 %v1729, %v1728
      %v1956 = vpack.c.b16 %v1730, %v1730
      %vm2182 = vcmask 179200
      %v2184 = vsel %vm2182, %v800, 0
      %vm2186 = vcmask 1042432
      %v2188 = vsel %vm2186, %v1956, 0
      %2190 = vmatprep.subr.bf16.mxu0 0
      %2191 = vmatpush1.bf16.msra.mxu0 %v1731
      %2192 = vmatprep.subr.bf16.mxu0 0
      %2193 = vmatpush1.bf16.msra.mxu0 %v1732
      %2194 = vmatprep.subr.bf16.mxu0 0
      %2195 = vmatpush1.bf16.msra.mxu0 %v1733
      %2196 = vmatprep.subr.bf16.mxu0 0
      %2197 = vmatpush1.bf16.msra.mxu0 %v1734
      %2198 = vmatprep.subr.bf16.mxu0 0
      %2199 = vmatpush1.bf16.msra.mxu0 %v1735
      %2200 = vmatprep.subr.bf16.mxu0 0
      %2201 = vmatpush1.bf16.msra.mxu0 %v1736
      %2202 = vmatprep.subr.bf16.mxu0 0
      %2203 = vmatpush1.bf16.msra.mxu0 %v1737
      %2204 = vmatprep.subr.bf16.mxu0 0
      %2205 = vmatpush1.bf16.msra.mxu0 %v1738
      %2206 = vmatprep.subr.bf16.mxu0 0
      %2207 = vmatpush1.bf16.msra.mxu0 %v1739
      %2208 = vmatprep.subr.bf16.mxu0 0
      %2209 = vmatpush1.bf16.msra.mxu0 %v1740
      %2210 = vmatprep.subr.bf16.mxu0 0
      %2211 = vmatpush1.bf16.msra.mxu0 %v1741
      %2212 = vmatprep.subr.bf16.mxu0 0
      %2213 = vmatpush1.bf16.msra.mxu0 %v1742
      %2214 = vmatprep.subr.bf16.mxu0 0
      %2215 = vmatpush1.bf16.msra.mxu0 %v1743
      %2216 = vmatprep.subr.bf16.mxu0 0
      %2217 = vmatpush1.bf16.msra.mxu0 %v1744
      %2218 = vmatprep.subr.bf16.mxu0 0
      %2219 = vmatpush1.bf16.msra.mxu0 %v1745
      %2220 = vmatprep.subr.bf16.mxu0 0
      %2221 = vmatpush1.bf16.msra.mxu0 %v1746
      %2222 = vmatprep.mubr.bf16.mxu0 %v773
      %2223 = vmatmul.mubr.bf16.gmra.mrb[0].mxu0 %v772
      %v2224 = vpop.f32.mrb[0].mxu0
      %v2225 = vadd.f32 0.0, %v2224
      %v2226 = vpop.f32.mrb[0].mxu0
      %v2227 = vpop.f32.mrb[0].mxu0
      %v2228 = vadd.f32 0.0, %v2227
      %v2229 = vpop.f32.mrb[0].mxu0
      %2230 = vdwg.mxu0
      %2231 = vmatprep.subr.bf16.mxu0 0
      %2232 = vmatpush1.bf16.msra.mxu0 %v1747
      %2233 = vmatprep.subr.bf16.mxu0 0
      %2234 = vmatpush1.bf16.msra.mxu0 %v1748
      %2235 = vmatprep.subr.bf16.mxu0 0
      %2236 = vmatpush1.bf16.msra.mxu0 %v1749
      %2237 = vmatprep.subr.bf16.mxu0 0
      %2238 = vmatpush1.bf16.msra.mxu0 %v1750
      %2239 = vmatprep.subr.bf16.mxu0 0
      %2240 = vmatpush1.bf16.msra.mxu0 %v1751
      %2241 = vmatprep.subr.bf16.mxu0 0
      %2242 = vmatpush1.bf16.msra.mxu0 %v1752
      %2243 = vmatprep.subr.bf16.mxu0 0
      %2244 = vmatpush1.bf16.msra.mxu0 %v1753
      %2245 = vmatprep.subr.bf16.mxu0 0
      %2246 = vmatpush1.bf16.msra.mxu0 %v1754
      %2247 = vmatprep.subr.bf16.mxu0 0
      %2248 = vmatpush1.bf16.msra.mxu0 %v1755
      %2249 = vmatprep.subr.bf16.mxu0 0
      %2250 = vmatpush1.bf16.msra.mxu0 %v1756
      %2251 = vmatprep.subr.bf16.mxu0 0
      %2252 = vmatpush1.bf16.msra.mxu0 %v1757
      %2253 = vmatprep.subr.bf16.mxu0 0
      %2254 = vmatpush1.bf16.msra.mxu0 %v1758
      %2255 = vmatprep.subr.bf16.mxu0 0
      %2256 = vmatpush1.bf16.msra.mxu0 %v1759
      %2257 = vmatprep.subr.bf16.mxu0 0
      %2258 = vmatpush1.bf16.msra.mxu0 %v1760
      %2259 = vmatprep.subr.bf16.mxu0 0
      %2260 = vmatpush1.bf16.msra.mxu0 %v1761
      %2261 = vmatprep.subr.bf16.mxu0 0
      %2262 = vmatpush1.bf16.msra.mxu0 %v1762
      %2263 = vmatprep.mubr.bf16.mxu0 %v775
      %2264 = vmatmul.mubr.bf16.gmra.mrb[0].mxu0 %v774
      %v2265 = vpop.f32.mrb[0].mxu0
      %v2266 = vadd.f32 %v2225, %v2265
      %v2267 = vpop.f32.mrb[0].mxu0
      %v2268 = vpop.f32.mrb[0].mxu0
      %v2269 = vadd.f32 %v2228, %v2268
      %v2270 = vpop.f32.mrb[0].mxu0
      %2271 = vdwg.mxu0
      %2272 = vmatprep.subr.bf16.mxu0 0
      %2273 = vmatpush1.bf16.msra.mxu0 %v1763
      %2274 = vmatprep.subr.bf16.mxu0 0
      %2275 = vmatpush1.bf16.msra.mxu0 %v1764
      %2276 = vmatprep.subr.bf16.mxu0 0
      %2277 = vmatpush1.bf16.msra.mxu0 %v1765
      %2278 = vmatprep.subr.bf16.mxu0 0
      %2279 = vmatpush1.bf16.msra.mxu0 %v1766
      %2280 = vmatprep.subr.bf16.mxu0 0
      %2281 = vmatpush1.bf16.msra.mxu0 %v1767
      %2282 = vmatprep.subr.bf16.mxu0 0
      %2283 = vmatpush1.bf16.msra.mxu0 %v1768
      %2284 = vmatprep.subr.bf16.mxu0 0
      %2285 = vmatpush1.bf16.msra.mxu0 %v1769
      %2286 = vmatprep.subr.bf16.mxu0 0
      %2287 = vmatpush1.bf16.msra.mxu0 %v1770
      %2288 = vmatprep.subr.bf16.mxu0 0
      %2289 = vmatpush1.bf16.msra.mxu0 %v1771
      %2290 = vmatprep.subr.bf16.mxu0 0
      %2291 = vmatpush1.bf16.msra.mxu0 %v1772
      %2292 = vmatprep.subr.bf16.mxu0 0
      %2293 = vmatpush1.bf16.msra.mxu0 %v1773
      %2294 = vmatprep.subr.bf16.mxu0 0
      %2295 = vmatpush1.bf16.msra.mxu0 %v1774
      %2296 = vmatprep.subr.bf16.mxu0 0
      %2297 = vmatpush1.bf16.msra.mxu0 %v1775
      %2298 = vmatprep.subr.bf16.mxu0 0
      %2299 = vmatpush1.bf16.msra.mxu0 %v1776
      %2300 = vmatprep.subr.bf16.mxu0 0
      %2301 = vmatpush1.bf16.msra.mxu0 %v1777
      %2302 = vmatprep.subr.bf16.mxu0 0
      %2303 = vmatpush1.bf16.msra.mxu0 %v1778
      %2304 = vmatprep.mubr.bf16.mxu0 %v777
      %2305 = vmatmul.mubr.bf16.gmra.mrb[0].mxu0 %v776
      %v2306 = vpop.f32.mrb[0].mxu0
      %v2307 = vadd.f32 %v2266, %v2306
      %v2308 = vpop.f32.mrb[0].mxu0
      %v2309 = vpop.f32.mrb[0].mxu0
      %v2310 = vadd.f32 %v2269, %v2309
      %v2311 = vpop.f32.mrb[0].mxu0
      %2312 = vdwg.mxu0
      %2313 = vmatprep.subr.bf16.mxu0 0
      %2314 = vmatpush1.bf16.msra.mxu0 %v1779
      %2315 = vmatprep.subr.bf16.mxu0 0
      %2316 = vmatpush1.bf16.msra.mxu0 %v1780
      %2317 = vmatprep.subr.bf16.mxu0 0
      %2318 = vmatpush1.bf16.msra.mxu0 %v1781
      %2319 = vmatprep.subr.bf16.mxu0 0
      %2320 = vmatpush1.bf16.msra.mxu0 %v1782
      %2321 = vmatprep.subr.bf16.mxu0 0
      %2322 = vmatpush1.bf16.msra.mxu0 %v1783
      %2323 = vmatprep.subr.bf16.mxu0 0
      %2324 = vmatpush1.bf16.msra.mxu0 %v1784
      %2325 = vmatprep.subr.bf16.mxu0 0
      %2326 = vmatpush1.bf16.msra.mxu0 %v1785
      %2327 = vmatprep.subr.bf16.mxu0 0
      %2328 = vmatpush1.bf16.msra.mxu0 %v1786
      %2329 = vmatprep.subr.bf16.mxu0 0
      %2330 = vmatpush1.bf16.msra.mxu0 %v1787
      %2331 = vmatprep.subr.bf16.mxu0 0
      %2332 = vmatpush1.bf16.msra.mxu0 %v1788
      %2333 = vmatprep.subr.bf16.mxu0 0
      %2334 = vmatpush1.bf16.msra.mxu0 %v1789
      %2335 = vmatprep.subr.bf16.mxu0 0
      %2336 = vmatpush1.bf16.msra.mxu0 %v1790
      %2337 = vmatprep.subr.bf16.mxu0 0
      %2338 = vmatpush1.bf16.msra.mxu0 %v1791
      %2339 = vmatprep.subr.bf16.mxu0 0
      %2340 = vmatpush1.bf16.msra.mxu0 %v1792
      %2341 = vmatprep.subr.bf16.mxu0 0
      %2342 = vmatpush1.bf16.msra.mxu0 %v1793
      %2343 = vmatprep.subr.bf16.mxu0 0
      %2344 = vmatpush1.bf16.msra.mxu0 %v1794
      %2345 = vmatprep.mubr.bf16.mxu0 %v779
      %2346 = vmatmul.mubr.bf16.gmra.mrb[0].mxu0 %v778
      %v2347 = vpop.f32.mrb[0].mxu0
      %v2348 = vadd.f32 %v2307, %v2347
      %v2349 = vpop.f32.mrb[0].mxu0
      %v2350 = vpop.f32.mrb[0].mxu0
      %v2351 = vadd.f32 %v2310, %v2350
      %v2352 = vpop.f32.mrb[0].mxu0
      %2353 = vdwg.mxu0
      %2354 = vmatprep.subr.bf16.mxu0 0
      %2355 = vmatpush1.bf16.msra.mxu0 %v1795
      %2356 = vmatprep.subr.bf16.mxu0 0
      %2357 = vmatpush1.bf16.msra.mxu0 %v1796
      %2358 = vmatprep.subr.bf16.mxu0 0
      %2359 = vmatpush1.bf16.msra.mxu0 %v1797
      %2360 = vmatprep.subr.bf16.mxu0 0
      %2361 = vmatpush1.bf16.msra.mxu0 %v1798
      %2362 = vmatprep.subr.bf16.mxu0 0
      %2363 = vmatpush1.bf16.msra.mxu0 %v1799
      %2364 = vmatprep.subr.bf16.mxu0 0
      %2365 = vmatpush1.bf16.msra.mxu0 %v1800
      %2366 = vmatprep.subr.bf16.mxu0 0
      %2367 = vmatpush1.bf16.msra.mxu0 %v1801
      %2368 = vmatprep.subr.bf16.mxu0 0
      %2369 = vmatpush1.bf16.msra.mxu0 %v1802
      %2370 = vmatprep.subr.bf16.mxu0 0
      %2371 = vmatpush1.bf16.msra.mxu0 %v1803
      %2372 = vmatprep.subr.bf16.mxu0 0
      %2373 = vmatpush1.bf16.msra.mxu0 %v1804
      %2374 = vmatprep.subr.bf16.mxu0 0
      %2375 = vmatpush1.bf16.msra.mxu0 %v1805
      %2376 = vmatprep.subr.bf16.mxu0 0
      %2377 = vmatpush1.bf16.msra.mxu0 %v1806
      %2378 = vmatprep.subr.bf16.mxu0 0
      %2379 = vmatpush1.bf16.msra.mxu0 %v1807
      %2380 = vmatprep.subr.bf16.mxu0 0
      %2381 = vmatpush1.bf16.msra.mxu0 %v1808
      %2382 = vmatprep.subr.bf16.mxu0 0
      %2383 = vmatpush1.bf16.msra.mxu0 %v1809
      %2384 = vmatprep.subr.bf16.mxu0 0
      %2385 = vmatpush1.bf16.msra.mxu0 %v1810
      %2386 = vmatprep.mubr.bf16.mxu0 %v781
      %2387 = vmatmul.mubr.bf16.gmra.mrb[0].mxu0 %v780
      %v2388 = vpop.f32.mrb[0].mxu0
      %v2389 = vadd.f32 %v2348, %v2388
      %v2390 = vpop.f32.mrb[0].mxu0
      %v2391 = vpop.f32.mrb[0].mxu0
      %v2392 = vadd.f32 %v2351, %v2391
      %v2393 = vpop.f32.mrb[0].mxu0
      %2394 = vdwg.mxu0
      %2395 = vmatprep.subr.bf16.mxu0 0
      %2396 = vmatpush1.bf16.msra.mxu0 %v1811
      %2397 = vmatprep.subr.bf16.mxu0 0
      %2398 = vmatpush1.bf16.msra.mxu0 %v1812
      %2399 = vmatprep.subr.bf16.mxu0 0
      %2400 = vmatpush1.bf16.msra.mxu0 %v1813
      %2401 = vmatprep.subr.bf16.mxu0 0
      %2402 = vmatpush1.bf16.msra.mxu0 %v1814
      %2403 = vmatprep.subr.bf16.mxu0 0
      %2404 = vmatpush1.bf16.msra.mxu0 %v1815
      %2405 = vmatprep.subr.bf16.mxu0 0
      %2406 = vmatpush1.bf16.msra.mxu0 %v1816
      %2407 = vmatprep.subr.bf16.mxu0 0
      %2408 = vmatpush1.bf16.msra.mxu0 %v1817
      %2409 = vmatprep.subr.bf16.mxu0 0
      %2410 = vmatpush1.bf16.msra.mxu0 %v1818
      %2411 = vmatprep.subr.bf16.mxu0 0
      %2412 = vmatpush1.bf16.msra.mxu0 %v1819
      %2413 = vmatprep.subr.bf16.mxu0 0
      %2414 = vmatpush1.bf16.msra.mxu0 %v1820
      %2415 = vmatprep.subr.bf16.mxu0 0
      %2416 = vmatpush1.bf16.msra.mxu0 %v1821
      %2417 = vmatprep.subr.bf16.mxu0 0
      %2418 = vmatpush1.bf16.msra.mxu0 %v1822
      %2419 = vmatprep.subr.bf16.mxu0 0
      %2420 = vmatpush1.bf16.msra.mxu0 %v1823
      %2421 = vmatprep.subr.bf16.mxu0 0
      %2422 = vmatpush1.bf16.msra.mxu0 %v1824
      %2423 = vmatprep.subr.bf16.mxu0 0
      %2424 = vmatpush1.bf16.msra.mxu0 %v1825
      %2425 = vmatprep.subr.bf16.mxu0 0
      %2426 = vmatpush1.bf16.msra.mxu0 %v1826
      %2427 = vmatprep.mubr.bf16.mxu0 %v783
      %2428 = vmatmul.mubr.bf16.gmra.mrb[0].mxu0 %v782
      %v2429 = vpop.f32.mrb[0].mxu0
      %v2430 = vadd.f32 %v2389, %v2429
      %v2431 = vpop.f32.mrb[0].mxu0
      %v2432 = vpop.f32.mrb[0].mxu0
      %v2433 = vadd.f32 %v2392, %v2432
      %v2434 = vpop.f32.mrb[0].mxu0
      %2435 = vdwg.mxu0
      %2436 = vmatprep.subr.bf16.mxu0 0
      %2437 = vmatpush1.bf16.msra.mxu0 %v1827
      %2438 = vmatprep.subr.bf16.mxu0 0
      %2439 = vmatpush1.bf16.msra.mxu0 %v1828
      %2440 = vmatprep.subr.bf16.mxu0 0
      %2441 = vmatpush1.bf16.msra.mxu0 %v1829
      %2442 = vmatprep.subr.bf16.mxu0 0
      %2443 = vmatpush1.bf16.msra.mxu0 %v1830
      %2444 = vmatprep.subr.bf16.mxu0 0
      %2445 = vmatpush1.bf16.msra.mxu0 %v1831
      %2446 = vmatprep.subr.bf16.mxu0 0
      %2447 = vmatpush1.bf16.msra.mxu0 %v1832
      %2448 = vmatprep.subr.bf16.mxu0 0
      %2449 = vmatpush1.bf16.msra.mxu0 %v1833
      %2450 = vmatprep.subr.bf16.mxu0 0
      %2451 = vmatpush1.bf16.msra.mxu0 %v1834
      %2452 = vmatprep.subr.bf16.mxu0 0
      %2453 = vmatpush1.bf16.msra.mxu0 %v1835
      %2454 = vmatprep.subr.bf16.mxu0 0
      %2455 = vmatpush1.bf16.msra.mxu0 %v1836
      %2456 = vmatprep.subr.bf16.mxu0 0
      %2457 = vmatpush1.bf16.msra.mxu0 %v1837
      %2458 = vmatprep.subr.bf16.mxu0 0
      %2459 = vmatpush1.bf16.msra.mxu0 %v1838
      %2460 = vmatprep.subr.bf16.mxu0 0
      %2461 = vmatpush1.bf16.msra.mxu0 %v1839
      %2462 = vmatprep.subr.bf16.mxu0 0
      %2463 = vmatpush1.bf16.msra.mxu0 %v1840
      %2464 = vmatprep.subr.bf16.mxu0 0
      %2465 = vmatpush1.bf16.msra.mxu0 %v1841
      %2466 = vmatprep.subr.bf16.mxu0 0
      %2467 = vmatpush1.bf16.msra.mxu0 %v1842
      %2468 = vmatprep.mubr.bf16.mxu0 %v785
      %2469 = vmatmul.mubr.bf16.gmra.mrb[0].mxu0 %v784
      %v2470 = vpop.f32.mrb[0].mxu0
      %v2471 = vadd.f32 %v2430, %v2470
      %v2472 = vpop.f32.mrb[0].mxu0
      %v2473 = vpop.f32.mrb[0].mxu0
      %v2474 = vadd.f32 %v2433, %v2473
      %v2475 = vpop.f32.mrb[0].mxu0
      %2476 = vdwg.mxu0
      %2477 = vmatprep.subr.bf16.mxu0 0
      %2478 = vmatpush1.bf16.msra.mxu0 %v1843
      %2479 = vmatprep.subr.bf16.mxu0 0
      %2480 = vmatpush1.bf16.msra.mxu0 %v1844
      %2481 = vmatprep.subr.bf16.mxu0 0
      %2482 = vmatpush1.bf16.msra.mxu0 %v1845
      %2483 = vmatprep.subr.bf16.mxu0 0
      %2484 = vmatpush1.bf16.msra.mxu0 %v1846
      %2485 = vmatprep.subr.bf16.mxu0 0
      %2486 = vmatpush1.bf16.msra.mxu0 %v1847
      %2487 = vmatprep.subr.bf16.mxu0 0
      %2488 = vmatpush1.bf16.msra.mxu0 %v1848
      %2489 = vmatprep.subr.bf16.mxu0 0
      %2490 = vmatpush1.bf16.msra.mxu0 %v1849
      %2491 = vmatprep.subr.bf16.mxu0 0
      %2492 = vmatpush1.bf16.msra.mxu0 %v1850
      %2493 = vmatprep.subr.bf16.mxu0 0
      %2494 = vmatpush1.bf16.msra.mxu0 %v1851
      %2495 = vmatprep.subr.bf16.mxu0 0
      %2496 = vmatpush1.bf16.msra.mxu0 %v1852
      %2497 = vmatprep.subr.bf16.mxu0 0
      %2498 = vmatpush1.bf16.msra.mxu0 %v1853
      %2499 = vmatprep.subr.bf16.mxu0 0
      %2500 = vmatpush1.bf16.msra.mxu0 %v1854
      %2501 = vmatprep.subr.bf16.mxu0 0
      %2502 = vmatpush1.bf16.msra.mxu0 %v1855
      %2503 = vmatprep.subr.bf16.mxu0 0
      %2504 = vmatpush1.bf16.msra.mxu0 %v1856
      %2505 = vmatprep.subr.bf16.mxu0 0
      %2506 = vmatpush1.bf16.msra.mxu0 %v1857
      %2507 = vmatprep.subr.bf16.mxu0 0
      %2508 = vmatpush1.bf16.msra.mxu0 %v1858
      %2509 = vmatprep.mubr.bf16.mxu0 %v787
      %2510 = vmatmul.mubr.bf16.gmra.mrb[0].mxu0 %v786
      %v2511 = vpop.f32.mrb[0].mxu0
      %v2512 = vadd.f32 %v2471, %v2511
      %v2513 = vpop.f32.mrb[0].mxu0
      %v2514 = vpop.f32.mrb[0].mxu0
      %v2515 = vadd.f32 %v2474, %v2514
      %v2516 = vpop.f32.mrb[0].mxu0
      %2517 = vdwg.mxu0
      %2518 = vmatprep.subr.bf16.mxu0 0
      %2519 = vmatpush1.bf16.msra.mxu0 %v1859
      %2520 = vmatprep.subr.bf16.mxu0 0
      %2521 = vmatpush1.bf16.msra.mxu0 %v1860
      %2522 = vmatprep.subr.bf16.mxu0 0
      %2523 = vmatpush1.bf16.msra.mxu0 %v1861
      %2524 = vmatprep.subr.bf16.mxu0 0
      %2525 = vmatpush1.bf16.msra.mxu0 %v1862
      %2526 = vmatprep.subr.bf16.mxu0 0
      %2527 = vmatpush1.bf16.msra.mxu0 %v1863
      %2528 = vmatprep.subr.bf16.mxu0 0
      %2529 = vmatpush1.bf16.msra.mxu0 %v1864
      %2530 = vmatprep.subr.bf16.mxu0 0
      %2531 = vmatpush1.bf16.msra.mxu0 %v1865
      %2532 = vmatprep.subr.bf16.mxu0 0
      %2533 = vmatpush1.bf16.msra.mxu0 %v1866
      %2534 = vmatprep.subr.bf16.mxu0 0
      %2535 = vmatpush1.bf16.msra.mxu0 %v1867
      %2536 = vmatprep.subr.bf16.mxu0 0
      %2537 = vmatpush1.bf16.msra.mxu0 %v1868
      %2538 = vmatprep.subr.bf16.mxu0 0
      %2539 = vmatpush1.bf16.msra.mxu0 %v1869
      %2540 = vmatprep.subr.bf16.mxu0 0
      %2541 = vmatpush1.bf16.msra.mxu0 %v1870
      %2542 = vmatprep.subr.bf16.mxu0 0
      %2543 = vmatpush1.bf16.msra.mxu0 %v1871
      %2544 = vmatprep.subr.bf16.mxu0 0
      %2545 = vmatpush1.bf16.msra.mxu0 %v1872
      %2546 = vmatprep.subr.bf16.mxu0 0
      %2547 = vmatpush1.bf16.msra.mxu0 %v1873
      %2548 = vmatprep.subr.bf16.mxu0 0
      %2549 = vmatpush1.bf16.msra.mxu0 %v1874
      %2550 = vmatprep.mubr.bf16.mxu0 %v789
      %2551 = vmatmul.mubr.bf16.gmra.mrb[0].mxu0 %v788
      %v2552 = vpop.f32.mrb[0].mxu0
      %v2553 = vadd.f32 %v2512, %v2552
      %v2554 = vpop.f32.mrb[0].mxu0
      %v2555 = vpop.f32.mrb[0].mxu0
      %v2556 = vadd.f32 %v2515, %v2555
      %v2557 = vpop.f32.mrb[0].mxu0
      %2558 = vdwg.mxu0
      %2559 = vmatprep.subr.bf16.mxu0 0
      %2560 = vmatpush1.bf16.msra.mxu0 %v1875
      %2561 = vmatprep.subr.bf16.mxu0 0
      %2562 = vmatpush1.bf16.msra.mxu0 %v1876
      %2563 = vmatprep.subr.bf16.mxu0 0
      %2564 = vmatpush1.bf16.msra.mxu0 %v1877
      %2565 = vmatprep.subr.bf16.mxu0 0
      %2566 = vmatpush1.bf16.msra.mxu0 %v1878
      %2567 = vmatprep.subr.bf16.mxu0 0
      %2568 = vmatpush1.bf16.msra.mxu0 %v1879
      %2569 = vmatprep.subr.bf16.mxu0 0
      %2570 = vmatpush1.bf16.msra.mxu0 %v1880
      %2571 = vmatprep.subr.bf16.mxu0 0
      %2572 = vmatpush1.bf16.msra.mxu0 %v1881
      %2573 = vmatprep.subr.bf16.mxu0 0
      %2574 = vmatpush1.bf16.msra.mxu0 %v1882
      %2575 = vmatprep.subr.bf16.mxu0 0
      %2576 = vmatpush1.bf16.msra.mxu0 %v1883
      %2577 = vmatprep.subr.bf16.mxu0 0
      %2578 = vmatpush1.bf16.msra.mxu0 %v1884
      %2579 = vmatprep.subr.bf16.mxu0 0
      %2580 = vmatpush1.bf16.msra.mxu0 %v1885
      %2581 = vmatprep.subr.bf16.mxu0 0
      %2582 = vmatpush1.bf16.msra.mxu0 %v1886
      %2583 = vmatprep.subr.bf16.mxu0 0
      %2584 = vmatpush1.bf16.msra.mxu0 %v1887
      %2585 = vmatprep.subr.bf16.mxu0 0
      %2586 = vmatpush1.bf16.msra.mxu0 %v1888
      %2587 = vmatprep.subr.bf16.mxu0 0
      %2588 = vmatpush1.bf16.msra.mxu0 %v1889
      %2589 = vmatprep.subr.bf16.mxu0 0
      %2590 = vmatpush1.bf16.msra.mxu0 %v1890
      %2591 = vmatprep.mubr.bf16.mxu0 %v791
      %2592 = vmatmul.mubr.bf16.gmra.mrb[0].mxu0 %v790
      %v2593 = vpop.f32.mrb[0].mxu0
      %v2594 = vadd.f32 %v2553, %v2593
      %v2595 = vpop.f32.mrb[0].mxu0
      %v2596 = vpop.f32.mrb[0].mxu0
      %v2597 = vadd.f32 %v2556, %v2596
      %v2598 = vpop.f32.mrb[0].mxu0
      %2599 = vdwg.mxu0
      %2600 = vmatprep.subr.bf16.mxu0 0
      %2601 = vmatpush1.bf16.msra.mxu0 %v1891
      %2602 = vmatprep.subr.bf16.mxu0 0
      %2603 = vmatpush1.bf16.msra.mxu0 %v1892
      %2604 = vmatprep.subr.bf16.mxu0 0
      %2605 = vmatpush1.bf16.msra.mxu0 %v1893
      %2606 = vmatprep.subr.bf16.mxu0 0
      %2607 = vmatpush1.bf16.msra.mxu0 %v1894
      %2608 = vmatprep.subr.bf16.mxu0 0
      %2609 = vmatpush1.bf16.msra.mxu0 %v1895
      %2610 = vmatprep.subr.bf16.mxu0 0
      %2611 = vmatpush1.bf16.msra.mxu0 %v1896
      %2612 = vmatprep.subr.bf16.mxu0 0
      %2613 = vmatpush1.bf16.msra.mxu0 %v1897
      %2614 = vmatprep.subr.bf16.mxu0 0
      %2615 = vmatpush1.bf16.msra.mxu0 %v1898
      %2616 = vmatprep.subr.bf16.mxu0 0
      %2617 = vmatpush1.bf16.msra.mxu0 %v1899
      %2618 = vmatprep.subr.bf16.mxu0 0
      %2619 = vmatpush1.bf16.msra.mxu0 %v1900
      %2620 = vmatprep.subr.bf16.mxu0 0
      %2621 = vmatpush1.bf16.msra.mxu0 %v1901
      %2622 = vmatprep.subr.bf16.mxu0 0
      %2623 = vmatpush1.bf16.msra.mxu0 %v1902
      %2624 = vmatprep.subr.bf16.mxu0 0
      %2625 = vmatpush1.bf16.msra.mxu0 %v1903
      %2626 = vmatprep.subr.bf16.mxu0 0
      %2627 = vmatpush1.bf16.msra.mxu0 %v1904
      %2628 = vmatprep.subr.bf16.mxu0 0
      %2629 = vmatpush1.bf16.msra.mxu0 %v1905
      %2630 = vmatprep.subr.bf16.mxu0 0
      %2631 = vmatpush1.bf16.msra.mxu0 %v1906
      %2632 = vmatprep.mubr.bf16.mxu0 %v793
      %2633 = vmatmul.mubr.bf16.gmra.mrb[0].mxu0 %v792
      %v2634 = vpop.f32.mrb[0].mxu0
      %v2635 = vadd.f32 %v2594, %v2634
      %v2636 = vpop.f32.mrb[0].mxu0
      %v2637 = vpop.f32.mrb[0].mxu0
      %v2638 = vadd.f32 %v2597, %v2637
      %v2639 = vpop.f32.mrb[0].mxu0
      %2640 = vdwg.mxu0
      %2641 = vmatprep.subr.bf16.mxu0 0
      %2642 = vmatpush1.bf16.msra.mxu0 %v1907
      %2643 = vmatprep.subr.bf16.mxu0 0
      %2644 = vmatpush1.bf16.msra.mxu0 %v1908
      %2645 = vmatprep.subr.bf16.mxu0 0
      %2646 = vmatpush1.bf16.msra.mxu0 %v1909
      %2647 = vmatprep.subr.bf16.mxu0 0
      %2648 = vmatpush1.bf16.msra.mxu0 %v1910
      %2649 = vmatprep.subr.bf16.mxu0 0
      %2650 = vmatpush1.bf16.msra.mxu0 %v1911
      %2651 = vmatprep.subr.bf16.mxu0 0
      %2652 = vmatpush1.bf16.msra.mxu0 %v1912
      %2653 = vmatprep.subr.bf16.mxu0 0
      %2654 = vmatpush1.bf16.msra.mxu0 %v1913
      %2655 = vmatprep.subr.bf16.mxu0 0
      %2656 = vmatpush1.bf16.msra.mxu0 %v1914
      %2657 = vmatprep.subr.bf16.mxu0 0
      %2658 = vmatpush1.bf16.msra.mxu0 %v1915
      %2659 = vmatprep.subr.bf16.mxu0 0
      %2660 = vmatpush1.bf16.msra.mxu0 %v1916
      %2661 = vmatprep.subr.bf16.mxu0 0
      %2662 = vmatpush1.bf16.msra.mxu0 %v1917
      %2663 = vmatprep.subr.bf16.mxu0 0
      %2664 = vmatpush1.bf16.msra.mxu0 %v1918
      %2665 = vmatprep.subr.bf16.mxu0 0
      %2666 = vmatpush1.bf16.msra.mxu0 %v1919
      %2667 = vmatprep.subr.bf16.mxu0 0
      %2668 = vmatpush1.bf16.msra.mxu0 %v1920
      %2669 = vmatprep.subr.bf16.mxu0 0
      %2670 = vmatpush1.bf16.msra.mxu0 %v1921
      %2671 = vmatprep.subr.bf16.mxu0 0
      %2672 = vmatpush1.bf16.msra.mxu0 %v1922
      %2673 = vmatprep.mubr.bf16.mxu0 %v795
      %2674 = vmatmul.mubr.bf16.gmra.mrb[0].mxu0 %v794
      %v2675 = vpop.f32.mrb[0].mxu0
      %v2676 = vadd.f32 %v2635, %v2675
      %v2677 = vpop.f32.mrb[0].mxu0
      %v2678 = vpop.f32.mrb[0].mxu0
      %v2679 = vadd.f32 %v2638, %v2678
      %v2680 = vpop.f32.mrb[0].mxu0
      %2681 = vdwg.mxu0
      %2682 = vmatprep.subr.bf16.mxu0 0
      %2683 = vmatpush1.bf16.msra.mxu0 %v1923
      %2684 = vmatprep.subr.bf16.mxu0 0
      %2685 = vmatpush1.bf16.msra.mxu0 %v1924
      %2686 = vmatprep.subr.bf16.mxu0 0
      %2687 = vmatpush1.bf16.msra.mxu0 %v1925
      %2688 = vmatprep.subr.bf16.mxu0 0
      %2689 = vmatpush1.bf16.msra.mxu0 %v1926
      %2690 = vmatprep.subr.bf16.mxu0 0
      %2691 = vmatpush1.bf16.msra.mxu0 %v1927
      %2692 = vmatprep.subr.bf16.mxu0 0
      %2693 = vmatpush1.bf16.msra.mxu0 %v1928
      %2694 = vmatprep.subr.bf16.mxu0 0
      %2695 = vmatpush1.bf16.msra.mxu0 %v1929
      %2696 = vmatprep.subr.bf16.mxu0 0
      %2697 = vmatpush1.bf16.msra.mxu0 %v1930
      %2698 = vmatprep.subr.bf16.mxu0 0
      %2699 = vmatpush1.bf16.msra.mxu0 %v1931
      %2700 = vmatprep.subr.bf16.mxu0 0
      %2701 = vmatpush1.bf16.msra.mxu0 %v1932
      %2702 = vmatprep.subr.bf16.mxu0 0
      %2703 = vmatpush1.bf16.msra.mxu0 %v1933
      %2704 = vmatprep.subr.bf16.mxu0 0
      %2705 = vmatpush1.bf16.msra.mxu0 %v1934
      %2706 = vmatprep.subr.bf16.mxu0 0
      %2707 = vmatpush1.bf16.msra.mxu0 %v1935
      %2708 = vmatprep.subr.bf16.mxu0 0
      %2709 = vmatpush1.bf16.msra.mxu0 %v1936
      %2710 = vmatprep.subr.bf16.mxu0 0
      %2711 = vmatpush1.bf16.msra.mxu0 %v1937
      %2712 = vmatprep.subr.bf16.mxu0 0
      %2713 = vmatpush1.bf16.msra.mxu0 %v1938
      %2714 = vmatprep.mubr.bf16.mxu0 %v797
      %2715 = vmatmul.mubr.bf16.gmra.mrb[0].mxu0 %v796
      %v2716 = vpop.f32.mrb[0].mxu0
      %v2717 = vadd.f32 %v2676, %v2716
      %v2718 = vpop.f32.mrb[0].mxu0
      %v2719 = vpop.f32.mrb[0].mxu0
      %v2720 = vadd.f32 %v2679, %v2719
      %v2721 = vpop.f32.mrb[0].mxu0
      %2722 = vdwg.mxu0
      %2723 = vmatprep.subr.bf16.mxu0 0
      %2724 = vmatpush1.bf16.msra.mxu0 %v1939
      %2725 = vmatprep.subr.bf16.mxu0 0
      %2726 = vmatpush1.bf16.msra.mxu0 %v1940
      %2727 = vmatprep.subr.bf16.mxu0 0
      %2728 = vmatpush1.bf16.msra.mxu0 %v1941
      %2729 = vmatprep.subr.bf16.mxu0 0
      %2730 = vmatpush1.bf16.msra.mxu0 %v1942
      %2731 = vmatprep.subr.bf16.mxu0 0
      %2732 = vmatpush1.bf16.msra.mxu0 %v1943
      %2733 = vmatprep.subr.bf16.mxu0 0
      %2734 = vmatpush1.bf16.msra.mxu0 %v1944
      %2735 = vmatprep.subr.bf16.mxu0 0
      %2736 = vmatpush1.bf16.msra.mxu0 %v1945
      %2737 = vmatprep.subr.bf16.mxu0 0
      %2738 = vmatpush1.bf16.msra.mxu0 %v1946
      %2739 = vmatprep.subr.bf16.mxu0 0
      %2740 = vmatpush1.bf16.msra.mxu0 %v1947
      %2741 = vmatprep.subr.bf16.mxu0 0
      %2742 = vmatpush1.bf16.msra.mxu0 %v1948
      %2743 = vmatprep.subr.bf16.mxu0 0
      %2744 = vmatpush1.bf16.msra.mxu0 %v1949
      %2745 = vmatprep.subr.bf16.mxu0 0
      %2746 = vmatpush1.bf16.msra.mxu0 %v1950
      %2747 = vmatprep.subr.bf16.mxu0 0
      %2748 = vmatpush1.bf16.msra.mxu0 %v1951
      %2749 = vmatprep.subr.bf16.mxu0 0
      %2750 = vmatpush1.bf16.msra.mxu0 %v1952
      %2751 = vmatprep.subr.bf16.mxu0 0
      %2752 = vmatpush1.bf16.msra.mxu0 %v1953
      %2753 = vmatprep.subr.bf16.mxu0 0
      %2754 = vmatpush1.bf16.msra.mxu0 %v1954
      %2755 = vmatprep.mubr.bf16.mxu0 %v799
      %2756 = vmatmul.mubr.bf16.gmra.mrb[0].mxu0 %v798
      %v2757 = vpop.f32.mrb[0].mxu0
      %v2758 = vadd.f32 %v2717, %v2757
      %v2759 = vpop.f32.mrb[0].mxu0
      %v2760 = vpop.f32.mrb[0].mxu0
      %v2761 = vadd.f32 %v2720, %v2760
      %v2762 = vpop.f32.mrb[0].mxu0
      %2763 = vdwg.mxu0
      %2764 = vmatprep.subr.bf16.mxu0 0
      %2765 = vmatpush1.bf16.msra.mxu0 %v1955
      %2766 = vmatprep.subr.bf16.mxu0 0
      %2767 = vmatpush1.bf16.msra.mxu0 %v2188
      %2768 = vmatprep.subr.bf16.mxu0 0
      %2769 = vmatpush1.bf16.msra.mxu0 0
      %2770 = vmatprep.subr.bf16.mxu0 0
      %2771 = vmatpush1.bf16.msra.mxu0 0
      %2772 = vmatprep.subr.bf16.mxu0 0
      %2773 = vmatpush1.bf16.msra.mxu0 0
      %2774 = vmatprep.subr.bf16.mxu0 0
      %2775 = vmatpush1.bf16.msra.mxu0 0
      %2776 = vmatprep.subr.bf16.mxu0 0
      %2777 = vmatpush1.bf16.msra.mxu0 0
      %2778 = vmatprep.subr.bf16.mxu0 0
      %2779 = vmatpush1.bf16.msra.mxu0 0
      %2780 = vmatprep.subr.bf16.mxu0 0
      %2781 = vmatpush1.bf16.msra.mxu0 0
      %2782 = vmatprep.subr.bf16.mxu0 0
      %2783 = vmatpush1.bf16.msra.mxu0 0
      %2784 = vmatprep.subr.bf16.mxu0 0
      %2785 = vmatpush1.bf16.msra.mxu0 0
      %2786 = vmatprep.subr.bf16.mxu0 0
      %2787 = vmatpush1.bf16.msra.mxu0 0
      %2788 = vmatprep.subr.bf16.mxu0 0
      %2789 = vmatpush1.bf16.msra.mxu0 0
      %2790 = vmatprep.subr.bf16.mxu0 0
      %2791 = vmatpush1.bf16.msra.mxu0 0
      %2792 = vmatprep.subr.bf16.mxu0 0
      %2793 = vmatpush1.bf16.msra.mxu0 0
      %2794 = vmatprep.subr.bf16.mxu0 0
      %2795 = vmatpush1.bf16.msra.mxu0 0
      %2796 = vmatprep.mubr.bf16.mxu0 0
      %2797 = vmatmul.mubr.bf16.gmra.mrb[0].mxu0 %v2184
      %v2798 = vpop.f32.mrb[0].mxu0
      %v2799 = vadd.f32 %v2758, %v2798
      %v2800 = vpop.f32.mrb[0].mxu0
      %v2801 = vpop.f32.mrb[0].mxu0
      %v2802 = vadd.f32 %v2761, %v2801
      %v2803 = vpop.f32.mrb[0].mxu0
      %2804 = vdwg.mxu0
      %v2805 = vtanh.pop %v2799
      %v2806 = vtanh.pop %v2802
      %v2807 = vpack.c.bf16 %v2806, %v2805
      %v2808 = vld [vmem:[%s2] sm:$0xf]
      %v2809 = vld [vmem:[%s2 + $0x4] sm:$0xf]
      %v2810 = vld [vmem:[%s2 + $0x8] sm:$0xf]
      %v2811 = vld [vmem:[%s2 + $0xc] sm:$0xf]
      %v2812 = vld [vmem:[%s2 + $0x10] sm:$0xf]
      %v2813 = vld [vmem:[%s2 + $0x14] sm:$0xf]
      %v2814 = vld [vmem:[%s2 + $0x18] sm:$0xf]
      %v2815 = vld [vmem:[%s2 + $0x1c] sm:$0xf]
      %v2816 = vld [vmem:[%s2 + $0x20] sm:$0xf]
      %v2817 = vld [vmem:[%s2 + $0x24] sm:$0xf]
      %v2818 = vld [vmem:[%s2 + $0x28] sm:$0xf]
      %v2819 = vld [vmem:[%s2 + $0x2c] sm:$0xf]
      %v2820 = vld [vmem:[%s2 + $0x30] sm:$0xf]
      %v2821 = vld [vmem:[%s2 + $0x34] sm:$0xf]
      %v2822 = vld [vmem:[%s2 + $0x38] sm:$0xf]
      %v2823 = vld [vmem:[%s2 + $0x3c] sm:$0xf]
      %v2824 = vld [vmem:[%s2 + $0x40] sm:$0xf]
      %v2825 = vld [vmem:[%s2 + $0x44] sm:$0xf]
      %v2826 = vld [vmem:[%s2 + $0x48] sm:$0xf]
      %v2827 = vld [vmem:[%s2 + $0x4c] sm:$0xf]
      %v2828 = vld [vmem:[%s2 + $0x50] sm:$0xf]
      %v2829 = vld [vmem:[%s2 + $0x54] sm:$0xf]
      %v2830 = vld [vmem:[%s2 + $0x58] sm:$0xf]
      %v2831 = vld [vmem:[%s2 + $0x5c] sm:$0xf]
      %v2832 = vld [vmem:[%s2 + $0x60] sm:$0xf]
      %v2833 = vld [vmem:[%s2 + $0x64] sm:$0xf]
      %v2834 = vld [vmem:[%s2 + $0x68] sm:$0xf]
      %v2835 = vld [vmem:[%s2 + $0x6c] sm:$0xf]
      %v2836 = vld [vmem:[%s2 + $0x70] sm:$0xf]
      %v2837 = vld [vmem:[%s2 + $0x74] sm:$0xf]
      %v2838 = vld [vmem:[%s2 + $0x78] sm:$0xf]
      %v2839 = vld [vmem:[%s2 + $0x7c] sm:$0xf]
      %v2840 = vld [vmem:[%s2 + $0x80] sm:$0xf]
      %v2841 = vld [vmem:[%s2 + $0x84] sm:$0xf]
      %v2842 = vld [vmem:[%s2 + $0x88] sm:$0xf]
      %v2843 = vld [vmem:[%s2 + $0x8c] sm:$0xf]
      %v2844 = vld [vmem:[%s2 + $0x90] sm:$0xf]
      %v2845 = vld [vmem:[%s2 + $0x94] sm:$0xf]
      %v2846 = vld [vmem:[%s2 + $0x98] sm:$0xf]
      %v2847 = vld [vmem:[%s2 + $0x9c] sm:$0xf]
      %v2848 = vld [vmem:[%s2 + $0xa0] sm:$0xf]
      %v2849 = vld [vmem:[%s2 + $0xa4] sm:$0xf]
      %v2850 = vld [vmem:[%s2 + $0xa8] sm:$0xf]
      %v2851 = vld [vmem:[%s2 + $0xac] sm:$0xf]
      %v2852 = vld [vmem:[%s2 + $0xb0] sm:$0xf]
      %v2853 = vld [vmem:[%s2 + $0xb4] sm:$0xf]
      %v2854 = vld [vmem:[%s2 + $0xb8] sm:$0xf]
      %v2855 = vld [vmem:[%s2 + $0xbc] sm:$0xf]
      %v2856 = vld [vmem:[%s2 + $0xc0] sm:$0xf]
      %v2857 = vld [vmem:[%s2 + $0xc4] sm:$0xf]
      %v2858 = vld [vmem:[%s2 + $0xc8] sm:$0xf]
      %v2859 = vld [vmem:[%s2 + $0xcc] sm:$0xf]
      %v2860 = vld [vmem:[%s2 + $0xd0] sm:$0xf]
      %v2861 = vld [vmem:[%s2 + $0xd4] sm:$0xf]
      %v2862 = vld [vmem:[%s2 + $0xd8] sm:$0xf]
      %v2863 = vld [vmem:[%s2 + $0xdc] sm:$0xf]
      %v2864 = vld [vmem:[%s2 + $0xe0] sm:$0xf]
      %v2865 = vld [vmem:[%s2 + $0xe4] sm:$0xf]
      %v2866 = vld [vmem:[%s2 + $0xe8] sm:$0xf]
      %v2867 = vld [vmem:[%s2 + $0xec] sm:$0xf]
      %v2868 = vld [vmem:[%s2 + $0xf0] sm:$0xf]
      %v2869 = vld [vmem:[%s2 + $0xf4] sm:$0xf]
      %v2870 = vld [vmem:[%s2 + $0xf8] sm:$0xf]
      %v2871 = vld [vmem:[%s2 + $0xfc] sm:$0xf]
      %v2872 = vld [vmem:[%s2 + $0x100] sm:$0xf]
      %v2873 = vld [vmem:[%s2 + $0x104] sm:$0xf]
      %v2874 = vld [vmem:[%s2 + $0x108] sm:$0xf]
      %v2875 = vld [vmem:[%s2 + $0x10c] sm:$0xf]
      %v2876 = vld [vmem:[%s2 + $0x110] sm:$0xf]
      %v2877 = vld [vmem:[%s2 + $0x114] sm:$0xf]
      %v2878 = vld [vmem:[%s2 + $0x118] sm:$0xf]
      %v2879 = vld [vmem:[%s2 + $0x11c] sm:$0xf]
      %v2880 = vld [vmem:[%s2 + $0x120] sm:$0xf]
      %v2881 = vld [vmem:[%s2 + $0x124] sm:$0xf]
      %v2882 = vld [vmem:[%s2 + $0x128] sm:$0xf]
      %v2883 = vld [vmem:[%s2 + $0x12c] sm:$0xf]
      %v2884 = vld [vmem:[%s2 + $0x130] sm:$0xf]
      %v2885 = vld [vmem:[%s2 + $0x134] sm:$0xf]
      %v2886 = vld [vmem:[%s2 + $0x138] sm:$0xf]
      %v2887 = vld [vmem:[%s2 + $0x13c] sm:$0xf]
      %v2888 = vld [vmem:[%s2 + $0x140] sm:$0xf]
      %v2889 = vld [vmem:[%s2 + $0x144] sm:$0xf]
      %v2890 = vld [vmem:[%s2 + $0x148] sm:$0xf]
      %v2891 = vld [vmem:[%s2 + $0x14c] sm:$0xf]
      %v2892 = vld [vmem:[%s2 + $0x150] sm:$0xf]
      %v2893 = vld [vmem:[%s2 + $0x154] sm:$0xf]
      %v2894 = vld [vmem:[%s2 + $0x158] sm:$0xf]
      %v2895 = vld [vmem:[%s2 + $0x15c] sm:$0xf]
      %v2896 = vld [vmem:[%s2 + $0x160] sm:$0xf]
      %v2897 = vld [vmem:[%s2 + $0x164] sm:$0xf]
      %v2898 = vld [vmem:[%s2 + $0x168] sm:$0xf]
      %v2899 = vld [vmem:[%s2 + $0x16c] sm:$0xf]
      %v2900 = vld [vmem:[%s2 + $0x170] sm:$0xf]
      %v2901 = vld [vmem:[%s2 + $0x174] sm:$0xf]
      %v2902 = vld [vmem:[%s2 + $0x178] sm:$0xf]
      %v2903 = vld [vmem:[%s2 + $0x17c] sm:$0xf]
      %v2904 = vld [vmem:[%s2 + $0x180] sm:$0xf]
      %v2905 = vld [vmem:[%s2 + $0x184] sm:$0xf]
      %v2906 = vld [vmem:[%s2 + $0x188] sm:$0xf]
      %v2907 = vld [vmem:[%s2 + $0x18c] sm:$0xf]
      %v2908 = vld [vmem:[%s2 + $0x190] sm:$0xf]
      %v2909 = vld [vmem:[%s2 + $0x194] sm:$0xf]
      %v2910 = vld [vmem:[%s2 + $0x198] sm:$0xf]
      %v2911 = vld [vmem:[%s2 + $0x19c] sm:$0xf]
      %v2912 = vld [vmem:[%s2 + $0x1a0] sm:$0xf]
      %v2913 = vld [vmem:[%s2 + $0x1a4] sm:$0xf]
      %v2914 = vld [vmem:[%s2 + $0x1a8] sm:$0xf]
      %v2915 = vld [vmem:[%s2 + $0x1ac] sm:$0xf]
      %v2916 = vld [vmem:[%s2 + $0x1b0] sm:$0xf]
      %v2917 = vld [vmem:[%s2 + $0x1b4] sm:$0xf]
      %v2918 = vld [vmem:[%s2 + $0x1b8] sm:$0xf]
      %v2919 = vld [vmem:[%s2 + $0x1bc] sm:$0xf]
      %v2920 = vld [vmem:[%s2 + $0x1c0] sm:$0xf]
      %v2921 = vld [vmem:[%s2 + $0x1c4] sm:$0xf]
      %v2922 = vld [vmem:[%s2 + $0x1c8] sm:$0xf]
      %v2923 = vld [vmem:[%s2 + $0x1cc] sm:$0xf]
      %v2924 = vld [vmem:[%s2 + $0x1d0] sm:$0xf]
      %v2925 = vld [vmem:[%s2 + $0x1d4] sm:$0xf]
      %v2926 = vld [vmem:[%s2 + $0x1d8] sm:$0xf]
      %v2927 = vld [vmem:[%s2 + $0x1dc] sm:$0xf]
      %v2928 = vld [vmem:[%s2 + $0x1e0] sm:$0xf]
      %v2929 = vld [vmem:[%s2 + $0x1e4] sm:$0xf]
      %v2930 = vld [vmem:[%s2 + $0x1e8] sm:$0xf]
      %v2931 = vld [vmem:[%s2 + $0x1ec] sm:$0xf]
      %v2932 = vld [vmem:[%s2 + $0x1f0] sm:$0xf]
      %v2933 = vld [vmem:[%s2 + $0x1f4] sm:$0xf]
      %v2934 = vld [vmem:[%s2 + $0x1f8] sm:$0xf]
      %v2935 = vld [vmem:[%s2 + $0x1fc] sm:$0xf]
      %v2936 = vld [vmem:[%s2 + $0x200] sm:$0xf]
      %v2937 = vld [vmem:[%s2 + $0x204] sm:$0xf]
      %v2938 = vld [vmem:[%s2 + $0x208] sm:$0xf]
      %v2939 = vld [vmem:[%s2 + $0x20c] sm:$0xf]
      %v2940 = vld [vmem:[%s2 + $0x210] sm:$0xf]
      %v2941 = vld [vmem:[%s2 + $0x214] sm:$0xf]
      %v2942 = vld [vmem:[%s2 + $0x218] sm:$0xf]
      %v2943 = vld [vmem:[%s2 + $0x21c] sm:$0xf]
      %v2944 = vld [vmem:[%s2 + $0x220] sm:$0xf]
      %v2945 = vld [vmem:[%s2 + $0x224] sm:$0xf]
      %v2946 = vld [vmem:[%s2 + $0x228] sm:$0xf]
      %v2947 = vld [vmem:[%s2 + $0x22c] sm:$0xf]
      %v2948 = vld [vmem:[%s2 + $0x230] sm:$0xf]
      %v2949 = vld [vmem:[%s2 + $0x234] sm:$0xf]
      %v2950 = vld [vmem:[%s2 + $0x238] sm:$0xf]
      %v2951 = vld [vmem:[%s2 + $0x23c] sm:$0xf]
      %v2952 = vld [vmem:[%s2 + $0x240] sm:$0xf]
      %v2953 = vld [vmem:[%s2 + $0x244] sm:$0xf]
      %v2954 = vld [vmem:[%s2 + $0x248] sm:$0xf]
      %v2955 = vld [vmem:[%s2 + $0x24c] sm:$0xf]
      %v2956 = vld [vmem:[%s2 + $0x250] sm:$0xf]
      %v2957 = vld [vmem:[%s2 + $0x254] sm:$0xf]
      %v2958 = vld [vmem:[%s2 + $0x258] sm:$0xf]
      %v2959 = vld [vmem:[%s2 + $0x25c] sm:$0xf]
      %v2960 = vld [vmem:[%s2 + $0x260] sm:$0xf]
      %v2961 = vld [vmem:[%s2 + $0x264] sm:$0xf]
      %v2962 = vld [vmem:[%s2 + $0x268] sm:$0xf]
      %v2963 = vld [vmem:[%s2 + $0x26c] sm:$0xf]
      %v2964 = vld [vmem:[%s2 + $0x270] sm:$0xf]
      %v2965 = vld [vmem:[%s2 + $0x274] sm:$0xf]
      %v2966 = vld [vmem:[%s2 + $0x278] sm:$0xf]
      %v2967 = vld [vmem:[%s2 + $0x27c] sm:$0xf]
      %v2968 = vld [vmem:[%s2 + $0x280] sm:$0xf]
      %v2969 = vld [vmem:[%s2 + $0x284] sm:$0xf]
      %v2970 = vld [vmem:[%s2 + $0x288] sm:$0xf]
      %v2971 = vld [vmem:[%s2 + $0x28c] sm:$0xf]
      %v2972 = vld [vmem:[%s2 + $0x290] sm:$0xf]
      %v2973 = vld [vmem:[%s2 + $0x294] sm:$0xf]
      %v2974 = vld [vmem:[%s2 + $0x298] sm:$0xf]
      %v2975 = vld [vmem:[%s2 + $0x29c] sm:$0xf]
      %v2976 = vld [vmem:[%s2 + $0x2a0] sm:$0xf]
      %v2977 = vld [vmem:[%s2 + $0x2a4] sm:$0xf]
      %v2978 = vld [vmem:[%s2 + $0x2a8] sm:$0xf]
      %v2979 = vld [vmem:[%s2 + $0x2ac] sm:$0xf]
      %v2980 = vld [vmem:[%s2 + $0x2b0] sm:$0xf]
      %v2981 = vld [vmem:[%s2 + $0x2b4] sm:$0xf]
      %v2982 = vld [vmem:[%s2 + $0x2b8] sm:$0xf]
      %v2983 = vld [vmem:[%s2 + $0x2bc] sm:$0xf]
      %v2984 = vld [vmem:[%s2 + $0x2c0] sm:$0xf]
      %v2985 = vld [vmem:[%s2 + $0x2c4] sm:$0xf]
      %v2986 = vld [vmem:[%s2 + $0x2c8] sm:$0xf]
      %v2987 = vld [vmem:[%s2 + $0x2cc] sm:$0xf]
      %v2988 = vld [vmem:[%s2 + $0x2d0] sm:$0xf]
      %v2989 = vld [vmem:[%s2 + $0x2d4] sm:$0xf]
      %v2990 = vld [vmem:[%s2 + $0x2d8] sm:$0xf]
      %v2991 = vld [vmem:[%s2 + $0x2dc] sm:$0xf]
      %v2992 = vld [vmem:[%s2 + $0x2e0] sm:$0xf]
      %v2993 = vld [vmem:[%s2 + $0x2e4] sm:$0xf]
      %v2994 = vld [vmem:[%s2 + $0x2e8] sm:$0xf]
      %v2995 = vld [vmem:[%s2 + $0x2ec] sm:$0xf]
      %v2996 = vld [vmem:[%s2 + $0x2f0] sm:$0xf]
      %v2997 = vld [vmem:[%s2 + $0x2f4] sm:$0xf]
      %v2998 = vld [vmem:[%s2 + $0x2f8] sm:$0xf]
      %v2999 = vld [vmem:[%s2 + $0x2fc] sm:$0xf]
      %v3000 = vld [vmem:[%s2 + $0x300] sm:$0xf]
      %v3001 = vld [vmem:[%s2 + $0x304] sm:$0xf]
      %v3002 = vld [vmem:[%s2 + $0x308] sm:$0xf]
      %v3003 = vld [vmem:[%s2 + $0x30c] sm:$0xf]
      %v3004 = vld [vmem:[%s2 + $0x310] sm:$0xf]
      %v3005 = vld [vmem:[%s2 + $0x314] sm:$0xf]
      %v3006 = vld [vmem:[%s2 + $0x318] sm:$0xf]
      %v3007 = vld [vmem:[%s2 + $0x31c] sm:$0xf]
      %v3008 = vld [vmem:[%s2 + $0x320] sm:$0xf]
      %v3009 = vld [vmem:[%s2 + $0x324] sm:$0xf]
      %v3010 = vld [vmem:[%s2 + $0x328] sm:$0xf]
      %v3011 = vld [vmem:[%s2 + $0x32c] sm:$0xf]
      %v3012 = vld [vmem:[%s2 + $0x330] sm:$0xf]
      %v3013 = vld [vmem:[%s2 + $0x334] sm:$0xf]
      %v3014 = vld [vmem:[%s2 + $0x338] sm:$0xf]
      %v3015 = vld [vmem:[%s2 + $0x33c] sm:$0xf]
      %v3016 = vld [vmem:[%s2 + $0x340] sm:$0xf]
      %v3017 = vld [vmem:[%s2 + $0x344] sm:$0xf]
      %v3018 = vld [vmem:[%s2 + $0x348] sm:$0xf]
      %v3019 = vld [vmem:[%s2 + $0x34c] sm:$0xf]
      %v3020 = vld [vmem:[%s2 + $0x350] sm:$0xf]
      %v3021 = vld [vmem:[%s2 + $0x354] sm:$0xf]
      %v3022 = vld [vmem:[%s2 + $0x358] sm:$0xf]
      %v3023 = vld [vmem:[%s2 + $0x35c] sm:$0xf]
      %v3024 = vld [vmem:[%s2 + $0x360] sm:$0xf]
      %v3025 = vld [vmem:[%s2 + $0x364] sm:$0xf]
      %v3026 = vld [vmem:[%s2 + $0x368] sm:$0xf]
      %v3027 = vld [vmem:[%s2 + $0x36c] sm:$0xf]
      %v3028 = vld [vmem:[%s2 + $0x370] sm:$0xf]
      %v3029 = vld [vmem:[%s2 + $0x374] sm:$0xf]
      %v3030 = vld [vmem:[%s2 + $0x378] sm:$0xf]
      %v3031 = vld [vmem:[%s2 + $0x37c] sm:$0xf]
      %v3032 = vld [vmem:[%s2 + $0x380] sm:$0xf]
      %v3033 = vld [vmem:[%s2 + $0x384] sm:$0xf]
      %v3034 = vld [vmem:[%s2 + $0x388] sm:$0xf]
      %v3035 = vld [vmem:[%s2 + $0x38c] sm:$0xf]
      %v3036 = vld [vmem:[%s2 + $0x390] sm:$0xf]
      %v3037 = vld [vmem:[%s2 + $0x394] sm:$0xf]
      %v3038 = vld [vmem:[%s2 + $0x398] sm:$0xf]
      %v3039 = vld [vmem:[%s2 + $0x39c] sm:$0xf]
      %v3040 = vld [vmem:[%s2 + $0x3a0] sm:$0xf]
      %v3041 = vld [vmem:[%s2 + $0x3a4] sm:$0xf]
      %v3042 = vld [vmem:[%s2 + $0x3a8] sm:$0xf]
      %v3043 = vld [vmem:[%s2 + $0x3ac] sm:$0xf]
      %v3044 = vld [vmem:[%s2 + $0x3b0] sm:$0xf]
      %v3045 = vld [vmem:[%s2 + $0x3b4] sm:$0xf]
      %v3046 = vld [vmem:[%s2 + $0x3b8] sm:$0xf]
      %v3047 = vld [vmem:[%s2 + $0x3bc] sm:$0xf]
      %v3048 = vld [vmem:[%s2 + $0x3c0] sm:$0xf]
      %v3049 = vld [vmem:[%s2 + $0x3c4] sm:$0xf]
      %v3050 = vld [vmem:[%s2 + $0x3c8] sm:$0xf]
      %v3051 = vld [vmem:[%s2 + $0x3cc] sm:$0xf]
      %v3052 = vld [vmem:[%s2 + $0x3d0] sm:$0xf]
      %v3053 = vld [vmem:[%s2 + $0x3d4] sm:$0xf]
      %v3054 = vld [vmem:[%s2 + $0x3d8] sm:$0xf]
      %v3055 = vld [vmem:[%s2 + $0x3dc] sm:$0xf]
      %v3056 = vld [vmem:[%s2 + $0x3e0] sm:$0xf]
      %v3057 = vld [vmem:[%s2 + $0x3e4] sm:$0xf]
      %v3058 = vld [vmem:[%s2 + $0x3e8] sm:$0xf]
      %v3059 = vld [vmem:[%s2 + $0x3ec] sm:$0xf]
      %v3060 = vld [vmem:[%s2 + $0x3f0] sm:$0xf]
      %v3061 = vld [vmem:[%s2 + $0x3f4] sm:$0xf]
      %v3062 = vld [vmem:[%s2 + $0x3f8] sm:$0xf]
      %v3063 = vld [vmem:[%s2 + $0x3fc] sm:$0xf]
      %v3064 = vld [vmem:[%s2 + $0x400] sm:$0xf]
      %v3065 = vld [vmem:[%s2 + $0x404] sm:$0xf]
      %v3066 = vld [vmem:[%s2 + $0x408] sm:$0xf]
      %v3067 = vld [vmem:[%s2 + $0x40c] sm:$0xf]
      %v3068 = vld [vmem:[%s2 + $0x410] sm:$0xf]
      %v3069 = vld [vmem:[%s2 + $0x414] sm:$0xf]
      %v3070 = vld [vmem:[%s2 + $0x418] sm:$0xf]
      %v3071 = vld [vmem:[%s2 + $0x41c] sm:$0xf]
      %v3072 = vld [vmem:[%s2 + $0x420] sm:$0xf]
      %v3073 = vld [vmem:[%s2 + $0x424] sm:$0xf]
      %v3074 = vld [vmem:[%s2 + $0x428] sm:$0xf]
      %v3075 = vld [vmem:[%s2 + $0x42c] sm:$0xf]
      %v3076 = vld [vmem:[%s2 + $0x430] sm:$0xf]
      %v3077 = vld [vmem:[%s2 + $0x434] sm:$0xf]
      %v3078 = vld [vmem:[%s2 + $0x438] sm:$0xf]
      %v3079 = vld [vmem:[%s2 + $0x43c] sm:$0xf]
      %v3080 = vld [vmem:[%s2 + $0x440] sm:$0xf]
      %v3081 = vld [vmem:[%s2 + $0x444] sm:$0xf]
      %v3082 = vld [vmem:[%s2 + $0x448] sm:$0xf]
      %v3083 = vld [vmem:[%s2 + $0x44c] sm:$0xf]
      %v3084 = vld [vmem:[%s2 + $0x450] sm:$0xf]
      %v3085 = vld [vmem:[%s2 + $0x454] sm:$0xf]
      %v3086 = vld [vmem:[%s2 + $0x458] sm:$0xf]
      %v3087 = vld [vmem:[%s2 + $0x45c] sm:$0xf]
      %v3088 = vld [vmem:[%s2 + $0x460] sm:$0xf]
      %v3089 = vld [vmem:[%s2 + $0x464] sm:$0xf]
      %v3090 = vld [vmem:[%s2 + $0x468] sm:$0xf]
      %v3091 = vld [vmem:[%s2 + $0x46c] sm:$0xf]
      %v3092 = vld [vmem:[%s2 + $0x470] sm:$0xf]
      %v3093 = vld [vmem:[%s2 + $0x474] sm:$0xf]
      %v3094 = vld [vmem:[%s2 + $0x478] sm:$0xf]
      %v3095 = vld [vmem:[%s2 + $0x47c] sm:$0xf]
      %v3096 = vld [vmem:[%s2 + $0x480] sm:$0xf]
      %v3097 = vld [vmem:[%s2 + $0x484] sm:$0xf]
      %v3098 = vld [vmem:[%s2 + $0x488] sm:$0xf]
      %v3099 = vld [vmem:[%s2 + $0x48c] sm:$0xf]
      %v3100 = vld [vmem:[%s2 + $0x490] sm:$0xf]
      %v3101 = vld [vmem:[%s2 + $0x494] sm:$0xf]
      %v3102 = vld [vmem:[%s2 + $0x498] sm:$0xf]
      %v3103 = vld [vmem:[%s2 + $0x49c] sm:$0xf]
      %v3104 = vld [vmem:[%s2 + $0x4a0] sm:$0xf]
      %v3105 = vld [vmem:[%s2 + $0x4a4] sm:$0xf]
      %v3106 = vld [vmem:[%s2 + $0x4a8] sm:$0xf]
      %v3107 = vld [vmem:[%s2 + $0x4ac] sm:$0xf]
      %v3108 = vld [vmem:[%s2 + $0x4b0] sm:$0xf]
      %v3109 = vld [vmem:[%s2 + $0x4b4] sm:$0xf]
      %v3110 = vld [vmem:[%s2 + $0x4b8] sm:$0xf]
      %v3111 = vld [vmem:[%s2 + $0x4bc] sm:$0xf]
      %v3112 = vld [vmem:[%s2 + $0x4c0] sm:$0xf]
      %v3113 = vld [vmem:[%s2 + $0x4c4] sm:$0xf]
      %v3114 = vld [vmem:[%s2 + $0x4c8] sm:$0xf]
      %v3115 = vld [vmem:[%s2 + $0x4cc] sm:$0xf]
      %v3116 = vld [vmem:[%s2 + $0x4d0] sm:$0xf]
      %v3117 = vld [vmem:[%s2 + $0x4d4] sm:$0xf]
      %v3118 = vld [vmem:[%s2 + $0x4d8] sm:$0xf]
      %v3119 = vld [vmem:[%s2 + $0x4dc] sm:$0xf]
      %v3120 = vld [vmem:[%s2 + $0x4e0] sm:$0xf]
      %v3121 = vld [vmem:[%s2 + $0x4e4] sm:$0xf]
      %v3122 = vld [vmem:[%s2 + $0x4e8] sm:$0xf]
      %v3123 = vld [vmem:[%s2 + $0x4ec] sm:$0xf]
      %v3124 = vld [vmem:[%s2 + $0x4f0] sm:$0xf]
      %v3125 = vld [vmem:[%s2 + $0x4f4] sm:$0xf]
      %v3126 = vld [vmem:[%s2 + $0x4f8] sm:$0xf]
      %v3127 = vld [vmem:[%s2 + $0x4fc] sm:$0xf]
      %v3128 = vld [vmem:[%s2 + $0x500] sm:$0xf]
      %v3129 = vld [vmem:[%s2 + $0x504] sm:$0xf]
      %v3130 = vld [vmem:[%s2 + $0x508] sm:$0xf]
      %v3131 = vld [vmem:[%s2 + $0x50c] sm:$0xf]
      %v3132 = vld [vmem:[%s2 + $0x510] sm:$0xf]
      %v3133 = vld [vmem:[%s2 + $0x514] sm:$0xf]
      %v3134 = vld [vmem:[%s2 + $0x518] sm:$0xf]
      %v3135 = vld [vmem:[%s2 + $0x51c] sm:$0xf]
      %v3136 = vld [vmem:[%s2 + $0x520] sm:$0xf]
      %v3137 = vld [vmem:[%s2 + $0x524] sm:$0xf]
      %v3138 = vld [vmem:[%s2 + $0x528] sm:$0xf]
      %v3139 = vld [vmem:[%s2 + $0x52c] sm:$0xf]
      %v3140 = vld [vmem:[%s2 + $0x530] sm:$0xf]
      %v3141 = vld [vmem:[%s2 + $0x534] sm:$0xf]
      %v3142 = vld [vmem:[%s2 + $0x538] sm:$0xf]
      %v3143 = vld [vmem:[%s2 + $0x53c] sm:$0xf]
      %v3144 = vld [vmem:[%s2 + $0x540] sm:$0xf]
      %v3145 = vld [vmem:[%s2 + $0x544] sm:$0xf]
      %v3146 = vld [vmem:[%s2 + $0x548] sm:$0xf]
      %v3147 = vld [vmem:[%s2 + $0x54c] sm:$0xf]
      %v3148 = vld [vmem:[%s2 + $0x550] sm:$0xf]
      %v3149 = vld [vmem:[%s2 + $0x554] sm:$0xf]
      %v3150 = vld [vmem:[%s2 + $0x558] sm:$0xf]
      %v3151 = vld [vmem:[%s2 + $0x55c] sm:$0xf]
      %v3152 = vld [vmem:[%s2 + $0x560] sm:$0xf]
      %v3153 = vld [vmem:[%s2 + $0x564] sm:$0xf]
      %v3154 = vld [vmem:[%s2 + $0x568] sm:$0xf]
      %v3155 = vld [vmem:[%s2 + $0x56c] sm:$0xf]
      %v3156 = vld [vmem:[%s2 + $0x570] sm:$0xf]
      %v3157 = vld [vmem:[%s2 + $0x574] sm:$0xf]
      %v3158 = vld [vmem:[%s2 + $0x578] sm:$0xf]
      %v3159 = vld [vmem:[%s2 + $0x57c] sm:$0xf]
      %v3160 = vld [vmem:[%s2 + $0x580] sm:$0xf]
      %v3161 = vld [vmem:[%s2 + $0x584] sm:$0xf]
      %v3162 = vld [vmem:[%s2 + $0x588] sm:$0xf]
      %v3163 = vld [vmem:[%s2 + $0x58c] sm:$0xf]
      %v3164 = vld [vmem:[%s2 + $0x590] sm:$0xf]
      %v3165 = vld [vmem:[%s2 + $0x594] sm:$0xf]
      %v3166 = vld [vmem:[%s2 + $0x598] sm:$0xf]
      %v3167 = vld [vmem:[%s2 + $0x59c] sm:$0xf]
      %v3168 = vld [vmem:[%s2 + $0x5a0] sm:$0xf]
      %v3169 = vld [vmem:[%s2 + $0x5a4] sm:$0xf]
      %v3170 = vld [vmem:[%s2 + $0x5a8] sm:$0xf]
      %v3171 = vld [vmem:[%s2 + $0x5ac] sm:$0xf]
      %v3172 = vld [vmem:[%s2 + $0x5b0] sm:$0xf]
      %v3173 = vld [vmem:[%s2 + $0x5b4] sm:$0xf]
      %v3174 = vld [vmem:[%s2 + $0x5b8] sm:$0xf]
      %v3175 = vld [vmem:[%s2 + $0x5bc] sm:$0xf]
      %v3176 = vld [vmem:[%s2 + $0x5c0] sm:$0xf]
      %v3177 = vld [vmem:[%s2 + $0x5c4] sm:$0xf]
      %v3178 = vld [vmem:[%s2 + $0x5c8] sm:$0xf]
      %v3179 = vld [vmem:[%s2 + $0x5cc] sm:$0xf]
      %v3180 = vld [vmem:[%s2 + $0x5d0] sm:$0xf]
      %v3181 = vld [vmem:[%s2 + $0x5d4] sm:$0xf]
      %v3182 = vld [vmem:[%s2 + $0x5d8] sm:$0xf]
      %v3183 = vld [vmem:[%s2 + $0x5dc] sm:$0xf]
      %v3184 = vld [vmem:[%s2 + $0x5e0] sm:$0xf]
      %v3185 = vld [vmem:[%s2 + $0x5e4] sm:$0xf]
      %v3186 = vld [vmem:[%s2 + $0x5e8] sm:$0xf]
      %v3187 = vld [vmem:[%s2 + $0x5ec] sm:$0xf]
      %v3188 = vld [vmem:[%s2 + $0x5f0] sm:$0xf]
      %v3189 = vld [vmem:[%s2 + $0x5f4] sm:$0xf]
      %v3190 = vld [vmem:[%s2 + $0x5f8] sm:$0xf]
      %v3191 = vld [vmem:[%s2 + $0x5fc] sm:$0xf]
      %v3192 = vld [vmem:[%s2 + $0x600] sm:$0xf]
      %v3193 = vld [vmem:[%s2 + $0x604] sm:$0xf]
      %v3194 = vld [vmem:[%s2 + $0x608] sm:$0xf]
      %v3195 = vld [vmem:[%s2 + $0x60c] sm:$0xf]
      %v3196 = vld [vmem:[%s2 + $0x610] sm:$0xf]
      %v3197 = vld [vmem:[%s2 + $0x614] sm:$0xf]
      %v3198 = vld [vmem:[%s2 + $0x618] sm:$0xf]
      %v3199 = vld [vmem:[%s2 + $0x61c] sm:$0xf]
      %v3200 = vld [vmem:[%s2 + $0x620] sm:$0xf]
      %v3201 = vld [vmem:[%s2 + $0x624] sm:$0xf]
      %v3202 = vld [vmem:[%s2 + $0x628] sm:$0xf]
      %v3203 = vld [vmem:[%s2 + $0x62c] sm:$0xf]
      %v3204 = vld [vmem:[%s2 + $0x630] sm:$0xf]
      %v3205 = vld [vmem:[%s2 + $0x634] sm:$0xf]
      %v3206 = vld [vmem:[%s2 + $0x638] sm:$0xf]
      %v3207 = vld [vmem:[%s2 + $0x63c] sm:$0xf]
      %v3208 = vld [vmem:[%s2 + $0x640] sm:$0xf]
      %v3209 = vld [vmem:[%s2 + $0x644] sm:$0xf]
      %v3210 = vld [vmem:[%s2 + $0x648] sm:$0xf]
      %v3211 = vld [vmem:[%s2 + $0x64c] sm:$0xf]
      %v3212 = vld [vmem:[%s2 + $0x650] sm:$0xf]
      %v3213 = vld [vmem:[%s2 + $0x654] sm:$0xf]
      %v3214 = vld [vmem:[%s2 + $0x658] sm:$0xf]
      %v3215 = vld [vmem:[%s2 + $0x65c] sm:$0xf]
      %v3216 = vld [vmem:[%s2 + $0x660] sm:$0xf]
      %v3217 = vld [vmem:[%s2 + $0x664] sm:$0xf]
      %v3218 = vld [vmem:[%s2 + $0x668] sm:$0xf]
      %v3219 = vld [vmem:[%s2 + $0x66c] sm:$0xf]
      %v3220 = vld [vmem:[%s2 + $0x670] sm:$0xf]
      %v3221 = vld [vmem:[%s2 + $0x674] sm:$0xf]
      %v3222 = vld [vmem:[%s2 + $0x678] sm:$0xf]
      %v3223 = vld [vmem:[%s2 + $0x67c] sm:$0xf]
      %v3224 = vld [vmem:[%s2 + $0x680] sm:$0xf]
      %v3225 = vld [vmem:[%s2 + $0x684] sm:$0xf]
      %v3226 = vld [vmem:[%s2 + $0x688] sm:$0xf]
      %v3227 = vld [vmem:[%s2 + $0x68c] sm:$0xf]
      %v3228 = vld [vmem:[%s2 + $0x690] sm:$0xf]
      %v3229 = vld [vmem:[%s2 + $0x694] sm:$0xf]
      %v3230 = vld [vmem:[%s2 + $0x698] sm:$0xf]
      %v3231 = vld [vmem:[%s2 + $0x69c] sm:$0xf]
      %v3232 = vld [vmem:[%s2 + $0x6a0] sm:$0xf]
      %v3233 = vld [vmem:[%s2 + $0x6a4] sm:$0xf]
      %v3234 = vld [vmem:[%s2 + $0x6a8] sm:$0xf]
      %v3235 = vld [vmem:[%s2 + $0x6ac] sm:$0xf]
      %v3236 = vld [vmem:[%s2 + $0x6b0] sm:$0xf]
      %v3237 = vld [vmem:[%s2 + $0x6b4] sm:$0xf]
      %v3238 = vld [vmem:[%s2 + $0x6b8] sm:$0xf]
      %v3239 = vld [vmem:[%s2 + $0x6bc] sm:$0xf]
      %v3240 = vld [vmem:[%s2 + $0x6c0] sm:$0xf]
      %v3241 = vld [vmem:[%s2 + $0x6c4] sm:$0xf]
      %v3242 = vld [vmem:[%s2 + $0x6c8] sm:$0xf]
      %v3243 = vld [vmem:[%s2 + $0x6cc] sm:$0xf]
      %v3244 = vld [vmem:[%s2 + $0x6d0] sm:$0xf]
      %v3245 = vld [vmem:[%s2 + $0x6d4] sm:$0xf]
      %v3246 = vld [vmem:[%s2 + $0x6d8] sm:$0xf]
      %v3247 = vld [vmem:[%s2 + $0x6dc] sm:$0xf]
      %v3248 = vld [vmem:[%s2 + $0x6e0] sm:$0xf]
      %v3249 = vld [vmem:[%s2 + $0x6e4] sm:$0xf]
      %v3250 = vld [vmem:[%s2 + $0x6e8] sm:$0xf]
      %v3251 = vld [vmem:[%s2 + $0x6ec] sm:$0xf]
      %v3252 = vld [vmem:[%s2 + $0x6f0] sm:$0xf]
      %v3253 = vld [vmem:[%s2 + $0x6f4] sm:$0xf]
      %v3254 = vld [vmem:[%s2 + $0x6f8] sm:$0xf]
      %v3255 = vld [vmem:[%s2 + $0x6fc] sm:$0xf]
      %v3256 = vld [vmem:[%s2 + $0x700] sm:$0xf]
      %v3257 = vld [vmem:[%s2 + $0x704] sm:$0xf]
      %v3258 = vld [vmem:[%s2 + $0x708] sm:$0x7]
      %v3710 = vunpack.c.l.b16 %v2808
      %v3711 = vunpack.c.l.b16 %v2809
      %v3712 = vunpack.c.l.b16 %v2810
      %v3713 = vunpack.c.l.b16 %v2811
      %v3714 = vunpack.c.l.b16 %v2812
      %v3715 = vunpack.c.l.b16 %v2813
      %v3716 = vunpack.c.l.b16 %v2814
      %v3717 = vunpack.c.l.b16 %v2815
      %v3718 = vunpack.c.l.b16 %v2816
      %v3719 = vunpack.c.l.b16 %v2817
      %v3720 = vunpack.c.l.b16 %v2818
      %v3721 = vunpack.c.l.b16 %v2819
      %v3722 = vunpack.c.l.b16 %v2820
      %v3723 = vunpack.c.l.b16 %v2821
      %v3724 = vunpack.c.l.b16 %v2822
      %v3725 = vunpack.c.l.b16 %v2823
      %v3726 = vunpack.c.l.b16 %v2824
      %v3727 = vunpack.c.l.b16 %v2825
      %v3728 = vunpack.c.l.b16 %v2826
      %v3729 = vunpack.c.l.b16 %v2827
      %v3730 = vunpack.c.l.b16 %v2828
      %v3731 = vunpack.c.l.b16 %v2829
      %v3732 = vunpack.c.l.b16 %v2830
      %v3733 = vunpack.c.l.b16 %v2831
      %v3734 = vunpack.c.l.b16 %v2832
      %v3735 = vunpack.c.l.b16 %v2833
      %v3736 = vunpack.c.l.b16 %v2834
      %v3737 = vunpack.c.l.b16 %v2835
      %v3738 = vunpack.c.l.b16 %v2836
      %v3739 = vunpack.c.l.b16 %v2837
      %v3740 = vunpack.c.l.b16 %v2838
      %v3741 = vunpack.c.l.b16 %v2839
      %v3742 = vunpack.c.l.b16 %v2840
      %v3743 = vunpack.c.l.b16 %v2841
      %v3744 = vunpack.c.l.b16 %v2842
      %v3745 = vunpack.c.l.b16 %v2843
      %v3746 = vunpack.c.l.b16 %v2844
      %v3747 = vunpack.c.l.b16 %v2845
      %v3748 = vunpack.c.l.b16 %v2846
      %v3749 = vunpack.c.l.b16 %v2847
      %v3750 = vunpack.c.l.b16 %v2848
      %v3751 = vunpack.c.l.b16 %v2849
      %v3752 = vunpack.c.l.b16 %v2850
      %v3753 = vunpack.c.l.b16 %v2851
      %v3754 = vunpack.c.l.b16 %v2852
      %v3755 = vunpack.c.l.b16 %v2853
      %v3756 = vunpack.c.l.b16 %v2854
      %v3757 = vunpack.c.l.b16 %v2855
      %v3758 = vunpack.c.l.b16 %v2856
      %v3759 = vunpack.c.l.b16 %v2857
      %v3760 = vunpack.c.l.b16 %v2858
      %v3761 = vunpack.c.l.b16 %v2859
      %v3762 = vunpack.c.l.b16 %v2860
      %v3763 = vunpack.c.l.b16 %v2861
      %v3764 = vunpack.c.l.b16 %v2862
      %v3765 = vunpack.c.l.b16 %v2863
      %v3766 = vunpack.c.l.b16 %v2864
      %v3767 = vunpack.c.l.b16 %v2865
      %v3768 = vunpack.c.l.b16 %v2866
      %v3769 = vunpack.c.l.b16 %v2867
      %v3770 = vunpack.c.l.b16 %v2868
      %v3771 = vunpack.c.l.b16 %v2869
      %v3772 = vunpack.c.l.b16 %v2870
      %v3773 = vunpack.c.l.b16 %v2871
      %v3774 = vunpack.c.l.b16 %v2872
      %v3775 = vunpack.c.l.b16 %v2873
      %v3776 = vunpack.c.l.b16 %v2874
      %v3777 = vunpack.c.l.b16 %v2875
      %v3778 = vunpack.c.l.b16 %v2876
      %v3779 = vunpack.c.l.b16 %v2877
      %v3780 = vunpack.c.l.b16 %v2878
      %v3781 = vunpack.c.l.b16 %v2879
      %v3782 = vunpack.c.l.b16 %v2880
      %v3783 = vunpack.c.l.b16 %v2881
      %v3784 = vunpack.c.l.b16 %v2882
      %v3785 = vunpack.c.l.b16 %v2883
      %v3786 = vunpack.c.l.b16 %v2884
      %v3787 = vunpack.c.l.b16 %v2885
      %v3788 = vunpack.c.l.b16 %v2886
      %v3789 = vunpack.c.l.b16 %v2887
      %v3790 = vunpack.c.l.b16 %v2888
      %v3791 = vunpack.c.l.b16 %v2889
      %v3792 = vunpack.c.l.b16 %v2890
      %v3793 = vunpack.c.l.b16 %v2891
      %v3794 = vunpack.c.l.b16 %v2892
      %v3795 = vunpack.c.l.b16 %v2893
      %v3796 = vunpack.c.l.b16 %v2894
      %v3797 = vunpack.c.l.b16 %v2895
      %v3798 = vunpack.c.l.b16 %v2896
      %v3799 = vunpack.c.l.b16 %v2897
      %v3800 = vunpack.c.l.b16 %v2898
      %v3801 = vunpack.c.l.b16 %v2899
      %v3802 = vunpack.c.l.b16 %v2900
      %v3803 = vunpack.c.l.b16 %v2901
      %v3804 = vunpack.c.l.b16 %v2902
      %v3805 = vunpack.c.l.b16 %v2903
      %v3806 = vunpack.c.l.b16 %v2904
      %v3807 = vunpack.c.l.b16 %v2905
      %v3808 = vunpack.c.l.b16 %v2906
      %v3809 = vunpack.c.l.b16 %v2907
      %v3810 = vunpack.c.l.b16 %v2908
      %v3811 = vunpack.c.l.b16 %v2909
      %v3812 = vunpack.c.l.b16 %v2910
      %v3813 = vunpack.c.l.b16 %v2911
      %v3814 = vunpack.c.l.b16 %v2912
      %v3815 = vunpack.c.l.b16 %v2913
      %v3816 = vunpack.c.l.b16 %v2914
      %v3817 = vunpack.c.l.b16 %v2915
      %v3818 = vunpack.c.l.b16 %v2916
      %v3819 = vunpack.c.l.b16 %v2917
      %v3820 = vunpack.c.l.b16 %v2918
      %v3821 = vunpack.c.l.b16 %v2919
      %v3822 = vunpack.c.l.b16 %v2920
      %v3823 = vunpack.c.l.b16 %v2921
      %v3824 = vunpack.c.l.b16 %v2922
      %v3825 = vunpack.c.l.b16 %v2923
      %v3826 = vunpack.c.l.b16 %v2924
      %v3827 = vunpack.c.l.b16 %v2925
      %v3828 = vunpack.c.l.b16 %v2926
      %v3829 = vunpack.c.l.b16 %v2927
      %v3830 = vunpack.c.l.b16 %v2928
      %v3831 = vunpack.c.l.b16 %v2929
      %v3832 = vunpack.c.l.b16 %v2930
      %v3833 = vunpack.c.l.b16 %v2931
      %v3834 = vunpack.c.l.b16 %v2932
      %v3835 = vunpack.c.l.b16 %v2933
      %v3836 = vunpack.c.l.b16 %v2934
      %v3837 = vunpack.c.l.b16 %v2935
      %v3838 = vunpack.c.l.b16 %v2936
      %v3839 = vunpack.c.l.b16 %v2937
      %v3840 = vunpack.c.l.b16 %v2938
      %v3841 = vunpack.c.l.b16 %v2939
      %v3842 = vunpack.c.l.b16 %v2940
      %v3843 = vunpack.c.l.b16 %v2941
      %v3844 = vunpack.c.l.b16 %v2942
      %v3845 = vunpack.c.l.b16 %v2943
      %v3846 = vunpack.c.l.b16 %v2944
      %v3847 = vunpack.c.l.b16 %v2945
      %v3848 = vunpack.c.l.b16 %v2946
      %v3849 = vunpack.c.l.b16 %v2947
      %v3850 = vunpack.c.l.b16 %v2948
      %v3851 = vunpack.c.l.b16 %v2949
      %v3852 = vunpack.c.l.b16 %v2950
      %v3853 = vunpack.c.l.b16 %v2951
      %v3854 = vunpack.c.l.b16 %v2952
      %v3855 = vunpack.c.l.b16 %v2953
      %v3856 = vunpack.c.l.b16 %v2954
      %v3857 = vunpack.c.l.b16 %v2955
      %v3858 = vunpack.c.l.b16 %v2956
      %v3859 = vunpack.c.l.b16 %v2957
      %v3860 = vunpack.c.l.b16 %v2958
      %v3861 = vunpack.c.l.b16 %v2959
      %v3862 = vunpack.c.l.b16 %v2960
      %v3863 = vunpack.c.l.b16 %v2961
      %v3864 = vunpack.c.l.b16 %v2962
      %v3865 = vunpack.c.l.b16 %v2963
      %v3866 = vunpack.c.l.b16 %v2964
      %v3867 = vunpack.c.l.b16 %v2965
      %v3868 = vunpack.c.l.b16 %v2966
      %v3869 = vunpack.c.l.b16 %v2967
      %v3870 = vunpack.c.l.b16 %v2968
      %v3871 = vunpack.c.l.b16 %v2969
      %v3872 = vunpack.c.l.b16 %v2970
      %v3873 = vunpack.c.l.b16 %v2971
      %v3874 = vunpack.c.l.b16 %v2972
      %v3875 = vunpack.c.l.b16 %v2973
      %v3876 = vunpack.c.l.b16 %v2974
      %v3877 = vunpack.c.l.b16 %v2975
      %v3878 = vunpack.c.l.b16 %v2976
      %v3879 = vunpack.c.l.b16 %v2977
      %v3880 = vunpack.c.l.b16 %v2978
      %v3881 = vunpack.c.l.b16 %v2979
      %v3882 = vunpack.c.l.b16 %v2980
      %v3883 = vunpack.c.l.b16 %v2981
      %v3884 = vunpack.c.l.b16 %v2982
      %v3885 = vunpack.c.l.b16 %v2983
      %v3886 = vunpack.c.l.b16 %v2984
      %v3887 = vunpack.c.l.b16 %v2985
      %v3888 = vunpack.c.l.b16 %v2986
      %v3889 = vunpack.c.l.b16 %v2987
      %v3890 = vunpack.c.l.b16 %v2988
      %v3891 = vunpack.c.l.b16 %v2989
      %v3892 = vunpack.c.l.b16 %v2990
      %v3893 = vunpack.c.l.b16 %v2991
      %v3894 = vunpack.c.l.b16 %v2992
      %v3895 = vunpack.c.l.b16 %v2993
      %v3896 = vunpack.c.l.b16 %v2994
      %v3897 = vunpack.c.l.b16 %v2995
      %v3898 = vunpack.c.l.b16 %v2996
      %v3899 = vunpack.c.l.b16 %v2997
      %v3900 = vunpack.c.l.b16 %v2998
      %v3901 = vunpack.c.l.b16 %v2999
      %v3902 = vunpack.c.l.b16 %v3000
      %v3903 = vunpack.c.l.b16 %v3001
      %v3904 = vunpack.c.l.b16 %v3002
      %v3905 = vunpack.c.l.b16 %v3003
      %v3906 = vunpack.c.l.b16 %v3004
      %v3907 = vunpack.c.l.b16 %v3005
      %v3908 = vunpack.c.l.b16 %v3006
      %v3909 = vunpack.c.l.b16 %v3007
      %v3910 = vunpack.c.l.b16 %v3008
      %v3911 = vunpack.c.l.b16 %v3009
      %v3912 = vunpack.c.l.b16 %v3010
      %v3913 = vunpack.c.l.b16 %v3011
      %v3914 = vunpack.c.l.b16 %v3012
      %v3915 = vunpack.c.l.b16 %v3013
      %v3916 = vunpack.c.l.b16 %v3014
      %v3917 = vunpack.c.l.b16 %v3015
      %v3918 = vunpack.c.l.b16 %v3016
      %v3919 = vunpack.c.l.b16 %v3017
      %v3920 = vunpack.c.l.b16 %v3018
      %v3921 = vunpack.c.l.b16 %v3019
      %v3922 = vunpack.c.l.b16 %v3020
      %v3923 = vunpack.c.l.b16 %v3021
      %v3924 = vunpack.c.l.b16 %v3022
      %v3925 = vunpack.c.l.b16 %v3023
      %v3926 = vunpack.c.l.b16 %v3024
      %v3927 = vunpack.c.l.b16 %v3025
      %v3928 = vunpack.c.l.b16 %v3026
      %v3929 = vunpack.c.l.b16 %v3027
      %v3930 = vunpack.c.l.b16 %v3028
      %v3931 = vunpack.c.l.b16 %v3029
      %v3932 = vunpack.c.l.b16 %v3030
      %v3933 = vunpack.c.l.b16 %v3031
      %v3934 = vunpack.c.l.b16 %v3032
      %v3935 = vunpack.c.l.b16 %v3033
      %v3936 = vunpack.c.l.b16 %v3034
      %v3937 = vunpack.c.l.b16 %v3035
      %v3938 = vunpack.c.l.b16 %v3036
      %v3939 = vunpack.c.l.b16 %v3037
      %v3940 = vunpack.c.l.b16 %v3038
      %v3941 = vunpack.c.l.b16 %v3039
      %v3942 = vunpack.c.l.b16 %v3040
      %v3943 = vunpack.c.l.b16 %v3041
      %v3944 = vunpack.c.l.b16 %v3042
      %v3945 = vunpack.c.l.b16 %v3043
      %v3946 = vunpack.c.l.b16 %v3044
      %v3947 = vunpack.c.l.b16 %v3045
      %v3948 = vunpack.c.l.b16 %v3046
      %v3949 = vunpack.c.l.b16 %v3047
      %v3950 = vunpack.c.l.b16 %v3048
      %v3951 = vunpack.c.l.b16 %v3049
      %v3952 = vunpack.c.l.b16 %v3050
      %v3953 = vunpack.c.l.b16 %v3051
      %v3954 = vunpack.c.l.b16 %v3052
      %v3955 = vunpack.c.l.b16 %v3053
      %v3956 = vunpack.c.l.b16 %v3054
      %v3957 = vunpack.c.l.b16 %v3055
      %v3958 = vunpack.c.l.b16 %v3056
      %v3959 = vunpack.c.l.b16 %v3057
      %v3960 = vunpack.c.l.b16 %v3058
      %v3961 = vunpack.c.l.b16 %v3059
      %v3962 = vunpack.c.l.b16 %v3060
      %v3963 = vunpack.c.l.b16 %v3061
      %v3964 = vunpack.c.l.b16 %v3062
      %v3965 = vunpack.c.l.b16 %v3063
      %v3966 = vunpack.c.l.b16 %v3064
      %v3967 = vunpack.c.l.b16 %v3065
      %v3968 = vunpack.c.l.b16 %v3066
      %v3969 = vunpack.c.l.b16 %v3067
      %v3970 = vunpack.c.l.b16 %v3068
      %v3971 = vunpack.c.l.b16 %v3069
      %v3972 = vunpack.c.l.b16 %v3070
      %v3973 = vunpack.c.l.b16 %v3071
      %v3974 = vunpack.c.l.b16 %v3072
      %v3975 = vunpack.c.l.b16 %v3073
      %v3976 = vunpack.c.l.b16 %v3074
      %v3977 = vunpack.c.l.b16 %v3075
      %v3978 = vunpack.c.l.b16 %v3076
      %v3979 = vunpack.c.l.b16 %v3077
      %v3980 = vunpack.c.l.b16 %v3078
      %v3981 = vunpack.c.l.b16 %v3079
      %v3982 = vunpack.c.l.b16 %v3080
      %v3983 = vunpack.c.l.b16 %v3081
      %v3984 = vunpack.c.l.b16 %v3082
      %v3985 = vunpack.c.l.b16 %v3083
      %v3986 = vunpack.c.l.b16 %v3084
      %v3987 = vunpack.c.l.b16 %v3085
      %v3988 = vunpack.c.l.b16 %v3086
      %v3989 = vunpack.c.l.b16 %v3087
      %v3990 = vunpack.c.l.b16 %v3088
      %v3991 = vunpack.c.l.b16 %v3089
      %v3992 = vunpack.c.l.b16 %v3090
      %v3993 = vunpack.c.l.b16 %v3091
      %v3994 = vunpack.c.l.b16 %v3092
      %v3995 = vunpack.c.l.b16 %v3093
      %v3996 = vunpack.c.l.b16 %v3094
      %v3997 = vunpack.c.l.b16 %v3095
      %v3998 = vunpack.c.l.b16 %v3096
      %v3999 = vunpack.c.l.b16 %v3097
      %v4000 = vunpack.c.l.b16 %v3098
      %v4001 = vunpack.c.l.b16 %v3099
      %v4002 = vunpack.c.l.b16 %v3100
      %v4003 = vunpack.c.l.b16 %v3101
      %v4004 = vunpack.c.l.b16 %v3102
      %v4005 = vunpack.c.l.b16 %v3103
      %v4006 = vunpack.c.l.b16 %v3104
      %v4007 = vunpack.c.l.b16 %v3105
      %v4008 = vunpack.c.l.b16 %v3106
      %v4009 = vunpack.c.l.b16 %v3107
      %v4010 = vunpack.c.l.b16 %v3108
      %v4011 = vunpack.c.l.b16 %v3109
      %v4012 = vunpack.c.l.b16 %v3110
      %v4013 = vunpack.c.l.b16 %v3111
      %v4014 = vunpack.c.l.b16 %v3112
      %v4015 = vunpack.c.l.b16 %v3113
      %v4016 = vunpack.c.l.b16 %v3114
      %v4017 = vunpack.c.l.b16 %v3115
      %v4018 = vunpack.c.l.b16 %v3116
      %v4019 = vunpack.c.l.b16 %v3117
      %v4020 = vunpack.c.l.b16 %v3118
      %v4021 = vunpack.c.l.b16 %v3119
      %v4022 = vunpack.c.l.b16 %v3120
      %v4023 = vunpack.c.l.b16 %v3121
      %v4024 = vunpack.c.l.b16 %v3122
      %v4025 = vunpack.c.l.b16 %v3123
      %v4026 = vunpack.c.l.b16 %v3124
      %v4027 = vunpack.c.l.b16 %v3125
      %v4028 = vunpack.c.l.b16 %v3126
      %v4029 = vunpack.c.l.b16 %v3127
      %v4030 = vunpack.c.l.b16 %v3128
      %v4031 = vunpack.c.l.b16 %v3129
      %v4032 = vunpack.c.l.b16 %v3130
      %v4033 = vunpack.c.l.b16 %v3131
      %v4034 = vunpack.c.l.b16 %v3132
      %v4035 = vunpack.c.l.b16 %v3133
      %v4036 = vunpack.c.l.b16 %v3134
      %v4037 = vunpack.c.l.b16 %v3135
      %v4038 = vunpack.c.l.b16 %v3136
      %v4039 = vunpack.c.l.b16 %v3137
      %v4040 = vunpack.c.l.b16 %v3138
      %v4041 = vunpack.c.l.b16 %v3139
      %v4042 = vunpack.c.l.b16 %v3140
      %v4043 = vunpack.c.l.b16 %v3141
      %v4044 = vunpack.c.l.b16 %v3142
      %v4045 = vunpack.c.l.b16 %v3143
      %v4046 = vunpack.c.l.b16 %v3144
      %v4047 = vunpack.c.l.b16 %v3145
      %v4048 = vunpack.c.l.b16 %v3146
      %v4049 = vunpack.c.l.b16 %v3147
      %v4050 = vunpack.c.l.b16 %v3148
      %v4051 = vunpack.c.l.b16 %v3149
      %v4052 = vunpack.c.l.b16 %v3150
      %v4053 = vunpack.c.l.b16 %v3151
      %v4054 = vunpack.c.l.b16 %v3152
      %v4055 = vunpack.c.l.b16 %v3153
      %v4056 = vunpack.c.l.b16 %v3154
      %v4057 = vunpack.c.l.b16 %v3155
      %v4058 = vunpack.c.l.b16 %v3156
      %v4059 = vunpack.c.l.b16 %v3157
      %v4060 = vunpack.c.l.b16 %v3158
      %v4061 = vunpack.c.l.b16 %v3159
      %v4062 = vunpack.c.l.b16 %v3160
      %v4063 = vunpack.c.l.b16 %v3161
      %v4064 = vunpack.c.l.b16 %v3162
      %v4065 = vunpack.c.l.b16 %v3163
      %v4066 = vunpack.c.l.b16 %v3164
      %v4067 = vunpack.c.l.b16 %v3165
      %v4068 = vunpack.c.l.b16 %v3166
      %v4069 = vunpack.c.l.b16 %v3167
      %v4070 = vunpack.c.l.b16 %v3168
      %v4071 = vunpack.c.l.b16 %v3169
      %v4072 = vunpack.c.l.b16 %v3170
      %v4073 = vunpack.c.l.b16 %v3171
      %v4074 = vunpack.c.l.b16 %v3172
      %v4075 = vunpack.c.l.b16 %v3173
      %v4076 = vunpack.c.l.b16 %v3174
      %v4077 = vunpack.c.l.b16 %v3175
      %v4078 = vunpack.c.l.b16 %v3176
      %v4079 = vunpack.c.l.b16 %v3177
      %v4080 = vunpack.c.l.b16 %v3178
      %v4081 = vunpack.c.l.b16 %v3179
      %v4082 = vunpack.c.l.b16 %v3180
      %v4083 = vunpack.c.l.b16 %v3181
      %v4084 = vunpack.c.l.b16 %v3182
      %v4085 = vunpack.c.l.b16 %v3183
      %v4086 = vunpack.c.l.b16 %v3184
      %v4087 = vunpack.c.l.b16 %v3185
      %v4088 = vunpack.c.l.b16 %v3186
      %v4089 = vunpack.c.l.b16 %v3187
      %v4090 = vunpack.c.l.b16 %v3188
      %v4091 = vunpack.c.l.b16 %v3189
      %v4092 = vunpack.c.l.b16 %v3190
      %v4093 = vunpack.c.l.b16 %v3191
      %v4094 = vunpack.c.l.b16 %v3192
      %v4095 = vunpack.c.l.b16 %v3193
      %v4096 = vunpack.c.l.b16 %v3194
      %v4097 = vunpack.c.l.b16 %v3195
      %v4098 = vunpack.c.l.b16 %v3196
      %v4099 = vunpack.c.l.b16 %v3197
      %v4100 = vunpack.c.l.b16 %v3198
      %v4101 = vunpack.c.l.b16 %v3199
      %v4102 = vunpack.c.l.b16 %v3200
      %v4103 = vunpack.c.l.b16 %v3201
      %v4104 = vunpack.c.l.b16 %v3202
      %v4105 = vunpack.c.l.b16 %v3203
      %v4106 = vunpack.c.l.b16 %v3204
      %v4107 = vunpack.c.l.b16 %v3205
      %v4108 = vunpack.c.l.b16 %v3206
      %v4109 = vunpack.c.l.b16 %v3207
      %v4110 = vunpack.c.l.b16 %v3208
      %v4111 = vunpack.c.l.b16 %v3209
      %v4112 = vunpack.c.l.b16 %v3210
      %v4113 = vunpack.c.l.b16 %v3211
      %v4114 = vunpack.c.l.b16 %v3212
      %v4115 = vunpack.c.l.b16 %v3213
      %v4116 = vunpack.c.l.b16 %v3214
      %v4117 = vunpack.c.l.b16 %v3215
      %v4118 = vunpack.c.l.b16 %v3216
      %v4119 = vunpack.c.l.b16 %v3217
      %v4120 = vunpack.c.l.b16 %v3218
      %v4121 = vunpack.c.l.b16 %v3219
      %v4122 = vunpack.c.l.b16 %v3220
      %v4123 = vunpack.c.l.b16 %v3221
      %v4124 = vunpack.c.l.b16 %v3222
      %v4125 = vunpack.c.l.b16 %v3223
      %v4126 = vunpack.c.l.b16 %v3224
      %v4127 = vunpack.c.l.b16 %v3225
      %v4128 = vunpack.c.l.b16 %v3226
      %v4129 = vunpack.c.l.b16 %v3227
      %v4130 = vunpack.c.l.b16 %v3228
      %v4131 = vunpack.c.l.b16 %v3229
      %v4132 = vunpack.c.l.b16 %v3230
      %v4133 = vunpack.c.l.b16 %v3231
      %v4134 = vunpack.c.l.b16 %v3232
      %v4135 = vunpack.c.l.b16 %v3233
      %v4136 = vunpack.c.l.b16 %v3234
      %v4137 = vunpack.c.l.b16 %v3235
      %v4138 = vunpack.c.l.b16 %v3236
      %v4139 = vunpack.c.l.b16 %v3237
      %v4140 = vunpack.c.l.b16 %v3238
      %v4141 = vunpack.c.l.b16 %v3239
      %v4142 = vunpack.c.l.b16 %v3240
      %v4143 = vunpack.c.l.b16 %v3241
      %v4144 = vunpack.c.l.b16 %v3242
      %v4145 = vunpack.c.l.b16 %v3243
      %v4146 = vunpack.c.l.b16 %v3244
      %v4147 = vunpack.c.l.b16 %v3245
      %v4148 = vunpack.c.l.b16 %v3246
      %v4149 = vunpack.c.l.b16 %v3247
      %v4150 = vunpack.c.l.b16 %v3248
      %v4151 = vunpack.c.l.b16 %v3249
      %v4152 = vunpack.c.l.b16 %v3250
      %v4153 = vunpack.c.l.b16 %v3251
      %v4154 = vunpack.c.l.b16 %v3252
      %v4155 = vunpack.c.l.b16 %v3253
      %v4156 = vunpack.c.l.b16 %v3254
      %v4157 = vunpack.c.l.b16 %v3255
      %v4158 = vunpack.c.l.b16 %v3256
      %v4159 = vunpack.c.l.b16 %v3257
      %v4160 = vunpack.c.l.b16 %v3258
      %v4161 = vpack.c.b16 %v3711, %v3710
      %v4162 = vpack.c.b16 %v3713, %v3712
      %v4163 = vpack.c.b16 %v3715, %v3714
      %v4164 = vpack.c.b16 %v3717, %v3716
      %v4165 = vpack.c.b16 %v3719, %v3718
      %v4166 = vpack.c.b16 %v3721, %v3720
      %v4167 = vpack.c.b16 %v3723, %v3722
      %v4168 = vpack.c.b16 %v3725, %v3724
      %v4169 = vpack.c.b16 %v3727, %v3726
      %v4170 = vpack.c.b16 %v3729, %v3728
      %v4171 = vpack.c.b16 %v3731, %v3730
      %v4172 = vpack.c.b16 %v3733, %v3732
      %v4173 = vpack.c.b16 %v3735, %v3734
      %v4174 = vpack.c.b16 %v3737, %v3736
      %v4175 = vpack.c.b16 %v3739, %v3738
      %v4176 = vpack.c.b16 %v3741, %v3740
      %v4177 = vpack.c.b16 %v3743, %v3742
      %v4178 = vpack.c.b16 %v3745, %v3744
      %v4179 = vpack.c.b16 %v3747, %v3746
      %v4180 = vpack.c.b16 %v3749, %v3748
      %v4181 = vpack.c.b16 %v3751, %v3750
      %v4182 = vpack.c.b16 %v3753, %v3752
      %v4183 = vpack.c.b16 %v3755, %v3754
      %v4184 = vpack.c.b16 %v3757, %v3756
      %v4185 = vpack.c.b16 %v3759, %v3758
      %v4186 = vpack.c.b16 %v3761, %v3760
      %v4187 = vpack.c.b16 %v3763, %v3762
      %v4188 = vpack.c.b16 %v3765, %v3764
      %v4189 = vpack.c.b16 %v3767, %v3766
      %v4190 = vpack.c.b16 %v3769, %v3768
      %v4191 = vpack.c.b16 %v3771, %v3770
      %v4192 = vpack.c.b16 %v3773, %v3772
      %v4193 = vpack.c.b16 %v3775, %v3774
      %v4194 = vpack.c.b16 %v3777, %v3776
      %v4195 = vpack.c.b16 %v3779, %v3778
      %v4196 = vpack.c.b16 %v3781, %v3780
      %v4197 = vpack.c.b16 %v3783, %v3782
      %v4198 = vpack.c.b16 %v3785, %v3784
      %v4199 = vpack.c.b16 %v3787, %v3786
      %v4200 = vpack.c.b16 %v3789, %v3788
      %v4201 = vpack.c.b16 %v3791, %v3790
      %v4202 = vpack.c.b16 %v3793, %v3792
      %v4203 = vpack.c.b16 %v3795, %v3794
      %v4204 = vpack.c.b16 %v3797, %v3796
      %v4205 = vpack.c.b16 %v3799, %v3798
      %v4206 = vpack.c.b16 %v3801, %v3800
      %v4207 = vpack.c.b16 %v3803, %v3802
      %v4208 = vpack.c.b16 %v3805, %v3804
      %v4209 = vpack.c.b16 %v3807, %v3806
      %v4210 = vpack.c.b16 %v3809, %v3808
      %v4211 = vpack.c.b16 %v3811, %v3810
      %v4212 = vpack.c.b16 %v3813, %v3812
      %v4213 = vpack.c.b16 %v3815, %v3814
      %v4214 = vpack.c.b16 %v3817, %v3816
      %v4215 = vpack.c.b16 %v3819, %v3818
      %v4216 = vpack.c.b16 %v3821, %v3820
      %v4217 = vpack.c.b16 %v3823, %v3822
      %v4218 = vpack.c.b16 %v3825, %v3824
      %v4219 = vpack.c.b16 %v3827, %v3826
      %v4220 = vpack.c.b16 %v3829, %v3828
      %v4221 = vpack.c.b16 %v3831, %v3830
      %v4222 = vpack.c.b16 %v3833, %v3832
      %v4223 = vpack.c.b16 %v3835, %v3834
      %v4224 = vpack.c.b16 %v3837, %v3836
      %v4225 = vpack.c.b16 %v3839, %v3838
      %v4226 = vpack.c.b16 %v3841, %v3840
      %v4227 = vpack.c.b16 %v3843, %v3842
      %v4228 = vpack.c.b16 %v3845, %v3844
      %v4229 = vpack.c.b16 %v3847, %v3846
      %v4230 = vpack.c.b16 %v3849, %v3848
      %v4231 = vpack.c.b16 %v3851, %v3850
      %v4232 = vpack.c.b16 %v3853, %v3852
      %v4233 = vpack.c.b16 %v3855, %v3854
      %v4234 = vpack.c.b16 %v3857, %v3856
      %v4235 = vpack.c.b16 %v3859, %v3858
      %v4236 = vpack.c.b16 %v3861, %v3860
      %v4237 = vpack.c.b16 %v3863, %v3862
      %v4238 = vpack.c.b16 %v3865, %v3864
      %v4239 = vpack.c.b16 %v3867, %v3866
      %v4240 = vpack.c.b16 %v3869, %v3868
      %v4241 = vpack.c.b16 %v3871, %v3870
      %v4242 = vpack.c.b16 %v3873, %v3872
      %v4243 = vpack.c.b16 %v3875, %v3874
      %v4244 = vpack.c.b16 %v3877, %v3876
      %v4245 = vpack.c.b16 %v3879, %v3878
      %v4246 = vpack.c.b16 %v3881, %v3880
      %v4247 = vpack.c.b16 %v3883, %v3882
      %v4248 = vpack.c.b16 %v3885, %v3884
      %v4249 = vpack.c.b16 %v3887, %v3886
      %v4250 = vpack.c.b16 %v3889, %v3888
      %v4251 = vpack.c.b16 %v3891, %v3890
      %v4252 = vpack.c.b16 %v3893, %v3892
      %v4253 = vpack.c.b16 %v3895, %v3894
      %v4254 = vpack.c.b16 %v3897, %v3896
      %v4255 = vpack.c.b16 %v3899, %v3898
      %v4256 = vpack.c.b16 %v3901, %v3900
      %v4257 = vpack.c.b16 %v3903, %v3902
      %v4258 = vpack.c.b16 %v3905, %v3904
      %v4259 = vpack.c.b16 %v3907, %v3906
      %v4260 = vpack.c.b16 %v3909, %v3908
      %v4261 = vpack.c.b16 %v3911, %v3910
      %v4262 = vpack.c.b16 %v3913, %v3912
      %v4263 = vpack.c.b16 %v3915, %v3914
      %v4264 = vpack.c.b16 %v3917, %v3916
      %v4265 = vpack.c.b16 %v3919, %v3918
      %v4266 = vpack.c.b16 %v3921, %v3920
      %v4267 = vpack.c.b16 %v3923, %v3922
      %v4268 = vpack.c.b16 %v3925, %v3924
      %v4269 = vpack.c.b16 %v3927, %v3926
      %v4270 = vpack.c.b16 %v3929, %v3928
      %v4271 = vpack.c.b16 %v3931, %v3930
      %v4272 = vpack.c.b16 %v3933, %v3932
      %v4273 = vpack.c.b16 %v3935, %v3934
      %v4274 = vpack.c.b16 %v3937, %v3936
      %v4275 = vpack.c.b16 %v3939, %v3938
      %v4276 = vpack.c.b16 %v3941, %v3940
      %v4277 = vpack.c.b16 %v3943, %v3942
      %v4278 = vpack.c.b16 %v3945, %v3944
      %v4279 = vpack.c.b16 %v3947, %v3946
      %v4280 = vpack.c.b16 %v3949, %v3948
      %v4281 = vpack.c.b16 %v3951, %v3950
      %v4282 = vpack.c.b16 %v3953, %v3952
      %v4283 = vpack.c.b16 %v3955, %v3954
      %v4284 = vpack.c.b16 %v3957, %v3956
      %v4285 = vpack.c.b16 %v3959, %v3958
      %v4286 = vpack.c.b16 %v3961, %v3960
      %v4287 = vpack.c.b16 %v3963, %v3962
      %v4288 = vpack.c.b16 %v3965, %v3964
      %v4289 = vpack.c.b16 %v3967, %v3966
      %v4290 = vpack.c.b16 %v3969, %v3968
      %v4291 = vpack.c.b16 %v3971, %v3970
      %v4292 = vpack.c.b16 %v3973, %v3972
      %v4293 = vpack.c.b16 %v3975, %v3974
      %v4294 = vpack.c.b16 %v3977, %v3976
      %v4295 = vpack.c.b16 %v3979, %v3978
      %v4296 = vpack.c.b16 %v3981, %v3980
      %v4297 = vpack.c.b16 %v3983, %v3982
      %v4298 = vpack.c.b16 %v3985, %v3984
      %v4299 = vpack.c.b16 %v3987, %v3986
      %v4300 = vpack.c.b16 %v3989, %v3988
      %v4301 = vpack.c.b16 %v3991, %v3990
      %v4302 = vpack.c.b16 %v3993, %v3992
      %v4303 = vpack.c.b16 %v3995, %v3994
      %v4304 = vpack.c.b16 %v3997, %v3996
      %v4305 = vpack.c.b16 %v3999, %v3998
      %v4306 = vpack.c.b16 %v4001, %v4000
      %v4307 = vpack.c.b16 %v4003, %v4002
      %v4308 = vpack.c.b16 %v4005, %v4004
      %v4309 = vpack.c.b16 %v4007, %v4006
      %v4310 = vpack.c.b16 %v4009, %v4008
      %v4311 = vpack.c.b16 %v4011, %v4010
      %v4312 = vpack.c.b16 %v4013, %v4012
      %v4313 = vpack.c.b16 %v4015, %v4014
      %v4314 = vpack.c.b16 %v4017, %v4016
      %v4315 = vpack.c.b16 %v4019, %v4018
      %v4316 = vpack.c.b16 %v4021, %v4020
      %v4317 = vpack.c.b16 %v4023, %v4022
      %v4318 = vpack.c.b16 %v4025, %v4024
      %v4319 = vpack.c.b16 %v4027, %v4026
      %v4320 = vpack.c.b16 %v4029, %v4028
      %v4321 = vpack.c.b16 %v4031, %v4030
      %v4322 = vpack.c.b16 %v4033, %v4032
      %v4323 = vpack.c.b16 %v4035, %v4034
      %v4324 = vpack.c.b16 %v4037, %v4036
      %v4325 = vpack.c.b16 %v4039, %v4038
      %v4326 = vpack.c.b16 %v4041, %v4040
      %v4327 = vpack.c.b16 %v4043, %v4042
      %v4328 = vpack.c.b16 %v4045, %v4044
      %v4329 = vpack.c.b16 %v4047, %v4046
      %v4330 = vpack.c.b16 %v4049, %v4048
      %v4331 = vpack.c.b16 %v4051, %v4050
      %v4332 = vpack.c.b16 %v4053, %v4052
      %v4333 = vpack.c.b16 %v4055, %v4054
      %v4334 = vpack.c.b16 %v4057, %v4056
      %v4335 = vpack.c.b16 %v4059, %v4058
      %v4336 = vpack.c.b16 %v4061, %v4060
      %v4337 = vpack.c.b16 %v4063, %v4062
      %v4338 = vpack.c.b16 %v4065, %v4064
      %v4339 = vpack.c.b16 %v4067, %v4066
      %v4340 = vpack.c.b16 %v4069, %v4068
      %v4341 = vpack.c.b16 %v4071, %v4070
      %v4342 = vpack.c.b16 %v4073, %v4072
      %v4343 = vpack.c.b16 %v4075, %v4074
      %v4344 = vpack.c.b16 %v4077, %v4076
      %v4345 = vpack.c.b16 %v4079, %v4078
      %v4346 = vpack.c.b16 %v4081, %v4080
      %v4347 = vpack.c.b16 %v4083, %v4082
      %v4348 = vpack.c.b16 %v4085, %v4084
      %v4349 = vpack.c.b16 %v4087, %v4086
      %v4350 = vpack.c.b16 %v4089, %v4088
      %v4351 = vpack.c.b16 %v4091, %v4090
      %v4352 = vpack.c.b16 %v4093, %v4092
      %v4353 = vpack.c.b16 %v4095, %v4094
      %v4354 = vpack.c.b16 %v4097, %v4096
      %v4355 = vpack.c.b16 %v4099, %v4098
      %v4356 = vpack.c.b16 %v4101, %v4100
      %v4357 = vpack.c.b16 %v4103, %v4102
      %v4358 = vpack.c.b16 %v4105, %v4104
      %v4359 = vpack.c.b16 %v4107, %v4106
      %v4360 = vpack.c.b16 %v4109, %v4108
      %v4361 = vpack.c.b16 %v4111, %v4110
      %v4362 = vpack.c.b16 %v4113, %v4112
      %v4363 = vpack.c.b16 %v4115, %v4114
      %v4364 = vpack.c.b16 %v4117, %v4116
      %v4365 = vpack.c.b16 %v4119, %v4118
      %v4366 = vpack.c.b16 %v4121, %v4120
      %v4367 = vpack.c.b16 %v4123, %v4122
      %v4368 = vpack.c.b16 %v4125, %v4124
      %v4369 = vpack.c.b16 %v4127, %v4126
      %v4370 = vpack.c.b16 %v4129, %v4128
      %v4371 = vpack.c.b16 %v4131, %v4130
      %v4372 = vpack.c.b16 %v4133, %v4132
      %v4373 = vpack.c.b16 %v4135, %v4134
      %v4374 = vpack.c.b16 %v4137, %v4136
      %v4375 = vpack.c.b16 %v4139, %v4138
      %v4376 = vpack.c.b16 %v4141, %v4140
      %v4377 = vpack.c.b16 %v4143, %v4142
      %v4378 = vpack.c.b16 %v4145, %v4144
      %v4379 = vpack.c.b16 %v4147, %v4146
      %v4380 = vpack.c.b16 %v4149, %v4148
      %v4381 = vpack.c.b16 %v4151, %v4150
      %v4382 = vpack.c.b16 %v4153, %v4152
      %v4383 = vpack.c.b16 %v4155, %v4154
      %v4384 = vpack.c.b16 %v4157, %v4156
      %v4385 = vpack.c.b16 %v4159, %v4158
      %v4386 = vpack.c.b16 %v4160, %v4160
      %vm4387 = vcmask 130048
      %v4389 = vsel %vm4387, %v4161, 0
      %v4392 = vsel %vm4387, %v4162, 0
      %v4395 = vsel %vm4387, %v4163, 0
      %v4398 = vsel %vm4387, %v4164, 0
      %v4401 = vsel %vm4387, %v4165, 0
      %v4404 = vsel %vm4387, %v4166, 0
      %v4407 = vsel %vm4387, %v4167, 0
      %v4410 = vsel %vm4387, %v4168, 0
      %v4413 = vsel %vm4387, %v4169, 0
      %v4416 = vsel %vm4387, %v4170, 0
      %v4419 = vsel %vm4387, %v4171, 0
      %v4422 = vsel %vm4387, %v4172, 0
      %v4425 = vsel %vm4387, %v4173, 0
      %v4428 = vsel %vm4387, %v4174, 0
      %v4431 = vsel %vm4387, %v4175, 0
      %v4434 = vsel %vm4387, %v4176, 0
      %v4437 = vsel %vm4387, %v4177, 0
      %v4440 = vsel %vm4387, %v4178, 0
      %v4443 = vsel %vm4387, %v4179, 0
      %v4446 = vsel %vm4387, %v4180, 0
      %v4449 = vsel %vm4387, %v4181, 0
      %v4452 = vsel %vm4387, %v4182, 0
      %v4455 = vsel %vm4387, %v4183, 0
      %v4458 = vsel %vm4387, %v4184, 0
      %v4461 = vsel %vm4387, %v4185, 0
      %v4464 = vsel %vm4387, %v4186, 0
      %v4467 = vsel %vm4387, %v4187, 0
      %v4470 = vsel %vm4387, %v4188, 0
      %v4473 = vsel %vm4387, %v4189, 0
      %v4476 = vsel %vm4387, %v4190, 0
      %v4479 = vsel %vm4387, %v4191, 0
      %v4482 = vsel %vm4387, %v4192, 0
      %v4485 = vsel %vm4387, %v4193, 0
      %v4488 = vsel %vm4387, %v4194, 0
      %v4491 = vsel %vm4387, %v4195, 0
      %v4494 = vsel %vm4387, %v4196, 0
      %v4497 = vsel %vm4387, %v4197, 0
      %v4500 = vsel %vm4387, %v4198, 0
      %v4503 = vsel %vm4387, %v4199, 0
      %v4506 = vsel %vm4387, %v4200, 0
      %v4509 = vsel %vm4387, %v4201, 0
      %v4512 = vsel %vm4387, %v4202, 0
      %v4515 = vsel %vm4387, %v4203, 0
      %v4518 = vsel %vm4387, %v4204, 0
      %v4521 = vsel %vm4387, %v4205, 0
      %v4524 = vsel %vm4387, %v4206, 0
      %v4527 = vsel %vm4387, %v4207, 0
      %v4530 = vsel %vm4387, %v4208, 0
      %v4533 = vsel %vm4387, %v4209, 0
      %v4536 = vsel %vm4387, %v4210, 0
      %v4539 = vsel %vm4387, %v4211, 0
      %v4542 = vsel %vm4387, %v4212, 0
      %v4545 = vsel %vm4387, %v4213, 0
      %v4548 = vsel %vm4387, %v4214, 0
      %v4551 = vsel %vm4387, %v4215, 0
      %v4554 = vsel %vm4387, %v4216, 0
      %v4557 = vsel %vm4387, %v4217, 0
      %v4560 = vsel %vm4387, %v4218, 0
      %v4563 = vsel %vm4387, %v4219, 0
      %v4566 = vsel %vm4387, %v4220, 0
      %v4569 = vsel %vm4387, %v4221, 0
      %v4572 = vsel %vm4387, %v4222, 0
      %v4575 = vsel %vm4387, %v4223, 0
      %v4578 = vsel %vm4387, %v4224, 0
      %v4581 = vsel %vm4387, %v4225, 0
      %v4584 = vsel %vm4387, %v4226, 0
      %v4587 = vsel %vm4387, %v4227, 0
      %v4590 = vsel %vm4387, %v4228, 0
      %v4593 = vsel %vm4387, %v4229, 0
      %v4596 = vsel %vm4387, %v4230, 0
      %v4599 = vsel %vm4387, %v4231, 0
      %v4602 = vsel %vm4387, %v4232, 0
      %v4605 = vsel %vm4387, %v4233, 0
      %v4608 = vsel %vm4387, %v4234, 0
      %v4611 = vsel %vm4387, %v4235, 0
      %v4614 = vsel %vm4387, %v4236, 0
      %v4617 = vsel %vm4387, %v4237, 0
      %v4620 = vsel %vm4387, %v4238, 0
      %v4623 = vsel %vm4387, %v4239, 0
      %v4626 = vsel %vm4387, %v4240, 0
      %v4629 = vsel %vm4387, %v4241, 0
      %v4632 = vsel %vm4387, %v4242, 0
      %v4635 = vsel %vm4387, %v4243, 0
      %v4638 = vsel %vm4387, %v4244, 0
      %v4641 = vsel %vm4387, %v4245, 0
      %v4644 = vsel %vm4387, %v4246, 0
      %v4647 = vsel %vm4387, %v4247, 0
      %v4650 = vsel %vm4387, %v4248, 0
      %v4653 = vsel %vm4387, %v4249, 0
      %v4656 = vsel %vm4387, %v4250, 0
      %v4659 = vsel %vm4387, %v4251, 0
      %v4662 = vsel %vm4387, %v4252, 0
      %v4665 = vsel %vm4387, %v4253, 0
      %v4668 = vsel %vm4387, %v4254, 0
      %v4671 = vsel %vm4387, %v4255, 0
      %v4674 = vsel %vm4387, %v4256, 0
      %v4677 = vsel %vm4387, %v4257, 0
      %v4680 = vsel %vm4387, %v4258, 0
      %v4683 = vsel %vm4387, %v4259, 0
      %v4686 = vsel %vm4387, %v4260, 0
      %v4689 = vsel %vm4387, %v4261, 0
      %v4692 = vsel %vm4387, %v4262, 0
      %v4695 = vsel %vm4387, %v4263, 0
      %v4698 = vsel %vm4387, %v4264, 0
      %v4701 = vsel %vm4387, %v4265, 0
      %v4704 = vsel %vm4387, %v4266, 0
      %v4707 = vsel %vm4387, %v4267, 0
      %v4710 = vsel %vm4387, %v4268, 0
      %v4713 = vsel %vm4387, %v4269, 0
      %v4716 = vsel %vm4387, %v4270, 0
      %v4719 = vsel %vm4387, %v4271, 0
      %v4722 = vsel %vm4387, %v4272, 0
      %v4725 = vsel %vm4387, %v4273, 0
      %v4728 = vsel %vm4387, %v4274, 0
      %v4731 = vsel %vm4387, %v4275, 0
      %v4734 = vsel %vm4387, %v4276, 0
      %v4737 = vsel %vm4387, %v4277, 0
      %v4740 = vsel %vm4387, %v4278, 0
      %v4743 = vsel %vm4387, %v4279, 0
      %v4746 = vsel %vm4387, %v4280, 0
      %v4749 = vsel %vm4387, %v4281, 0
      %v4752 = vsel %vm4387, %v4282, 0
      %v4755 = vsel %vm4387, %v4283, 0
      %v4758 = vsel %vm4387, %v4284, 0
      %v4761 = vsel %vm4387, %v4285, 0
      %v4764 = vsel %vm4387, %v4286, 0
      %v4767 = vsel %vm4387, %v4287, 0
      %v4770 = vsel %vm4387, %v4288, 0
      %v4773 = vsel %vm4387, %v4289, 0
      %v4776 = vsel %vm4387, %v4290, 0
      %v4779 = vsel %vm4387, %v4291, 0
      %v4782 = vsel %vm4387, %v4292, 0
      %v4785 = vsel %vm4387, %v4293, 0
      %v4788 = vsel %vm4387, %v4294, 0
      %v4791 = vsel %vm4387, %v4295, 0
      %v4794 = vsel %vm4387, %v4296, 0
      %v4797 = vsel %vm4387, %v4297, 0
      %v4800 = vsel %vm4387, %v4298, 0
      %v4803 = vsel %vm4387, %v4299, 0
      %v4806 = vsel %vm4387, %v4300, 0
      %v4809 = vsel %vm4387, %v4301, 0
      %v4812 = vsel %vm4387, %v4302, 0
      %v4815 = vsel %vm4387, %v4303, 0
      %v4818 = vsel %vm4387, %v4304, 0
      %v4821 = vsel %vm4387, %v4305, 0
      %v4824 = vsel %vm4387, %v4306, 0
      %v4827 = vsel %vm4387, %v4307, 0
      %v4830 = vsel %vm4387, %v4308, 0
      %v4833 = vsel %vm4387, %v4309, 0
      %v4836 = vsel %vm4387, %v4310, 0
      %v4839 = vsel %vm4387, %v4311, 0
      %v4842 = vsel %vm4387, %v4312, 0
      %v4845 = vsel %vm4387, %v4313, 0
      %v4848 = vsel %vm4387, %v4314, 0
      %v4851 = vsel %vm4387, %v4315, 0
      %v4854 = vsel %vm4387, %v4316, 0
      %v4857 = vsel %vm4387, %v4317, 0
      %v4860 = vsel %vm4387, %v4318, 0
      %v4863 = vsel %vm4387, %v4319, 0
      %v4866 = vsel %vm4387, %v4320, 0
      %v4869 = vsel %vm4387, %v4321, 0
      %v4872 = vsel %vm4387, %v4322, 0
      %v4875 = vsel %vm4387, %v4323, 0
      %v4878 = vsel %vm4387, %v4324, 0
      %v4881 = vsel %vm4387, %v4325, 0
      %v4884 = vsel %vm4387, %v4326, 0
      %v4887 = vsel %vm4387, %v4327, 0
      %v4890 = vsel %vm4387, %v4328, 0
      %v4893 = vsel %vm4387, %v4329, 0
      %v4896 = vsel %vm4387, %v4330, 0
      %v4899 = vsel %vm4387, %v4331, 0
      %v4902 = vsel %vm4387, %v4332, 0
      %v4905 = vsel %vm4387, %v4333, 0
      %v4908 = vsel %vm4387, %v4334, 0
      %v4911 = vsel %vm4387, %v4335, 0
      %v4914 = vsel %vm4387, %v4336, 0
      %v4917 = vsel %vm4387, %v4337, 0
      %v4920 = vsel %vm4387, %v4338, 0
      %v4923 = vsel %vm4387, %v4339, 0
      %v4926 = vsel %vm4387, %v4340, 0
      %v4929 = vsel %vm4387, %v4341, 0
      %v4932 = vsel %vm4387, %v4342, 0
      %v4935 = vsel %vm4387, %v4343, 0
      %v4938 = vsel %vm4387, %v4344, 0
      %v4941 = vsel %vm4387, %v4345, 0
      %v4944 = vsel %vm4387, %v4346, 0
      %v4947 = vsel %vm4387, %v4347, 0
      %v4950 = vsel %vm4387, %v4348, 0
      %v4953 = vsel %vm4387, %v4349, 0
      %v4956 = vsel %vm4387, %v4350, 0
      %v4959 = vsel %vm4387, %v4351, 0
      %v4962 = vsel %vm4387, %v4352, 0
      %v4965 = vsel %vm4387, %v4353, 0
      %v4968 = vsel %vm4387, %v4354, 0
      %v4971 = vsel %vm4387, %v4355, 0
      %v4974 = vsel %vm4387, %v4356, 0
      %v4977 = vsel %vm4387, %v4357, 0
      %v4980 = vsel %vm4387, %v4358, 0
      %v4983 = vsel %vm4387, %v4359, 0
      %v4986 = vsel %vm4387, %v4360, 0
      %v4989 = vsel %vm4387, %v4361, 0
      %v4992 = vsel %vm4387, %v4362, 0
      %v4995 = vsel %vm4387, %v4363, 0
      %v4998 = vsel %vm4387, %v4364, 0
      %v5001 = vsel %vm4387, %v4365, 0
      %v5004 = vsel %vm4387, %v4366, 0
      %v5007 = vsel %vm4387, %v4367, 0
      %v5010 = vsel %vm4387, %v4368, 0
      %v5013 = vsel %vm4387, %v4369, 0
      %v5016 = vsel %vm4387, %v4370, 0
      %v5019 = vsel %vm4387, %v4371, 0
      %v5022 = vsel %vm4387, %v4372, 0
      %v5025 = vsel %vm4387, %v4373, 0
      %v5028 = vsel %vm4387, %v4374, 0
      %v5031 = vsel %vm4387, %v4375, 0
      %v5034 = vsel %vm4387, %v4376, 0
      %v5037 = vsel %vm4387, %v4377, 0
      %v5040 = vsel %vm4387, %v4378, 0
      %v5043 = vsel %vm4387, %v4379, 0
      %v5046 = vsel %vm4387, %v4380, 0
      %v5049 = vsel %vm4387, %v4381, 0
      %v5052 = vsel %vm4387, %v4382, 0
      %v5055 = vsel %vm4387, %v4383, 0
      %v5058 = vsel %vm4387, %v4384, 0
      %v5061 = vsel %vm4387, %v4385, 0
      %v5064 = vsel %vm4387, %v4386, 0
      %5066 = vmatprep.subr.bf16.mxu0 0
      %5067 = vmatpush1.bf16.msra.mxu0 %v2807
      %5068 = vmatprep.subr.bf16.mxu0 0
      %5069 = vmatpush1.bf16.msra.mxu0 0
      %5070 = vmatprep.subr.bf16.mxu0 0
      %5071 = vmatpush1.bf16.msra.mxu0 0
      %5072 = vmatprep.subr.bf16.mxu0 0
      %5073 = vmatpush1.bf16.msra.mxu0 0
      %5074 = vmatprep.subr.bf16.mxu0 0
      %5075 = vmatpush1.bf16.msra.mxu0 0
      %5076 = vmatprep.subr.bf16.mxu0 0
      %5077 = vmatpush1.bf16.msra.mxu0 0
      %5078 = vmatprep.subr.bf16.mxu0 0
      %5079 = vmatpush1.bf16.msra.mxu0 0
      %5080 = vmatprep.subr.bf16.mxu0 0
      %5081 = vmatpush1.bf16.msra.mxu0 0
      %5082 = vmatprep.subr.bf16.mxu0 0
      %5083 = vmatpush1.bf16.msra.mxu0 0
      %5084 = vmatprep.subr.bf16.mxu0 0
      %5085 = vmatpush1.bf16.msra.mxu0 0
      %5086 = vmatprep.subr.bf16.mxu0 0
      %5087 = vmatpush1.bf16.msra.mxu0 0
      %5088 = vmatprep.subr.bf16.mxu0 0
      %5089 = vmatpush1.bf16.msra.mxu0 0
      %5090 = vmatprep.subr.bf16.mxu0 0
      %5091 = vmatpush1.bf16.msra.mxu0 0
      %5092 = vmatprep.subr.bf16.mxu0 0
      %5093 = vmatpush1.bf16.msra.mxu0 0
      %5094 = vmatprep.subr.bf16.mxu0 0
      %5095 = vmatpush1.bf16.msra.mxu0 0
      %5096 = vmatprep.subr.bf16.mxu0 0
      %5097 = vmatpush1.bf16.msra.mxu0 0
      %5098 = vmatprep.mubr.bf16.mxu0 0
      %5099 = vmatmul.mubr.bf16.gmra.mrb[0].mxu0 %v4389
      %v5100 = vpop.f32.mrb[0].mxu0
      %v5101 = vadd.f32 0.0, %v5100
      %v5102 = vpop.f32.mrb[0].mxu0
      %v5103 = vpop.f32.mrb[0].mxu0
      %v5104 = vadd.f32 0.0, %v5103
      %v5105 = vpop.f32.mrb[0].mxu0
      %5106 = vmatprep.mubr.bf16.mxu0 0
      %5107 = vmatmul.mubr.bf16.gmra.mrb[0].mxu0 %v4392
      %v5108 = vpop.f32.mrb[0].mxu0
      %v5109 = vadd.f32 0.0, %v5108
      %v5110 = vpop.f32.mrb[0].mxu0
      %v5111 = vpop.f32.mrb[0].mxu0
      %v5112 = vadd.f32 0.0, %v5111
      %v5113 = vpop.f32.mrb[0].mxu0
      %5114 = vmatprep.mubr.bf16.mxu0 0
      %5115 = vmatmul.mubr.bf16.gmra.mrb[0].mxu0 %v4395
      %v5116 = vpop.f32.mrb[0].mxu0
      %v5117 = vadd.f32 0.0, %v5116
      %v5118 = vpop.f32.mrb[0].mxu0
      %v5119 = vpop.f32.mrb[0].mxu0
      %v5120 = vadd.f32 0.0, %v5119
      %v5121 = vpop.f32.mrb[0].mxu0
      %5122 = vmatprep.mubr.bf16.mxu0 0
      %5123 = vmatmul.mubr.bf16.gmra.mrb[0].mxu0 %v4398
      %v5124 = vpop.f32.mrb[0].mxu0
      %v5125 = vadd.f32 0.0, %v5124
      %v5126 = vpop.f32.mrb[0].mxu0
      %v5127 = vpop.f32.mrb[0].mxu0
      %v5128 = vadd.f32 0.0, %v5127
      %v5129 = vpop.f32.mrb[0].mxu0
      %5130 = vmatprep.mubr.bf16.mxu0 0
      %5131 = vmatmul.mubr.bf16.gmra.mrb[0].mxu0 %v4401
      %v5132 = vpop.f32.mrb[0].mxu0
      %v5133 = vadd.f32 0.0, %v5132
      %v5134 = vpop.f32.mrb[0].mxu0
      %v5135 = vpop.f32.mrb[0].mxu0
      %v5136 = vadd.f32 0.0, %v5135
      %v5137 = vpop.f32.mrb[0].mxu0
      %5138 = vmatprep.mubr.bf16.mxu0 0
      %5139 = vmatmul.mubr.bf16.gmra.mrb[0].mxu0 %v4404
      %v5140 = vpop.f32.mrb[0].mxu0
      %v5141 = vadd.f32 0.0, %v5140
      %v5142 = vpop.f32.mrb[0].mxu0
      %v5143 = vpop.f32.mrb[0].mxu0
      %v5144 = vadd.f32 0.0, %v5143
      %v5145 = vpop.f32.mrb[0].mxu0
      %5146 = vmatprep.mubr.bf16.mxu0 0
      %5147 = vmatmul.mubr.bf16.gmra.mrb[0].mxu0 %v4407
      %v5148 = vpop.f32.mrb[0].mxu0
      %v5149 = vadd.f32 0.0, %v5148
      %v5150 = vpop.f32.mrb[0].mxu0
      %v5151 = vpop.f32.mrb[0].mxu0
      %v5152 = vadd.f32 0.0, %v5151
      %v5153 = vpop.f32.mrb[0].mxu0
      %5154 = vmatprep.mubr.bf16.mxu0 0
      %5155 = vmatmul.mubr.bf16.gmra.mrb[0].mxu0 %v4410
      %v5156 = vpop.f32.mrb[0].mxu0
      %v5157 = vadd.f32 0.0, %v5156
      %v5158 = vpop.f32.mrb[0].mxu0
      %v5159 = vpop.f32.mrb[0].mxu0
      %v5160 = vadd.f32 0.0, %v5159
      %v5161 = vpop.f32.mrb[0].mxu0
      %5162 = vmatprep.mubr.bf16.mxu0 0
      %5163 = vmatmul.mubr.bf16.gmra.mrb[0].mxu0 %v4413
      %v5164 = vpop.f32.mrb[0].mxu0
      %v5165 = vadd.f32 0.0, %v5164
      %v5166 = vpop.f32.mrb[0].mxu0
      %v5167 = vpop.f32.mrb[0].mxu0
      %v5168 = vadd.f32 0.0, %v5167
      %v5169 = vpop.f32.mrb[0].mxu0
      %5170 = vmatprep.mubr.bf16.mxu0 0
      %5171 = vmatmul.mubr.bf16.gmra.mrb[0].mxu0 %v4416
      %v5172 = vpop.f32.mrb[0].mxu0
      %v5173 = vadd.f32 0.0, %v5172
      %v5174 = vpop.f32.mrb[0].mxu0
      %v5175 = vpop.f32.mrb[0].mxu0
      %v5176 = vadd.f32 0.0, %v5175
      %v5177 = vpop.f32.mrb[0].mxu0
      %5178 = vmatprep.mubr.bf16.mxu0 0
      %5179 = vmatmul.mubr.bf16.gmra.mrb[0].mxu0 %v4419
      %v5180 = vpop.f32.mrb[0].mxu0
      %v5181 = vadd.f32 0.0, %v5180
      %v5182 = vpop.f32.mrb[0].mxu0
      %v5183 = vpop.f32.mrb[0].mxu0
      %v5184 = vadd.f32 0.0, %v5183
      %v5185 = vpop.f32.mrb[0].mxu0
      %5186 = vmatprep.mubr.bf16.mxu0 0
      %5187 = vmatmul.mubr.bf16.gmra.mrb[0].mxu0 %v4422
      %v5188 = vpop.f32.mrb[0].mxu0
      %v5189 = vadd.f32 0.0, %v5188
      %v5190 = vpop.f32.mrb[0].mxu0
      %v5191 = vpop.f32.mrb[0].mxu0
      %v5192 = vadd.f32 0.0, %v5191
      %v5193 = vpop.f32.mrb[0].mxu0
      %5194 = vmatprep.mubr.bf16.mxu0 0
      %5195 = vmatmul.mubr.bf16.gmra.mrb[0].mxu0 %v4425
      %v5196 = vpop.f32.mrb[0].mxu0
      %v5197 = vadd.f32 0.0, %v5196
      %v5198 = vpop.f32.mrb[0].mxu0
      %v5199 = vpop.f32.mrb[0].mxu0
      %v5200 = vadd.f32 0.0, %v5199
      %v5201 = vpop.f32.mrb[0].mxu0
      %5202 = vmatprep.mubr.bf16.mxu0 0
      %5203 = vmatmul.mubr.bf16.gmra.mrb[0].mxu0 %v4428
      %v5204 = vpop.f32.mrb[0].mxu0
      %v5205 = vadd.f32 0.0, %v5204
      %v5206 = vpop.f32.mrb[0].mxu0
      %v5207 = vpop.f32.mrb[0].mxu0
      %v5208 = vadd.f32 0.0, %v5207
      %v5209 = vpop.f32.mrb[0].mxu0
      %5210 = vmatprep.mubr.bf16.mxu0 0
      %5211 = vmatmul.mubr.bf16.gmra.mrb[0].mxu0 %v4431
      %v5212 = vpop.f32.mrb[0].mxu0
      %v5213 = vadd.f32 0.0, %v5212
      %v5214 = vpop.f32.mrb[0].mxu0
      %v5215 = vpop.f32.mrb[0].mxu0
      %v5216 = vadd.f32 0.0, %v5215
      %v5217 = vpop.f32.mrb[0].mxu0
      %5218 = vmatprep.mubr.bf16.mxu0 0
      %5219 = vmatmul.mubr.bf16.gmra.mrb[0].mxu0 %v4434
      %v5220 = vpop.f32.mrb[0].mxu0
      %v5221 = vadd.f32 0.0, %v5220
      %v5222 = vpop.f32.mrb[0].mxu0
      %v5223 = vpop.f32.mrb[0].mxu0
      %v5224 = vadd.f32 0.0, %v5223
      %v5225 = vpop.f32.mrb[0].mxu0
      %5226 = vmatprep.mubr.bf16.mxu0 0
      %5227 = vmatmul.mubr.bf16.gmra.mrb[0].mxu0 %v4437
      %v5228 = vpop.f32.mrb[0].mxu0
      %v5229 = vadd.f32 0.0, %v5228
      %v5230 = vpop.f32.mrb[0].mxu0
      %v5231 = vpop.f32.mrb[0].mxu0
      %v5232 = vadd.f32 0.0, %v5231
      %v5233 = vpop.f32.mrb[0].mxu0
      %5234 = vmatprep.mubr.bf16.mxu0 0
      %5235 = vmatmul.mubr.bf16.gmra.mrb[0].mxu0 %v4440
      %v5236 = vpop.f32.mrb[0].mxu0
      %v5237 = vadd.f32 0.0, %v5236
      %v5238 = vpop.f32.mrb[0].mxu0
      %v5239 = vpop.f32.mrb[0].mxu0
      %v5240 = vadd.f32 0.0, %v5239
      %v5241 = vpop.f32.mrb[0].mxu0
      %5242 = vmatprep.mubr.bf16.mxu0 0
      %5243 = vmatmul.mubr.bf16.gmra.mrb[0].mxu0 %v4443
      %v5244 = vpop.f32.mrb[0].mxu0
      %v5245 = vadd.f32 0.0, %v5244
      %v5246 = vpop.f32.mrb[0].mxu0
      %v5247 = vpop.f32.mrb[0].mxu0
      %v5248 = vadd.f32 0.0, %v5247
      %v5249 = vpop.f32.mrb[0].mxu0
      %5250 = vmatprep.mubr.bf16.mxu0 0
      %5251 = vmatmul.mubr.bf16.gmra.mrb[0].mxu0 %v4446
      %v5252 = vpop.f32.mrb[0].mxu0
      %v5253 = vadd.f32 0.0, %v5252
      %v5254 = vpop.f32.mrb[0].mxu0
      %v5255 = vpop.f32.mrb[0].mxu0
      %v5256 = vadd.f32 0.0, %v5255
      %v5257 = vpop.f32.mrb[0].mxu0
      %5258 = vmatprep.mubr.bf16.mxu0 0
      %5259 = vmatmul.mubr.bf16.gmra.mrb[0].mxu0 %v4449
      %v5260 = vpop.f32.mrb[0].mxu0
      %v5261 = vadd.f32 0.0, %v5260
      %v5262 = vpop.f32.mrb[0].mxu0
      %v5263 = vpop.f32.mrb[0].mxu0
      %v5264 = vadd.f32 0.0, %v5263
      %v5265 = vpop.f32.mrb[0].mxu0
      %5266 = vmatprep.mubr.bf16.mxu0 0
      %5267 = vmatmul.mubr.bf16.gmra.mrb[0].mxu0 %v4452
      %v5268 = vpop.f32.mrb[0].mxu0
      %v5269 = vadd.f32 0.0, %v5268
      %v5270 = vpop.f32.mrb[0].mxu0
      %v5271 = vpop.f32.mrb[0].mxu0
      %v5272 = vadd.f32 0.0, %v5271
      %v5273 = vpop.f32.mrb[0].mxu0
      %5274 = vmatprep.mubr.bf16.mxu0 0
      %5275 = vmatmul.mubr.bf16.gmra.mrb[0].mxu0 %v4455
      %v5276 = vpop.f32.mrb[0].mxu0
      %v5277 = vadd.f32 0.0, %v5276
      %v5278 = vpop.f32.mrb[0].mxu0
      %v5279 = vpop.f32.mrb[0].mxu0
      %v5280 = vadd.f32 0.0, %v5279
      %v5281 = vpop.f32.mrb[0].mxu0
      %5282 = vmatprep.mubr.bf16.mxu0 0
      %5283 = vmatmul.mubr.bf16.gmra.mrb[0].mxu0 %v4458
      %v5284 = vpop.f32.mrb[0].mxu0
      %v5285 = vadd.f32 0.0, %v5284
      %v5286 = vpop.f32.mrb[0].mxu0
      %v5287 = vpop.f32.mrb[0].mxu0
      %v5288 = vadd.f32 0.0, %v5287
      %v5289 = vpop.f32.mrb[0].mxu0
      %5290 = vmatprep.mubr.bf16.mxu0 0
      %5291 = vmatmul.mubr.bf16.gmra.mrb[0].mxu0 %v4461
      %v5292 = vpop.f32.mrb[0].mxu0
      %v5293 = vadd.f32 0.0, %v5292
      %v5294 = vpop.f32.mrb[0].mxu0
      %v5295 = vpop.f32.mrb[0].mxu0
      %v5296 = vadd.f32 0.0, %v5295
      %v5297 = vpop.f32.mrb[0].mxu0
      %5298 = vmatprep.mubr.bf16.mxu0 0
      %5299 = vmatmul.mubr.bf16.gmra.mrb[0].mxu0 %v4464
      %v5300 = vpop.f32.mrb[0].mxu0
      %v5301 = vadd.f32 0.0, %v5300
      %v5302 = vpop.f32.mrb[0].mxu0
      %v5303 = vpop.f32.mrb[0].mxu0
      %v5304 = vadd.f32 0.0, %v5303
      %v5305 = vpop.f32.mrb[0].mxu0
      %5306 = vmatprep.mubr.bf16.mxu0 0
      %5307 = vmatmul.mubr.bf16.gmra.mrb[0].mxu0 %v4467
      %v5308 = vpop.f32.mrb[0].mxu0
      %v5309 = vadd.f32 0.0, %v5308
      %v5310 = vpop.f32.mrb[0].mxu0
      %v5311 = vpop.f32.mrb[0].mxu0
      %v5312 = vadd.f32 0.0, %v5311
      %v5313 = vpop.f32.mrb[0].mxu0
      %5314 = vmatprep.mubr.bf16.mxu0 0
      %5315 = vmatmul.mubr.bf16.gmra.mrb[0].mxu0 %v4470
      %v5316 = vpop.f32.mrb[0].mxu0
      %v5317 = vadd.f32 0.0, %v5316
      %v5318 = vpop.f32.mrb[0].mxu0
      %v5319 = vpop.f32.mrb[0].mxu0
      %v5320 = vadd.f32 0.0, %v5319
      %v5321 = vpop.f32.mrb[0].mxu0
      %5322 = vmatprep.mubr.bf16.mxu0 0
      %5323 = vmatmul.mubr.bf16.gmra.mrb[0].mxu0 %v4473
      %v5324 = vpop.f32.mrb[0].mxu0
      %v5325 = vadd.f32 0.0, %v5324
      %v5326 = vpop.f32.mrb[0].mxu0
      %v5327 = vpop.f32.mrb[0].mxu0
      %v5328 = vadd.f32 0.0, %v5327
      %v5329 = vpop.f32.mrb[0].mxu0
      %5330 = vmatprep.mubr.bf16.mxu0 0
      %5331 = vmatmul.mubr.bf16.gmra.mrb[0].mxu0 %v4476
      %v5332 = vpop.f32.mrb[0].mxu0
      %v5333 = vadd.f32 0.0, %v5332
      %v5334 = vpop.f32.mrb[0].mxu0
      %v5335 = vpop.f32.mrb[0].mxu0
      %v5336 = vadd.f32 0.0, %v5335
      %v5337 = vpop.f32.mrb[0].mxu0
      %5338 = vmatprep.mubr.bf16.mxu0 0
      %5339 = vmatmul.mubr.bf16.gmra.mrb[0].mxu0 %v4479
      %v5340 = vpop.f32.mrb[0].mxu0
      %v5341 = vadd.f32 0.0, %v5340
      %v5342 = vpop.f32.mrb[0].mxu0
      %v5343 = vpop.f32.mrb[0].mxu0
      %v5344 = vadd.f32 0.0, %v5343
      %v5345 = vpop.f32.mrb[0].mxu0
      %5346 = vmatprep.mubr.bf16.mxu0 0
      %5347 = vmatmul.mubr.bf16.gmra.mrb[0].mxu0 %v4482
      %v5348 = vpop.f32.mrb[0].mxu0
      %v5349 = vadd.f32 0.0, %v5348
      %v5350 = vpop.f32.mrb[0].mxu0
      %v5351 = vpop.f32.mrb[0].mxu0
      %v5352 = vadd.f32 0.0, %v5351
      %v5353 = vpop.f32.mrb[0].mxu0
      %5354 = vmatprep.mubr.bf16.mxu0 0
      %5355 = vmatmul.mubr.bf16.gmra.mrb[0].mxu0 %v4485
      %v5356 = vpop.f32.mrb[0].mxu0
      %v5357 = vadd.f32 0.0, %v5356
      %v5358 = vpop.f32.mrb[0].mxu0
      %v5359 = vpop.f32.mrb[0].mxu0
      %v5360 = vadd.f32 0.0, %v5359
      %v5361 = vpop.f32.mrb[0].mxu0
      %5362 = vmatprep.mubr.bf16.mxu0 0
      %5363 = vmatmul.mubr.bf16.gmra.mrb[0].mxu0 %v4488
      %v5364 = vpop.f32.mrb[0].mxu0
      %v5365 = vadd.f32 0.0, %v5364
      %v5366 = vpop.f32.mrb[0].mxu0
      %v5367 = vpop.f32.mrb[0].mxu0
      %v5368 = vadd.f32 0.0, %v5367
      %v5369 = vpop.f32.mrb[0].mxu0
      %5370 = vmatprep.mubr.bf16.mxu0 0
      %5371 = vmatmul.mubr.bf16.gmra.mrb[0].mxu0 %v4491
      %v5372 = vpop.f32.mrb[0].mxu0
      %v5373 = vadd.f32 0.0, %v5372
      %v5374 = vpop.f32.mrb[0].mxu0
      %v5375 = vpop.f32.mrb[0].mxu0
      %v5376 = vadd.f32 0.0, %v5375
      %v5377 = vpop.f32.mrb[0].mxu0
      %5378 = vmatprep.mubr.bf16.mxu0 0
      %5379 = vmatmul.mubr.bf16.gmra.mrb[0].mxu0 %v4494
      %v5380 = vpop.f32.mrb[0].mxu0
      %v5381 = vadd.f32 0.0, %v5380
      %v5382 = vpop.f32.mrb[0].mxu0
      %v5383 = vpop.f32.mrb[0].mxu0
      %v5384 = vadd.f32 0.0, %v5383
      %v5385 = vpop.f32.mrb[0].mxu0
      %5386 = vmatprep.mubr.bf16.mxu0 0
      %5387 = vmatmul.mubr.bf16.gmra.mrb[0].mxu0 %v4497
      %v5388 = vpop.f32.mrb[0].mxu0
      %v5389 = vadd.f32 0.0, %v5388
      %v5390 = vpop.f32.mrb[0].mxu0
      %v5391 = vpop.f32.mrb[0].mxu0
      %v5392 = vadd.f32 0.0, %v5391
      %v5393 = vpop.f32.mrb[0].mxu0
      %5394 = vmatprep.mubr.bf16.mxu0 0
      %5395 = vmatmul.mubr.bf16.gmra.mrb[0].mxu0 %v4500
      %v5396 = vpop.f32.mrb[0].mxu0
      %v5397 = vadd.f32 0.0, %v5396
      %v5398 = vpop.f32.mrb[0].mxu0
      %v5399 = vpop.f32.mrb[0].mxu0
      %v5400 = vadd.f32 0.0, %v5399
      %v5401 = vpop.f32.mrb[0].mxu0
      %5402 = vmatprep.mubr.bf16.mxu0 0
      %5403 = vmatmul.mubr.bf16.gmra.mrb[0].mxu0 %v4503
      %v5404 = vpop.f32.mrb[0].mxu0
      %v5405 = vadd.f32 0.0, %v5404
      %v5406 = vpop.f32.mrb[0].mxu0
      %v5407 = vpop.f32.mrb[0].mxu0
      %v5408 = vadd.f32 0.0, %v5407
      %v5409 = vpop.f32.mrb[0].mxu0
      %5410 = vmatprep.mubr.bf16.mxu0 0
      %5411 = vmatmul.mubr.bf16.gmra.mrb[0].mxu0 %v4506
      %v5412 = vpop.f32.mrb[0].mxu0
      %v5413 = vadd.f32 0.0, %v5412
      %v5414 = vpop.f32.mrb[0].mxu0
      %v5415 = vpop.f32.mrb[0].mxu0
      %v5416 = vadd.f32 0.0, %v5415
      %v5417 = vpop.f32.mrb[0].mxu0
      %5418 = vmatprep.mubr.bf16.mxu0 0
      %5419 = vmatmul.mubr.bf16.gmra.mrb[0].mxu0 %v4509
      %v5420 = vpop.f32.mrb[0].mxu0
      %v5421 = vadd.f32 0.0, %v5420
      %v5422 = vpop.f32.mrb[0].mxu0
      %v5423 = vpop.f32.mrb[0].mxu0
      %v5424 = vadd.f32 0.0, %v5423
      %v5425 = vpop.f32.mrb[0].mxu0
      %5426 = vmatprep.mubr.bf16.mxu0 0
      %5427 = vmatmul.mubr.bf16.gmra.mrb[0].mxu0 %v4512
      %v5428 = vpop.f32.mrb[0].mxu0
      %v5429 = vadd.f32 0.0, %v5428
      %v5430 = vpop.f32.mrb[0].mxu0
      %v5431 = vpop.f32.mrb[0].mxu0
      %v5432 = vadd.f32 0.0, %v5431
      %v5433 = vpop.f32.mrb[0].mxu0
      %5434 = vmatprep.mubr.bf16.mxu0 0
      %5435 = vmatmul.mubr.bf16.gmra.mrb[0].mxu0 %v4515
      %v5436 = vpop.f32.mrb[0].mxu0
      %v5437 = vadd.f32 0.0, %v5436
      %v5438 = vpop.f32.mrb[0].mxu0
      %v5439 = vpop.f32.mrb[0].mxu0
      %v5440 = vadd.f32 0.0, %v5439
      %v5441 = vpop.f32.mrb[0].mxu0
      %5442 = vmatprep.mubr.bf16.mxu0 0
      %5443 = vmatmul.mubr.bf16.gmra.mrb[0].mxu0 %v4518
      %v5444 = vpop.f32.mrb[0].mxu0
      %v5445 = vadd.f32 0.0, %v5444
      %v5446 = vpop.f32.mrb[0].mxu0
      %v5447 = vpop.f32.mrb[0].mxu0
      %v5448 = vadd.f32 0.0, %v5447
      %v5449 = vpop.f32.mrb[0].mxu0
      %5450 = vmatprep.mubr.bf16.mxu0 0
      %5451 = vmatmul.mubr.bf16.gmra.mrb[0].mxu0 %v4521
      %v5452 = vpop.f32.mrb[0].mxu0
      %v5453 = vadd.f32 0.0, %v5452
      %v5454 = vpop.f32.mrb[0].mxu0
      %v5455 = vpop.f32.mrb[0].mxu0
      %v5456 = vadd.f32 0.0, %v5455
      %v5457 = vpop.f32.mrb[0].mxu0
      %5458 = vmatprep.mubr.bf16.mxu0 0
      %5459 = vmatmul.mubr.bf16.gmra.mrb[0].mxu0 %v4524
      %v5460 = vpop.f32.mrb[0].mxu0
      %v5461 = vadd.f32 0.0, %v5460
      %v5462 = vpop.f32.mrb[0].mxu0
      %v5463 = vpop.f32.mrb[0].mxu0
      %v5464 = vadd.f32 0.0, %v5463
      %v5465 = vpop.f32.mrb[0].mxu0
      %5466 = vmatprep.mubr.bf16.mxu0 0
      %5467 = vmatmul.mubr.bf16.gmra.mrb[0].mxu0 %v4527
      %v5468 = vpop.f32.mrb[0].mxu0
      %v5469 = vadd.f32 0.0, %v5468
      %v5470 = vpop.f32.mrb[0].mxu0
      %v5471 = vpop.f32.mrb[0].mxu0
      %v5472 = vadd.f32 0.0, %v5471
      %v5473 = vpop.f32.mrb[0].mxu0
      %5474 = vmatprep.mubr.bf16.mxu0 0
      %5475 = vmatmul.mubr.bf16.gmra.mrb[0].mxu0 %v4530
      %v5476 = vpop.f32.mrb[0].mxu0
      %v5477 = vadd.f32 0.0, %v5476
      %v5478 = vpop.f32.mrb[0].mxu0
      %v5479 = vpop.f32.mrb[0].mxu0
      %v5480 = vadd.f32 0.0, %v5479
      %v5481 = vpop.f32.mrb[0].mxu0
      %5482 = vmatprep.mubr.bf16.mxu0 0
      %5483 = vmatmul.mubr.bf16.gmra.mrb[0].mxu0 %v4533
      %v5484 = vpop.f32.mrb[0].mxu0
      %v5485 = vadd.f32 0.0, %v5484
      %v5486 = vpop.f32.mrb[0].mxu0
      %v5487 = vpop.f32.mrb[0].mxu0
      %v5488 = vadd.f32 0.0, %v5487
      %v5489 = vpop.f32.mrb[0].mxu0
      %5490 = vmatprep.mubr.bf16.mxu0 0
      %5491 = vmatmul.mubr.bf16.gmra.mrb[0].mxu0 %v4536
      %v5492 = vpop.f32.mrb[0].mxu0
      %v5493 = vadd.f32 0.0, %v5492
      %v5494 = vpop.f32.mrb[0].mxu0
      %v5495 = vpop.f32.mrb[0].mxu0
      %v5496 = vadd.f32 0.0, %v5495
      %v5497 = vpop.f32.mrb[0].mxu0
      %5498 = vmatprep.mubr.bf16.mxu0 0
      %5499 = vmatmul.mubr.bf16.gmra.mrb[0].mxu0 %v4539
      %v5500 = vpop.f32.mrb[0].mxu0
      %v5501 = vadd.f32 0.0, %v5500
      %v5502 = vpop.f32.mrb[0].mxu0
      %v5503 = vpop.f32.mrb[0].mxu0
      %v5504 = vadd.f32 0.0, %v5503
      %v5505 = vpop.f32.mrb[0].mxu0
      %5506 = vmatprep.mubr.bf16.mxu0 0
      %5507 = vmatmul.mubr.bf16.gmra.mrb[0].mxu0 %v4542
      %v5508 = vpop.f32.mrb[0].mxu0
      %v5509 = vadd.f32 0.0, %v5508
      %v5510 = vpop.f32.mrb[0].mxu0
      %v5511 = vpop.f32.mrb[0].mxu0
      %v5512 = vadd.f32 0.0, %v5511
      %v5513 = vpop.f32.mrb[0].mxu0
      %5514 = vmatprep.mubr.bf16.mxu0 0
      %5515 = vmatmul.mubr.bf16.gmra.mrb[0].mxu0 %v4545
      %v5516 = vpop.f32.mrb[0].mxu0
      %v5517 = vadd.f32 0.0, %v5516
      %v5518 = vpop.f32.mrb[0].mxu0
      %v5519 = vpop.f32.mrb[0].mxu0
      %v5520 = vadd.f32 0.0, %v5519
      %v5521 = vpop.f32.mrb[0].mxu0
      %5522 = vmatprep.mubr.bf16.mxu0 0
      %5523 = vmatmul.mubr.bf16.gmra.mrb[0].mxu0 %v4548
      %v5524 = vpop.f32.mrb[0].mxu0
      %v5525 = vadd.f32 0.0, %v5524
      %v5526 = vpop.f32.mrb[0].mxu0
      %v5527 = vpop.f32.mrb[0].mxu0
      %v5528 = vadd.f32 0.0, %v5527
      %v5529 = vpop.f32.mrb[0].mxu0
      %5530 = vmatprep.mubr.bf16.mxu0 0
      %5531 = vmatmul.mubr.bf16.gmra.mrb[0].mxu0 %v4551
      %v5532 = vpop.f32.mrb[0].mxu0
      %v5533 = vadd.f32 0.0, %v5532
      %v5534 = vpop.f32.mrb[0].mxu0
      %v5535 = vpop.f32.mrb[0].mxu0
      %v5536 = vadd.f32 0.0, %v5535
      %v5537 = vpop.f32.mrb[0].mxu0
      %5538 = vmatprep.mubr.bf16.mxu0 0
      %5539 = vmatmul.mubr.bf16.gmra.mrb[0].mxu0 %v4554
      %v5540 = vpop.f32.mrb[0].mxu0
      %v5541 = vadd.f32 0.0, %v5540
      %v5542 = vpop.f32.mrb[0].mxu0
      %v5543 = vpop.f32.mrb[0].mxu0
      %v5544 = vadd.f32 0.0, %v5543
      %v5545 = vpop.f32.mrb[0].mxu0
      %5546 = vmatprep.mubr.bf16.mxu0 0
      %5547 = vmatmul.mubr.bf16.gmra.mrb[0].mxu0 %v4557
      %v5548 = vpop.f32.mrb[0].mxu0
      %v5549 = vadd.f32 0.0, %v5548
      %v5550 = vpop.f32.mrb[0].mxu0
      %v5551 = vpop.f32.mrb[0].mxu0
      %v5552 = vadd.f32 0.0, %v5551
      %v5553 = vpop.f32.mrb[0].mxu0
      %5554 = vmatprep.mubr.bf16.mxu0 0
      %5555 = vmatmul.mubr.bf16.gmra.mrb[0].mxu0 %v4560
      %v5556 = vpop.f32.mrb[0].mxu0
      %v5557 = vadd.f32 0.0, %v5556
      %v5558 = vpop.f32.mrb[0].mxu0
      %v5559 = vpop.f32.mrb[0].mxu0
      %v5560 = vadd.f32 0.0, %v5559
      %v5561 = vpop.f32.mrb[0].mxu0
      %5562 = vmatprep.mubr.bf16.mxu0 0
      %5563 = vmatmul.mubr.bf16.gmra.mrb[0].mxu0 %v4563
      %v5564 = vpop.f32.mrb[0].mxu0
      %v5565 = vadd.f32 0.0, %v5564
      %v5566 = vpop.f32.mrb[0].mxu0
      %v5567 = vpop.f32.mrb[0].mxu0
      %v5568 = vadd.f32 0.0, %v5567
      %v5569 = vpop.f32.mrb[0].mxu0
      %5570 = vmatprep.mubr.bf16.mxu0 0
      %5571 = vmatmul.mubr.bf16.gmra.mrb[0].mxu0 %v4566
      %v5572 = vpop.f32.mrb[0].mxu0
      %v5573 = vadd.f32 0.0, %v5572
      %v5574 = vpop.f32.mrb[0].mxu0
      %v5575 = vpop.f32.mrb[0].mxu0
      %v5576 = vadd.f32 0.0, %v5575
      %v5577 = vpop.f32.mrb[0].mxu0
      %5578 = vmatprep.mubr.bf16.mxu0 0
      %5579 = vmatmul.mubr.bf16.gmra.mrb[0].mxu0 %v4569
      %v5580 = vpop.f32.mrb[0].mxu0
      %v5581 = vadd.f32 0.0, %v5580
      %v5582 = vpop.f32.mrb[0].mxu0
      %v5583 = vpop.f32.mrb[0].mxu0
      %v5584 = vadd.f32 0.0, %v5583
      %v5585 = vpop.f32.mrb[0].mxu0
      %5586 = vmatprep.mubr.bf16.mxu0 0
      %5587 = vmatmul.mubr.bf16.gmra.mrb[0].mxu0 %v4572
      %v5588 = vpop.f32.mrb[0].mxu0
      %v5589 = vadd.f32 0.0, %v5588
      %v5590 = vpop.f32.mrb[0].mxu0
      %v5591 = vpop.f32.mrb[0].mxu0
      %v5592 = vadd.f32 0.0, %v5591
      %v5593 = vpop.f32.mrb[0].mxu0
      %5594 = vmatprep.mubr.bf16.mxu0 0
      %5595 = vmatmul.mubr.bf16.gmra.mrb[0].mxu0 %v4575
      %v5596 = vpop.f32.mrb[0].mxu0
      %v5597 = vadd.f32 0.0, %v5596
      %v5598 = vpop.f32.mrb[0].mxu0
      %v5599 = vpop.f32.mrb[0].mxu0
      %v5600 = vadd.f32 0.0, %v5599
      %v5601 = vpop.f32.mrb[0].mxu0
      %5602 = vmatprep.mubr.bf16.mxu0 0
      %5603 = vmatmul.mubr.bf16.gmra.mrb[0].mxu0 %v4578
      %v5604 = vpop.f32.mrb[0].mxu0
      %v5605 = vadd.f32 0.0, %v5604
      %v5606 = vpop.f32.mrb[0].mxu0
      %v5607 = vpop.f32.mrb[0].mxu0
      %v5608 = vadd.f32 0.0, %v5607
      %v5609 = vpop.f32.mrb[0].mxu0
      %5610 = vmatprep.mubr.bf16.mxu0 0
      %5611 = vmatmul.mubr.bf16.gmra.mrb[0].mxu0 %v4581
      %v5612 = vpop.f32.mrb[0].mxu0
      %v5613 = vadd.f32 0.0, %v5612
      %v5614 = vpop.f32.mrb[0].mxu0
      %v5615 = vpop.f32.mrb[0].mxu0
      %v5616 = vadd.f32 0.0, %v5615
      %v5617 = vpop.f32.mrb[0].mxu0
      %5618 = vmatprep.mubr.bf16.mxu0 0
      %5619 = vmatmul.mubr.bf16.gmra.mrb[0].mxu0 %v4584
      %v5620 = vpop.f32.mrb[0].mxu0
      %v5621 = vadd.f32 0.0, %v5620
      %v5622 = vpop.f32.mrb[0].mxu0
      %v5623 = vpop.f32.mrb[0].mxu0
      %v5624 = vadd.f32 0.0, %v5623
      %v5625 = vpop.f32.mrb[0].mxu0
      %5626 = vmatprep.mubr.bf16.mxu0 0
      %5627 = vmatmul.mubr.bf16.gmra.mrb[0].mxu0 %v4587
      %v5628 = vpop.f32.mrb[0].mxu0
      %v5629 = vadd.f32 0.0, %v5628
      %v5630 = vpop.f32.mrb[0].mxu0
      %v5631 = vpop.f32.mrb[0].mxu0
      %v5632 = vadd.f32 0.0, %v5631
      %v5633 = vpop.f32.mrb[0].mxu0
      %5634 = vmatprep.mubr.bf16.mxu0 0
      %5635 = vmatmul.mubr.bf16.gmra.mrb[0].mxu0 %v4590
      %v5636 = vpop.f32.mrb[0].mxu0
      %v5637 = vadd.f32 0.0, %v5636
      %v5638 = vpop.f32.mrb[0].mxu0
      %v5639 = vpop.f32.mrb[0].mxu0
      %v5640 = vadd.f32 0.0, %v5639
      %v5641 = vpop.f32.mrb[0].mxu0
      %5642 = vmatprep.mubr.bf16.mxu0 0
      %5643 = vmatmul.mubr.bf16.gmra.mrb[0].mxu0 %v4593
      %v5644 = vpop.f32.mrb[0].mxu0
      %v5645 = vadd.f32 0.0, %v5644
      %v5646 = vpop.f32.mrb[0].mxu0
      %v5647 = vpop.f32.mrb[0].mxu0
      %v5648 = vadd.f32 0.0, %v5647
      %v5649 = vpop.f32.mrb[0].mxu0
      %5650 = vmatprep.mubr.bf16.mxu0 0
      %5651 = vmatmul.mubr.bf16.gmra.mrb[0].mxu0 %v4596
      %v5652 = vpop.f32.mrb[0].mxu0
      %v5653 = vadd.f32 0.0, %v5652
      %v5654 = vpop.f32.mrb[0].mxu0
      %v5655 = vpop.f32.mrb[0].mxu0
      %v5656 = vadd.f32 0.0, %v5655
      %v5657 = vpop.f32.mrb[0].mxu0
      %5658 = vmatprep.mubr.bf16.mxu0 0
      %5659 = vmatmul.mubr.bf16.gmra.mrb[0].mxu0 %v4599
      %v5660 = vpop.f32.mrb[0].mxu0
      %v5661 = vadd.f32 0.0, %v5660
      %v5662 = vpop.f32.mrb[0].mxu0
      %v5663 = vpop.f32.mrb[0].mxu0
      %v5664 = vadd.f32 0.0, %v5663
      %v5665 = vpop.f32.mrb[0].mxu0
      %5666 = vmatprep.mubr.bf16.mxu0 0
      %5667 = vmatmul.mubr.bf16.gmra.mrb[0].mxu0 %v4602
      %v5668 = vpop.f32.mrb[0].mxu0
      %v5669 = vadd.f32 0.0, %v5668
      %v5670 = vpop.f32.mrb[0].mxu0
      %v5671 = vpop.f32.mrb[0].mxu0
      %v5672 = vadd.f32 0.0, %v5671
      %v5673 = vpop.f32.mrb[0].mxu0
      %5674 = vmatprep.mubr.bf16.mxu0 0
      %5675 = vmatmul.mubr.bf16.gmra.mrb[0].mxu0 %v4605
      %v5676 = vpop.f32.mrb[0].mxu0
      %v5677 = vadd.f32 0.0, %v5676
      %v5678 = vpop.f32.mrb[0].mxu0
      %v5679 = vpop.f32.mrb[0].mxu0
      %v5680 = vadd.f32 0.0, %v5679
      %v5681 = vpop.f32.mrb[0].mxu0
      %5682 = vmatprep.mubr.bf16.mxu0 0
      %5683 = vmatmul.mubr.bf16.gmra.mrb[0].mxu0 %v4608
      %v5684 = vpop.f32.mrb[0].mxu0
      %v5685 = vadd.f32 0.0, %v5684
      %v5686 = vpop.f32.mrb[0].mxu0
      %v5687 = vpop.f32.mrb[0].mxu0
      %v5688 = vadd.f32 0.0, %v5687
      %v5689 = vpop.f32.mrb[0].mxu0
      %5690 = vmatprep.mubr.bf16.mxu0 0
      %5691 = vmatmul.mubr.bf16.gmra.mrb[0].mxu0 %v4611
      %v5692 = vpop.f32.mrb[0].mxu0
      %v5693 = vadd.f32 0.0, %v5692
      %v5694 = vpop.f32.mrb[0].mxu0
      %v5695 = vpop.f32.mrb[0].mxu0
      %v5696 = vadd.f32 0.0, %v5695
      %v5697 = vpop.f32.mrb[0].mxu0
      %5698 = vmatprep.mubr.bf16.mxu0 0
      %5699 = vmatmul.mubr.bf16.gmra.mrb[0].mxu0 %v4614
      %v5700 = vpop.f32.mrb[0].mxu0
      %v5701 = vadd.f32 0.0, %v5700
      %v5702 = vpop.f32.mrb[0].mxu0
      %v5703 = vpop.f32.mrb[0].mxu0
      %v5704 = vadd.f32 0.0, %v5703
      %v5705 = vpop.f32.mrb[0].mxu0
      %5706 = vmatprep.mubr.bf16.mxu0 0
      %5707 = vmatmul.mubr.bf16.gmra.mrb[0].mxu0 %v4617
      %v5708 = vpop.f32.mrb[0].mxu0
      %v5709 = vadd.f32 0.0, %v5708
      %v5710 = vpop.f32.mrb[0].mxu0
      %v5711 = vpop.f32.mrb[0].mxu0
      %v5712 = vadd.f32 0.0, %v5711
      %v5713 = vpop.f32.mrb[0].mxu0
      %5714 = vmatprep.mubr.bf16.mxu0 0
      %5715 = vmatmul.mubr.bf16.gmra.mrb[0].mxu0 %v4620
      %v5716 = vpop.f32.mrb[0].mxu0
      %v5717 = vadd.f32 0.0, %v5716
      %v5718 = vpop.f32.mrb[0].mxu0
      %v5719 = vpop.f32.mrb[0].mxu0
      %v5720 = vadd.f32 0.0, %v5719
      %v5721 = vpop.f32.mrb[0].mxu0
      %5722 = vmatprep.mubr.bf16.mxu0 0
      %5723 = vmatmul.mubr.bf16.gmra.mrb[0].mxu0 %v4623
      %v5724 = vpop.f32.mrb[0].mxu0
      %v5725 = vadd.f32 0.0, %v5724
      %v5726 = vpop.f32.mrb[0].mxu0
      %v5727 = vpop.f32.mrb[0].mxu0
      %v5728 = vadd.f32 0.0, %v5727
      %v5729 = vpop.f32.mrb[0].mxu0
      %5730 = vmatprep.mubr.bf16.mxu0 0
      %5731 = vmatmul.mubr.bf16.gmra.mrb[0].mxu0 %v4626
      %v5732 = vpop.f32.mrb[0].mxu0
      %v5733 = vadd.f32 0.0, %v5732
      %v5734 = vpop.f32.mrb[0].mxu0
      %v5735 = vpop.f32.mrb[0].mxu0
      %v5736 = vadd.f32 0.0, %v5735
      %v5737 = vpop.f32.mrb[0].mxu0
      %5738 = vmatprep.mubr.bf16.mxu0 0
      %5739 = vmatmul.mubr.bf16.gmra.mrb[0].mxu0 %v4629
      %v5740 = vpop.f32.mrb[0].mxu0
      %v5741 = vadd.f32 0.0, %v5740
      %v5742 = vpop.f32.mrb[0].mxu0
      %v5743 = vpop.f32.mrb[0].mxu0
      %v5744 = vadd.f32 0.0, %v5743
      %v5745 = vpop.f32.mrb[0].mxu0
      %5746 = vmatprep.mubr.bf16.mxu0 0
      %5747 = vmatmul.mubr.bf16.gmra.mrb[0].mxu0 %v4632
      %v5748 = vpop.f32.mrb[0].mxu0
      %v5749 = vadd.f32 0.0, %v5748
      %v5750 = vpop.f32.mrb[0].mxu0
      %v5751 = vpop.f32.mrb[0].mxu0
      %v5752 = vadd.f32 0.0, %v5751
      %v5753 = vpop.f32.mrb[0].mxu0
      %5754 = vmatprep.mubr.bf16.mxu0 0
      %5755 = vmatmul.mubr.bf16.gmra.mrb[0].mxu0 %v4635
      %v5756 = vpop.f32.mrb[0].mxu0
      %v5757 = vadd.f32 0.0, %v5756
      %v5758 = vpop.f32.mrb[0].mxu0
      %v5759 = vpop.f32.mrb[0].mxu0
      %v5760 = vadd.f32 0.0, %v5759
      %v5761 = vpop.f32.mrb[0].mxu0
      %5762 = vmatprep.mubr.bf16.mxu0 0
      %5763 = vmatmul.mubr.bf16.gmra.mrb[0].mxu0 %v4638
      %v5764 = vpop.f32.mrb[0].mxu0
      %v5765 = vadd.f32 0.0, %v5764
      %v5766 = vpop.f32.mrb[0].mxu0
      %v5767 = vpop.f32.mrb[0].mxu0
      %v5768 = vadd.f32 0.0, %v5767
      %v5769 = vpop.f32.mrb[0].mxu0
      %5770 = vmatprep.mubr.bf16.mxu0 0
      %5771 = vmatmul.mubr.bf16.gmra.mrb[0].mxu0 %v4641
      %v5772 = vpop.f32.mrb[0].mxu0
      %v5773 = vadd.f32 0.0, %v5772
      %v5774 = vpop.f32.mrb[0].mxu0
      %v5775 = vpop.f32.mrb[0].mxu0
      %v5776 = vadd.f32 0.0, %v5775
      %v5777 = vpop.f32.mrb[0].mxu0
      %5778 = vmatprep.mubr.bf16.mxu0 0
      %5779 = vmatmul.mubr.bf16.gmra.mrb[0].mxu0 %v4644
      %v5780 = vpop.f32.mrb[0].mxu0
      %v5781 = vadd.f32 0.0, %v5780
      %v5782 = vpop.f32.mrb[0].mxu0
      %v5783 = vpop.f32.mrb[0].mxu0
      %v5784 = vadd.f32 0.0, %v5783
      %v5785 = vpop.f32.mrb[0].mxu0
      %5786 = vmatprep.mubr.bf16.mxu0 0
      %5787 = vmatmul.mubr.bf16.gmra.mrb[0].mxu0 %v4647
      %v5788 = vpop.f32.mrb[0].mxu0
      %v5789 = vadd.f32 0.0, %v5788
      %v5790 = vpop.f32.mrb[0].mxu0
      %v5791 = vpop.f32.mrb[0].mxu0
      %v5792 = vadd.f32 0.0, %v5791
      %v5793 = vpop.f32.mrb[0].mxu0
      %5794 = vmatprep.mubr.bf16.mxu0 0
      %5795 = vmatmul.mubr.bf16.gmra.mrb[0].mxu0 %v4650
      %v5796 = vpop.f32.mrb[0].mxu0
      %v5797 = vadd.f32 0.0, %v5796
      %v5798 = vpop.f32.mrb[0].mxu0
      %v5799 = vpop.f32.mrb[0].mxu0
      %v5800 = vadd.f32 0.0, %v5799
      %v5801 = vpop.f32.mrb[0].mxu0
      %5802 = vmatprep.mubr.bf16.mxu0 0
      %5803 = vmatmul.mubr.bf16.gmra.mrb[0].mxu0 %v4653
      %v5804 = vpop.f32.mrb[0].mxu0
      %v5805 = vadd.f32 0.0, %v5804
      %v5806 = vpop.f32.mrb[0].mxu0
      %v5807 = vpop.f32.mrb[0].mxu0
      %v5808 = vadd.f32 0.0, %v5807
      %v5809 = vpop.f32.mrb[0].mxu0
      %5810 = vmatprep.mubr.bf16.mxu0 0
      %5811 = vmatmul.mubr.bf16.gmra.mrb[0].mxu0 %v4656
      %v5812 = vpop.f32.mrb[0].mxu0
      %v5813 = vadd.f32 0.0, %v5812
      %v5814 = vpop.f32.mrb[0].mxu0
      %v5815 = vpop.f32.mrb[0].mxu0
      %v5816 = vadd.f32 0.0, %v5815
      %v5817 = vpop.f32.mrb[0].mxu0
      %5818 = vmatprep.mubr.bf16.mxu0 0
      %5819 = vmatmul.mubr.bf16.gmra.mrb[0].mxu0 %v4659
      %v5820 = vpop.f32.mrb[0].mxu0
      %v5821 = vadd.f32 0.0, %v5820
      %v5822 = vpop.f32.mrb[0].mxu0
      %v5823 = vpop.f32.mrb[0].mxu0
      %v5824 = vadd.f32 0.0, %v5823
      %v5825 = vpop.f32.mrb[0].mxu0
      %5826 = vmatprep.mubr.bf16.mxu0 0
      %5827 = vmatmul.mubr.bf16.gmra.mrb[0].mxu0 %v4662
      %v5828 = vpop.f32.mrb[0].mxu0
      %v5829 = vadd.f32 0.0, %v5828
      %v5830 = vpop.f32.mrb[0].mxu0
      %v5831 = vpop.f32.mrb[0].mxu0
      %v5832 = vadd.f32 0.0, %v5831
      %v5833 = vpop.f32.mrb[0].mxu0
      %5834 = vmatprep.mubr.bf16.mxu0 0
      %5835 = vmatmul.mubr.bf16.gmra.mrb[0].mxu0 %v4665
      %v5836 = vpop.f32.mrb[0].mxu0
      %v5837 = vadd.f32 0.0, %v5836
      %v5838 = vpop.f32.mrb[0].mxu0
      %v5839 = vpop.f32.mrb[0].mxu0
      %v5840 = vadd.f32 0.0, %v5839
      %v5841 = vpop.f32.mrb[0].mxu0
      %5842 = vmatprep.mubr.bf16.mxu0 0
      %5843 = vmatmul.mubr.bf16.gmra.mrb[0].mxu0 %v4668
      %v5844 = vpop.f32.mrb[0].mxu0
      %v5845 = vadd.f32 0.0, %v5844
      %v5846 = vpop.f32.mrb[0].mxu0
      %v5847 = vpop.f32.mrb[0].mxu0
      %v5848 = vadd.f32 0.0, %v5847
      %v5849 = vpop.f32.mrb[0].mxu0
      %5850 = vmatprep.mubr.bf16.mxu0 0
      %5851 = vmatmul.mubr.bf16.gmra.mrb[0].mxu0 %v4671
      %v5852 = vpop.f32.mrb[0].mxu0
      %v5853 = vadd.f32 0.0, %v5852
      %v5854 = vpop.f32.mrb[0].mxu0
      %v5855 = vpop.f32.mrb[0].mxu0
      %v5856 = vadd.f32 0.0, %v5855
      %v5857 = vpop.f32.mrb[0].mxu0
      %5858 = vmatprep.mubr.bf16.mxu0 0
      %5859 = vmatmul.mubr.bf16.gmra.mrb[0].mxu0 %v4674
      %v5860 = vpop.f32.mrb[0].mxu0
      %v5861 = vadd.f32 0.0, %v5860
      %v5862 = vpop.f32.mrb[0].mxu0
      %v5863 = vpop.f32.mrb[0].mxu0
      %v5864 = vadd.f32 0.0, %v5863
      %v5865 = vpop.f32.mrb[0].mxu0
      %5866 = vmatprep.mubr.bf16.mxu0 0
      %5867 = vmatmul.mubr.bf16.gmra.mrb[0].mxu0 %v4677
      %v5868 = vpop.f32.mrb[0].mxu0
      %v5869 = vadd.f32 0.0, %v5868
      %v5870 = vpop.f32.mrb[0].mxu0
      %v5871 = vpop.f32.mrb[0].mxu0
      %v5872 = vadd.f32 0.0, %v5871
      %v5873 = vpop.f32.mrb[0].mxu0
      %5874 = vmatprep.mubr.bf16.mxu0 0
      %5875 = vmatmul.mubr.bf16.gmra.mrb[0].mxu0 %v4680
      %v5876 = vpop.f32.mrb[0].mxu0
      %v5877 = vadd.f32 0.0, %v5876
      %v5878 = vpop.f32.mrb[0].mxu0
      %v5879 = vpop.f32.mrb[0].mxu0
      %v5880 = vadd.f32 0.0, %v5879
      %v5881 = vpop.f32.mrb[0].mxu0
      %5882 = vmatprep.mubr.bf16.mxu0 0
      %5883 = vmatmul.mubr.bf16.gmra.mrb[0].mxu0 %v4683
      %v5884 = vpop.f32.mrb[0].mxu0
      %v5885 = vadd.f32 0.0, %v5884
      %v5886 = vpop.f32.mrb[0].mxu0
      %v5887 = vpop.f32.mrb[0].mxu0
      %v5888 = vadd.f32 0.0, %v5887
      %v5889 = vpop.f32.mrb[0].mxu0
      %5890 = vmatprep.mubr.bf16.mxu0 0
      %5891 = vmatmul.mubr.bf16.gmra.mrb[0].mxu0 %v4686
      %v5892 = vpop.f32.mrb[0].mxu0
      %v5893 = vadd.f32 0.0, %v5892
      %v5894 = vpop.f32.mrb[0].mxu0
      %v5895 = vpop.f32.mrb[0].mxu0
      %v5896 = vadd.f32 0.0, %v5895
      %v5897 = vpop.f32.mrb[0].mxu0
      %5898 = vmatprep.mubr.bf16.mxu0 0
      %5899 = vmatmul.mubr.bf16.gmra.mrb[0].mxu0 %v4689
      %v5900 = vpop.f32.mrb[0].mxu0
      %v5901 = vadd.f32 0.0, %v5900
      %v5902 = vpop.f32.mrb[0].mxu0
      %v5903 = vpop.f32.mrb[0].mxu0
      %v5904 = vadd.f32 0.0, %v5903
      %v5905 = vpop.f32.mrb[0].mxu0
      %5906 = vmatprep.mubr.bf16.mxu0 0
      %5907 = vmatmul.mubr.bf16.gmra.mrb[0].mxu0 %v4692
      %v5908 = vpop.f32.mrb[0].mxu0
      %v5909 = vadd.f32 0.0, %v5908
      %v5910 = vpop.f32.mrb[0].mxu0
      %v5911 = vpop.f32.mrb[0].mxu0
      %v5912 = vadd.f32 0.0, %v5911
      %v5913 = vpop.f32.mrb[0].mxu0
      %5914 = vmatprep.mubr.bf16.mxu0 0
      %5915 = vmatmul.mubr.bf16.gmra.mrb[0].mxu0 %v4695
      %v5916 = vpop.f32.mrb[0].mxu0
      %v5917 = vadd.f32 0.0, %v5916
      %v5918 = vpop.f32.mrb[0].mxu0
      %v5919 = vpop.f32.mrb[0].mxu0
      %v5920 = vadd.f32 0.0, %v5919
      %v5921 = vpop.f32.mrb[0].mxu0
      %5922 = vmatprep.mubr.bf16.mxu0 0
      %5923 = vmatmul.mubr.bf16.gmra.mrb[0].mxu0 %v4698
      %v5924 = vpop.f32.mrb[0].mxu0
      %v5925 = vadd.f32 0.0, %v5924
      %v5926 = vpop.f32.mrb[0].mxu0
      %v5927 = vpop.f32.mrb[0].mxu0
      %v5928 = vadd.f32 0.0, %v5927
      %v5929 = vpop.f32.mrb[0].mxu0
      %5930 = vmatprep.mubr.bf16.mxu0 0
      %5931 = vmatmul.mubr.bf16.gmra.mrb[0].mxu0 %v4701
      %v5932 = vpop.f32.mrb[0].mxu0
      %v5933 = vadd.f32 0.0, %v5932
      %v5934 = vpop.f32.mrb[0].mxu0
      %v5935 = vpop.f32.mrb[0].mxu0
      %v5936 = vadd.f32 0.0, %v5935
      %v5937 = vpop.f32.mrb[0].mxu0
      %5938 = vmatprep.mubr.bf16.mxu0 0
      %5939 = vmatmul.mubr.bf16.gmra.mrb[0].mxu0 %v4704
      %v5940 = vpop.f32.mrb[0].mxu0
      %v5941 = vadd.f32 0.0, %v5940
      %v5942 = vpop.f32.mrb[0].mxu0
      %v5943 = vpop.f32.mrb[0].mxu0
      %v5944 = vadd.f32 0.0, %v5943
      %v5945 = vpop.f32.mrb[0].mxu0
      %5946 = vmatprep.mubr.bf16.mxu0 0
      %5947 = vmatmul.mubr.bf16.gmra.mrb[0].mxu0 %v4707
      %v5948 = vpop.f32.mrb[0].mxu0
      %v5949 = vadd.f32 0.0, %v5948
      %v5950 = vpop.f32.mrb[0].mxu0
      %v5951 = vpop.f32.mrb[0].mxu0
      %v5952 = vadd.f32 0.0, %v5951
      %v5953 = vpop.f32.mrb[0].mxu0
      %5954 = vmatprep.mubr.bf16.mxu0 0
      %5955 = vmatmul.mubr.bf16.gmra.mrb[0].mxu0 %v4710
      %v5956 = vpop.f32.mrb[0].mxu0
      %v5957 = vadd.f32 0.0, %v5956
      %v5958 = vpop.f32.mrb[0].mxu0
      %v5959 = vpop.f32.mrb[0].mxu0
      %v5960 = vadd.f32 0.0, %v5959
      %v5961 = vpop.f32.mrb[0].mxu0
      %5962 = vmatprep.mubr.bf16.mxu0 0
      %5963 = vmatmul.mubr.bf16.gmra.mrb[0].mxu0 %v4713
      %v5964 = vpop.f32.mrb[0].mxu0
      %v5965 = vadd.f32 0.0, %v5964
      %v5966 = vpop.f32.mrb[0].mxu0
      %v5967 = vpop.f32.mrb[0].mxu0
      %v5968 = vadd.f32 0.0, %v5967
      %v5969 = vpop.f32.mrb[0].mxu0
      %5970 = vmatprep.mubr.bf16.mxu0 0
      %5971 = vmatmul.mubr.bf16.gmra.mrb[0].mxu0 %v4716
      %v5972 = vpop.f32.mrb[0].mxu0
      %v5973 = vadd.f32 0.0, %v5972
      %v5974 = vpop.f32.mrb[0].mxu0
      %v5975 = vpop.f32.mrb[0].mxu0
      %v5976 = vadd.f32 0.0, %v5975
      %v5977 = vpop.f32.mrb[0].mxu0
      %5978 = vmatprep.mubr.bf16.mxu0 0
      %5979 = vmatmul.mubr.bf16.gmra.mrb[0].mxu0 %v4719
      %v5980 = vpop.f32.mrb[0].mxu0
      %v5981 = vadd.f32 0.0, %v5980
      %v5982 = vpop.f32.mrb[0].mxu0
      %v5983 = vpop.f32.mrb[0].mxu0
      %v5984 = vadd.f32 0.0, %v5983
      %v5985 = vpop.f32.mrb[0].mxu0
      %5986 = vmatprep.mubr.bf16.mxu0 0
      %5987 = vmatmul.mubr.bf16.gmra.mrb[0].mxu0 %v4722
      %v5988 = vpop.f32.mrb[0].mxu0
      %v5989 = vadd.f32 0.0, %v5988
      %v5990 = vpop.f32.mrb[0].mxu0
      %v5991 = vpop.f32.mrb[0].mxu0
      %v5992 = vadd.f32 0.0, %v5991
      %v5993 = vpop.f32.mrb[0].mxu0
      %5994 = vmatprep.mubr.bf16.mxu0 0
      %5995 = vmatmul.mubr.bf16.gmra.mrb[0].mxu0 %v4725
      %v5996 = vpop.f32.mrb[0].mxu0
      %v5997 = vadd.f32 0.0, %v5996
      %v5998 = vpop.f32.mrb[0].mxu0
      %v5999 = vpop.f32.mrb[0].mxu0
      %v6000 = vadd.f32 0.0, %v5999
      %v6001 = vpop.f32.mrb[0].mxu0
      %6002 = vmatprep.mubr.bf16.mxu0 0
      %6003 = vmatmul.mubr.bf16.gmra.mrb[0].mxu0 %v4728
      %v6004 = vpop.f32.mrb[0].mxu0
      %v6005 = vadd.f32 0.0, %v6004
      %v6006 = vpop.f32.mrb[0].mxu0
      %v6007 = vpop.f32.mrb[0].mxu0
      %v6008 = vadd.f32 0.0, %v6007
      %v6009 = vpop.f32.mrb[0].mxu0
      %6010 = vmatprep.mubr.bf16.mxu0 0
      %6011 = vmatmul.mubr.bf16.gmra.mrb[0].mxu0 %v4731
      %v6012 = vpop.f32.mrb[0].mxu0
      %v6013 = vadd.f32 0.0, %v6012
      %v6014 = vpop.f32.mrb[0].mxu0
      %v6015 = vpop.f32.mrb[0].mxu0
      %v6016 = vadd.f32 0.0, %v6015
      %v6017 = vpop.f32.mrb[0].mxu0
      %6018 = vmatprep.mubr.bf16.mxu0 0
      %6019 = vmatmul.mubr.bf16.gmra.mrb[0].mxu0 %v4734
      %v6020 = vpop.f32.mrb[0].mxu0
      %v6021 = vadd.f32 0.0, %v6020
      %v6022 = vpop.f32.mrb[0].mxu0
      %v6023 = vpop.f32.mrb[0].mxu0
      %v6024 = vadd.f32 0.0, %v6023
      %v6025 = vpop.f32.mrb[0].mxu0
      %6026 = vmatprep.mubr.bf16.mxu0 0
      %6027 = vmatmul.mubr.bf16.gmra.mrb[0].mxu0 %v4737
      %v6028 = vpop.f32.mrb[0].mxu0
      %v6029 = vadd.f32 0.0, %v6028
      %v6030 = vpop.f32.mrb[0].mxu0
      %v6031 = vpop.f32.mrb[0].mxu0
      %v6032 = vadd.f32 0.0, %v6031
      %v6033 = vpop.f32.mrb[0].mxu0
      %6034 = vmatprep.mubr.bf16.mxu0 0
      %6035 = vmatmul.mubr.bf16.gmra.mrb[0].mxu0 %v4740
      %v6036 = vpop.f32.mrb[0].mxu0
      %v6037 = vadd.f32 0.0, %v6036
      %v6038 = vpop.f32.mrb[0].mxu0
      %v6039 = vpop.f32.mrb[0].mxu0
      %v6040 = vadd.f32 0.0, %v6039
      %v6041 = vpop.f32.mrb[0].mxu0
      %6042 = vmatprep.mubr.bf16.mxu0 0
      %6043 = vmatmul.mubr.bf16.gmra.mrb[0].mxu0 %v4743
      %v6044 = vpop.f32.mrb[0].mxu0
      %v6045 = vadd.f32 0.0, %v6044
      %v6046 = vpop.f32.mrb[0].mxu0
      %v6047 = vpop.f32.mrb[0].mxu0
      %v6048 = vadd.f32 0.0, %v6047
      %v6049 = vpop.f32.mrb[0].mxu0
      %6050 = vmatprep.mubr.bf16.mxu0 0
      %6051 = vmatmul.mubr.bf16.gmra.mrb[0].mxu0 %v4746
      %v6052 = vpop.f32.mrb[0].mxu0
      %v6053 = vadd.f32 0.0, %v6052
      %v6054 = vpop.f32.mrb[0].mxu0
      %v6055 = vpop.f32.mrb[0].mxu0
      %v6056 = vadd.f32 0.0, %v6055
      %v6057 = vpop.f32.mrb[0].mxu0
      %6058 = vmatprep.mubr.bf16.mxu0 0
      %6059 = vmatmul.mubr.bf16.gmra.mrb[0].mxu0 %v4749
      %v6060 = vpop.f32.mrb[0].mxu0
      %v6061 = vadd.f32 0.0, %v6060
      %v6062 = vpop.f32.mrb[0].mxu0
      %v6063 = vpop.f32.mrb[0].mxu0
      %v6064 = vadd.f32 0.0, %v6063
      %v6065 = vpop.f32.mrb[0].mxu0
      %6066 = vmatprep.mubr.bf16.mxu0 0
      %6067 = vmatmul.mubr.bf16.gmra.mrb[0].mxu0 %v4752
      %v6068 = vpop.f32.mrb[0].mxu0
      %v6069 = vadd.f32 0.0, %v6068
      %v6070 = vpop.f32.mrb[0].mxu0
      %v6071 = vpop.f32.mrb[0].mxu0
      %v6072 = vadd.f32 0.0, %v6071
      %v6073 = vpop.f32.mrb[0].mxu0
      %6074 = vmatprep.mubr.bf16.mxu0 0
      %6075 = vmatmul.mubr.bf16.gmra.mrb[0].mxu0 %v4755
      %v6076 = vpop.f32.mrb[0].mxu0
      %v6077 = vadd.f32 0.0, %v6076
      %v6078 = vpop.f32.mrb[0].mxu0
      %v6079 = vpop.f32.mrb[0].mxu0
      %v6080 = vadd.f32 0.0, %v6079
      %v6081 = vpop.f32.mrb[0].mxu0
      %6082 = vmatprep.mubr.bf16.mxu0 0
      %6083 = vmatmul.mubr.bf16.gmra.mrb[0].mxu0 %v4758
      %v6084 = vpop.f32.mrb[0].mxu0
      %v6085 = vadd.f32 0.0, %v6084
      %v6086 = vpop.f32.mrb[0].mxu0
      %v6087 = vpop.f32.mrb[0].mxu0
      %v6088 = vadd.f32 0.0, %v6087
      %v6089 = vpop.f32.mrb[0].mxu0
      %6090 = vmatprep.mubr.bf16.mxu0 0
      %6091 = vmatmul.mubr.bf16.gmra.mrb[0].mxu0 %v4761
      %v6092 = vpop.f32.mrb[0].mxu0
      %v6093 = vadd.f32 0.0, %v6092
      %v6094 = vpop.f32.mrb[0].mxu0
      %v6095 = vpop.f32.mrb[0].mxu0
      %v6096 = vadd.f32 0.0, %v6095
      %v6097 = vpop.f32.mrb[0].mxu0
      %6098 = vmatprep.mubr.bf16.mxu0 0
      %6099 = vmatmul.mubr.bf16.gmra.mrb[0].mxu0 %v4764
      %v6100 = vpop.f32.mrb[0].mxu0
      %v6101 = vadd.f32 0.0, %v6100
      %v6102 = vpop.f32.mrb[0].mxu0
      %v6103 = vpop.f32.mrb[0].mxu0
      %v6104 = vadd.f32 0.0, %v6103
      %v6105 = vpop.f32.mrb[0].mxu0
      %6106 = vmatprep.mubr.bf16.mxu0 0
      %6107 = vmatmul.mubr.bf16.gmra.mrb[0].mxu0 %v4767
      %v6108 = vpop.f32.mrb[0].mxu0
      %v6109 = vadd.f32 0.0, %v6108
      %v6110 = vpop.f32.mrb[0].mxu0
      %v6111 = vpop.f32.mrb[0].mxu0
      %v6112 = vadd.f32 0.0, %v6111
      %v6113 = vpop.f32.mrb[0].mxu0
      %6114 = vmatprep.mubr.bf16.mxu0 0
      %6115 = vmatmul.mubr.bf16.gmra.mrb[0].mxu0 %v4770
      %v6116 = vpop.f32.mrb[0].mxu0
      %v6117 = vadd.f32 0.0, %v6116
      %v6118 = vpop.f32.mrb[0].mxu0
      %v6119 = vpop.f32.mrb[0].mxu0
      %v6120 = vadd.f32 0.0, %v6119
      %v6121 = vpop.f32.mrb[0].mxu0
      %6122 = vmatprep.mubr.bf16.mxu0 0
      %6123 = vmatmul.mubr.bf16.gmra.mrb[0].mxu0 %v4773
      %v6124 = vpop.f32.mrb[0].mxu0
      %v6125 = vadd.f32 0.0, %v6124
      %v6126 = vpop.f32.mrb[0].mxu0
      %v6127 = vpop.f32.mrb[0].mxu0
      %v6128 = vadd.f32 0.0, %v6127
      %v6129 = vpop.f32.mrb[0].mxu0
      %6130 = vmatprep.mubr.bf16.mxu0 0
      %6131 = vmatmul.mubr.bf16.gmra.mrb[0].mxu0 %v4776
      %v6132 = vpop.f32.mrb[0].mxu0
      %v6133 = vadd.f32 0.0, %v6132
      %v6134 = vpop.f32.mrb[0].mxu0
      %v6135 = vpop.f32.mrb[0].mxu0
      %v6136 = vadd.f32 0.0, %v6135
      %v6137 = vpop.f32.mrb[0].mxu0
      %6138 = vmatprep.mubr.bf16.mxu0 0
      %6139 = vmatmul.mubr.bf16.gmra.mrb[0].mxu0 %v4779
      %v6140 = vpop.f32.mrb[0].mxu0
      %v6141 = vadd.f32 0.0, %v6140
      %v6142 = vpop.f32.mrb[0].mxu0
      %v6143 = vpop.f32.mrb[0].mxu0
      %v6144 = vadd.f32 0.0, %v6143
      %v6145 = vpop.f32.mrb[0].mxu0
      %6146 = vmatprep.mubr.bf16.mxu0 0
      %6147 = vmatmul.mubr.bf16.gmra.mrb[0].mxu0 %v4782
      %v6148 = vpop.f32.mrb[0].mxu0
      %v6149 = vadd.f32 0.0, %v6148
      %v6150 = vpop.f32.mrb[0].mxu0
      %v6151 = vpop.f32.mrb[0].mxu0
      %v6152 = vadd.f32 0.0, %v6151
      %v6153 = vpop.f32.mrb[0].mxu0
      %6154 = vmatprep.mubr.bf16.mxu0 0
      %6155 = vmatmul.mubr.bf16.gmra.mrb[0].mxu0 %v4785
      %v6156 = vpop.f32.mrb[0].mxu0
      %v6157 = vadd.f32 0.0, %v6156
      %v6158 = vpop.f32.mrb[0].mxu0
      %v6159 = vpop.f32.mrb[0].mxu0
      %v6160 = vadd.f32 0.0, %v6159
      %v6161 = vpop.f32.mrb[0].mxu0
      %6162 = vmatprep.mubr.bf16.mxu0 0
      %6163 = vmatmul.mubr.bf16.gmra.mrb[0].mxu0 %v4788
      %v6164 = vpop.f32.mrb[0].mxu0
      %v6165 = vadd.f32 0.0, %v6164
      %v6166 = vpop.f32.mrb[0].mxu0
      %v6167 = vpop.f32.mrb[0].mxu0
      %v6168 = vadd.f32 0.0, %v6167
      %v6169 = vpop.f32.mrb[0].mxu0
      %6170 = vmatprep.mubr.bf16.mxu0 0
      %6171 = vmatmul.mubr.bf16.gmra.mrb[0].mxu0 %v4791
      %v6172 = vpop.f32.mrb[0].mxu0
      %v6173 = vadd.f32 0.0, %v6172
      %v6174 = vpop.f32.mrb[0].mxu0
      %v6175 = vpop.f32.mrb[0].mxu0
      %v6176 = vadd.f32 0.0, %v6175
      %v6177 = vpop.f32.mrb[0].mxu0
      %6178 = vmatprep.mubr.bf16.mxu0 0
      %6179 = vmatmul.mubr.bf16.gmra.mrb[0].mxu0 %v4794
      %v6180 = vpop.f32.mrb[0].mxu0
      %v6181 = vadd.f32 0.0, %v6180
      %v6182 = vpop.f32.mrb[0].mxu0
      %v6183 = vpop.f32.mrb[0].mxu0
      %v6184 = vadd.f32 0.0, %v6183
      %v6185 = vpop.f32.mrb[0].mxu0
      %6186 = vmatprep.mubr.bf16.mxu0 0
      %6187 = vmatmul.mubr.bf16.gmra.mrb[0].mxu0 %v4797
      %v6188 = vpop.f32.mrb[0].mxu0
      %v6189 = vadd.f32 0.0, %v6188
      %v6190 = vpop.f32.mrb[0].mxu0
      %v6191 = vpop.f32.mrb[0].mxu0
      %v6192 = vadd.f32 0.0, %v6191
      %v6193 = vpop.f32.mrb[0].mxu0
      %6194 = vmatprep.mubr.bf16.mxu0 0
      %6195 = vmatmul.mubr.bf16.gmra.mrb[0].mxu0 %v4800
      %v6196 = vpop.f32.mrb[0].mxu0
      %v6197 = vadd.f32 0.0, %v6196
      %v6198 = vpop.f32.mrb[0].mxu0
      %v6199 = vpop.f32.mrb[0].mxu0
      %v6200 = vadd.f32 0.0, %v6199
      %v6201 = vpop.f32.mrb[0].mxu0
      %6202 = vmatprep.mubr.bf16.mxu0 0
      %6203 = vmatmul.mubr.bf16.gmra.mrb[0].mxu0 %v4803
      %v6204 = vpop.f32.mrb[0].mxu0
      %v6205 = vadd.f32 0.0, %v6204
      %v6206 = vpop.f32.mrb[0].mxu0
      %v6207 = vpop.f32.mrb[0].mxu0
      %v6208 = vadd.f32 0.0, %v6207
      %v6209 = vpop.f32.mrb[0].mxu0
      %6210 = vmatprep.mubr.bf16.mxu0 0
      %6211 = vmatmul.mubr.bf16.gmra.mrb[0].mxu0 %v4806
      %v6212 = vpop.f32.mrb[0].mxu0
      %v6213 = vadd.f32 0.0, %v6212
      %v6214 = vpop.f32.mrb[0].mxu0
      %v6215 = vpop.f32.mrb[0].mxu0
      %v6216 = vadd.f32 0.0, %v6215
      %v6217 = vpop.f32.mrb[0].mxu0
      %6218 = vmatprep.mubr.bf16.mxu0 0
      %6219 = vmatmul.mubr.bf16.gmra.mrb[0].mxu0 %v4809
      %v6220 = vpop.f32.mrb[0].mxu0
      %v6221 = vadd.f32 0.0, %v6220
      %v6222 = vpop.f32.mrb[0].mxu0
      %v6223 = vpop.f32.mrb[0].mxu0
      %v6224 = vadd.f32 0.0, %v6223
      %v6225 = vpop.f32.mrb[0].mxu0
      %6226 = vmatprep.mubr.bf16.mxu0 0
      %6227 = vmatmul.mubr.bf16.gmra.mrb[0].mxu0 %v4812
      %v6228 = vpop.f32.mrb[0].mxu0
      %v6229 = vadd.f32 0.0, %v6228
      %v6230 = vpop.f32.mrb[0].mxu0
      %v6231 = vpop.f32.mrb[0].mxu0
      %v6232 = vadd.f32 0.0, %v6231
      %v6233 = vpop.f32.mrb[0].mxu0
      %6234 = vmatprep.mubr.bf16.mxu0 0
      %6235 = vmatmul.mubr.bf16.gmra.mrb[0].mxu0 %v4815
      %v6236 = vpop.f32.mrb[0].mxu0
      %v6237 = vadd.f32 0.0, %v6236
      %v6238 = vpop.f32.mrb[0].mxu0
      %v6239 = vpop.f32.mrb[0].mxu0
      %v6240 = vadd.f32 0.0, %v6239
      %v6241 = vpop.f32.mrb[0].mxu0
      %6242 = vmatprep.mubr.bf16.mxu0 0
      %6243 = vmatmul.mubr.bf16.gmra.mrb[0].mxu0 %v4818
      %v6244 = vpop.f32.mrb[0].mxu0
      %v6245 = vadd.f32 0.0, %v6244
      %v6246 = vpop.f32.mrb[0].mxu0
      %v6247 = vpop.f32.mrb[0].mxu0
      %v6248 = vadd.f32 0.0, %v6247
      %v6249 = vpop.f32.mrb[0].mxu0
      %6250 = vmatprep.mubr.bf16.mxu0 0
      %6251 = vmatmul.mubr.bf16.gmra.mrb[0].mxu0 %v4821
      %v6252 = vpop.f32.mrb[0].mxu0
      %v6253 = vadd.f32 0.0, %v6252
      %v6254 = vpop.f32.mrb[0].mxu0
      %v6255 = vpop.f32.mrb[0].mxu0
      %v6256 = vadd.f32 0.0, %v6255
      %v6257 = vpop.f32.mrb[0].mxu0
      %6258 = vmatprep.mubr.bf16.mxu0 0
      %6259 = vmatmul.mubr.bf16.gmra.mrb[0].mxu0 %v4824
      %v6260 = vpop.f32.mrb[0].mxu0
      %v6261 = vadd.f32 0.0, %v6260
      %v6262 = vpop.f32.mrb[0].mxu0
      %v6263 = vpop.f32.mrb[0].mxu0
      %v6264 = vadd.f32 0.0, %v6263
      %v6265 = vpop.f32.mrb[0].mxu0
      %6266 = vmatprep.mubr.bf16.mxu0 0
      %6267 = vmatmul.mubr.bf16.gmra.mrb[0].mxu0 %v4827
      %v6268 = vpop.f32.mrb[0].mxu0
      %v6269 = vadd.f32 0.0, %v6268
      %v6270 = vpop.f32.mrb[0].mxu0
      %v6271 = vpop.f32.mrb[0].mxu0
      %v6272 = vadd.f32 0.0, %v6271
      %v6273 = vpop.f32.mrb[0].mxu0
      %6274 = vmatprep.mubr.bf16.mxu0 0
      %6275 = vmatmul.mubr.bf16.gmra.mrb[0].mxu0 %v4830
      %v6276 = vpop.f32.mrb[0].mxu0
      %v6277 = vadd.f32 0.0, %v6276
      %v6278 = vpop.f32.mrb[0].mxu0
      %v6279 = vpop.f32.mrb[0].mxu0
      %v6280 = vadd.f32 0.0, %v6279
      %v6281 = vpop.f32.mrb[0].mxu0
      %6282 = vmatprep.mubr.bf16.mxu0 0
      %6283 = vmatmul.mubr.bf16.gmra.mrb[0].mxu0 %v4833
      %v6284 = vpop.f32.mrb[0].mxu0
      %v6285 = vadd.f32 0.0, %v6284
      %v6286 = vpop.f32.mrb[0].mxu0
      %v6287 = vpop.f32.mrb[0].mxu0
      %v6288 = vadd.f32 0.0, %v6287
      %v6289 = vpop.f32.mrb[0].mxu0
      %6290 = vmatprep.mubr.bf16.mxu0 0
      %6291 = vmatmul.mubr.bf16.gmra.mrb[0].mxu0 %v4836
      %v6292 = vpop.f32.mrb[0].mxu0
      %v6293 = vadd.f32 0.0, %v6292
      %v6294 = vpop.f32.mrb[0].mxu0
      %v6295 = vpop.f32.mrb[0].mxu0
      %v6296 = vadd.f32 0.0, %v6295
      %v6297 = vpop.f32.mrb[0].mxu0
      %6298 = vmatprep.mubr.bf16.mxu0 0
      %6299 = vmatmul.mubr.bf16.gmra.mrb[0].mxu0 %v4839
      %v6300 = vpop.f32.mrb[0].mxu0
      %v6301 = vadd.f32 0.0, %v6300
      %v6302 = vpop.f32.mrb[0].mxu0
      %v6303 = vpop.f32.mrb[0].mxu0
      %v6304 = vadd.f32 0.0, %v6303
      %v6305 = vpop.f32.mrb[0].mxu0
      %6306 = vmatprep.mubr.bf16.mxu0 0
      %6307 = vmatmul.mubr.bf16.gmra.mrb[0].mxu0 %v4842
      %v6308 = vpop.f32.mrb[0].mxu0
      %v6309 = vadd.f32 0.0, %v6308
      %v6310 = vpop.f32.mrb[0].mxu0
      %v6311 = vpop.f32.mrb[0].mxu0
      %v6312 = vadd.f32 0.0, %v6311
      %v6313 = vpop.f32.mrb[0].mxu0
      %6314 = vmatprep.mubr.bf16.mxu0 0
      %6315 = vmatmul.mubr.bf16.gmra.mrb[0].mxu0 %v4845
      %v6316 = vpop.f32.mrb[0].mxu0
      %v6317 = vadd.f32 0.0, %v6316
      %v6318 = vpop.f32.mrb[0].mxu0
      %v6319 = vpop.f32.mrb[0].mxu0
      %v6320 = vadd.f32 0.0, %v6319
      %v6321 = vpop.f32.mrb[0].mxu0
      %6322 = vmatprep.mubr.bf16.mxu0 0
      %6323 = vmatmul.mubr.bf16.gmra.mrb[0].mxu0 %v4848
      %v6324 = vpop.f32.mrb[0].mxu0
      %v6325 = vadd.f32 0.0, %v6324
      %v6326 = vpop.f32.mrb[0].mxu0
      %v6327 = vpop.f32.mrb[0].mxu0
      %v6328 = vadd.f32 0.0, %v6327
      %v6329 = vpop.f32.mrb[0].mxu0
      %6330 = vmatprep.mubr.bf16.mxu0 0
      %6331 = vmatmul.mubr.bf16.gmra.mrb[0].mxu0 %v4851
      %v6332 = vpop.f32.mrb[0].mxu0
      %v6333 = vadd.f32 0.0, %v6332
      %v6334 = vpop.f32.mrb[0].mxu0
      %v6335 = vpop.f32.mrb[0].mxu0
      %v6336 = vadd.f32 0.0, %v6335
      %v6337 = vpop.f32.mrb[0].mxu0
      %6338 = vmatprep.mubr.bf16.mxu0 0
      %6339 = vmatmul.mubr.bf16.gmra.mrb[0].mxu0 %v4854
      %v6340 = vpop.f32.mrb[0].mxu0
      %v6341 = vadd.f32 0.0, %v6340
      %v6342 = vpop.f32.mrb[0].mxu0
      %v6343 = vpop.f32.mrb[0].mxu0
      %v6344 = vadd.f32 0.0, %v6343
      %v6345 = vpop.f32.mrb[0].mxu0
      %6346 = vmatprep.mubr.bf16.mxu0 0
      %6347 = vmatmul.mubr.bf16.gmra.mrb[0].mxu0 %v4857
      %v6348 = vpop.f32.mrb[0].mxu0
      %v6349 = vadd.f32 0.0, %v6348
      %v6350 = vpop.f32.mrb[0].mxu0
      %v6351 = vpop.f32.mrb[0].mxu0
      %v6352 = vadd.f32 0.0, %v6351
      %v6353 = vpop.f32.mrb[0].mxu0
      %6354 = vmatprep.mubr.bf16.mxu0 0
      %6355 = vmatmul.mubr.bf16.gmra.mrb[0].mxu0 %v4860
      %v6356 = vpop.f32.mrb[0].mxu0
      %v6357 = vadd.f32 0.0, %v6356
      %v6358 = vpop.f32.mrb[0].mxu0
      %v6359 = vpop.f32.mrb[0].mxu0
      %v6360 = vadd.f32 0.0, %v6359
      %v6361 = vpop.f32.mrb[0].mxu0
      %6362 = vmatprep.mubr.bf16.mxu0 0
      %6363 = vmatmul.mubr.bf16.gmra.mrb[0].mxu0 %v4863
      %v6364 = vpop.f32.mrb[0].mxu0
      %v6365 = vadd.f32 0.0, %v6364
      %v6366 = vpop.f32.mrb[0].mxu0
      %v6367 = vpop.f32.mrb[0].mxu0
      %v6368 = vadd.f32 0.0, %v6367
      %v6369 = vpop.f32.mrb[0].mxu0
      %6370 = vmatprep.mubr.bf16.mxu0 0
      %6371 = vmatmul.mubr.bf16.gmra.mrb[0].mxu0 %v4866
      %v6372 = vpop.f32.mrb[0].mxu0
      %v6373 = vadd.f32 0.0, %v6372
      %v6374 = vpop.f32.mrb[0].mxu0
      %v6375 = vpop.f32.mrb[0].mxu0
      %v6376 = vadd.f32 0.0, %v6375
      %v6377 = vpop.f32.mrb[0].mxu0
      %6378 = vmatprep.mubr.bf16.mxu0 0
      %6379 = vmatmul.mubr.bf16.gmra.mrb[0].mxu0 %v4869
      %v6380 = vpop.f32.mrb[0].mxu0
      %v6381 = vadd.f32 0.0, %v6380
      %v6382 = vpop.f32.mrb[0].mxu0
      %v6383 = vpop.f32.mrb[0].mxu0
      %v6384 = vadd.f32 0.0, %v6383
      %v6385 = vpop.f32.mrb[0].mxu0
      %6386 = vmatprep.mubr.bf16.mxu0 0
      %6387 = vmatmul.mubr.bf16.gmra.mrb[0].mxu0 %v4872
      %v6388 = vpop.f32.mrb[0].mxu0
      %v6389 = vadd.f32 0.0, %v6388
      %v6390 = vpop.f32.mrb[0].mxu0
      %v6391 = vpop.f32.mrb[0].mxu0
      %v6392 = vadd.f32 0.0, %v6391
      %v6393 = vpop.f32.mrb[0].mxu0
      %6394 = vmatprep.mubr.bf16.mxu0 0
      %6395 = vmatmul.mubr.bf16.gmra.mrb[0].mxu0 %v4875
      %v6396 = vpop.f32.mrb[0].mxu0
      %v6397 = vadd.f32 0.0, %v6396
      %v6398 = vpop.f32.mrb[0].mxu0
      %v6399 = vpop.f32.mrb[0].mxu0
      %v6400 = vadd.f32 0.0, %v6399
      %v6401 = vpop.f32.mrb[0].mxu0
      %6402 = vmatprep.mubr.bf16.mxu0 0
      %6403 = vmatmul.mubr.bf16.gmra.mrb[0].mxu0 %v4878
      %v6404 = vpop.f32.mrb[0].mxu0
      %v6405 = vadd.f32 0.0, %v6404
      %v6406 = vpop.f32.mrb[0].mxu0
      %v6407 = vpop.f32.mrb[0].mxu0
      %v6408 = vadd.f32 0.0, %v6407
      %v6409 = vpop.f32.mrb[0].mxu0
      %6410 = vmatprep.mubr.bf16.mxu0 0
      %6411 = vmatmul.mubr.bf16.gmra.mrb[0].mxu0 %v4881
      %v6412 = vpop.f32.mrb[0].mxu0
      %v6413 = vadd.f32 0.0, %v6412
      %v6414 = vpop.f32.mrb[0].mxu0
      %v6415 = vpop.f32.mrb[0].mxu0
      %v6416 = vadd.f32 0.0, %v6415
      %v6417 = vpop.f32.mrb[0].mxu0
      %6418 = vmatprep.mubr.bf16.mxu0 0
      %6419 = vmatmul.mubr.bf16.gmra.mrb[0].mxu0 %v4884
      %v6420 = vpop.f32.mrb[0].mxu0
      %v6421 = vadd.f32 0.0, %v6420
      %v6422 = vpop.f32.mrb[0].mxu0
      %v6423 = vpop.f32.mrb[0].mxu0
      %v6424 = vadd.f32 0.0, %v6423
      %v6425 = vpop.f32.mrb[0].mxu0
      %6426 = vmatprep.mubr.bf16.mxu0 0
      %6427 = vmatmul.mubr.bf16.gmra.mrb[0].mxu0 %v4887
      %v6428 = vpop.f32.mrb[0].mxu0
      %v6429 = vadd.f32 0.0, %v6428
      %v6430 = vpop.f32.mrb[0].mxu0
      %v6431 = vpop.f32.mrb[0].mxu0
      %v6432 = vadd.f32 0.0, %v6431
      %v6433 = vpop.f32.mrb[0].mxu0
      %6434 = vmatprep.mubr.bf16.mxu0 0
      %6435 = vmatmul.mubr.bf16.gmra.mrb[0].mxu0 %v4890
      %v6436 = vpop.f32.mrb[0].mxu0
      %v6437 = vadd.f32 0.0, %v6436
      %v6438 = vpop.f32.mrb[0].mxu0
      %v6439 = vpop.f32.mrb[0].mxu0
      %v6440 = vadd.f32 0.0, %v6439
      %v6441 = vpop.f32.mrb[0].mxu0
      %6442 = vmatprep.mubr.bf16.mxu0 0
      %6443 = vmatmul.mubr.bf16.gmra.mrb[0].mxu0 %v4893
      %v6444 = vpop.f32.mrb[0].mxu0
      %v6445 = vadd.f32 0.0, %v6444
      %v6446 = vpop.f32.mrb[0].mxu0
      %v6447 = vpop.f32.mrb[0].mxu0
      %v6448 = vadd.f32 0.0, %v6447
      %v6449 = vpop.f32.mrb[0].mxu0
      %6450 = vmatprep.mubr.bf16.mxu0 0
      %6451 = vmatmul.mubr.bf16.gmra.mrb[0].mxu0 %v4896
      %v6452 = vpop.f32.mrb[0].mxu0
      %v6453 = vadd.f32 0.0, %v6452
      %v6454 = vpop.f32.mrb[0].mxu0
      %v6455 = vpop.f32.mrb[0].mxu0
      %v6456 = vadd.f32 0.0, %v6455
      %v6457 = vpop.f32.mrb[0].mxu0
      %6458 = vmatprep.mubr.bf16.mxu0 0
      %6459 = vmatmul.mubr.bf16.gmra.mrb[0].mxu0 %v4899
      %v6460 = vpop.f32.mrb[0].mxu0
      %v6461 = vadd.f32 0.0, %v6460
      %v6462 = vpop.f32.mrb[0].mxu0
      %v6463 = vpop.f32.mrb[0].mxu0
      %v6464 = vadd.f32 0.0, %v6463
      %v6465 = vpop.f32.mrb[0].mxu0
      %6466 = vmatprep.mubr.bf16.mxu0 0
      %6467 = vmatmul.mubr.bf16.gmra.mrb[0].mxu0 %v4902
      %v6468 = vpop.f32.mrb[0].mxu0
      %v6469 = vadd.f32 0.0, %v6468
      %v6470 = vpop.f32.mrb[0].mxu0
      %v6471 = vpop.f32.mrb[0].mxu0
      %v6472 = vadd.f32 0.0, %v6471
      %v6473 = vpop.f32.mrb[0].mxu0
      %6474 = vmatprep.mubr.bf16.mxu0 0
      %6475 = vmatmul.mubr.bf16.gmra.mrb[0].mxu0 %v4905
      %v6476 = vpop.f32.mrb[0].mxu0
      %v6477 = vadd.f32 0.0, %v6476
      %v6478 = vpop.f32.mrb[0].mxu0
      %v6479 = vpop.f32.mrb[0].mxu0
      %v6480 = vadd.f32 0.0, %v6479
      %v6481 = vpop.f32.mrb[0].mxu0
      %6482 = vmatprep.mubr.bf16.mxu0 0
      %6483 = vmatmul.mubr.bf16.gmra.mrb[0].mxu0 %v4908
      %v6484 = vpop.f32.mrb[0].mxu0
      %v6485 = vadd.f32 0.0, %v6484
      %v6486 = vpop.f32.mrb[0].mxu0
      %v6487 = vpop.f32.mrb[0].mxu0
      %v6488 = vadd.f32 0.0, %v6487
      %v6489 = vpop.f32.mrb[0].mxu0
      %6490 = vmatprep.mubr.bf16.mxu0 0
      %6491 = vmatmul.mubr.bf16.gmra.mrb[0].mxu0 %v4911
      %v6492 = vpop.f32.mrb[0].mxu0
      %v6493 = vadd.f32 0.0, %v6492
      %v6494 = vpop.f32.mrb[0].mxu0
      %v6495 = vpop.f32.mrb[0].mxu0
      %v6496 = vadd.f32 0.0, %v6495
      %v6497 = vpop.f32.mrb[0].mxu0
      %6498 = vmatprep.mubr.bf16.mxu0 0
      %6499 = vmatmul.mubr.bf16.gmra.mrb[0].mxu0 %v4914
      %v6500 = vpop.f32.mrb[0].mxu0
      %v6501 = vadd.f32 0.0, %v6500
      %v6502 = vpop.f32.mrb[0].mxu0
      %v6503 = vpop.f32.mrb[0].mxu0
      %v6504 = vadd.f32 0.0, %v6503
      %v6505 = vpop.f32.mrb[0].mxu0
      %6506 = vmatprep.mubr.bf16.mxu0 0
      %6507 = vmatmul.mubr.bf16.gmra.mrb[0].mxu0 %v4917
      %v6508 = vpop.f32.mrb[0].mxu0
      %v6509 = vadd.f32 0.0, %v6508
      %v6510 = vpop.f32.mrb[0].mxu0
      %v6511 = vpop.f32.mrb[0].mxu0
      %v6512 = vadd.f32 0.0, %v6511
      %v6513 = vpop.f32.mrb[0].mxu0
      %6514 = vmatprep.mubr.bf16.mxu0 0
      %6515 = vmatmul.mubr.bf16.gmra.mrb[0].mxu0 %v4920
      %v6516 = vpop.f32.mrb[0].mxu0
      %v6517 = vadd.f32 0.0, %v6516
      %v6518 = vpop.f32.mrb[0].mxu0
      %v6519 = vpop.f32.mrb[0].mxu0
      %v6520 = vadd.f32 0.0, %v6519
      %v6521 = vpop.f32.mrb[0].mxu0
      %6522 = vmatprep.mubr.bf16.mxu0 0
      %6523 = vmatmul.mubr.bf16.gmra.mrb[0].mxu0 %v4923
      %v6524 = vpop.f32.mrb[0].mxu0
      %v6525 = vadd.f32 0.0, %v6524
      %v6526 = vpop.f32.mrb[0].mxu0
      %v6527 = vpop.f32.mrb[0].mxu0
      %v6528 = vadd.f32 0.0, %v6527
      %v6529 = vpop.f32.mrb[0].mxu0
      %6530 = vmatprep.mubr.bf16.mxu0 0
      %6531 = vmatmul.mubr.bf16.gmra.mrb[0].mxu0 %v4926
      %v6532 = vpop.f32.mrb[0].mxu0
      %v6533 = vadd.f32 0.0, %v6532
      %v6534 = vpop.f32.mrb[0].mxu0
      %v6535 = vpop.f32.mrb[0].mxu0
      %v6536 = vadd.f32 0.0, %v6535
      %v6537 = vpop.f32.mrb[0].mxu0
      %6538 = vmatprep.mubr.bf16.mxu0 0
      %6539 = vmatmul.mubr.bf16.gmra.mrb[0].mxu0 %v4929
      %v6540 = vpop.f32.mrb[0].mxu0
      %v6541 = vadd.f32 0.0, %v6540
      %v6542 = vpop.f32.mrb[0].mxu0
      %v6543 = vpop.f32.mrb[0].mxu0
      %v6544 = vadd.f32 0.0, %v6543
      %v6545 = vpop.f32.mrb[0].mxu0
      %6546 = vmatprep.mubr.bf16.mxu0 0
      %6547 = vmatmul.mubr.bf16.gmra.mrb[0].mxu0 %v4932
      %v6548 = vpop.f32.mrb[0].mxu0
      %v6549 = vadd.f32 0.0, %v6548
      %v6550 = vpop.f32.mrb[0].mxu0
      %v6551 = vpop.f32.mrb[0].mxu0
      %v6552 = vadd.f32 0.0, %v6551
      %v6553 = vpop.f32.mrb[0].mxu0
      %6554 = vmatprep.mubr.bf16.mxu0 0
      %6555 = vmatmul.mubr.bf16.gmra.mrb[0].mxu0 %v4935
      %v6556 = vpop.f32.mrb[0].mxu0
      %v6557 = vadd.f32 0.0, %v6556
      %v6558 = vpop.f32.mrb[0].mxu0
      %v6559 = vpop.f32.mrb[0].mxu0
      %v6560 = vadd.f32 0.0, %v6559
      %v6561 = vpop.f32.mrb[0].mxu0
      %6562 = vmatprep.mubr.bf16.mxu0 0
      %6563 = vmatmul.mubr.bf16.gmra.mrb[0].mxu0 %v4938
      %v6564 = vpop.f32.mrb[0].mxu0
      %v6565 = vadd.f32 0.0, %v6564
      %v6566 = vpop.f32.mrb[0].mxu0
      %v6567 = vpop.f32.mrb[0].mxu0
      %v6568 = vadd.f32 0.0, %v6567
      %v6569 = vpop.f32.mrb[0].mxu0
      %6570 = vmatprep.mubr.bf16.mxu0 0
      %6571 = vmatmul.mubr.bf16.gmra.mrb[0].mxu0 %v4941
      %v6572 = vpop.f32.mrb[0].mxu0
      %v6573 = vadd.f32 0.0, %v6572
      %v6574 = vpop.f32.mrb[0].mxu0
      %v6575 = vpop.f32.mrb[0].mxu0
      %v6576 = vadd.f32 0.0, %v6575
      %v6577 = vpop.f32.mrb[0].mxu0
      %6578 = vmatprep.mubr.bf16.mxu0 0
      %6579 = vmatmul.mubr.bf16.gmra.mrb[0].mxu0 %v4944
      %v6580 = vpop.f32.mrb[0].mxu0
      %v6581 = vadd.f32 0.0, %v6580
      %v6582 = vpop.f32.mrb[0].mxu0
      %v6583 = vpop.f32.mrb[0].mxu0
      %v6584 = vadd.f32 0.0, %v6583
      %v6585 = vpop.f32.mrb[0].mxu0
      %6586 = vmatprep.mubr.bf16.mxu0 0
      %6587 = vmatmul.mubr.bf16.gmra.mrb[0].mxu0 %v4947
      %v6588 = vpop.f32.mrb[0].mxu0
      %v6589 = vadd.f32 0.0, %v6588
      %v6590 = vpop.f32.mrb[0].mxu0
      %v6591 = vpop.f32.mrb[0].mxu0
      %v6592 = vadd.f32 0.0, %v6591
      %v6593 = vpop.f32.mrb[0].mxu0
      %6594 = vmatprep.mubr.bf16.mxu0 0
      %6595 = vmatmul.mubr.bf16.gmra.mrb[0].mxu0 %v4950
      %v6596 = vpop.f32.mrb[0].mxu0
      %v6597 = vadd.f32 0.0, %v6596
      %v6598 = vpop.f32.mrb[0].mxu0
      %v6599 = vpop.f32.mrb[0].mxu0
      %v6600 = vadd.f32 0.0, %v6599
      %v6601 = vpop.f32.mrb[0].mxu0
      %6602 = vmatprep.mubr.bf16.mxu0 0
      %6603 = vmatmul.mubr.bf16.gmra.mrb[0].mxu0 %v4953
      %v6604 = vpop.f32.mrb[0].mxu0
      %v6605 = vadd.f32 0.0, %v6604
      %v6606 = vpop.f32.mrb[0].mxu0
      %v6607 = vpop.f32.mrb[0].mxu0
      %v6608 = vadd.f32 0.0, %v6607
      %v6609 = vpop.f32.mrb[0].mxu0
      %6610 = vmatprep.mubr.bf16.mxu0 0
      %6611 = vmatmul.mubr.bf16.gmra.mrb[0].mxu0 %v4956
      %v6612 = vpop.f32.mrb[0].mxu0
      %v6613 = vadd.f32 0.0, %v6612
      %v6614 = vpop.f32.mrb[0].mxu0
      %v6615 = vpop.f32.mrb[0].mxu0
      %v6616 = vadd.f32 0.0, %v6615
      %v6617 = vpop.f32.mrb[0].mxu0
      %6618 = vmatprep.mubr.bf16.mxu0 0
      %6619 = vmatmul.mubr.bf16.gmra.mrb[0].mxu0 %v4959
      %v6620 = vpop.f32.mrb[0].mxu0
      %v6621 = vadd.f32 0.0, %v6620
      %v6622 = vpop.f32.mrb[0].mxu0
      %v6623 = vpop.f32.mrb[0].mxu0
      %v6624 = vadd.f32 0.0, %v6623
      %v6625 = vpop.f32.mrb[0].mxu0
      %6626 = vmatprep.mubr.bf16.mxu0 0
      %6627 = vmatmul.mubr.bf16.gmra.mrb[0].mxu0 %v4962
      %v6628 = vpop.f32.mrb[0].mxu0
      %v6629 = vadd.f32 0.0, %v6628
      %v6630 = vpop.f32.mrb[0].mxu0
      %v6631 = vpop.f32.mrb[0].mxu0
      %v6632 = vadd.f32 0.0, %v6631
      %v6633 = vpop.f32.mrb[0].mxu0
      %6634 = vmatprep.mubr.bf16.mxu0 0
      %6635 = vmatmul.mubr.bf16.gmra.mrb[0].mxu0 %v4965
      %v6636 = vpop.f32.mrb[0].mxu0
      %v6637 = vadd.f32 0.0, %v6636
      %v6638 = vpop.f32.mrb[0].mxu0
      %v6639 = vpop.f32.mrb[0].mxu0
      %v6640 = vadd.f32 0.0, %v6639
      %v6641 = vpop.f32.mrb[0].mxu0
      %6642 = vmatprep.mubr.bf16.mxu0 0
      %6643 = vmatmul.mubr.bf16.gmra.mrb[0].mxu0 %v4968
      %v6644 = vpop.f32.mrb[0].mxu0
      %v6645 = vadd.f32 0.0, %v6644
      %v6646 = vpop.f32.mrb[0].mxu0
      %v6647 = vpop.f32.mrb[0].mxu0
      %v6648 = vadd.f32 0.0, %v6647
      %v6649 = vpop.f32.mrb[0].mxu0
      %6650 = vmatprep.mubr.bf16.mxu0 0
      %6651 = vmatmul.mubr.bf16.gmra.mrb[0].mxu0 %v4971
      %v6652 = vpop.f32.mrb[0].mxu0
      %v6653 = vadd.f32 0.0, %v6652
      %v6654 = vpop.f32.mrb[0].mxu0
      %v6655 = vpop.f32.mrb[0].mxu0
      %v6656 = vadd.f32 0.0, %v6655
      %v6657 = vpop.f32.mrb[0].mxu0
      %6658 = vmatprep.mubr.bf16.mxu0 0
      %6659 = vmatmul.mubr.bf16.gmra.mrb[0].mxu0 %v4974
      %v6660 = vpop.f32.mrb[0].mxu0
      %v6661 = vadd.f32 0.0, %v6660
      %v6662 = vpop.f32.mrb[0].mxu0
      %v6663 = vpop.f32.mrb[0].mxu0
      %v6664 = vadd.f32 0.0, %v6663
      %v6665 = vpop.f32.mrb[0].mxu0
      %6666 = vmatprep.mubr.bf16.mxu0 0
      %6667 = vmatmul.mubr.bf16.gmra.mrb[0].mxu0 %v4977
      %v6668 = vpop.f32.mrb[0].mxu0
      %v6669 = vadd.f32 0.0, %v6668
      %v6670 = vpop.f32.mrb[0].mxu0
      %v6671 = vpop.f32.mrb[0].mxu0
      %v6672 = vadd.f32 0.0, %v6671
      %v6673 = vpop.f32.mrb[0].mxu0
      %6674 = vmatprep.mubr.bf16.mxu0 0
      %6675 = vmatmul.mubr.bf16.gmra.mrb[0].mxu0 %v4980
      %v6676 = vpop.f32.mrb[0].mxu0
      %v6677 = vadd.f32 0.0, %v6676
      %v6678 = vpop.f32.mrb[0].mxu0
      %v6679 = vpop.f32.mrb[0].mxu0
      %v6680 = vadd.f32 0.0, %v6679
      %v6681 = vpop.f32.mrb[0].mxu0
      %6682 = vmatprep.mubr.bf16.mxu0 0
      %6683 = vmatmul.mubr.bf16.gmra.mrb[0].mxu0 %v4983
      %v6684 = vpop.f32.mrb[0].mxu0
      %v6685 = vadd.f32 0.0, %v6684
      %v6686 = vpop.f32.mrb[0].mxu0
      %v6687 = vpop.f32.mrb[0].mxu0
      %v6688 = vadd.f32 0.0, %v6687
      %v6689 = vpop.f32.mrb[0].mxu0
      %6690 = vmatprep.mubr.bf16.mxu0 0
      %6691 = vmatmul.mubr.bf16.gmra.mrb[0].mxu0 %v4986
      %v6692 = vpop.f32.mrb[0].mxu0
      %v6693 = vadd.f32 0.0, %v6692
      %v6694 = vpop.f32.mrb[0].mxu0
      %v6695 = vpop.f32.mrb[0].mxu0
      %v6696 = vadd.f32 0.0, %v6695
      %v6697 = vpop.f32.mrb[0].mxu0
      %6698 = vmatprep.mubr.bf16.mxu0 0
      %6699 = vmatmul.mubr.bf16.gmra.mrb[0].mxu0 %v4989
      %v6700 = vpop.f32.mrb[0].mxu0
      %v6701 = vadd.f32 0.0, %v6700
      %v6702 = vpop.f32.mrb[0].mxu0
      %v6703 = vpop.f32.mrb[0].mxu0
      %v6704 = vadd.f32 0.0, %v6703
      %v6705 = vpop.f32.mrb[0].mxu0
      %6706 = vmatprep.mubr.bf16.mxu0 0
      %6707 = vmatmul.mubr.bf16.gmra.mrb[0].mxu0 %v4992
      %v6708 = vpop.f32.mrb[0].mxu0
      %v6709 = vadd.f32 0.0, %v6708
      %v6710 = vpop.f32.mrb[0].mxu0
      %v6711 = vpop.f32.mrb[0].mxu0
      %v6712 = vadd.f32 0.0, %v6711
      %v6713 = vpop.f32.mrb[0].mxu0
      %6714 = vmatprep.mubr.bf16.mxu0 0
      %6715 = vmatmul.mubr.bf16.gmra.mrb[0].mxu0 %v4995
      %v6716 = vpop.f32.mrb[0].mxu0
      %v6717 = vadd.f32 0.0, %v6716
      %v6718 = vpop.f32.mrb[0].mxu0
      %v6719 = vpop.f32.mrb[0].mxu0
      %v6720 = vadd.f32 0.0, %v6719
      %v6721 = vpop.f32.mrb[0].mxu0
      %6722 = vmatprep.mubr.bf16.mxu0 0
      %6723 = vmatmul.mubr.bf16.gmra.mrb[0].mxu0 %v4998
      %v6724 = vpop.f32.mrb[0].mxu0
      %v6725 = vadd.f32 0.0, %v6724
      %v6726 = vpop.f32.mrb[0].mxu0
      %v6727 = vpop.f32.mrb[0].mxu0
      %v6728 = vadd.f32 0.0, %v6727
      %v6729 = vpop.f32.mrb[0].mxu0
      %6730 = vmatprep.mubr.bf16.mxu0 0
      %6731 = vmatmul.mubr.bf16.gmra.mrb[0].mxu0 %v5001
      %v6732 = vpop.f32.mrb[0].mxu0
      %v6733 = vadd.f32 0.0, %v6732
      %v6734 = vpop.f32.mrb[0].mxu0
      %v6735 = vpop.f32.mrb[0].mxu0
      %v6736 = vadd.f32 0.0, %v6735
      %v6737 = vpop.f32.mrb[0].mxu0
      %6738 = vmatprep.mubr.bf16.mxu0 0
      %6739 = vmatmul.mubr.bf16.gmra.mrb[0].mxu0 %v5004
      %v6740 = vpop.f32.mrb[0].mxu0
      %v6741 = vadd.f32 0.0, %v6740
      %v6742 = vpop.f32.mrb[0].mxu0
      %v6743 = vpop.f32.mrb[0].mxu0
      %v6744 = vadd.f32 0.0, %v6743
      %v6745 = vpop.f32.mrb[0].mxu0
      %6746 = vmatprep.mubr.bf16.mxu0 0
      %6747 = vmatmul.mubr.bf16.gmra.mrb[0].mxu0 %v5007
      %v6748 = vpop.f32.mrb[0].mxu0
      %v6749 = vadd.f32 0.0, %v6748
      %v6750 = vpop.f32.mrb[0].mxu0
      %v6751 = vpop.f32.mrb[0].mxu0
      %v6752 = vadd.f32 0.0, %v6751
      %v6753 = vpop.f32.mrb[0].mxu0
      %6754 = vmatprep.mubr.bf16.mxu0 0
      %6755 = vmatmul.mubr.bf16.gmra.mrb[0].mxu0 %v5010
      %v6756 = vpop.f32.mrb[0].mxu0
      %v6757 = vadd.f32 0.0, %v6756
      %v6758 = vpop.f32.mrb[0].mxu0
      %v6759 = vpop.f32.mrb[0].mxu0
      %v6760 = vadd.f32 0.0, %v6759
      %v6761 = vpop.f32.mrb[0].mxu0
      %6762 = vmatprep.mubr.bf16.mxu0 0
      %6763 = vmatmul.mubr.bf16.gmra.mrb[0].mxu0 %v5013
      %v6764 = vpop.f32.mrb[0].mxu0
      %v6765 = vadd.f32 0.0, %v6764
      %v6766 = vpop.f32.mrb[0].mxu0
      %v6767 = vpop.f32.mrb[0].mxu0
      %v6768 = vadd.f32 0.0, %v6767
      %v6769 = vpop.f32.mrb[0].mxu0
      %6770 = vmatprep.mubr.bf16.mxu0 0
      %6771 = vmatmul.mubr.bf16.gmra.mrb[0].mxu0 %v5016
      %v6772 = vpop.f32.mrb[0].mxu0
      %v6773 = vadd.f32 0.0, %v6772
      %v6774 = vpop.f32.mrb[0].mxu0
      %v6775 = vpop.f32.mrb[0].mxu0
      %v6776 = vadd.f32 0.0, %v6775
      %v6777 = vpop.f32.mrb[0].mxu0
      %6778 = vmatprep.mubr.bf16.mxu0 0
      %6779 = vmatmul.mubr.bf16.gmra.mrb[0].mxu0 %v5019
      %v6780 = vpop.f32.mrb[0].mxu0
      %v6781 = vadd.f32 0.0, %v6780
      %v6782 = vpop.f32.mrb[0].mxu0
      %v6783 = vpop.f32.mrb[0].mxu0
      %v6784 = vadd.f32 0.0, %v6783
      %v6785 = vpop.f32.mrb[0].mxu0
      %6786 = vmatprep.mubr.bf16.mxu0 0
      %6787 = vmatmul.mubr.bf16.gmra.mrb[0].mxu0 %v5022
      %v6788 = vpop.f32.mrb[0].mxu0
      %v6789 = vadd.f32 0.0, %v6788
      %v6790 = vpop.f32.mrb[0].mxu0
      %v6791 = vpop.f32.mrb[0].mxu0
      %v6792 = vadd.f32 0.0, %v6791
      %v6793 = vpop.f32.mrb[0].mxu0
      %6794 = vmatprep.mubr.bf16.mxu0 0
      %6795 = vmatmul.mubr.bf16.gmra.mrb[0].mxu0 %v5025
      %v6796 = vpop.f32.mrb[0].mxu0
      %v6797 = vadd.f32 0.0, %v6796
      %v6798 = vpop.f32.mrb[0].mxu0
      %v6799 = vpop.f32.mrb[0].mxu0
      %v6800 = vadd.f32 0.0, %v6799
      %v6801 = vpop.f32.mrb[0].mxu0
      %6802 = vmatprep.mubr.bf16.mxu0 0
      %6803 = vmatmul.mubr.bf16.gmra.mrb[0].mxu0 %v5028
      %v6804 = vpop.f32.mrb[0].mxu0
      %v6805 = vadd.f32 0.0, %v6804
      %v6806 = vpop.f32.mrb[0].mxu0
      %v6807 = vpop.f32.mrb[0].mxu0
      %v6808 = vadd.f32 0.0, %v6807
      %v6809 = vpop.f32.mrb[0].mxu0
      %6810 = vmatprep.mubr.bf16.mxu0 0
      %6811 = vmatmul.mubr.bf16.gmra.mrb[0].mxu0 %v5031
      %v6812 = vpop.f32.mrb[0].mxu0
      %v6813 = vadd.f32 0.0, %v6812
      %v6814 = vpop.f32.mrb[0].mxu0
      %v6815 = vpop.f32.mrb[0].mxu0
      %v6816 = vadd.f32 0.0, %v6815
      %v6817 = vpop.f32.mrb[0].mxu0
      %6818 = vmatprep.mubr.bf16.mxu0 0
      %6819 = vmatmul.mubr.bf16.gmra.mrb[0].mxu0 %v5034
      %v6820 = vpop.f32.mrb[0].mxu0
      %v6821 = vadd.f32 0.0, %v6820
      %v6822 = vpop.f32.mrb[0].mxu0
      %v6823 = vpop.f32.mrb[0].mxu0
      %v6824 = vadd.f32 0.0, %v6823
      %v6825 = vpop.f32.mrb[0].mxu0
      %6826 = vmatprep.mubr.bf16.mxu0 0
      %6827 = vmatmul.mubr.bf16.gmra.mrb[0].mxu0 %v5037
      %v6828 = vpop.f32.mrb[0].mxu0
      %v6829 = vadd.f32 0.0, %v6828
      %v6830 = vpop.f32.mrb[0].mxu0
      %v6831 = vpop.f32.mrb[0].mxu0
      %v6832 = vadd.f32 0.0, %v6831
      %v6833 = vpop.f32.mrb[0].mxu0
      %6834 = vmatprep.mubr.bf16.mxu0 0
      %6835 = vmatmul.mubr.bf16.gmra.mrb[0].mxu0 %v5040
      %v6836 = vpop.f32.mrb[0].mxu0
      %v6837 = vadd.f32 0.0, %v6836
      %v6838 = vpop.f32.mrb[0].mxu0
      %v6839 = vpop.f32.mrb[0].mxu0
      %v6840 = vadd.f32 0.0, %v6839
      %v6841 = vpop.f32.mrb[0].mxu0
      %6842 = vmatprep.mubr.bf16.mxu0 0
      %6843 = vmatmul.mubr.bf16.gmra.mrb[0].mxu0 %v5043
      %v6844 = vpop.f32.mrb[0].mxu0
      %v6845 = vadd.f32 0.0, %v6844
      %v6846 = vpop.f32.mrb[0].mxu0
      %v6847 = vpop.f32.mrb[0].mxu0
      %v6848 = vadd.f32 0.0, %v6847
      %v6849 = vpop.f32.mrb[0].mxu0
      %6850 = vmatprep.mubr.bf16.mxu0 0
      %6851 = vmatmul.mubr.bf16.gmra.mrb[0].mxu0 %v5046
      %v6852 = vpop.f32.mrb[0].mxu0
      %v6853 = vadd.f32 0.0, %v6852
      %v6854 = vpop.f32.mrb[0].mxu0
      %v6855 = vpop.f32.mrb[0].mxu0
      %v6856 = vadd.f32 0.0, %v6855
      %v6857 = vpop.f32.mrb[0].mxu0
      %6858 = vmatprep.mubr.bf16.mxu0 0
      %6859 = vmatmul.mubr.bf16.gmra.mrb[0].mxu0 %v5049
      %v6860 = vpop.f32.mrb[0].mxu0
      %v6861 = vadd.f32 0.0, %v6860
      %v6862 = vpop.f32.mrb[0].mxu0
      %v6863 = vpop.f32.mrb[0].mxu0
      %v6864 = vadd.f32 0.0, %v6863
      %v6865 = vpop.f32.mrb[0].mxu0
      %6866 = vmatprep.mubr.bf16.mxu0 0
      %6867 = vmatmul.mubr.bf16.gmra.mrb[0].mxu0 %v5052
      %v6868 = vpop.f32.mrb[0].mxu0
      %v6869 = vadd.f32 0.0, %v6868
      %v6870 = vpop.f32.mrb[0].mxu0
      %v6871 = vpop.f32.mrb[0].mxu0
      %v6872 = vadd.f32 0.0, %v6871
      %v6873 = vpop.f32.mrb[0].mxu0
      %6874 = vmatprep.mubr.bf16.mxu0 0
      %6875 = vmatmul.mubr.bf16.gmra.mrb[0].mxu0 %v5055
      %v6876 = vpop.f32.mrb[0].mxu0
      %v6877 = vadd.f32 0.0, %v6876
      %v6878 = vpop.f32.mrb[0].mxu0
      %v6879 = vpop.f32.mrb[0].mxu0
      %v6880 = vadd.f32 0.0, %v6879
      %v6881 = vpop.f32.mrb[0].mxu0
      %6882 = vmatprep.mubr.bf16.mxu0 0
      %6883 = vmatmul.mubr.bf16.gmra.mrb[0].mxu0 %v5058
      %v6884 = vpop.f32.mrb[0].mxu0
      %v6885 = vadd.f32 0.0, %v6884
      %v6886 = vpop.f32.mrb[0].mxu0
      %v6887 = vpop.f32.mrb[0].mxu0
      %v6888 = vadd.f32 0.0, %v6887
      %v6889 = vpop.f32.mrb[0].mxu0
      %6890 = vmatprep.mubr.bf16.mxu0 0
      %6891 = vmatmul.mubr.bf16.gmra.mrb[0].mxu0 %v5061
      %v6892 = vpop.f32.mrb[0].mxu0
      %v6893 = vadd.f32 0.0, %v6892
      %v6894 = vpop.f32.mrb[0].mxu0
      %v6895 = vpop.f32.mrb[0].mxu0
      %v6896 = vadd.f32 0.0, %v6895
      %v6897 = vpop.f32.mrb[0].mxu0
      %6898 = vmatprep.mubr.bf16.mxu0 0
      %6899 = vmatmul.mubr.bf16.gmra.mrb[0].mxu0 %v5064
      %v6900 = vpop.f32.mrb[0].mxu0
      %v6901 = vadd.f32 0.0, %v6900
      %v6902 = vpop.f32.mrb[0].mxu0
      %v6903 = vpop.f32.mrb[0].mxu0
      %v6904 = vpop.f32.mrb[0].mxu0
      %6905 = vdwg.mxu0
      %v6906 = vpack.c.bf16 %v5104, %v5101
      %v6907 = vpack.c.bf16 %v5112, %v5109
      %v6908 = vpack.c.bf16 %v5120, %v5117
      %v6909 = vpack.c.bf16 %v5128, %v5125
      %v6910 = vpack.c.bf16 %v5136, %v5133
      %v6911 = vpack.c.bf16 %v5144, %v5141
      %v6912 = vpack.c.bf16 %v5152, %v5149
      %v6913 = vpack.c.bf16 %v5160, %v5157
      %v6914 = vpack.c.bf16 %v5168, %v5165
      %v6915 = vpack.c.bf16 %v5176, %v5173
      %v6916 = vpack.c.bf16 %v5184, %v5181
      %v6917 = vpack.c.bf16 %v5192, %v5189
      %v6918 = vpack.c.bf16 %v5200, %v5197
      %v6919 = vpack.c.bf16 %v5208, %v5205
      %v6920 = vpack.c.bf16 %v5216, %v5213
      %v6921 = vpack.c.bf16 %v5224, %v5221
      %v6922 = vpack.c.bf16 %v5232, %v5229
      %v6923 = vpack.c.bf16 %v5240, %v5237
      %v6924 = vpack.c.bf16 %v5248, %v5245
      %v6925 = vpack.c.bf16 %v5256, %v5253
      %v6926 = vpack.c.bf16 %v5264, %v5261
      %v6927 = vpack.c.bf16 %v5272, %v5269
      %v6928 = vpack.c.bf16 %v5280, %v5277
      %v6929 = vpack.c.bf16 %v5288, %v5285
      %v6930 = vpack.c.bf16 %v5296, %v5293
      %v6931 = vpack.c.bf16 %v5304, %v5301
      %v6932 = vpack.c.bf16 %v5312, %v5309
      %v6933 = vpack.c.bf16 %v5320, %v5317
      %v6934 = vpack.c.bf16 %v5328, %v5325
      %v6935 = vpack.c.bf16 %v5336, %v5333
      %v6936 = vpack.c.bf16 %v5344, %v5341
      %v6937 = vpack.c.bf16 %v5352, %v5349
      %v6938 = vpack.c.bf16 %v5360, %v5357
      %v6939 = vpack.c.bf16 %v5368, %v5365
      %v6940 = vpack.c.bf16 %v5376, %v5373
      %v6941 = vpack.c.bf16 %v5384, %v5381
      %v6942 = vpack.c.bf16 %v5392, %v5389
      %v6943 = vpack.c.bf16 %v5400, %v5397
      %v6944 = vpack.c.bf16 %v5408, %v5405
      %v6945 = vpack.c.bf16 %v5416, %v5413
      %v6946 = vpack.c.bf16 %v5424, %v5421
      %v6947 = vpack.c.bf16 %v5432, %v5429
      %v6948 = vpack.c.bf16 %v5440, %v5437
      %v6949 = vpack.c.bf16 %v5448, %v5445
      %v6950 = vpack.c.bf16 %v5456, %v5453
      %v6951 = vpack.c.bf16 %v5464, %v5461
      %v6952 = vpack.c.bf16 %v5472, %v5469
      %v6953 = vpack.c.bf16 %v5480, %v5477
      %v6954 = vpack.c.bf16 %v5488, %v5485
      %v6955 = vpack.c.bf16 %v5496, %v5493
      %v6956 = vpack.c.bf16 %v5504, %v5501
      %v6957 = vpack.c.bf16 %v5512, %v5509
      %v6958 = vpack.c.bf16 %v5520, %v5517
      %v6959 = vpack.c.bf16 %v5528, %v5525
      %v6960 = vpack.c.bf16 %v5536, %v5533
      %v6961 = vpack.c.bf16 %v5544, %v5541
      %v6962 = vpack.c.bf16 %v5552, %v5549
      %v6963 = vpack.c.bf16 %v5560, %v5557
      %v6964 = vpack.c.bf16 %v5568, %v5565
      %v6965 = vpack.c.bf16 %v5576, %v5573
      %v6966 = vpack.c.bf16 %v5584, %v5581
      %v6967 = vpack.c.bf16 %v5592, %v5589
      %v6968 = vpack.c.bf16 %v5600, %v5597
      %v6969 = vpack.c.bf16 %v5608, %v5605
      %v6970 = vpack.c.bf16 %v5616, %v5613
      %v6971 = vpack.c.bf16 %v5624, %v5621
      %v6972 = vpack.c.bf16 %v5632, %v5629
      %v6973 = vpack.c.bf16 %v5640, %v5637
      %v6974 = vpack.c.bf16 %v5648, %v5645
      %v6975 = vpack.c.bf16 %v5656, %v5653
      %v6976 = vpack.c.bf16 %v5664, %v5661
      %v6977 = vpack.c.bf16 %v5672, %v5669
      %v6978 = vpack.c.bf16 %v5680, %v5677
      %v6979 = vpack.c.bf16 %v5688, %v5685
      %v6980 = vpack.c.bf16 %v5696, %v5693
      %v6981 = vpack.c.bf16 %v5704, %v5701
      %v6982 = vpack.c.bf16 %v5712, %v5709
      %v6983 = vpack.c.bf16 %v5720, %v5717
      %v6984 = vpack.c.bf16 %v5728, %v5725
      %v6985 = vpack.c.bf16 %v5736, %v5733
      %v6986 = vpack.c.bf16 %v5744, %v5741
      %v6987 = vpack.c.bf16 %v5752, %v5749
      %v6988 = vpack.c.bf16 %v5760, %v5757
      %v6989 = vpack.c.bf16 %v5768, %v5765
      %v6990 = vpack.c.bf16 %v5776, %v5773
      %v6991 = vpack.c.bf16 %v5784, %v5781
      %v6992 = vpack.c.bf16 %v5792, %v5789
      %v6993 = vpack.c.bf16 %v5800, %v5797
      %v6994 = vpack.c.bf16 %v5808, %v5805
      %v6995 = vpack.c.bf16 %v5816, %v5813
      %v6996 = vpack.c.bf16 %v5824, %v5821
      %v6997 = vpack.c.bf16 %v5832, %v5829
      %v6998 = vpack.c.bf16 %v5840, %v5837
      %v6999 = vpack.c.bf16 %v5848, %v5845
      %v7000 = vpack.c.bf16 %v5856, %v5853
      %v7001 = vpack.c.bf16 %v5864, %v5861
      %v7002 = vpack.c.bf16 %v5872, %v5869
      %v7003 = vpack.c.bf16 %v5880, %v5877
      %v7004 = vpack.c.bf16 %v5888, %v5885
      %v7005 = vpack.c.bf16 %v5896, %v5893
      %v7006 = vpack.c.bf16 %v5904, %v5901
      %v7007 = vpack.c.bf16 %v5912, %v5909
      %v7008 = vpack.c.bf16 %v5920, %v5917
      %v7009 = vpack.c.bf16 %v5928, %v5925
      %v7010 = vpack.c.bf16 %v5936, %v5933
      %v7011 = vpack.c.bf16 %v5944, %v5941
      %v7012 = vpack.c.bf16 %v5952, %v5949
      %v7013 = vpack.c.bf16 %v5960, %v5957
      %v7014 = vpack.c.bf16 %v5968, %v5965
      %v7015 = vpack.c.bf16 %v5976, %v5973
      %v7016 = vpack.c.bf16 %v5984, %v5981
      %v7017 = vpack.c.bf16 %v5992, %v5989
      %v7018 = vpack.c.bf16 %v6000, %v5997
      %v7019 = vpack.c.bf16 %v6008, %v6005
      %v7020 = vpack.c.bf16 %v6016, %v6013
      %v7021 = vpack.c.bf16 %v6024, %v6021
      %v7022 = vpack.c.bf16 %v6032, %v6029
      %v7023 = vpack.c.bf16 %v6040, %v6037
      %v7024 = vpack.c.bf16 %v6048, %v6045
      %v7025 = vpack.c.bf16 %v6056, %v6053
      %v7026 = vpack.c.bf16 %v6064, %v6061
      %v7027 = vpack.c.bf16 %v6072, %v6069
      %v7028 = vpack.c.bf16 %v6080, %v6077
      %v7029 = vpack.c.bf16 %v6088, %v6085
      %v7030 = vpack.c.bf16 %v6096, %v6093
      %v7031 = vpack.c.bf16 %v6104, %v6101
      %v7032 = vpack.c.bf16 %v6112, %v6109
      %v7033 = vpack.c.bf16 %v6120, %v6117
      %v7034 = vpack.c.bf16 %v6128, %v6125
      %v7035 = vpack.c.bf16 %v6136, %v6133
      %v7036 = vpack.c.bf16 %v6144, %v6141
      %v7037 = vpack.c.bf16 %v6152, %v6149
      %v7038 = vpack.c.bf16 %v6160, %v6157
      %v7039 = vpack.c.bf16 %v6168, %v6165
      %v7040 = vpack.c.bf16 %v6176, %v6173
      %v7041 = vpack.c.bf16 %v6184, %v6181
      %v7042 = vpack.c.bf16 %v6192, %v6189
      %v7043 = vpack.c.bf16 %v6200, %v6197
      %v7044 = vpack.c.bf16 %v6208, %v6205
      %v7045 = vpack.c.bf16 %v6216, %v6213
      %v7046 = vpack.c.bf16 %v6224, %v6221
      %v7047 = vpack.c.bf16 %v6232, %v6229
      %v7048 = vpack.c.bf16 %v6240, %v6237
      %v7049 = vpack.c.bf16 %v6248, %v6245
      %v7050 = vpack.c.bf16 %v6256, %v6253
      %v7051 = vpack.c.bf16 %v6264, %v6261
      %v7052 = vpack.c.bf16 %v6272, %v6269
      %v7053 = vpack.c.bf16 %v6280, %v6277
      %v7054 = vpack.c.bf16 %v6288, %v6285
      %v7055 = vpack.c.bf16 %v6296, %v6293
      %v7056 = vpack.c.bf16 %v6304, %v6301
      %v7057 = vpack.c.bf16 %v6312, %v6309
      %v7058 = vpack.c.bf16 %v6320, %v6317
      %v7059 = vpack.c.bf16 %v6328, %v6325
      %v7060 = vpack.c.bf16 %v6336, %v6333
      %v7061 = vpack.c.bf16 %v6344, %v6341
      %v7062 = vpack.c.bf16 %v6352, %v6349
      %v7063 = vpack.c.bf16 %v6360, %v6357
      %v7064 = vpack.c.bf16 %v6368, %v6365
      %v7065 = vpack.c.bf16 %v6376, %v6373
      %v7066 = vpack.c.bf16 %v6384, %v6381
      %v7067 = vpack.c.bf16 %v6392, %v6389
      %v7068 = vpack.c.bf16 %v6400, %v6397
      %v7069 = vpack.c.bf16 %v6408, %v6405
      %v7070 = vpack.c.bf16 %v6416, %v6413
      %v7071 = vpack.c.bf16 %v6424, %v6421
      %v7072 = vpack.c.bf16 %v6432, %v6429
      %v7073 = vpack.c.bf16 %v6440, %v6437
      %v7074 = vpack.c.bf16 %v6448, %v6445
      %v7075 = vpack.c.bf16 %v6456, %v6453
      %v7076 = vpack.c.bf16 %v6464, %v6461
      %v7077 = vpack.c.bf16 %v6472, %v6469
      %v7078 = vpack.c.bf16 %v6480, %v6477
      %v7079 = vpack.c.bf16 %v6488, %v6485
      %v7080 = vpack.c.bf16 %v6496, %v6493
      %v7081 = vpack.c.bf16 %v6504, %v6501
      %v7082 = vpack.c.bf16 %v6512, %v6509
      %v7083 = vpack.c.bf16 %v6520, %v6517
      %v7084 = vpack.c.bf16 %v6528, %v6525
      %v7085 = vpack.c.bf16 %v6536, %v6533
      %v7086 = vpack.c.bf16 %v6544, %v6541
      %v7087 = vpack.c.bf16 %v6552, %v6549
      %v7088 = vpack.c.bf16 %v6560, %v6557
      %v7089 = vpack.c.bf16 %v6568, %v6565
      %v7090 = vpack.c.bf16 %v6576, %v6573
      %v7091 = vpack.c.bf16 %v6584, %v6581
      %v7092 = vpack.c.bf16 %v6592, %v6589
      %v7093 = vpack.c.bf16 %v6600, %v6597
      %v7094 = vpack.c.bf16 %v6608, %v6605
      %v7095 = vpack.c.bf16 %v6616, %v6613
      %v7096 = vpack.c.bf16 %v6624, %v6621
      %v7097 = vpack.c.bf16 %v6632, %v6629
      %v7098 = vpack.c.bf16 %v6640, %v6637
      %v7099 = vpack.c.bf16 %v6648, %v6645
      %v7100 = vpack.c.bf16 %v6656, %v6653
      %v7101 = vpack.c.bf16 %v6664, %v6661
      %v7102 = vpack.c.bf16 %v6672, %v6669
      %v7103 = vpack.c.bf16 %v6680, %v6677
      %v7104 = vpack.c.bf16 %v6688, %v6685
      %v7105 = vpack.c.bf16 %v6696, %v6693
      %v7106 = vpack.c.bf16 %v6704, %v6701
      %v7107 = vpack.c.bf16 %v6712, %v6709
      %v7108 = vpack.c.bf16 %v6720, %v6717
      %v7109 = vpack.c.bf16 %v6728, %v6725
      %v7110 = vpack.c.bf16 %v6736, %v6733
      %v7111 = vpack.c.bf16 %v6744, %v6741
      %v7112 = vpack.c.bf16 %v6752, %v6749
      %v7113 = vpack.c.bf16 %v6760, %v6757
      %v7114 = vpack.c.bf16 %v6768, %v6765
      %v7115 = vpack.c.bf16 %v6776, %v6773
      %v7116 = vpack.c.bf16 %v6784, %v6781
      %v7117 = vpack.c.bf16 %v6792, %v6789
      %v7118 = vpack.c.bf16 %v6800, %v6797
      %v7119 = vpack.c.bf16 %v6808, %v6805
      %v7120 = vpack.c.bf16 %v6816, %v6813
      %v7121 = vpack.c.bf16 %v6824, %v6821
      %v7122 = vpack.c.bf16 %v6832, %v6829
      %v7123 = vpack.c.bf16 %v6840, %v6837
      %v7124 = vpack.c.bf16 %v6848, %v6845
      %v7125 = vpack.c.bf16 %v6856, %v6853
      %v7126 = vpack.c.bf16 %v6864, %v6861
      %v7127 = vpack.c.bf16 %v6872, %v6869
      %v7128 = vpack.c.bf16 %v6880, %v6877
      %v7129 = vpack.c.bf16 %v6888, %v6885
      %v7130 = vpack.c.bf16 %v6896, %v6893
      %v7131 = vpack.c.bf16 %v6901, %v6901
      %v7358 = vunpack.c.l.b16 %v6906
      %v7359 = vunpack.c.h.b16 %v6906
      %v7360 = vunpack.c.l.b16 %v6907
      %v7361 = vunpack.c.h.b16 %v6907
      %v7362 = vunpack.c.l.b16 %v6908
      %v7363 = vunpack.c.h.b16 %v6908
      %v7364 = vunpack.c.l.b16 %v6909
      %v7365 = vunpack.c.h.b16 %v6909
      %v7366 = vunpack.c.l.b16 %v6910
      %v7367 = vunpack.c.h.b16 %v6910
      %v7368 = vunpack.c.l.b16 %v6911
      %v7369 = vunpack.c.h.b16 %v6911
      %v7370 = vunpack.c.l.b16 %v6912
      %v7371 = vunpack.c.h.b16 %v6912
      %v7372 = vunpack.c.l.b16 %v6913
      %v7373 = vunpack.c.h.b16 %v6913
      %v7374 = vunpack.c.l.b16 %v6914
      %v7375 = vunpack.c.h.b16 %v6914
      %v7376 = vunpack.c.l.b16 %v6915
      %v7377 = vunpack.c.h.b16 %v6915
      %v7378 = vunpack.c.l.b16 %v6916
      %v7379 = vunpack.c.h.b16 %v6916
      %v7380 = vunpack.c.l.b16 %v6917
      %v7381 = vunpack.c.h.b16 %v6917
      %v7382 = vunpack.c.l.b16 %v6918
      %v7383 = vunpack.c.h.b16 %v6918
      %v7384 = vunpack.c.l.b16 %v6919
      %v7385 = vunpack.c.h.b16 %v6919
      %v7386 = vunpack.c.l.b16 %v6920
      %v7387 = vunpack.c.h.b16 %v6920
      %v7388 = vunpack.c.l.b16 %v6921
      %v7389 = vunpack.c.h.b16 %v6921
      %v7390 = vunpack.c.l.b16 %v6922
      %v7391 = vunpack.c.h.b16 %v6922
      %v7392 = vunpack.c.l.b16 %v6923
      %v7393 = vunpack.c.h.b16 %v6923
      %v7394 = vunpack.c.l.b16 %v6924
      %v7395 = vunpack.c.h.b16 %v6924
      %v7396 = vunpack.c.l.b16 %v6925
      %v7397 = vunpack.c.h.b16 %v6925
      %v7398 = vunpack.c.l.b16 %v6926
      %v7399 = vunpack.c.h.b16 %v6926
      %v7400 = vunpack.c.l.b16 %v6927
      %v7401 = vunpack.c.h.b16 %v6927
      %v7402 = vunpack.c.l.b16 %v6928
      %v7403 = vunpack.c.h.b16 %v6928
      %v7404 = vunpack.c.l.b16 %v6929
      %v7405 = vunpack.c.h.b16 %v6929
      %v7406 = vunpack.c.l.b16 %v6930
      %v7407 = vunpack.c.h.b16 %v6930
      %v7408 = vunpack.c.l.b16 %v6931
      %v7409 = vunpack.c.h.b16 %v6931
      %v7410 = vunpack.c.l.b16 %v6932
      %v7411 = vunpack.c.h.b16 %v6932
      %v7412 = vunpack.c.l.b16 %v6933
      %v7413 = vunpack.c.h.b16 %v6933
      %v7414 = vunpack.c.l.b16 %v6934
      %v7415 = vunpack.c.h.b16 %v6934
      %v7416 = vunpack.c.l.b16 %v6935
      %v7417 = vunpack.c.h.b16 %v6935
      %v7418 = vunpack.c.l.b16 %v6936
      %v7419 = vunpack.c.h.b16 %v6936
      %v7420 = vunpack.c.l.b16 %v6937
      %v7421 = vunpack.c.h.b16 %v6937
      %v7422 = vunpack.c.l.b16 %v6938
      %v7423 = vunpack.c.h.b16 %v6938
      %v7424 = vunpack.c.l.b16 %v6939
      %v7425 = vunpack.c.h.b16 %v6939
      %v7426 = vunpack.c.l.b16 %v6940
      %v7427 = vunpack.c.h.b16 %v6940
      %v7428 = vunpack.c.l.b16 %v6941
      %v7429 = vunpack.c.h.b16 %v6941
      %v7430 = vunpack.c.l.b16 %v6942
      %v7431 = vunpack.c.h.b16 %v6942
      %v7432 = vunpack.c.l.b16 %v6943
      %v7433 = vunpack.c.h.b16 %v6943
      %v7434 = vunpack.c.l.b16 %v6944
      %v7435 = vunpack.c.h.b16 %v6944
      %v7436 = vunpack.c.l.b16 %v6945
      %v7437 = vunpack.c.h.b16 %v6945
      %v7438 = vunpack.c.l.b16 %v6946
      %v7439 = vunpack.c.h.b16 %v6946
      %v7440 = vunpack.c.l.b16 %v6947
      %v7441 = vunpack.c.h.b16 %v6947
      %v7442 = vunpack.c.l.b16 %v6948
      %v7443 = vunpack.c.h.b16 %v6948
      %v7444 = vunpack.c.l.b16 %v6949
      %v7445 = vunpack.c.h.b16 %v6949
      %v7446 = vunpack.c.l.b16 %v6950
      %v7447 = vunpack.c.h.b16 %v6950
      %v7448 = vunpack.c.l.b16 %v6951
      %v7449 = vunpack.c.h.b16 %v6951
      %v7450 = vunpack.c.l.b16 %v6952
      %v7451 = vunpack.c.h.b16 %v6952
      %v7452 = vunpack.c.l.b16 %v6953
      %v7453 = vunpack.c.h.b16 %v6953
      %v7454 = vunpack.c.l.b16 %v6954
      %v7455 = vunpack.c.h.b16 %v6954
      %v7456 = vunpack.c.l.b16 %v6955
      %v7457 = vunpack.c.h.b16 %v6955
      %v7458 = vunpack.c.l.b16 %v6956
      %v7459 = vunpack.c.h.b16 %v6956
      %v7460 = vunpack.c.l.b16 %v6957
      %v7461 = vunpack.c.h.b16 %v6957
      %v7462 = vunpack.c.l.b16 %v6958
      %v7463 = vunpack.c.h.b16 %v6958
      %v7464 = vunpack.c.l.b16 %v6959
      %v7465 = vunpack.c.h.b16 %v6959
      %v7466 = vunpack.c.l.b16 %v6960
      %v7467 = vunpack.c.h.b16 %v6960
      %v7468 = vunpack.c.l.b16 %v6961
      %v7469 = vunpack.c.h.b16 %v6961
      %v7470 = vunpack.c.l.b16 %v6962
      %v7471 = vunpack.c.h.b16 %v6962
      %v7472 = vunpack.c.l.b16 %v6963
      %v7473 = vunpack.c.h.b16 %v6963
      %v7474 = vunpack.c.l.b16 %v6964
      %v7475 = vunpack.c.h.b16 %v6964
      %v7476 = vunpack.c.l.b16 %v6965
      %v7477 = vunpack.c.h.b16 %v6965
      %v7478 = vunpack.c.l.b16 %v6966
      %v7479 = vunpack.c.h.b16 %v6966
      %v7480 = vunpack.c.l.b16 %v6967
      %v7481 = vunpack.c.h.b16 %v6967
      %v7482 = vunpack.c.l.b16 %v6968
      %v7483 = vunpack.c.h.b16 %v6968
      %v7484 = vunpack.c.l.b16 %v6969
      %v7485 = vunpack.c.h.b16 %v6969
      %v7486 = vunpack.c.l.b16 %v6970
      %v7487 = vunpack.c.h.b16 %v6970
      %v7488 = vunpack.c.l.b16 %v6971
      %v7489 = vunpack.c.h.b16 %v6971
      %v7490 = vunpack.c.l.b16 %v6972
      %v7491 = vunpack.c.h.b16 %v6972
      %v7492 = vunpack.c.l.b16 %v6973
      %v7493 = vunpack.c.h.b16 %v6973
      %v7494 = vunpack.c.l.b16 %v6974
      %v7495 = vunpack.c.h.b16 %v6974
      %v7496 = vunpack.c.l.b16 %v6975
      %v7497 = vunpack.c.h.b16 %v6975
      %v7498 = vunpack.c.l.b16 %v6976
      %v7499 = vunpack.c.h.b16 %v6976
      %v7500 = vunpack.c.l.b16 %v6977
      %v7501 = vunpack.c.h.b16 %v6977
      %v7502 = vunpack.c.l.b16 %v6978
      %v7503 = vunpack.c.h.b16 %v6978
      %v7504 = vunpack.c.l.b16 %v6979
      %v7505 = vunpack.c.h.b16 %v6979
      %v7506 = vunpack.c.l.b16 %v6980
      %v7507 = vunpack.c.h.b16 %v6980
      %v7508 = vunpack.c.l.b16 %v6981
      %v7509 = vunpack.c.h.b16 %v6981
      %v7510 = vunpack.c.l.b16 %v6982
      %v7511 = vunpack.c.h.b16 %v6982
      %v7512 = vunpack.c.l.b16 %v6983
      %v7513 = vunpack.c.h.b16 %v6983
      %v7514 = vunpack.c.l.b16 %v6984
      %v7515 = vunpack.c.h.b16 %v6984
      %v7516 = vunpack.c.l.b16 %v6985
      %v7517 = vunpack.c.h.b16 %v6985
      %v7518 = vunpack.c.l.b16 %v6986
      %v7519 = vunpack.c.h.b16 %v6986
      %v7520 = vunpack.c.l.b16 %v6987
      %v7521 = vunpack.c.h.b16 %v6987
      %v7522 = vunpack.c.l.b16 %v6988
      %v7523 = vunpack.c.h.b16 %v6988
      %v7524 = vunpack.c.l.b16 %v6989
      %v7525 = vunpack.c.h.b16 %v6989
      %v7526 = vunpack.c.l.b16 %v6990
      %v7527 = vunpack.c.h.b16 %v6990
      %v7528 = vunpack.c.l.b16 %v6991
      %v7529 = vunpack.c.h.b16 %v6991
      %v7530 = vunpack.c.l.b16 %v6992
      %v7531 = vunpack.c.h.b16 %v6992
      %v7532 = vunpack.c.l.b16 %v6993
      %v7533 = vunpack.c.h.b16 %v6993
      %v7534 = vunpack.c.l.b16 %v6994
      %v7535 = vunpack.c.h.b16 %v6994
      %v7536 = vunpack.c.l.b16 %v6995
      %v7537 = vunpack.c.h.b16 %v6995
      %v7538 = vunpack.c.l.b16 %v6996
      %v7539 = vunpack.c.h.b16 %v6996
      %v7540 = vunpack.c.l.b16 %v6997
      %v7541 = vunpack.c.h.b16 %v6997
      %v7542 = vunpack.c.l.b16 %v6998
      %v7543 = vunpack.c.h.b16 %v6998
      %v7544 = vunpack.c.l.b16 %v6999
      %v7545 = vunpack.c.h.b16 %v6999
      %v7546 = vunpack.c.l.b16 %v7000
      %v7547 = vunpack.c.h.b16 %v7000
      %v7548 = vunpack.c.l.b16 %v7001
      %v7549 = vunpack.c.h.b16 %v7001
      %v7550 = vunpack.c.l.b16 %v7002
      %v7551 = vunpack.c.h.b16 %v7002
      %v7552 = vunpack.c.l.b16 %v7003
      %v7553 = vunpack.c.h.b16 %v7003
      %v7554 = vunpack.c.l.b16 %v7004
      %v7555 = vunpack.c.h.b16 %v7004
      %v7556 = vunpack.c.l.b16 %v7005
      %v7557 = vunpack.c.h.b16 %v7005
      %v7558 = vunpack.c.l.b16 %v7006
      %v7559 = vunpack.c.h.b16 %v7006
      %v7560 = vunpack.c.l.b16 %v7007
      %v7561 = vunpack.c.h.b16 %v7007
      %v7562 = vunpack.c.l.b16 %v7008
      %v7563 = vunpack.c.h.b16 %v7008
      %v7564 = vunpack.c.l.b16 %v7009
      %v7565 = vunpack.c.h.b16 %v7009
      %v7566 = vunpack.c.l.b16 %v7010
      %v7567 = vunpack.c.h.b16 %v7010
      %v7568 = vunpack.c.l.b16 %v7011
      %v7569 = vunpack.c.h.b16 %v7011
      %v7570 = vunpack.c.l.b16 %v7012
      %v7571 = vunpack.c.h.b16 %v7012
      %v7572 = vunpack.c.l.b16 %v7013
      %v7573 = vunpack.c.h.b16 %v7013
      %v7574 = vunpack.c.l.b16 %v7014
      %v7575 = vunpack.c.h.b16 %v7014
      %v7576 = vunpack.c.l.b16 %v7015
      %v7577 = vunpack.c.h.b16 %v7015
      %v7578 = vunpack.c.l.b16 %v7016
      %v7579 = vunpack.c.h.b16 %v7016
      %v7580 = vunpack.c.l.b16 %v7017
      %v7581 = vunpack.c.h.b16 %v7017
      %v7582 = vunpack.c.l.b16 %v7018
      %v7583 = vunpack.c.h.b16 %v7018
      %v7584 = vunpack.c.l.b16 %v7019
      %v7585 = vunpack.c.h.b16 %v7019
      %v7586 = vunpack.c.l.b16 %v7020
      %v7587 = vunpack.c.h.b16 %v7020
      %v7588 = vunpack.c.l.b16 %v7021
      %v7589 = vunpack.c.h.b16 %v7021
      %v7590 = vunpack.c.l.b16 %v7022
      %v7591 = vunpack.c.h.b16 %v7022
      %v7592 = vunpack.c.l.b16 %v7023
      %v7593 = vunpack.c.h.b16 %v7023
      %v7594 = vunpack.c.l.b16 %v7024
      %v7595 = vunpack.c.h.b16 %v7024
      %v7596 = vunpack.c.l.b16 %v7025
      %v7597 = vunpack.c.h.b16 %v7025
      %v7598 = vunpack.c.l.b16 %v7026
      %v7599 = vunpack.c.h.b16 %v7026
      %v7600 = vunpack.c.l.b16 %v7027
      %v7601 = vunpack.c.h.b16 %v7027
      %v7602 = vunpack.c.l.b16 %v7028
      %v7603 = vunpack.c.h.b16 %v7028
      %v7604 = vunpack.c.l.b16 %v7029
      %v7605 = vunpack.c.h.b16 %v7029
      %v7606 = vunpack.c.l.b16 %v7030
      %v7607 = vunpack.c.h.b16 %v7030
      %v7608 = vunpack.c.l.b16 %v7031
      %v7609 = vunpack.c.h.b16 %v7031
      %v7610 = vunpack.c.l.b16 %v7032
      %v7611 = vunpack.c.h.b16 %v7032
      %v7612 = vunpack.c.l.b16 %v7033
      %v7613 = vunpack.c.h.b16 %v7033
      %v7614 = vunpack.c.l.b16 %v7034
      %v7615 = vunpack.c.h.b16 %v7034
      %v7616 = vunpack.c.l.b16 %v7035
      %v7617 = vunpack.c.h.b16 %v7035
      %v7618 = vunpack.c.l.b16 %v7036
      %v7619 = vunpack.c.h.b16 %v7036
      %v7620 = vunpack.c.l.b16 %v7037
      %v7621 = vunpack.c.h.b16 %v7037
      %v7622 = vunpack.c.l.b16 %v7038
      %v7623 = vunpack.c.h.b16 %v7038
      %v7624 = vunpack.c.l.b16 %v7039
      %v7625 = vunpack.c.h.b16 %v7039
      %v7626 = vunpack.c.l.b16 %v7040
      %v7627 = vunpack.c.h.b16 %v7040
      %v7628 = vunpack.c.l.b16 %v7041
      %v7629 = vunpack.c.h.b16 %v7041
      %v7630 = vunpack.c.l.b16 %v7042
      %v7631 = vunpack.c.h.b16 %v7042
      %v7632 = vunpack.c.l.b16 %v7043
      %v7633 = vunpack.c.h.b16 %v7043
      %v7634 = vunpack.c.l.b16 %v7044
      %v7635 = vunpack.c.h.b16 %v7044
      %v7636 = vunpack.c.l.b16 %v7045
      %v7637 = vunpack.c.h.b16 %v7045
      %v7638 = vunpack.c.l.b16 %v7046
      %v7639 = vunpack.c.h.b16 %v7046
      %v7640 = vunpack.c.l.b16 %v7047
      %v7641 = vunpack.c.h.b16 %v7047
      %v7642 = vunpack.c.l.b16 %v7048
      %v7643 = vunpack.c.h.b16 %v7048
      %v7644 = vunpack.c.l.b16 %v7049
      %v7645 = vunpack.c.h.b16 %v7049
      %v7646 = vunpack.c.l.b16 %v7050
      %v7647 = vunpack.c.h.b16 %v7050
      %v7648 = vunpack.c.l.b16 %v7051
      %v7649 = vunpack.c.h.b16 %v7051
      %v7650 = vunpack.c.l.b16 %v7052
      %v7651 = vunpack.c.h.b16 %v7052
      %v7652 = vunpack.c.l.b16 %v7053
      %v7653 = vunpack.c.h.b16 %v7053
      %v7654 = vunpack.c.l.b16 %v7054
      %v7655 = vunpack.c.h.b16 %v7054
      %v7656 = vunpack.c.l.b16 %v7055
      %v7657 = vunpack.c.h.b16 %v7055
      %v7658 = vunpack.c.l.b16 %v7056
      %v7659 = vunpack.c.h.b16 %v7056
      %v7660 = vunpack.c.l.b16 %v7057
      %v7661 = vunpack.c.h.b16 %v7057
      %v7662 = vunpack.c.l.b16 %v7058
      %v7663 = vunpack.c.h.b16 %v7058
      %v7664 = vunpack.c.l.b16 %v7059
      %v7665 = vunpack.c.h.b16 %v7059
      %v7666 = vunpack.c.l.b16 %v7060
      %v7667 = vunpack.c.h.b16 %v7060
      %v7668 = vunpack.c.l.b16 %v7061
      %v7669 = vunpack.c.h.b16 %v7061
      %v7670 = vunpack.c.l.b16 %v7062
      %v7671 = vunpack.c.h.b16 %v7062
      %v7672 = vunpack.c.l.b16 %v7063
      %v7673 = vunpack.c.h.b16 %v7063
      %v7674 = vunpack.c.l.b16 %v7064
      %v7675 = vunpack.c.h.b16 %v7064
      %v7676 = vunpack.c.l.b16 %v7065
      %v7677 = vunpack.c.h.b16 %v7065
      %v7678 = vunpack.c.l.b16 %v7066
      %v7679 = vunpack.c.h.b16 %v7066
      %v7680 = vunpack.c.l.b16 %v7067
      %v7681 = vunpack.c.h.b16 %v7067
      %v7682 = vunpack.c.l.b16 %v7068
      %v7683 = vunpack.c.h.b16 %v7068
      %v7684 = vunpack.c.l.b16 %v7069
      %v7685 = vunpack.c.h.b16 %v7069
      %v7686 = vunpack.c.l.b16 %v7070
      %v7687 = vunpack.c.h.b16 %v7070
      %v7688 = vunpack.c.l.b16 %v7071
      %v7689 = vunpack.c.h.b16 %v7071
      %v7690 = vunpack.c.l.b16 %v7072
      %v7691 = vunpack.c.h.b16 %v7072
      %v7692 = vunpack.c.l.b16 %v7073
      %v7693 = vunpack.c.h.b16 %v7073
      %v7694 = vunpack.c.l.b16 %v7074
      %v7695 = vunpack.c.h.b16 %v7074
      %v7696 = vunpack.c.l.b16 %v7075
      %v7697 = vunpack.c.h.b16 %v7075
      %v7698 = vunpack.c.l.b16 %v7076
      %v7699 = vunpack.c.h.b16 %v7076
      %v7700 = vunpack.c.l.b16 %v7077
      %v7701 = vunpack.c.h.b16 %v7077
      %v7702 = vunpack.c.l.b16 %v7078
      %v7703 = vunpack.c.h.b16 %v7078
      %v7704 = vunpack.c.l.b16 %v7079
      %v7705 = vunpack.c.h.b16 %v7079
      %v7706 = vunpack.c.l.b16 %v7080
      %v7707 = vunpack.c.h.b16 %v7080
      %v7708 = vunpack.c.l.b16 %v7081
      %v7709 = vunpack.c.h.b16 %v7081
      %v7710 = vunpack.c.l.b16 %v7082
      %v7711 = vunpack.c.h.b16 %v7082
      %v7712 = vunpack.c.l.b16 %v7083
      %v7713 = vunpack.c.h.b16 %v7083
      %v7714 = vunpack.c.l.b16 %v7084
      %v7715 = vunpack.c.h.b16 %v7084
      %v7716 = vunpack.c.l.b16 %v7085
      %v7717 = vunpack.c.h.b16 %v7085
      %v7718 = vunpack.c.l.b16 %v7086
      %v7719 = vunpack.c.h.b16 %v7086
      %v7720 = vunpack.c.l.b16 %v7087
      %v7721 = vunpack.c.h.b16 %v7087
      %v7722 = vunpack.c.l.b16 %v7088
      %v7723 = vunpack.c.h.b16 %v7088
      %v7724 = vunpack.c.l.b16 %v7089
      %v7725 = vunpack.c.h.b16 %v7089
      %v7726 = vunpack.c.l.b16 %v7090
      %v7727 = vunpack.c.h.b16 %v7090
      %v7728 = vunpack.c.l.b16 %v7091
      %v7729 = vunpack.c.h.b16 %v7091
      %v7730 = vunpack.c.l.b16 %v7092
      %v7731 = vunpack.c.h.b16 %v7092
      %v7732 = vunpack.c.l.b16 %v7093
      %v7733 = vunpack.c.h.b16 %v7093
      %v7734 = vunpack.c.l.b16 %v7094
      %v7735 = vunpack.c.h.b16 %v7094
      %v7736 = vunpack.c.l.b16 %v7095
      %v7737 = vunpack.c.h.b16 %v7095
      %v7738 = vunpack.c.l.b16 %v7096
      %v7739 = vunpack.c.h.b16 %v7096
      %v7740 = vunpack.c.l.b16 %v7097
      %v7741 = vunpack.c.h.b16 %v7097
      %v7742 = vunpack.c.l.b16 %v7098
      %v7743 = vunpack.c.h.b16 %v7098
      %v7744 = vunpack.c.l.b16 %v7099
      %v7745 = vunpack.c.h.b16 %v7099
      %v7746 = vunpack.c.l.b16 %v7100
      %v7747 = vunpack.c.h.b16 %v7100
      %v7748 = vunpack.c.l.b16 %v7101
      %v7749 = vunpack.c.h.b16 %v7101
      %v7750 = vunpack.c.l.b16 %v7102
      %v7751 = vunpack.c.h.b16 %v7102
      %v7752 = vunpack.c.l.b16 %v7103
      %v7753 = vunpack.c.h.b16 %v7103
      %v7754 = vunpack.c.l.b16 %v7104
      %v7755 = vunpack.c.h.b16 %v7104
      %v7756 = vunpack.c.l.b16 %v7105
      %v7757 = vunpack.c.h.b16 %v7105
      %v7758 = vunpack.c.l.b16 %v7106
      %v7759 = vunpack.c.h.b16 %v7106
      %v7760 = vunpack.c.l.b16 %v7107
      %v7761 = vunpack.c.h.b16 %v7107
      %v7762 = vunpack.c.l.b16 %v7108
      %v7763 = vunpack.c.h.b16 %v7108
      %v7764 = vunpack.c.l.b16 %v7109
      %v7765 = vunpack.c.h.b16 %v7109
      %v7766 = vunpack.c.l.b16 %v7110
      %v7767 = vunpack.c.h.b16 %v7110
      %v7768 = vunpack.c.l.b16 %v7111
      %v7769 = vunpack.c.h.b16 %v7111
      %v7770 = vunpack.c.l.b16 %v7112
      %v7771 = vunpack.c.h.b16 %v7112
      %v7772 = vunpack.c.l.b16 %v7113
      %v7773 = vunpack.c.h.b16 %v7113
      %v7774 = vunpack.c.l.b16 %v7114
      %v7775 = vunpack.c.h.b16 %v7114
      %v7776 = vunpack.c.l.b16 %v7115
      %v7777 = vunpack.c.h.b16 %v7115
      %v7778 = vunpack.c.l.b16 %v7116
      %v7779 = vunpack.c.h.b16 %v7116
      %v7780 = vunpack.c.l.b16 %v7117
      %v7781 = vunpack.c.h.b16 %v7117
      %v7782 = vunpack.c.l.b16 %v7118
      %v7783 = vunpack.c.h.b16 %v7118
      %v7784 = vunpack.c.l.b16 %v7119
      %v7785 = vunpack.c.h.b16 %v7119
      %v7786 = vunpack.c.l.b16 %v7120
      %v7787 = vunpack.c.h.b16 %v7120
      %v7788 = vunpack.c.l.b16 %v7121
      %v7789 = vunpack.c.h.b16 %v7121
      %v7790 = vunpack.c.l.b16 %v7122
      %v7791 = vunpack.c.h.b16 %v7122
      %v7792 = vunpack.c.l.b16 %v7123
      %v7793 = vunpack.c.h.b16 %v7123
      %v7794 = vunpack.c.l.b16 %v7124
      %v7795 = vunpack.c.h.b16 %v7124
      %v7796 = vunpack.c.l.b16 %v7125
      %v7797 = vunpack.c.h.b16 %v7125
      %v7798 = vunpack.c.l.b16 %v7126
      %v7799 = vunpack.c.h.b16 %v7126
      %v7800 = vunpack.c.l.b16 %v7127
      %v7801 = vunpack.c.h.b16 %v7127
      %v7802 = vunpack.c.l.b16 %v7128
      %v7803 = vunpack.c.h.b16 %v7128
      %v7804 = vunpack.c.l.b16 %v7129
      %v7805 = vunpack.c.h.b16 %v7129
      %v7806 = vunpack.c.l.b16 %v7130
      %v7807 = vunpack.c.h.b16 %v7130
      %v7808 = vunpack.c.l.b16 %v7131
      %v7809 = vpack.c.b16 %v7358, %v7358
      %v7810 = vpack.c.b16 %v7359, %v7359
      %v7811 = vpack.c.b16 %v7360, %v7360
      %v7812 = vpack.c.b16 %v7361, %v7361
      %v7813 = vpack.c.b16 %v7362, %v7362
      %v7814 = vpack.c.b16 %v7363, %v7363
      %v7815 = vpack.c.b16 %v7364, %v7364
      %v7816 = vpack.c.b16 %v7365, %v7365
      %v7817 = vpack.c.b16 %v7366, %v7366
      %v7818 = vpack.c.b16 %v7367, %v7367
      %v7819 = vpack.c.b16 %v7368, %v7368
      %v7820 = vpack.c.b16 %v7369, %v7369
      %v7821 = vpack.c.b16 %v7370, %v7370
      %v7822 = vpack.c.b16 %v7371, %v7371
      %v7823 = vpack.c.b16 %v7372, %v7372
      %v7824 = vpack.c.b16 %v7373, %v7373
      %v7825 = vpack.c.b16 %v7374, %v7374
      %v7826 = vpack.c.b16 %v7375, %v7375
      %v7827 = vpack.c.b16 %v7376, %v7376
      %v7828 = vpack.c.b16 %v7377, %v7377
      %v7829 = vpack.c.b16 %v7378, %v7378
      %v7830 = vpack.c.b16 %v7379, %v7379
      %v7831 = vpack.c.b16 %v7380, %v7380
      %v7832 = vpack.c.b16 %v7381, %v7381
      %v7833 = vpack.c.b16 %v7382, %v7382
      %v7834 = vpack.c.b16 %v7383, %v7383
      %v7835 = vpack.c.b16 %v7384, %v7384
      %v7836 = vpack.c.b16 %v7385, %v7385
      %v7837 = vpack.c.b16 %v7386, %v7386
      %v7838 = vpack.c.b16 %v7387, %v7387
      %v7839 = vpack.c.b16 %v7388, %v7388
      %v7840 = vpack.c.b16 %v7389, %v7389
      %v7841 = vpack.c.b16 %v7390, %v7390
      %v7842 = vpack.c.b16 %v7391, %v7391
      %v7843 = vpack.c.b16 %v7392, %v7392
      %v7844 = vpack.c.b16 %v7393, %v7393
      %v7845 = vpack.c.b16 %v7394, %v7394
      %v7846 = vpack.c.b16 %v7395, %v7395
      %v7847 = vpack.c.b16 %v7396, %v7396
      %v7848 = vpack.c.b16 %v7397, %v7397
      %v7849 = vpack.c.b16 %v7398, %v7398
      %v7850 = vpack.c.b16 %v7399, %v7399
      %v7851 = vpack.c.b16 %v7400, %v7400
      %v7852 = vpack.c.b16 %v7401, %v7401
      %v7853 = vpack.c.b16 %v7402, %v7402
      %v7854 = vpack.c.b16 %v7403, %v7403
      %v7855 = vpack.c.b16 %v7404, %v7404
      %v7856 = vpack.c.b16 %v7405, %v7405
      %v7857 = vpack.c.b16 %v7406, %v7406
      %v7858 = vpack.c.b16 %v7407, %v7407
      %v7859 = vpack.c.b16 %v7408, %v7408
      %v7860 = vpack.c.b16 %v7409, %v7409
      %v7861 = vpack.c.b16 %v7410, %v7410
      %v7862 = vpack.c.b16 %v7411, %v7411
      %v7863 = vpack.c.b16 %v7412, %v7412
      %v7864 = vpack.c.b16 %v7413, %v7413
      %v7865 = vpack.c.b16 %v7414, %v7414
      %v7866 = vpack.c.b16 %v7415, %v7415
      %v7867 = vpack.c.b16 %v7416, %v7416
      %v7868 = vpack.c.b16 %v7417, %v7417
      %v7869 = vpack.c.b16 %v7418, %v7418
      %v7870 = vpack.c.b16 %v7419, %v7419
      %v7871 = vpack.c.b16 %v7420, %v7420
      %v7872 = vpack.c.b16 %v7421, %v7421
      %v7873 = vpack.c.b16 %v7422, %v7422
      %v7874 = vpack.c.b16 %v7423, %v7423
      %v7875 = vpack.c.b16 %v7424, %v7424
      %v7876 = vpack.c.b16 %v7425, %v7425
      %v7877 = vpack.c.b16 %v7426, %v7426
      %v7878 = vpack.c.b16 %v7427, %v7427
      %v7879 = vpack.c.b16 %v7428, %v7428
      %v7880 = vpack.c.b16 %v7429, %v7429
      %v7881 = vpack.c.b16 %v7430, %v7430
      %v7882 = vpack.c.b16 %v7431, %v7431
      %v7883 = vpack.c.b16 %v7432, %v7432
      %v7884 = vpack.c.b16 %v7433, %v7433
      %v7885 = vpack.c.b16 %v7434, %v7434
      %v7886 = vpack.c.b16 %v7435, %v7435
      %v7887 = vpack.c.b16 %v7436, %v7436
      %v7888 = vpack.c.b16 %v7437, %v7437
      %v7889 = vpack.c.b16 %v7438, %v7438
      %v7890 = vpack.c.b16 %v7439, %v7439
      %v7891 = vpack.c.b16 %v7440, %v7440
      %v7892 = vpack.c.b16 %v7441, %v7441
      %v7893 = vpack.c.b16 %v7442, %v7442
      %v7894 = vpack.c.b16 %v7443, %v7443
      %v7895 = vpack.c.b16 %v7444, %v7444
      %v7896 = vpack.c.b16 %v7445, %v7445
      %v7897 = vpack.c.b16 %v7446, %v7446
      %v7898 = vpack.c.b16 %v7447, %v7447
      %v7899 = vpack.c.b16 %v7448, %v7448
      %v7900 = vpack.c.b16 %v7449, %v7449
      %v7901 = vpack.c.b16 %v7450, %v7450
      %v7902 = vpack.c.b16 %v7451, %v7451
      %v7903 = vpack.c.b16 %v7452, %v7452
      %v7904 = vpack.c.b16 %v7453, %v7453
      %v7905 = vpack.c.b16 %v7454, %v7454
      %v7906 = vpack.c.b16 %v7455, %v7455
      %v7907 = vpack.c.b16 %v7456, %v7456
      %v7908 = vpack.c.b16 %v7457, %v7457
      %v7909 = vpack.c.b16 %v7458, %v7458
      %v7910 = vpack.c.b16 %v7459, %v7459
      %v7911 = vpack.c.b16 %v7460, %v7460
      %v7912 = vpack.c.b16 %v7461, %v7461
      %v7913 = vpack.c.b16 %v7462, %v7462
      %v7914 = vpack.c.b16 %v7463, %v7463
      %v7915 = vpack.c.b16 %v7464, %v7464
      %v7916 = vpack.c.b16 %v7465, %v7465
      %v7917 = vpack.c.b16 %v7466, %v7466
      %v7918 = vpack.c.b16 %v7467, %v7467
      %v7919 = vpack.c.b16 %v7468, %v7468
      %v7920 = vpack.c.b16 %v7469, %v7469
      %v7921 = vpack.c.b16 %v7470, %v7470
      %v7922 = vpack.c.b16 %v7471, %v7471
      %v7923 = vpack.c.b16 %v7472, %v7472
      %v7924 = vpack.c.b16 %v7473, %v7473
      %v7925 = vpack.c.b16 %v7474, %v7474
      %v7926 = vpack.c.b16 %v7475, %v7475
      %v7927 = vpack.c.b16 %v7476, %v7476
      %v7928 = vpack.c.b16 %v7477, %v7477
      %v7929 = vpack.c.b16 %v7478, %v7478
      %v7930 = vpack.c.b16 %v7479, %v7479
      %v7931 = vpack.c.b16 %v7480, %v7480
      %v7932 = vpack.c.b16 %v7481, %v7481
      %v7933 = vpack.c.b16 %v7482, %v7482
      %v7934 = vpack.c.b16 %v7483, %v7483
      %v7935 = vpack.c.b16 %v7484, %v7484
      %v7936 = vpack.c.b16 %v7485, %v7485
      %v7937 = vpack.c.b16 %v7486, %v7486
      %v7938 = vpack.c.b16 %v7487, %v7487
      %v7939 = vpack.c.b16 %v7488, %v7488
      %v7940 = vpack.c.b16 %v7489, %v7489
      %v7941 = vpack.c.b16 %v7490, %v7490
      %v7942 = vpack.c.b16 %v7491, %v7491
      %v7943 = vpack.c.b16 %v7492, %v7492
      %v7944 = vpack.c.b16 %v7493, %v7493
      %v7945 = vpack.c.b16 %v7494, %v7494
      %v7946 = vpack.c.b16 %v7495, %v7495
      %v7947 = vpack.c.b16 %v7496, %v7496
      %v7948 = vpack.c.b16 %v7497, %v7497
      %v7949 = vpack.c.b16 %v7498, %v7498
      %v7950 = vpack.c.b16 %v7499, %v7499
      %v7951 = vpack.c.b16 %v7500, %v7500
      %v7952 = vpack.c.b16 %v7501, %v7501
      %v7953 = vpack.c.b16 %v7502, %v7502
      %v7954 = vpack.c.b16 %v7503, %v7503
      %v7955 = vpack.c.b16 %v7504, %v7504
      %v7956 = vpack.c.b16 %v7505, %v7505
      %v7957 = vpack.c.b16 %v7506, %v7506
      %v7958 = vpack.c.b16 %v7507, %v7507
      %v7959 = vpack.c.b16 %v7508, %v7508
      %v7960 = vpack.c.b16 %v7509, %v7509
      %v7961 = vpack.c.b16 %v7510, %v7510
      %v7962 = vpack.c.b16 %v7511, %v7511
      %v7963 = vpack.c.b16 %v7512, %v7512
      %v7964 = vpack.c.b16 %v7513, %v7513
      %v7965 = vpack.c.b16 %v7514, %v7514
      %v7966 = vpack.c.b16 %v7515, %v7515
      %v7967 = vpack.c.b16 %v7516, %v7516
      %v7968 = vpack.c.b16 %v7517, %v7517
      %v7969 = vpack.c.b16 %v7518, %v7518
      %v7970 = vpack.c.b16 %v7519, %v7519
      %v7971 = vpack.c.b16 %v7520, %v7520
      %v7972 = vpack.c.b16 %v7521, %v7521
      %v7973 = vpack.c.b16 %v7522, %v7522
      %v7974 = vpack.c.b16 %v7523, %v7523
      %v7975 = vpack.c.b16 %v7524, %v7524
      %v7976 = vpack.c.b16 %v7525, %v7525
      %v7977 = vpack.c.b16 %v7526, %v7526
      %v7978 = vpack.c.b16 %v7527, %v7527
      %v7979 = vpack.c.b16 %v7528, %v7528
      %v7980 = vpack.c.b16 %v7529, %v7529
      %v7981 = vpack.c.b16 %v7530, %v7530
      %v7982 = vpack.c.b16 %v7531, %v7531
      %v7983 = vpack.c.b16 %v7532, %v7532
      %v7984 = vpack.c.b16 %v7533, %v7533
      %v7985 = vpack.c.b16 %v7534, %v7534
      %v7986 = vpack.c.b16 %v7535, %v7535
      %v7987 = vpack.c.b16 %v7536, %v7536
      %v7988 = vpack.c.b16 %v7537, %v7537
      %v7989 = vpack.c.b16 %v7538, %v7538
      %v7990 = vpack.c.b16 %v7539, %v7539
      %v7991 = vpack.c.b16 %v7540, %v7540
      %v7992 = vpack.c.b16 %v7541, %v7541
      %v7993 = vpack.c.b16 %v7542, %v7542
      %v7994 = vpack.c.b16 %v7543, %v7543
      %v7995 = vpack.c.b16 %v7544, %v7544
      %v7996 = vpack.c.b16 %v7545, %v7545
      %v7997 = vpack.c.b16 %v7546, %v7546
      %v7998 = vpack.c.b16 %v7547, %v7547
      %v7999 = vpack.c.b16 %v7548, %v7548
      %v8000 = vpack.c.b16 %v7549, %v7549
      %v8001 = vpack.c.b16 %v7550, %v7550
      %v8002 = vpack.c.b16 %v7551, %v7551
      %v8003 = vpack.c.b16 %v7552, %v7552
      %v8004 = vpack.c.b16 %v7553, %v7553
      %v8005 = vpack.c.b16 %v7554, %v7554
      %v8006 = vpack.c.b16 %v7555, %v7555
      %v8007 = vpack.c.b16 %v7556, %v7556
      %v8008 = vpack.c.b16 %v7557, %v7557
      %v8009 = vpack.c.b16 %v7558, %v7558
      %v8010 = vpack.c.b16 %v7559, %v7559
      %v8011 = vpack.c.b16 %v7560, %v7560
      %v8012 = vpack.c.b16 %v7561, %v7561
      %v8013 = vpack.c.b16 %v7562, %v7562
      %v8014 = vpack.c.b16 %v7563, %v7563
      %v8015 = vpack.c.b16 %v7564, %v7564
      %v8016 = vpack.c.b16 %v7565, %v7565
      %v8017 = vpack.c.b16 %v7566, %v7566
      %v8018 = vpack.c.b16 %v7567, %v7567
      %v8019 = vpack.c.b16 %v7568, %v7568
      %v8020 = vpack.c.b16 %v7569, %v7569
      %v8021 = vpack.c.b16 %v7570, %v7570
      %v8022 = vpack.c.b16 %v7571, %v7571
      %v8023 = vpack.c.b16 %v7572, %v7572
      %v8024 = vpack.c.b16 %v7573, %v7573
      %v8025 = vpack.c.b16 %v7574, %v7574
      %v8026 = vpack.c.b16 %v7575, %v7575
      %v8027 = vpack.c.b16 %v7576, %v7576
      %v8028 = vpack.c.b16 %v7577, %v7577
      %v8029 = vpack.c.b16 %v7578, %v7578
      %v8030 = vpack.c.b16 %v7579, %v7579
      %v8031 = vpack.c.b16 %v7580, %v7580
      %v8032 = vpack.c.b16 %v7581, %v7581
      %v8033 = vpack.c.b16 %v7582, %v7582
      %v8034 = vpack.c.b16 %v7583, %v7583
      %v8035 = vpack.c.b16 %v7584, %v7584
      %v8036 = vpack.c.b16 %v7585, %v7585
      %v8037 = vpack.c.b16 %v7586, %v7586
      %v8038 = vpack.c.b16 %v7587, %v7587
      %v8039 = vpack.c.b16 %v7588, %v7588
      %v8040 = vpack.c.b16 %v7589, %v7589
      %v8041 = vpack.c.b16 %v7590, %v7590
      %v8042 = vpack.c.b16 %v7591, %v7591
      %v8043 = vpack.c.b16 %v7592, %v7592
      %v8044 = vpack.c.b16 %v7593, %v7593
      %v8045 = vpack.c.b16 %v7594, %v7594
      %v8046 = vpack.c.b16 %v7595, %v7595
      %v8047 = vpack.c.b16 %v7596, %v7596
      %v8048 = vpack.c.b16 %v7597, %v7597
      %v8049 = vpack.c.b16 %v7598, %v7598
      %v8050 = vpack.c.b16 %v7599, %v7599
      %v8051 = vpack.c.b16 %v7600, %v7600
      %v8052 = vpack.c.b16 %v7601, %v7601
      %v8053 = vpack.c.b16 %v7602, %v7602
      %v8054 = vpack.c.b16 %v7603, %v7603
      %v8055 = vpack.c.b16 %v7604, %v7604
      %v8056 = vpack.c.b16 %v7605, %v7605
      %v8057 = vpack.c.b16 %v7606, %v7606
      %v8058 = vpack.c.b16 %v7607, %v7607
      %v8059 = vpack.c.b16 %v7608, %v7608
      %v8060 = vpack.c.b16 %v7609, %v7609
      %v8061 = vpack.c.b16 %v7610, %v7610
      %v8062 = vpack.c.b16 %v7611, %v7611
      %v8063 = vpack.c.b16 %v7612, %v7612
      %v8064 = vpack.c.b16 %v7613, %v7613
      %v8065 = vpack.c.b16 %v7614, %v7614
      %v8066 = vpack.c.b16 %v7615, %v7615
      %v8067 = vpack.c.b16 %v7616, %v7616
      %v8068 = vpack.c.b16 %v7617, %v7617
      %v8069 = vpack.c.b16 %v7618, %v7618
      %v8070 = vpack.c.b16 %v7619, %v7619
      %v8071 = vpack.c.b16 %v7620, %v7620
      %v8072 = vpack.c.b16 %v7621, %v7621
      %v8073 = vpack.c.b16 %v7622, %v7622
      %v8074 = vpack.c.b16 %v7623, %v7623
      %v8075 = vpack.c.b16 %v7624, %v7624
      %v8076 = vpack.c.b16 %v7625, %v7625
      %v8077 = vpack.c.b16 %v7626, %v7626
      %v8078 = vpack.c.b16 %v7627, %v7627
      %v8079 = vpack.c.b16 %v7628, %v7628
      %v8080 = vpack.c.b16 %v7629, %v7629
      %v8081 = vpack.c.b16 %v7630, %v7630
      %v8082 = vpack.c.b16 %v7631, %v7631
      %v8083 = vpack.c.b16 %v7632, %v7632
      %v8084 = vpack.c.b16 %v7633, %v7633
      %v8085 = vpack.c.b16 %v7634, %v7634
      %v8086 = vpack.c.b16 %v7635, %v7635
      %v8087 = vpack.c.b16 %v7636, %v7636
      %v8088 = vpack.c.b16 %v7637, %v7637
      %v8089 = vpack.c.b16 %v7638, %v7638
      %v8090 = vpack.c.b16 %v7639, %v7639
      %v8091 = vpack.c.b16 %v7640, %v7640
      %v8092 = vpack.c.b16 %v7641, %v7641
      %v8093 = vpack.c.b16 %v7642, %v7642
      %v8094 = vpack.c.b16 %v7643, %v7643
      %v8095 = vpack.c.b16 %v7644, %v7644
      %v8096 = vpack.c.b16 %v7645, %v7645
      %v8097 = vpack.c.b16 %v7646, %v7646
      %v8098 = vpack.c.b16 %v7647, %v7647
      %v8099 = vpack.c.b16 %v7648, %v7648
      %v8100 = vpack.c.b16 %v7649, %v7649
      %v8101 = vpack.c.b16 %v7650, %v7650
      %v8102 = vpack.c.b16 %v7651, %v7651
      %v8103 = vpack.c.b16 %v7652, %v7652
      %v8104 = vpack.c.b16 %v7653, %v7653
      %v8105 = vpack.c.b16 %v7654, %v7654
      %v8106 = vpack.c.b16 %v7655, %v7655
      %v8107 = vpack.c.b16 %v7656, %v7656
      %v8108 = vpack.c.b16 %v7657, %v7657
      %v8109 = vpack.c.b16 %v7658, %v7658
      %v8110 = vpack.c.b16 %v7659, %v7659
      %v8111 = vpack.c.b16 %v7660, %v7660
      %v8112 = vpack.c.b16 %v7661, %v7661
      %v8113 = vpack.c.b16 %v7662, %v7662
      %v8114 = vpack.c.b16 %v7663, %v7663
      %v8115 = vpack.c.b16 %v7664, %v7664
      %v8116 = vpack.c.b16 %v7665, %v7665
      %v8117 = vpack.c.b16 %v7666, %v7666
      %v8118 = vpack.c.b16 %v7667, %v7667
      %v8119 = vpack.c.b16 %v7668, %v7668
      %v8120 = vpack.c.b16 %v7669, %v7669
      %v8121 = vpack.c.b16 %v7670, %v7670
      %v8122 = vpack.c.b16 %v7671, %v7671
      %v8123 = vpack.c.b16 %v7672, %v7672
      %v8124 = vpack.c.b16 %v7673, %v7673
      %v8125 = vpack.c.b16 %v7674, %v7674
      %v8126 = vpack.c.b16 %v7675, %v7675
      %v8127 = vpack.c.b16 %v7676, %v7676
      %v8128 = vpack.c.b16 %v7677, %v7677
      %v8129 = vpack.c.b16 %v7678, %v7678
      %v8130 = vpack.c.b16 %v7679, %v7679
      %v8131 = vpack.c.b16 %v7680, %v7680
      %v8132 = vpack.c.b16 %v7681, %v7681
      %v8133 = vpack.c.b16 %v7682, %v7682
      %v8134 = vpack.c.b16 %v7683, %v7683
      %v8135 = vpack.c.b16 %v7684, %v7684
      %v8136 = vpack.c.b16 %v7685, %v7685
      %v8137 = vpack.c.b16 %v7686, %v7686
      %v8138 = vpack.c.b16 %v7687, %v7687
      %v8139 = vpack.c.b16 %v7688, %v7688
      %v8140 = vpack.c.b16 %v7689, %v7689
      %v8141 = vpack.c.b16 %v7690, %v7690
      %v8142 = vpack.c.b16 %v7691, %v7691
      %v8143 = vpack.c.b16 %v7692, %v7692
      %v8144 = vpack.c.b16 %v7693, %v7693
      %v8145 = vpack.c.b16 %v7694, %v7694
      %v8146 = vpack.c.b16 %v7695, %v7695
      %v8147 = vpack.c.b16 %v7696, %v7696
      %v8148 = vpack.c.b16 %v7697, %v7697
      %v8149 = vpack.c.b16 %v7698, %v7698
      %v8150 = vpack.c.b16 %v7699, %v7699
      %v8151 = vpack.c.b16 %v7700, %v7700
      %v8152 = vpack.c.b16 %v7701, %v7701
      %v8153 = vpack.c.b16 %v7702, %v7702
      %v8154 = vpack.c.b16 %v7703, %v7703
      %v8155 = vpack.c.b16 %v7704, %v7704
      %v8156 = vpack.c.b16 %v7705, %v7705
      %v8157 = vpack.c.b16 %v7706, %v7706
      %v8158 = vpack.c.b16 %v7707, %v7707
      %v8159 = vpack.c.b16 %v7708, %v7708
      %v8160 = vpack.c.b16 %v7709, %v7709
      %v8161 = vpack.c.b16 %v7710, %v7710
      %v8162 = vpack.c.b16 %v7711, %v7711
      %v8163 = vpack.c.b16 %v7712, %v7712
      %v8164 = vpack.c.b16 %v7713, %v7713
      %v8165 = vpack.c.b16 %v7714, %v7714
      %v8166 = vpack.c.b16 %v7715, %v7715
      %v8167 = vpack.c.b16 %v7716, %v7716
      %v8168 = vpack.c.b16 %v7717, %v7717
      %v8169 = vpack.c.b16 %v7718, %v7718
      %v8170 = vpack.c.b16 %v7719, %v7719
      %v8171 = vpack.c.b16 %v7720, %v7720
      %v8172 = vpack.c.b16 %v7721, %v7721
      %v8173 = vpack.c.b16 %v7722, %v7722
      %v8174 = vpack.c.b16 %v7723, %v7723
      %v8175 = vpack.c.b16 %v7724, %v7724
      %v8176 = vpack.c.b16 %v7725, %v7725
      %v8177 = vpack.c.b16 %v7726, %v7726
      %v8178 = vpack.c.b16 %v7727, %v7727
      %v8179 = vpack.c.b16 %v7728, %v7728
      %v8180 = vpack.c.b16 %v7729, %v7729
      %v8181 = vpack.c.b16 %v7730, %v7730
      %v8182 = vpack.c.b16 %v7731, %v7731
      %v8183 = vpack.c.b16 %v7732, %v7732
      %v8184 = vpack.c.b16 %v7733, %v7733
      %v8185 = vpack.c.b16 %v7734, %v7734
      %v8186 = vpack.c.b16 %v7735, %v7735
      %v8187 = vpack.c.b16 %v7736, %v7736
      %v8188 = vpack.c.b16 %v7737, %v7737
      %v8189 = vpack.c.b16 %v7738, %v7738
      %v8190 = vpack.c.b16 %v7739, %v7739
      %v8191 = vpack.c.b16 %v7740, %v7740
      %v8192 = vpack.c.b16 %v7741, %v7741
      %v8193 = vpack.c.b16 %v7742, %v7742
      %v8194 = vpack.c.b16 %v7743, %v7743
      %v8195 = vpack.c.b16 %v7744, %v7744
      %v8196 = vpack.c.b16 %v7745, %v7745
      %v8197 = vpack.c.b16 %v7746, %v7746
      %v8198 = vpack.c.b16 %v7747, %v7747
      %v8199 = vpack.c.b16 %v7748, %v7748
      %v8200 = vpack.c.b16 %v7749, %v7749
      %v8201 = vpack.c.b16 %v7750, %v7750
      %v8202 = vpack.c.b16 %v7751, %v7751
      %v8203 = vpack.c.b16 %v7752, %v7752
      %v8204 = vpack.c.b16 %v7753, %v7753
      %v8205 = vpack.c.b16 %v7754, %v7754
      %v8206 = vpack.c.b16 %v7755, %v7755
      %v8207 = vpack.c.b16 %v7756, %v7756
      %v8208 = vpack.c.b16 %v7757, %v7757
      %v8209 = vpack.c.b16 %v7758, %v7758
      %v8210 = vpack.c.b16 %v7759, %v7759
      %v8211 = vpack.c.b16 %v7760, %v7760
      %v8212 = vpack.c.b16 %v7761, %v7761
      %v8213 = vpack.c.b16 %v7762, %v7762
      %v8214 = vpack.c.b16 %v7763, %v7763
      %v8215 = vpack.c.b16 %v7764, %v7764
      %v8216 = vpack.c.b16 %v7765, %v7765
      %v8217 = vpack.c.b16 %v7766, %v7766
      %v8218 = vpack.c.b16 %v7767, %v7767
      %v8219 = vpack.c.b16 %v7768, %v7768
      %v8220 = vpack.c.b16 %v7769, %v7769
      %v8221 = vpack.c.b16 %v7770, %v7770
      %v8222 = vpack.c.b16 %v7771, %v7771
      %v8223 = vpack.c.b16 %v7772, %v7772
      %v8224 = vpack.c.b16 %v7773, %v7773
      %v8225 = vpack.c.b16 %v7774, %v7774
      %v8226 = vpack.c.b16 %v7775, %v7775
      %v8227 = vpack.c.b16 %v7776, %v7776
      %v8228 = vpack.c.b16 %v7777, %v7777
      %v8229 = vpack.c.b16 %v7778, %v7778
      %v8230 = vpack.c.b16 %v7779, %v7779
      %v8231 = vpack.c.b16 %v7780, %v7780
      %v8232 = vpack.c.b16 %v7781, %v7781
      %v8233 = vpack.c.b16 %v7782, %v7782
      %v8234 = vpack.c.b16 %v7783, %v7783
      %v8235 = vpack.c.b16 %v7784, %v7784
      %v8236 = vpack.c.b16 %v7785, %v7785
      %v8237 = vpack.c.b16 %v7786, %v7786
      %v8238 = vpack.c.b16 %v7787, %v7787
      %v8239 = vpack.c.b16 %v7788, %v7788
      %v8240 = vpack.c.b16 %v7789, %v7789
      %v8241 = vpack.c.b16 %v7790, %v7790
      %v8242 = vpack.c.b16 %v7791, %v7791
      %v8243 = vpack.c.b16 %v7792, %v7792
      %v8244 = vpack.c.b16 %v7793, %v7793
      %v8245 = vpack.c.b16 %v7794, %v7794
      %v8246 = vpack.c.b16 %v7795, %v7795
      %v8247 = vpack.c.b16 %v7796, %v7796
      %v8248 = vpack.c.b16 %v7797, %v7797
      %v8249 = vpack.c.b16 %v7798, %v7798
      %v8250 = vpack.c.b16 %v7799, %v7799
      %v8251 = vpack.c.b16 %v7800, %v7800
      %v8252 = vpack.c.b16 %v7801, %v7801
      %v8253 = vpack.c.b16 %v7802, %v7802
      %v8254 = vpack.c.b16 %v7803, %v7803
      %v8255 = vpack.c.b16 %v7804, %v7804
      %v8256 = vpack.c.b16 %v7805, %v7805
      %v8257 = vpack.c.b16 %v7806, %v7806
      %v8258 = vpack.c.b16 %v7807, %v7807
      %v8259 = vpack.c.b16 %v7808, %v7808
      %vm8711 = vcmask 60416
      %8712 = vst.msk [vmem:[%s201] sm:$0xf] %vm8711, %v7809
      %8713 = vst.msk [vmem:[%s201 + $0x4] sm:$0xf] %vm8711, %v7810
      %8714 = vst.msk [vmem:[%s201 + $0x8] sm:$0xf] %vm8711, %v7811
      %8715 = vst.msk [vmem:[%s201 + $0xc] sm:$0xf] %vm8711, %v7812
      %8716 = vst.msk [vmem:[%s201 + $0x10] sm:$0xf] %vm8711, %v7813
      %8717 = vst.msk [vmem:[%s201 + $0x14] sm:$0xf] %vm8711, %v7814
      %8718 = vst.msk [vmem:[%s201 + $0x18] sm:$0xf] %vm8711, %v7815
      %8719 = vst.msk [vmem:[%s201 + $0x1c] sm:$0xf] %vm8711, %v7816
      %8720 = vst.msk [vmem:[%s201 + $0x20] sm:$0xf] %vm8711, %v7817
      %8721 = vst.msk [vmem:[%s201 + $0x24] sm:$0xf] %vm8711, %v7818
      %8722 = vst.msk [vmem:[%s201 + $0x28] sm:$0xf] %vm8711, %v7819
      %8723 = vst.msk [vmem:[%s201 + $0x2c] sm:$0xf] %vm8711, %v7820
      %8724 = vst.msk [vmem:[%s201 + $0x30] sm:$0xf] %vm8711, %v7821
      %8725 = vst.msk [vmem:[%s201 + $0x34] sm:$0xf] %vm8711, %v7822
      %8726 = vst.msk [vmem:[%s201 + $0x38] sm:$0xf] %vm8711, %v7823
      %8727 = vst.msk [vmem:[%s201 + $0x3c] sm:$0xf] %vm8711, %v7824
      %8728 = vst.msk [vmem:[%s201 + $0x40] sm:$0xf] %vm8711, %v7825
      %8729 = vst.msk [vmem:[%s201 + $0x44] sm:$0xf] %vm8711, %v7826
      %8730 = vst.msk [vmem:[%s201 + $0x48] sm:$0xf] %vm8711, %v7827
      %8731 = vst.msk [vmem:[%s201 + $0x4c] sm:$0xf] %vm8711, %v7828
      %8732 = vst.msk [vmem:[%s201 + $0x50] sm:$0xf] %vm8711, %v7829
      %8733 = vst.msk [vmem:[%s201 + $0x54] sm:$0xf] %vm8711, %v7830
      %8734 = vst.msk [vmem:[%s201 + $0x58] sm:$0xf] %vm8711, %v7831
      %8735 = vst.msk [vmem:[%s201 + $0x5c] sm:$0xf] %vm8711, %v7832
      %8736 = vst.msk [vmem:[%s201 + $0x60] sm:$0xf] %vm8711, %v7833
      %8737 = vst.msk [vmem:[%s201 + $0x64] sm:$0xf] %vm8711, %v7834
      %8738 = vst.msk [vmem:[%s201 + $0x68] sm:$0xf] %vm8711, %v7835
      %8739 = vst.msk [vmem:[%s201 + $0x6c] sm:$0xf] %vm8711, %v7836
      %8740 = vst.msk [vmem:[%s201 + $0x70] sm:$0xf] %vm8711, %v7837
      %8741 = vst.msk [vmem:[%s201 + $0x74] sm:$0xf] %vm8711, %v7838
      %8742 = vst.msk [vmem:[%s201 + $0x78] sm:$0xf] %vm8711, %v7839
      %8743 = vst.msk [vmem:[%s201 + $0x7c] sm:$0xf] %vm8711, %v7840
      %8744 = vst.msk [vmem:[%s201 + $0x80] sm:$0xf] %vm8711, %v7841
      %8745 = vst.msk [vmem:[%s201 + $0x84] sm:$0xf] %vm8711, %v7842
      %8746 = vst.msk [vmem:[%s201 + $0x88] sm:$0xf] %vm8711, %v7843
      %8747 = vst.msk [vmem:[%s201 + $0x8c] sm:$0xf] %vm8711, %v7844
      %8748 = vst.msk [vmem:[%s201 + $0x90] sm:$0xf] %vm8711, %v7845
      %8749 = vst.msk [vmem:[%s201 + $0x94] sm:$0xf] %vm8711, %v7846
      %8750 = vst.msk [vmem:[%s201 + $0x98] sm:$0xf] %vm8711, %v7847
      %8751 = vst.msk [vmem:[%s201 + $0x9c] sm:$0xf] %vm8711, %v7848
      %8752 = vst.msk [vmem:[%s201 + $0xa0] sm:$0xf] %vm8711, %v7849
      %8753 = vst.msk [vmem:[%s201 + $0xa4] sm:$0xf] %vm8711, %v7850
      %8754 = vst.msk [vmem:[%s201 + $0xa8] sm:$0xf] %vm8711, %v7851
      %8755 = vst.msk [vmem:[%s201 + $0xac] sm:$0xf] %vm8711, %v7852
      %8756 = vst.msk [vmem:[%s201 + $0xb0] sm:$0xf] %vm8711, %v7853
      %8757 = vst.msk [vmem:[%s201 + $0xb4] sm:$0xf] %vm8711, %v7854
      %8758 = vst.msk [vmem:[%s201 + $0xb8] sm:$0xf] %vm8711, %v7855
      %8759 = vst.msk [vmem:[%s201 + $0xbc] sm:$0xf] %vm8711, %v7856
      %8760 = vst.msk [vmem:[%s201 + $0xc0] sm:$0xf] %vm8711, %v7857
      %8761 = vst.msk [vmem:[%s201 + $0xc4] sm:$0xf] %vm8711, %v7858
      %8762 = vst.msk [vmem:[%s201 + $0xc8] sm:$0xf] %vm8711, %v7859
      %8763 = vst.msk [vmem:[%s201 + $0xcc] sm:$0xf] %vm8711, %v7860
      %8764 = vst.msk [vmem:[%s201 + $0xd0] sm:$0xf] %vm8711, %v7861
      %8765 = vst.msk [vmem:[%s201 + $0xd4] sm:$0xf] %vm8711, %v7862
      %8766 = vst.msk [vmem:[%s201 + $0xd8] sm:$0xf] %vm8711, %v7863
      %8767 = vst.msk [vmem:[%s201 + $0xdc] sm:$0xf] %vm8711, %v7864
      %8768 = vst.msk [vmem:[%s201 + $0xe0] sm:$0xf] %vm8711, %v7865
      %8769 = vst.msk [vmem:[%s201 + $0xe4] sm:$0xf] %vm8711, %v7866
      %8770 = vst.msk [vmem:[%s201 + $0xe8] sm:$0xf] %vm8711, %v7867
      %8771 = vst.msk [vmem:[%s201 + $0xec] sm:$0xf] %vm8711, %v7868
      %8772 = vst.msk [vmem:[%s201 + $0xf0] sm:$0xf] %vm8711, %v7869
      %8773 = vst.msk [vmem:[%s201 + $0xf4] sm:$0xf] %vm8711, %v7870
      %8774 = vst.msk [vmem:[%s201 + $0xf8] sm:$0xf] %vm8711, %v7871
      %8775 = vst.msk [vmem:[%s201 + $0xfc] sm:$0xf] %vm8711, %v7872
      %8776 = vst.msk [vmem:[%s201 + $0x100] sm:$0xf] %vm8711, %v7873
      %8777 = vst.msk [vmem:[%s201 + $0x104] sm:$0xf] %vm8711, %v7874
      %8778 = vst.msk [vmem:[%s201 + $0x108] sm:$0xf] %vm8711, %v7875
      %8779 = vst.msk [vmem:[%s201 + $0x10c] sm:$0xf] %vm8711, %v7876
      %8780 = vst.msk [vmem:[%s201 + $0x110] sm:$0xf] %vm8711, %v7877
      %8781 = vst.msk [vmem:[%s201 + $0x114] sm:$0xf] %vm8711, %v7878
      %8782 = vst.msk [vmem:[%s201 + $0x118] sm:$0xf] %vm8711, %v7879
      %8783 = vst.msk [vmem:[%s201 + $0x11c] sm:$0xf] %vm8711, %v7880
      %8784 = vst.msk [vmem:[%s201 + $0x120] sm:$0xf] %vm8711, %v7881
      %8785 = vst.msk [vmem:[%s201 + $0x124] sm:$0xf] %vm8711, %v7882
      %8786 = vst.msk [vmem:[%s201 + $0x128] sm:$0xf] %vm8711, %v7883
      %8787 = vst.msk [vmem:[%s201 + $0x12c] sm:$0xf] %vm8711, %v7884
      %8788 = vst.msk [vmem:[%s201 + $0x130] sm:$0xf] %vm8711, %v7885
      %8789 = vst.msk [vmem:[%s201 + $0x134] sm:$0xf] %vm8711, %v7886
      %8790 = vst.msk [vmem:[%s201 + $0x138] sm:$0xf] %vm8711, %v7887
      %8791 = vst.msk [vmem:[%s201 + $0x13c] sm:$0xf] %vm8711, %v7888
      %8792 = vst.msk [vmem:[%s201 + $0x140] sm:$0xf] %vm8711, %v7889
      %8793 = vst.msk [vmem:[%s201 + $0x144] sm:$0xf] %vm8711, %v7890
      %8794 = vst.msk [vmem:[%s201 + $0x148] sm:$0xf] %vm8711, %v7891
      %8795 = vst.msk [vmem:[%s201 + $0x14c] sm:$0xf] %vm8711, %v7892
      %8796 = vst.msk [vmem:[%s201 + $0x150] sm:$0xf] %vm8711, %v7893
      %8797 = vst.msk [vmem:[%s201 + $0x154] sm:$0xf] %vm8711, %v7894
      %8798 = vst.msk [vmem:[%s201 + $0x158] sm:$0xf] %vm8711, %v7895
      %8799 = vst.msk [vmem:[%s201 + $0x15c] sm:$0xf] %vm8711, %v7896
      %8800 = vst.msk [vmem:[%s201 + $0x160] sm:$0xf] %vm8711, %v7897
      %8801 = vst.msk [vmem:[%s201 + $0x164] sm:$0xf] %vm8711, %v7898
      %8802 = vst.msk [vmem:[%s201 + $0x168] sm:$0xf] %vm8711, %v7899
      %8803 = vst.msk [vmem:[%s201 + $0x16c] sm:$0xf] %vm8711, %v7900
      %8804 = vst.msk [vmem:[%s201 + $0x170] sm:$0xf] %vm8711, %v7901
      %8805 = vst.msk [vmem:[%s201 + $0x174] sm:$0xf] %vm8711, %v7902
      %8806 = vst.msk [vmem:[%s201 + $0x178] sm:$0xf] %vm8711, %v7903
      %8807 = vst.msk [vmem:[%s201 + $0x17c] sm:$0xf] %vm8711, %v7904
      %8808 = vst.msk [vmem:[%s201 + $0x180] sm:$0xf] %vm8711, %v7905
      %8809 = vst.msk [vmem:[%s201 + $0x184] sm:$0xf] %vm8711, %v7906
      %8810 = vst.msk [vmem:[%s201 + $0x188] sm:$0xf] %vm8711, %v7907
      %8811 = vst.msk [vmem:[%s201 + $0x18c] sm:$0xf] %vm8711, %v7908
      %8812 = vst.msk [vmem:[%s201 + $0x190] sm:$0xf] %vm8711, %v7909
      %8813 = vst.msk [vmem:[%s201 + $0x194] sm:$0xf] %vm8711, %v7910
      %8814 = vst.msk [vmem:[%s201 + $0x198] sm:$0xf] %vm8711, %v7911
      %8815 = vst.msk [vmem:[%s201 + $0x19c] sm:$0xf] %vm8711, %v7912
      %8816 = vst.msk [vmem:[%s201 + $0x1a0] sm:$0xf] %vm8711, %v7913
      %8817 = vst.msk [vmem:[%s201 + $0x1a4] sm:$0xf] %vm8711, %v7914
      %8818 = vst.msk [vmem:[%s201 + $0x1a8] sm:$0xf] %vm8711, %v7915
      %8819 = vst.msk [vmem:[%s201 + $0x1ac] sm:$0xf] %vm8711, %v7916
      %8820 = vst.msk [vmem:[%s201 + $0x1b0] sm:$0xf] %vm8711, %v7917
      %8821 = vst.msk [vmem:[%s201 + $0x1b4] sm:$0xf] %vm8711, %v7918
      %8822 = vst.msk [vmem:[%s201 + $0x1b8] sm:$0xf] %vm8711, %v7919
      %8823 = vst.msk [vmem:[%s201 + $0x1bc] sm:$0xf] %vm8711, %v7920
      %8824 = vst.msk [vmem:[%s201 + $0x1c0] sm:$0xf] %vm8711, %v7921
      %8825 = vst.msk [vmem:[%s201 + $0x1c4] sm:$0xf] %vm8711, %v7922
      %8826 = vst.msk [vmem:[%s201 + $0x1c8] sm:$0xf] %vm8711, %v7923
      %8827 = vst.msk [vmem:[%s201 + $0x1cc] sm:$0xf] %vm8711, %v7924
      %8828 = vst.msk [vmem:[%s201 + $0x1d0] sm:$0xf] %vm8711, %v7925
      %8829 = vst.msk [vmem:[%s201 + $0x1d4] sm:$0xf] %vm8711, %v7926
      %8830 = vst.msk [vmem:[%s201 + $0x1d8] sm:$0xf] %vm8711, %v7927
      %8831 = vst.msk [vmem:[%s201 + $0x1dc] sm:$0xf] %vm8711, %v7928
      %8832 = vst.msk [vmem:[%s201 + $0x1e0] sm:$0xf] %vm8711, %v7929
      %8833 = vst.msk [vmem:[%s201 + $0x1e4] sm:$0xf] %vm8711, %v7930
      %8834 = vst.msk [vmem:[%s201 + $0x1e8] sm:$0xf] %vm8711, %v7931
      %8835 = vst.msk [vmem:[%s201 + $0x1ec] sm:$0xf] %vm8711, %v7932
      %8836 = vst.msk [vmem:[%s201 + $0x1f0] sm:$0xf] %vm8711, %v7933
      %8837 = vst.msk [vmem:[%s201 + $0x1f4] sm:$0xf] %vm8711, %v7934
      %8838 = vst.msk [vmem:[%s201 + $0x1f8] sm:$0xf] %vm8711, %v7935
      %8839 = vst.msk [vmem:[%s201 + $0x1fc] sm:$0xf] %vm8711, %v7936
      %8840 = vst.msk [vmem:[%s201 + $0x200] sm:$0xf] %vm8711, %v7937
      %8841 = vst.msk [vmem:[%s201 + $0x204] sm:$0xf] %vm8711, %v7938
      %8842 = vst.msk [vmem:[%s201 + $0x208] sm:$0xf] %vm8711, %v7939
      %8843 = vst.msk [vmem:[%s201 + $0x20c] sm:$0xf] %vm8711, %v7940
      %8844 = vst.msk [vmem:[%s201 + $0x210] sm:$0xf] %vm8711, %v7941
      %8845 = vst.msk [vmem:[%s201 + $0x214] sm:$0xf] %vm8711, %v7942
      %8846 = vst.msk [vmem:[%s201 + $0x218] sm:$0xf] %vm8711, %v7943
      %8847 = vst.msk [vmem:[%s201 + $0x21c] sm:$0xf] %vm8711, %v7944
      %8848 = vst.msk [vmem:[%s201 + $0x220] sm:$0xf] %vm8711, %v7945
      %8849 = vst.msk [vmem:[%s201 + $0x224] sm:$0xf] %vm8711, %v7946
      %8850 = vst.msk [vmem:[%s201 + $0x228] sm:$0xf] %vm8711, %v7947
      %8851 = vst.msk [vmem:[%s201 + $0x22c] sm:$0xf] %vm8711, %v7948
      %8852 = vst.msk [vmem:[%s201 + $0x230] sm:$0xf] %vm8711, %v7949
      %8853 = vst.msk [vmem:[%s201 + $0x234] sm:$0xf] %vm8711, %v7950
      %8854 = vst.msk [vmem:[%s201 + $0x238] sm:$0xf] %vm8711, %v7951
      %8855 = vst.msk [vmem:[%s201 + $0x23c] sm:$0xf] %vm8711, %v7952
      %8856 = vst.msk [vmem:[%s201 + $0x240] sm:$0xf] %vm8711, %v7953
      %8857 = vst.msk [vmem:[%s201 + $0x244] sm:$0xf] %vm8711, %v7954
      %8858 = vst.msk [vmem:[%s201 + $0x248] sm:$0xf] %vm8711, %v7955
      %8859 = vst.msk [vmem:[%s201 + $0x24c] sm:$0xf] %vm8711, %v7956
      %8860 = vst.msk [vmem:[%s201 + $0x250] sm:$0xf] %vm8711, %v7957
      %8861 = vst.msk [vmem:[%s201 + $0x254] sm:$0xf] %vm8711, %v7958
      %8862 = vst.msk [vmem:[%s201 + $0x258] sm:$0xf] %vm8711, %v7959
      %8863 = vst.msk [vmem:[%s201 + $0x25c] sm:$0xf] %vm8711, %v7960
      %8864 = vst.msk [vmem:[%s201 + $0x260] sm:$0xf] %vm8711, %v7961
      %8865 = vst.msk [vmem:[%s201 + $0x264] sm:$0xf] %vm8711, %v7962
      %8866 = vst.msk [vmem:[%s201 + $0x268] sm:$0xf] %vm8711, %v7963
      %8867 = vst.msk [vmem:[%s201 + $0x26c] sm:$0xf] %vm8711, %v7964
      %8868 = vst.msk [vmem:[%s201 + $0x270] sm:$0xf] %vm8711, %v7965
      %8869 = vst.msk [vmem:[%s201 + $0x274] sm:$0xf] %vm8711, %v7966
      %8870 = vst.msk [vmem:[%s201 + $0x278] sm:$0xf] %vm8711, %v7967
      %8871 = vst.msk [vmem:[%s201 + $0x27c] sm:$0xf] %vm8711, %v7968
      %8872 = vst.msk [vmem:[%s201 + $0x280] sm:$0xf] %vm8711, %v7969
      %8873 = vst.msk [vmem:[%s201 + $0x284] sm:$0xf] %vm8711, %v7970
      %8874 = vst.msk [vmem:[%s201 + $0x288] sm:$0xf] %vm8711, %v7971
      %8875 = vst.msk [vmem:[%s201 + $0x28c] sm:$0xf] %vm8711, %v7972
      %8876 = vst.msk [vmem:[%s201 + $0x290] sm:$0xf] %vm8711, %v7973
      %8877 = vst.msk [vmem:[%s201 + $0x294] sm:$0xf] %vm8711, %v7974
      %8878 = vst.msk [vmem:[%s201 + $0x298] sm:$0xf] %vm8711, %v7975
      %8879 = vst.msk [vmem:[%s201 + $0x29c] sm:$0xf] %vm8711, %v7976
      %8880 = vst.msk [vmem:[%s201 + $0x2a0] sm:$0xf] %vm8711, %v7977
      %8881 = vst.msk [vmem:[%s201 + $0x2a4] sm:$0xf] %vm8711, %v7978
      %8882 = vst.msk [vmem:[%s201 + $0x2a8] sm:$0xf] %vm8711, %v7979
      %8883 = vst.msk [vmem:[%s201 + $0x2ac] sm:$0xf] %vm8711, %v7980
      %8884 = vst.msk [vmem:[%s201 + $0x2b0] sm:$0xf] %vm8711, %v7981
      %8885 = vst.msk [vmem:[%s201 + $0x2b4] sm:$0xf] %vm8711, %v7982
      %8886 = vst.msk [vmem:[%s201 + $0x2b8] sm:$0xf] %vm8711, %v7983
      %8887 = vst.msk [vmem:[%s201 + $0x2bc] sm:$0xf] %vm8711, %v7984
      %8888 = vst.msk [vmem:[%s201 + $0x2c0] sm:$0xf] %vm8711, %v7985
      %8889 = vst.msk [vmem:[%s201 + $0x2c4] sm:$0xf] %vm8711, %v7986
      %8890 = vst.msk [vmem:[%s201 + $0x2c8] sm:$0xf] %vm8711, %v7987
      %8891 = vst.msk [vmem:[%s201 + $0x2cc] sm:$0xf] %vm8711, %v7988
      %8892 = vst.msk [vmem:[%s201 + $0x2d0] sm:$0xf] %vm8711, %v7989
      %8893 = vst.msk [vmem:[%s201 + $0x2d4] sm:$0xf] %vm8711, %v7990
      %8894 = vst.msk [vmem:[%s201 + $0x2d8] sm:$0xf] %vm8711, %v7991
      %8895 = vst.msk [vmem:[%s201 + $0x2dc] sm:$0xf] %vm8711, %v7992
      %8896 = vst.msk [vmem:[%s201 + $0x2e0] sm:$0xf] %vm8711, %v7993
      %8897 = vst.msk [vmem:[%s201 + $0x2e4] sm:$0xf] %vm8711, %v7994
      %8898 = vst.msk [vmem:[%s201 + $0x2e8] sm:$0xf] %vm8711, %v7995
      %8899 = vst.msk [vmem:[%s201 + $0x2ec] sm:$0xf] %vm8711, %v7996
      %8900 = vst.msk [vmem:[%s201 + $0x2f0] sm:$0xf] %vm8711, %v7997
      %8901 = vst.msk [vmem:[%s201 + $0x2f4] sm:$0xf] %vm8711, %v7998
      %8902 = vst.msk [vmem:[%s201 + $0x2f8] sm:$0xf] %vm8711, %v7999
      %8903 = vst.msk [vmem:[%s201 + $0x2fc] sm:$0xf] %vm8711, %v8000
      %8904 = vst.msk [vmem:[%s201 + $0x300] sm:$0xf] %vm8711, %v8001
      %8905 = vst.msk [vmem:[%s201 + $0x304] sm:$0xf] %vm8711, %v8002
      %8906 = vst.msk [vmem:[%s201 + $0x308] sm:$0xf] %vm8711, %v8003
      %8907 = vst.msk [vmem:[%s201 + $0x30c] sm:$0xf] %vm8711, %v8004
      %8908 = vst.msk [vmem:[%s201 + $0x310] sm:$0xf] %vm8711, %v8005
      %8909 = vst.msk [vmem:[%s201 + $0x314] sm:$0xf] %vm8711, %v8006
      %8910 = vst.msk [vmem:[%s201 + $0x318] sm:$0xf] %vm8711, %v8007
      %8911 = vst.msk [vmem:[%s201 + $0x31c] sm:$0xf] %vm8711, %v8008
      %8912 = vst.msk [vmem:[%s201 + $0x320] sm:$0xf] %vm8711, %v8009
      %8913 = vst.msk [vmem:[%s201 + $0x324] sm:$0xf] %vm8711, %v8010
      %8914 = vst.msk [vmem:[%s201 + $0x328] sm:$0xf] %vm8711, %v8011
      %8915 = vst.msk [vmem:[%s201 + $0x32c] sm:$0xf] %vm8711, %v8012
      %8916 = vst.msk [vmem:[%s201 + $0x330] sm:$0xf] %vm8711, %v8013
      %8917 = vst.msk [vmem:[%s201 + $0x334] sm:$0xf] %vm8711, %v8014
      %8918 = vst.msk [vmem:[%s201 + $0x338] sm:$0xf] %vm8711, %v8015
      %8919 = vst.msk [vmem:[%s201 + $0x33c] sm:$0xf] %vm8711, %v8016
      %8920 = vst.msk [vmem:[%s201 + $0x340] sm:$0xf] %vm8711, %v8017
      %8921 = vst.msk [vmem:[%s201 + $0x344] sm:$0xf] %vm8711, %v8018
      %8922 = vst.msk [vmem:[%s201 + $0x348] sm:$0xf] %vm8711, %v8019
      %8923 = vst.msk [vmem:[%s201 + $0x34c] sm:$0xf] %vm8711, %v8020
      %8924 = vst.msk [vmem:[%s201 + $0x350] sm:$0xf] %vm8711, %v8021
      %8925 = vst.msk [vmem:[%s201 + $0x354] sm:$0xf] %vm8711, %v8022
      %8926 = vst.msk [vmem:[%s201 + $0x358] sm:$0xf] %vm8711, %v8023
      %8927 = vst.msk [vmem:[%s201 + $0x35c] sm:$0xf] %vm8711, %v8024
      %8928 = vst.msk [vmem:[%s201 + $0x360] sm:$0xf] %vm8711, %v8025
      %8929 = vst.msk [vmem:[%s201 + $0x364] sm:$0xf] %vm8711, %v8026
      %8930 = vst.msk [vmem:[%s201 + $0x368] sm:$0xf] %vm8711, %v8027
      %8931 = vst.msk [vmem:[%s201 + $0x36c] sm:$0xf] %vm8711, %v8028
      %8932 = vst.msk [vmem:[%s201 + $0x370] sm:$0xf] %vm8711, %v8029
      %8933 = vst.msk [vmem:[%s201 + $0x374] sm:$0xf] %vm8711, %v8030
      %8934 = vst.msk [vmem:[%s201 + $0x378] sm:$0xf] %vm8711, %v8031
      %8935 = vst.msk [vmem:[%s201 + $0x37c] sm:$0xf] %vm8711, %v8032
      %8936 = vst.msk [vmem:[%s201 + $0x380] sm:$0xf] %vm8711, %v8033
      %8937 = vst.msk [vmem:[%s201 + $0x384] sm:$0xf] %vm8711, %v8034
      %8938 = vst.msk [vmem:[%s201 + $0x388] sm:$0xf] %vm8711, %v8035
      %8939 = vst.msk [vmem:[%s201 + $0x38c] sm:$0xf] %vm8711, %v8036
      %8940 = vst.msk [vmem:[%s201 + $0x390] sm:$0xf] %vm8711, %v8037
      %8941 = vst.msk [vmem:[%s201 + $0x394] sm:$0xf] %vm8711, %v8038
      %8942 = vst.msk [vmem:[%s201 + $0x398] sm:$0xf] %vm8711, %v8039
      %8943 = vst.msk [vmem:[%s201 + $0x39c] sm:$0xf] %vm8711, %v8040
      %8944 = vst.msk [vmem:[%s201 + $0x3a0] sm:$0xf] %vm8711, %v8041
      %8945 = vst.msk [vmem:[%s201 + $0x3a4] sm:$0xf] %vm8711, %v8042
      %8946 = vst.msk [vmem:[%s201 + $0x3a8] sm:$0xf] %vm8711, %v8043
      %8947 = vst.msk [vmem:[%s201 + $0x3ac] sm:$0xf] %vm8711, %v8044
      %8948 = vst.msk [vmem:[%s201 + $0x3b0] sm:$0xf] %vm8711, %v8045
      %8949 = vst.msk [vmem:[%s201 + $0x3b4] sm:$0xf] %vm8711, %v8046
      %8950 = vst.msk [vmem:[%s201 + $0x3b8] sm:$0xf] %vm8711, %v8047
      %8951 = vst.msk [vmem:[%s201 + $0x3bc] sm:$0xf] %vm8711, %v8048
      %8952 = vst.msk [vmem:[%s201 + $0x3c0] sm:$0xf] %vm8711, %v8049
      %8953 = vst.msk [vmem:[%s201 + $0x3c4] sm:$0xf] %vm8711, %v8050
      %8954 = vst.msk [vmem:[%s201 + $0x3c8] sm:$0xf] %vm8711, %v8051
      %8955 = vst.msk [vmem:[%s201 + $0x3cc] sm:$0xf] %vm8711, %v8052
      %8956 = vst.msk [vmem:[%s201 + $0x3d0] sm:$0xf] %vm8711, %v8053
      %8957 = vst.msk [vmem:[%s201 + $0x3d4] sm:$0xf] %vm8711, %v8054
      %8958 = vst.msk [vmem:[%s201 + $0x3d8] sm:$0xf] %vm8711, %v8055
      %8959 = vst.msk [vmem:[%s201 + $0x3dc] sm:$0xf] %vm8711, %v8056
      %8960 = vst.msk [vmem:[%s201 + $0x3e0] sm:$0xf] %vm8711, %v8057
      %8961 = vst.msk [vmem:[%s201 + $0x3e4] sm:$0xf] %vm8711, %v8058
      %8962 = vst.msk [vmem:[%s201 + $0x3e8] sm:$0xf] %vm8711, %v8059
      %8963 = vst.msk [vmem:[%s201 + $0x3ec] sm:$0xf] %vm8711, %v8060
      %8964 = vst.msk [vmem:[%s201 + $0x3f0] sm:$0xf] %vm8711, %v8061
      %8965 = vst.msk [vmem:[%s201 + $0x3f4] sm:$0xf] %vm8711, %v8062
      %8966 = vst.msk [vmem:[%s201 + $0x3f8] sm:$0xf] %vm8711, %v8063
      %8967 = vst.msk [vmem:[%s201 + $0x3fc] sm:$0xf] %vm8711, %v8064
      %8968 = vst.msk [vmem:[%s201 + $0x400] sm:$0xf] %vm8711, %v8065
      %8969 = vst.msk [vmem:[%s201 + $0x404] sm:$0xf] %vm8711, %v8066
      %8970 = vst.msk [vmem:[%s201 + $0x408] sm:$0xf] %vm8711, %v8067
      %8971 = vst.msk [vmem:[%s201 + $0x40c] sm:$0xf] %vm8711, %v8068
      %8972 = vst.msk [vmem:[%s201 + $0x410] sm:$0xf] %vm8711, %v8069
      %8973 = vst.msk [vmem:[%s201 + $0x414] sm:$0xf] %vm8711, %v8070
      %8974 = vst.msk [vmem:[%s201 + $0x418] sm:$0xf] %vm8711, %v8071
      %8975 = vst.msk [vmem:[%s201 + $0x41c] sm:$0xf] %vm8711, %v8072
      %8976 = vst.msk [vmem:[%s201 + $0x420] sm:$0xf] %vm8711, %v8073
      %8977 = vst.msk [vmem:[%s201 + $0x424] sm:$0xf] %vm8711, %v8074
      %8978 = vst.msk [vmem:[%s201 + $0x428] sm:$0xf] %vm8711, %v8075
      %8979 = vst.msk [vmem:[%s201 + $0x42c] sm:$0xf] %vm8711, %v8076
      %8980 = vst.msk [vmem:[%s201 + $0x430] sm:$0xf] %vm8711, %v8077
      %8981 = vst.msk [vmem:[%s201 + $0x434] sm:$0xf] %vm8711, %v8078
      %8982 = vst.msk [vmem:[%s201 + $0x438] sm:$0xf] %vm8711, %v8079
      %8983 = vst.msk [vmem:[%s201 + $0x43c] sm:$0xf] %vm8711, %v8080
      %8984 = vst.msk [vmem:[%s201 + $0x440] sm:$0xf] %vm8711, %v8081
      %8985 = vst.msk [vmem:[%s201 + $0x444] sm:$0xf] %vm8711, %v8082
      %8986 = vst.msk [vmem:[%s201 + $0x448] sm:$0xf] %vm8711, %v8083
      %8987 = vst.msk [vmem:[%s201 + $0x44c] sm:$0xf] %vm8711, %v8084
      %8988 = vst.msk [vmem:[%s201 + $0x450] sm:$0xf] %vm8711, %v8085
      %8989 = vst.msk [vmem:[%s201 + $0x454] sm:$0xf] %vm8711, %v8086
      %8990 = vst.msk [vmem:[%s201 + $0x458] sm:$0xf] %vm8711, %v8087
      %8991 = vst.msk [vmem:[%s201 + $0x45c] sm:$0xf] %vm8711, %v8088
      %8992 = vst.msk [vmem:[%s201 + $0x460] sm:$0xf] %vm8711, %v8089
      %8993 = vst.msk [vmem:[%s201 + $0x464] sm:$0xf] %vm8711, %v8090
      %8994 = vst.msk [vmem:[%s201 + $0x468] sm:$0xf] %vm8711, %v8091
      %8995 = vst.msk [vmem:[%s201 + $0x46c] sm:$0xf] %vm8711, %v8092
      %8996 = vst.msk [vmem:[%s201 + $0x470] sm:$0xf] %vm8711, %v8093
      %8997 = vst.msk [vmem:[%s201 + $0x474] sm:$0xf] %vm8711, %v8094
      %8998 = vst.msk [vmem:[%s201 + $0x478] sm:$0xf] %vm8711, %v8095
      %8999 = vst.msk [vmem:[%s201 + $0x47c] sm:$0xf] %vm8711, %v8096
      %9000 = vst.msk [vmem:[%s201 + $0x480] sm:$0xf] %vm8711, %v8097
      %9001 = vst.msk [vmem:[%s201 + $0x484] sm:$0xf] %vm8711, %v8098
      %9002 = vst.msk [vmem:[%s201 + $0x488] sm:$0xf] %vm8711, %v8099
      %9003 = vst.msk [vmem:[%s201 + $0x48c] sm:$0xf] %vm8711, %v8100
      %9004 = vst.msk [vmem:[%s201 + $0x490] sm:$0xf] %vm8711, %v8101
      %9005 = vst.msk [vmem:[%s201 + $0x494] sm:$0xf] %vm8711, %v8102
      %9006 = vst.msk [vmem:[%s201 + $0x498] sm:$0xf] %vm8711, %v8103
      %9007 = vst.msk [vmem:[%s201 + $0x49c] sm:$0xf] %vm8711, %v8104
      %9008 = vst.msk [vmem:[%s201 + $0x4a0] sm:$0xf] %vm8711, %v8105
      %9009 = vst.msk [vmem:[%s201 + $0x4a4] sm:$0xf] %vm8711, %v8106
      %9010 = vst.msk [vmem:[%s201 + $0x4a8] sm:$0xf] %vm8711, %v8107
      %9011 = vst.msk [vmem:[%s201 + $0x4ac] sm:$0xf] %vm8711, %v8108
      %9012 = vst.msk [vmem:[%s201 + $0x4b0] sm:$0xf] %vm8711, %v8109
      %9013 = vst.msk [vmem:[%s201 + $0x4b4] sm:$0xf] %vm8711, %v8110
      %9014 = vst.msk [vmem:[%s201 + $0x4b8] sm:$0xf] %vm8711, %v8111
      %9015 = vst.msk [vmem:[%s201 + $0x4bc] sm:$0xf] %vm8711, %v8112
      %9016 = vst.msk [vmem:[%s201 + $0x4c0] sm:$0xf] %vm8711, %v8113
      %9017 = vst.msk [vmem:[%s201 + $0x4c4] sm:$0xf] %vm8711, %v8114
      %9018 = vst.msk [vmem:[%s201 + $0x4c8] sm:$0xf] %vm8711, %v8115
      %9019 = vst.msk [vmem:[%s201 + $0x4cc] sm:$0xf] %vm8711, %v8116
      %9020 = vst.msk [vmem:[%s201 + $0x4d0] sm:$0xf] %vm8711, %v8117
      %9021 = vst.msk [vmem:[%s201 + $0x4d4] sm:$0xf] %vm8711, %v8118
      %9022 = vst.msk [vmem:[%s201 + $0x4d8] sm:$0xf] %vm8711, %v8119
      %9023 = vst.msk [vmem:[%s201 + $0x4dc] sm:$0xf] %vm8711, %v8120
      %9024 = vst.msk [vmem:[%s201 + $0x4e0] sm:$0xf] %vm8711, %v8121
      %9025 = vst.msk [vmem:[%s201 + $0x4e4] sm:$0xf] %vm8711, %v8122
      %9026 = vst.msk [vmem:[%s201 + $0x4e8] sm:$0xf] %vm8711, %v8123
      %9027 = vst.msk [vmem:[%s201 + $0x4ec] sm:$0xf] %vm8711, %v8124
      %9028 = vst.msk [vmem:[%s201 + $0x4f0] sm:$0xf] %vm8711, %v8125
      %9029 = vst.msk [vmem:[%s201 + $0x4f4] sm:$0xf] %vm8711, %v8126
      %9030 = vst.msk [vmem:[%s201 + $0x4f8] sm:$0xf] %vm8711, %v8127
      %9031 = vst.msk [vmem:[%s201 + $0x4fc] sm:$0xf] %vm8711, %v8128
      %9032 = vst.msk [vmem:[%s201 + $0x500] sm:$0xf] %vm8711, %v8129
      %9033 = vst.msk [vmem:[%s201 + $0x504] sm:$0xf] %vm8711, %v8130
      %9034 = vst.msk [vmem:[%s201 + $0x508] sm:$0xf] %vm8711, %v8131
      %9035 = vst.msk [vmem:[%s201 + $0x50c] sm:$0xf] %vm8711, %v8132
      %9036 = vst.msk [vmem:[%s201 + $0x510] sm:$0xf] %vm8711, %v8133
      %9037 = vst.msk [vmem:[%s201 + $0x514] sm:$0xf] %vm8711, %v8134
      %9038 = vst.msk [vmem:[%s201 + $0x518] sm:$0xf] %vm8711, %v8135
      %9039 = vst.msk [vmem:[%s201 + $0x51c] sm:$0xf] %vm8711, %v8136
      %9040 = vst.msk [vmem:[%s201 + $0x520] sm:$0xf] %vm8711, %v8137
      %9041 = vst.msk [vmem:[%s201 + $0x524] sm:$0xf] %vm8711, %v8138
      %9042 = vst.msk [vmem:[%s201 + $0x528] sm:$0xf] %vm8711, %v8139
      %9043 = vst.msk [vmem:[%s201 + $0x52c] sm:$0xf] %vm8711, %v8140
      %9044 = vst.msk [vmem:[%s201 + $0x530] sm:$0xf] %vm8711, %v8141
      %9045 = vst.msk [vmem:[%s201 + $0x534] sm:$0xf] %vm8711, %v8142
      %9046 = vst.msk [vmem:[%s201 + $0x538] sm:$0xf] %vm8711, %v8143
      %9047 = vst.msk [vmem:[%s201 + $0x53c] sm:$0xf] %vm8711, %v8144
      %9048 = vst.msk [vmem:[%s201 + $0x540] sm:$0xf] %vm8711, %v8145
      %9049 = vst.msk [vmem:[%s201 + $0x544] sm:$0xf] %vm8711, %v8146
      %9050 = vst.msk [vmem:[%s201 + $0x548] sm:$0xf] %vm8711, %v8147
      %9051 = vst.msk [vmem:[%s201 + $0x54c] sm:$0xf] %vm8711, %v8148
      %9052 = vst.msk [vmem:[%s201 + $0x550] sm:$0xf] %vm8711, %v8149
      %9053 = vst.msk [vmem:[%s201 + $0x554] sm:$0xf] %vm8711, %v8150
      %9054 = vst.msk [vmem:[%s201 + $0x558] sm:$0xf] %vm8711, %v8151
      %9055 = vst.msk [vmem:[%s201 + $0x55c] sm:$0xf] %vm8711, %v8152
      %9056 = vst.msk [vmem:[%s201 + $0x560] sm:$0xf] %vm8711, %v8153
      %9057 = vst.msk [vmem:[%s201 + $0x564] sm:$0xf] %vm8711, %v8154
      %9058 = vst.msk [vmem:[%s201 + $0x568] sm:$0xf] %vm8711, %v8155
      %9059 = vst.msk [vmem:[%s201 + $0x56c] sm:$0xf] %vm8711, %v8156
      %9060 = vst.msk [vmem:[%s201 + $0x570] sm:$0xf] %vm8711, %v8157
      %9061 = vst.msk [vmem:[%s201 + $0x574] sm:$0xf] %vm8711, %v8158
      %9062 = vst.msk [vmem:[%s201 + $0x578] sm:$0xf] %vm8711, %v8159
      %9063 = vst.msk [vmem:[%s201 + $0x57c] sm:$0xf] %vm8711, %v8160
      %9064 = vst.msk [vmem:[%s201 + $0x580] sm:$0xf] %vm8711, %v8161
      %9065 = vst.msk [vmem:[%s201 + $0x584] sm:$0xf] %vm8711, %v8162
      %9066 = vst.msk [vmem:[%s201 + $0x588] sm:$0xf] %vm8711, %v8163
      %9067 = vst.msk [vmem:[%s201 + $0x58c] sm:$0xf] %vm8711, %v8164
      %9068 = vst.msk [vmem:[%s201 + $0x590] sm:$0xf] %vm8711, %v8165
      %9069 = vst.msk [vmem:[%s201 + $0x594] sm:$0xf] %vm8711, %v8166
      %9070 = vst.msk [vmem:[%s201 + $0x598] sm:$0xf] %vm8711, %v8167
      %9071 = vst.msk [vmem:[%s201 + $0x59c] sm:$0xf] %vm8711, %v8168
      %9072 = vst.msk [vmem:[%s201 + $0x5a0] sm:$0xf] %vm8711, %v8169
      %9073 = vst.msk [vmem:[%s201 + $0x5a4] sm:$0xf] %vm8711, %v8170
      %9074 = vst.msk [vmem:[%s201 + $0x5a8] sm:$0xf] %vm8711, %v8171
      %9075 = vst.msk [vmem:[%s201 + $0x5ac] sm:$0xf] %vm8711, %v8172
      %9076 = vst.msk [vmem:[%s201 + $0x5b0] sm:$0xf] %vm8711, %v8173
      %9077 = vst.msk [vmem:[%s201 + $0x5b4] sm:$0xf] %vm8711, %v8174
      %9078 = vst.msk [vmem:[%s201 + $0x5b8] sm:$0xf] %vm8711, %v8175
      %9079 = vst.msk [vmem:[%s201 + $0x5bc] sm:$0xf] %vm8711, %v8176
      %9080 = vst.msk [vmem:[%s201 + $0x5c0] sm:$0xf] %vm8711, %v8177
      %9081 = vst.msk [vmem:[%s201 + $0x5c4] sm:$0xf] %vm8711, %v8178
      %9082 = vst.msk [vmem:[%s201 + $0x5c8] sm:$0xf] %vm8711, %v8179
      %9083 = vst.msk [vmem:[%s201 + $0x5cc] sm:$0xf] %vm8711, %v8180
      %9084 = vst.msk [vmem:[%s201 + $0x5d0] sm:$0xf] %vm8711, %v8181
      %9085 = vst.msk [vmem:[%s201 + $0x5d4] sm:$0xf] %vm8711, %v8182
      %9086 = vst.msk [vmem:[%s201 + $0x5d8] sm:$0xf] %vm8711, %v8183
      %9087 = vst.msk [vmem:[%s201 + $0x5dc] sm:$0xf] %vm8711, %v8184
      %9088 = vst.msk [vmem:[%s201 + $0x5e0] sm:$0xf] %vm8711, %v8185
      %9089 = vst.msk [vmem:[%s201 + $0x5e4] sm:$0xf] %vm8711, %v8186
      %9090 = vst.msk [vmem:[%s201 + $0x5e8] sm:$0xf] %vm8711, %v8187
      %9091 = vst.msk [vmem:[%s201 + $0x5ec] sm:$0xf] %vm8711, %v8188
      %9092 = vst.msk [vmem:[%s201 + $0x5f0] sm:$0xf] %vm8711, %v8189
      %9093 = vst.msk [vmem:[%s201 + $0x5f4] sm:$0xf] %vm8711, %v8190
      %9094 = vst.msk [vmem:[%s201 + $0x5f8] sm:$0xf] %vm8711, %v8191
      %9095 = vst.msk [vmem:[%s201 + $0x5fc] sm:$0xf] %vm8711, %v8192
      %9096 = vst.msk [vmem:[%s201 + $0x600] sm:$0xf] %vm8711, %v8193
      %9097 = vst.msk [vmem:[%s201 + $0x604] sm:$0xf] %vm8711, %v8194
      %9098 = vst.msk [vmem:[%s201 + $0x608] sm:$0xf] %vm8711, %v8195
      %9099 = vst.msk [vmem:[%s201 + $0x60c] sm:$0xf] %vm8711, %v8196
      %9100 = vst.msk [vmem:[%s201 + $0x610] sm:$0xf] %vm8711, %v8197
      %9101 = vst.msk [vmem:[%s201 + $0x614] sm:$0xf] %vm8711, %v8198
      %9102 = vst.msk [vmem:[%s201 + $0x618] sm:$0xf] %vm8711, %v8199
      %9103 = vst.msk [vmem:[%s201 + $0x61c] sm:$0xf] %vm8711, %v8200
      %9104 = vst.msk [vmem:[%s201 + $0x620] sm:$0xf] %vm8711, %v8201
      %9105 = vst.msk [vmem:[%s201 + $0x624] sm:$0xf] %vm8711, %v8202
      %9106 = vst.msk [vmem:[%s201 + $0x628] sm:$0xf] %vm8711, %v8203
      %9107 = vst.msk [vmem:[%s201 + $0x62c] sm:$0xf] %vm8711, %v8204
      %9108 = vst.msk [vmem:[%s201 + $0x630] sm:$0xf] %vm8711, %v8205
      %9109 = vst.msk [vmem:[%s201 + $0x634] sm:$0xf] %vm8711, %v8206
      %9110 = vst.msk [vmem:[%s201 + $0x638] sm:$0xf] %vm8711, %v8207
      %9111 = vst.msk [vmem:[%s201 + $0x63c] sm:$0xf] %vm8711, %v8208
      %9112 = vst.msk [vmem:[%s201 + $0x640] sm:$0xf] %vm8711, %v8209
      %9113 = vst.msk [vmem:[%s201 + $0x644] sm:$0xf] %vm8711, %v8210
      %9114 = vst.msk [vmem:[%s201 + $0x648] sm:$0xf] %vm8711, %v8211
      %9115 = vst.msk [vmem:[%s201 + $0x64c] sm:$0xf] %vm8711, %v8212
      %9116 = vst.msk [vmem:[%s201 + $0x650] sm:$0xf] %vm8711, %v8213
      %9117 = vst.msk [vmem:[%s201 + $0x654] sm:$0xf] %vm8711, %v8214
      %9118 = vst.msk [vmem:[%s201 + $0x658] sm:$0xf] %vm8711, %v8215
      %9119 = vst.msk [vmem:[%s201 + $0x65c] sm:$0xf] %vm8711, %v8216
      %9120 = vst.msk [vmem:[%s201 + $0x660] sm:$0xf] %vm8711, %v8217
      %9121 = vst.msk [vmem:[%s201 + $0x664] sm:$0xf] %vm8711, %v8218
      %9122 = vst.msk [vmem:[%s201 + $0x668] sm:$0xf] %vm8711, %v8219
      %9123 = vst.msk [vmem:[%s201 + $0x66c] sm:$0xf] %vm8711, %v8220
      %9124 = vst.msk [vmem:[%s201 + $0x670] sm:$0xf] %vm8711, %v8221
      %9125 = vst.msk [vmem:[%s201 + $0x674] sm:$0xf] %vm8711, %v8222
      %9126 = vst.msk [vmem:[%s201 + $0x678] sm:$0xf] %vm8711, %v8223
      %9127 = vst.msk [vmem:[%s201 + $0x67c] sm:$0xf] %vm8711, %v8224
      %9128 = vst.msk [vmem:[%s201 + $0x680] sm:$0xf] %vm8711, %v8225
      %9129 = vst.msk [vmem:[%s201 + $0x684] sm:$0xf] %vm8711, %v8226
      %9130 = vst.msk [vmem:[%s201 + $0x688] sm:$0xf] %vm8711, %v8227
      %9131 = vst.msk [vmem:[%s201 + $0x68c] sm:$0xf] %vm8711, %v8228
      %9132 = vst.msk [vmem:[%s201 + $0x690] sm:$0xf] %vm8711, %v8229
      %9133 = vst.msk [vmem:[%s201 + $0x694] sm:$0xf] %vm8711, %v8230
      %9134 = vst.msk [vmem:[%s201 + $0x698] sm:$0xf] %vm8711, %v8231
      %9135 = vst.msk [vmem:[%s201 + $0x69c] sm:$0xf] %vm8711, %v8232
      %9136 = vst.msk [vmem:[%s201 + $0x6a0] sm:$0xf] %vm8711, %v8233
      %9137 = vst.msk [vmem:[%s201 + $0x6a4] sm:$0xf] %vm8711, %v8234
      %9138 = vst.msk [vmem:[%s201 + $0x6a8] sm:$0xf] %vm8711, %v8235
      %9139 = vst.msk [vmem:[%s201 + $0x6ac] sm:$0xf] %vm8711, %v8236
      %9140 = vst.msk [vmem:[%s201 + $0x6b0] sm:$0xf] %vm8711, %v8237
      %9141 = vst.msk [vmem:[%s201 + $0x6b4] sm:$0xf] %vm8711, %v8238
      %9142 = vst.msk [vmem:[%s201 + $0x6b8] sm:$0xf] %vm8711, %v8239
      %9143 = vst.msk [vmem:[%s201 + $0x6bc] sm:$0xf] %vm8711, %v8240
      %9144 = vst.msk [vmem:[%s201 + $0x6c0] sm:$0xf] %vm8711, %v8241
      %9145 = vst.msk [vmem:[%s201 + $0x6c4] sm:$0xf] %vm8711, %v8242
      %9146 = vst.msk [vmem:[%s201 + $0x6c8] sm:$0xf] %vm8711, %v8243
      %9147 = vst.msk [vmem:[%s201 + $0x6cc] sm:$0xf] %vm8711, %v8244
      %9148 = vst.msk [vmem:[%s201 + $0x6d0] sm:$0xf] %vm8711, %v8245
      %9149 = vst.msk [vmem:[%s201 + $0x6d4] sm:$0xf] %vm8711, %v8246
      %9150 = vst.msk [vmem:[%s201 + $0x6d8] sm:$0xf] %vm8711, %v8247
      %9151 = vst.msk [vmem:[%s201 + $0x6dc] sm:$0xf] %vm8711, %v8248
      %9152 = vst.msk [vmem:[%s201 + $0x6e0] sm:$0xf] %vm8711, %v8249
      %9153 = vst.msk [vmem:[%s201 + $0x6e4] sm:$0xf] %vm8711, %v8250
      %9154 = vst.msk [vmem:[%s201 + $0x6e8] sm:$0xf] %vm8711, %v8251
      %9155 = vst.msk [vmem:[%s201 + $0x6ec] sm:$0xf] %vm8711, %v8252
      %9156 = vst.msk [vmem:[%s201 + $0x6f0] sm:$0xf] %vm8711, %v8253
      %9157 = vst.msk [vmem:[%s201 + $0x6f4] sm:$0xf] %vm8711, %v8254
      %9158 = vst.msk [vmem:[%s201 + $0x6f8] sm:$0xf] %vm8711, %v8255
      %9159 = vst.msk [vmem:[%s201 + $0x6fc] sm:$0xf] %vm8711, %v8256
      %9160 = vst.msk [vmem:[%s201 + $0x700] sm:$0xf] %vm8711, %v8257
      %9161 = vst.msk [vmem:[%s201 + $0x704] sm:$0xf] %vm8711, %v8258
      %vm9162 = vcmask 59392
      %9163 = vst.msk [vmem:[%s201 + $0x708] sm:$0x7] %vm9162, %v8259
      %p9164 = scmp.lt.s32.totalorder %s19, 1
      %s9165 = scalar_select %p9164, %s19, 1
      %p9166 = scmp.lt.s32.totalorder %s18, 0
      %s9167 = scalar_select %p9166, %s18, 0
      %s9168 = smul.addr %s9165, 451
      %s9169 = sadd.s32 %s9167, %s9168
      %s9170 = smul.addr %s9169, 4
      %s9171 = scalar_lea.vmem %s3, %s9170
      // Predicated region
      $region33: #{vae_forward.1} parent=31 // pred_check
        %p9172 = pneg %p116
      $region34: #{vae_forward.1} parent=31 // pred_check_branch
        %9174 = sbr.rel (%p9172) target = $region36
      $region35: #{vae_forward.1} parent=31 // pred_region
        _
      $region36: #{vae_forward.1} parent=31 // pred_fallthru
        _
    $region32: #{vae_forward.1} parent=5 // pred_fallthru
      _
    %p9175 = scmp.le.s32.totalorder 2, %s9
    // Predicated region
    $region37: #{vae_forward.1} parent=5 // pred_check
      %p9176 = pneg %p9175
    $region38: #{vae_forward.1} parent=5 // pred_check_branch
      %9178 = sbr.rel (%p9176) target = $region40
    $region39: #{vae_forward.1} parent=5 // pred_region
      %s9179 = ssub.s32 %s9, 2
      // Predicated region
      $region41: #{vae_forward.1} parent=39 // pred_check
        %p9180 = pneg %p122
      $region42: #{vae_forward.1} parent=39 // pred_check_branch
        %9182 = sbr.rel (%p9180) target = $region44
      $region43: #{vae_forward.1} parent=39 // pred_region
        %p9183 = scmp.lt.s32.totalorder %s21, 1
        %s9184 = scalar_select %p9183, %s21, 1
        %p9185 = scmp.lt.s32.totalorder %s20, 0
        %s9186 = scalar_select %p9185, %s20, 0
        %s9187 = smul.addr %s9184, 451
        %s9188 = sadd.s32 %s9186, %s9187
        %s9189 = smul.addr %s9188, 4
        %s9190 = scalar_lea.vmem %s3, %s9189
      $region44: #{vae_forward.1} parent=39 // pred_fallthru
        _
    $region40: #{vae_forward.1} parent=5 // pred_fallthru
      _
  $region6: #{vae_forward.1} parent=0 // loop_footer
    %s13 = sadd.s32 1, %s9
  $region7: #{vae_forward.1} parent=0 // loop_footer_branch
    %8 = sbr.rel target = $region3
  $region8: #{vae_forward.1} parent=0 // loop_exit
    _

</llo_original>
